<compile_context>
chip_gen: v6e
topology: v6e:2x2x1
jax: 0.10.0
libtpu: 0.0.40
codegen_flags: <defaults>
</compile_context>

<pallas_src>
import functools
import math

import jax
import jax.numpy as jnp
from jax.experimental import pallas as pl
from jax.experimental.pallas import tpu as pltpu

BN_EPS = 1e-5
MXU_DTYPE = jnp.bfloat16            # bf16 MXU operands, f32 accumulation.
_VMEM = pl.BlockSpec(memory_space=pltpu.MemorySpace.VMEM)
_CPARAMS = pltpu.CompilerParams(vmem_limit_bytes=32 * 1024 * 1024)


# ----------------------------- Pallas kernels --------------------------------

def _bn_scale_shift(y, gamma, beta):
    # Training-mode BatchNorm2d over the M = N*OH*OW rows, per output channel.
    # Hoist per-channel scale/shift once, then a single mul+add per element.
    mu = jnp.mean(y, axis=0, keepdims=True)
    var = jnp.mean(jnp.square(y - mu), axis=0, keepdims=True)
    scale = gamma * jax.lax.rsqrt(var + BN_EPS)
    shift = beta - mu * scale
    return y * scale + shift


def _stem_kernel(n_relu, pooled_taps, p_ref, w_ref, g_ref, b_ref, o_ref):
    # Fused (optional AvgPool prologue) -> matmul of im2col patches against the
    # Cout-concatenated weights of all convs sharing this input -> BN -> ReLU on
    # the first `n_relu` columns only (left branch gets ReLU, BN-only shortcut
    # does not).
    if pooled_taps:
        # p_ref: (taps, M, K); count_include_pad AvgPool = plain mean over taps.
        x = jnp.mean(p_ref[...].astype(jnp.float32), axis=0).astype(MXU_DTYPE)
    else:
        x = p_ref[...]                                     # (M, K) bf16
    y = jnp.dot(x, w_ref[...], preferred_element_type=jnp.float32)
    y = _bn_scale_shift(y, g_ref[...], b_ref[...])
    c = y.shape[1]
    if n_relu >= c:
        y = jnp.maximum(y, 0.0)
    elif n_relu > 0:
        col = jax.lax.broadcasted_iota(jnp.int32, y.shape, 1)
        y = jnp.where(col < n_relu, jnp.maximum(y, 0.0), y)
    o_ref[...] = y


def _tail_kernel(p_ref, w_ref, g_ref, b_ref, s_ref, o_ref):
    # Second conv of a residual block with the residual add + final ReLU fused
    # into the epilogue: out = relu(BN(patches @ w) + shortcut).
    y = jnp.dot(p_ref[...], w_ref[...], preferred_element_type=jnp.float32)
    y = _bn_scale_shift(y, g_ref[...], b_ref[...])
    o_ref[...] = jnp.maximum(y + s_ref[...], 0.0)


def _final_merge_kernel(co1, pp1_ref,
                        p2_ref, w2_ref, g2_ref, b2_ref, s2_ref,
                        p3_ref, w3_ref, g3_ref, b3_ref, s3_ref,
                        p4_ref, w4_ref, g4_ref, b4_ref, s4_ref,
                        o_ref):
    # Writes the channel-concatenated result of all four branches once.
    # Branch 1: AvgPool of the left half + MaxPool of the shortcut half -> add -> relu.
    pp1 = pp1_ref[...]                                     # (taps, M, 2*co1) f32
    out1 = jnp.maximum(jnp.mean(pp1[..., :co1], axis=0) +
                       jnp.max(pp1[..., co1:], axis=0), 0.0)

    def tail(p, w, g, b, s):
        y = jnp.dot(p[...], w[...], preferred_element_type=jnp.float32)
        y = _bn_scale_shift(y, g[...], b[...])
        return jnp.maximum(y + s[...], 0.0)

    out2 = tail(p2_ref, w2_ref, g2_ref, b2_ref, s2_ref)    # 5x5 block tail
    out3 = tail(p3_ref, w3_ref, g3_ref, b3_ref, s3_ref)    # 3x3_2 block tail
    out4 = tail(p4_ref, w4_ref, g4_ref, b4_ref, s4_ref)    # v2_3 block tail
    o_ref[...] = jnp.concatenate([out1, out2, out3, out4], axis=-1)


# ------------------------------ JAX glue --------------------------------------

def _im2col(x, kh, kw, stride, padding):
    # x: (N, H, W, C) -> patches (N*OH*OW, KH*KW*C), ordering [kh, kw, c].
    n, h, w, c = x.shape
    if padding:
        x = jnp.pad(x, ((0, 0), (padding, padding), (padding, padding), (0, 0)))
    hp, wp = h + 2 * padding, w + 2 * padding
    oh = (hp - kh) // stride + 1
    ow = (wp - kw) // stride + 1
    cols = []
    for i in range(kh):
        for j in range(kw):
            cols.append(x[:, i:i + (oh - 1) * stride + 1:stride,
                          j:j + (ow - 1) * stride + 1:stride, :])
    patches = jnp.stack(cols, axis=3)                      # (n, oh, ow, kh*kw, c)
    return patches.reshape(n * oh * ow, kh * kw * c), (n, oh, ow)


def _pool_patches(x, k, stride, padding):
    # (k*k, N*OH*OW, C) window patches for pooling reductions inside kernels.
    n, h, w, c = x.shape
    if padding:
        x = jnp.pad(x, ((0, 0), (padding, padding), (padding, padding), (0, 0)))
    hp, wp = h + 2 * padding, w + 2 * padding
    oh = (hp - k) // stride + 1
    ow = (wp - k) // stride + 1
    cols = []
    for i in range(k):
        for j in range(k):
            cols.append(x[:, i:i + (oh - 1) * stride + 1:stride,
                          j:j + (ow - 1) * stride + 1:stride, :].reshape(n * oh * ow, c))
    return jnp.stack(cols, axis=0), (n, oh, ow)


def _w_to_mat(w):
    # PyTorch (Co, Ci, KH, KW) -> (KH*KW*Ci, Co), matching the im2col ordering.
    co, ci, kh, kw = w.shape
    return jnp.transpose(w, (2, 3, 1, 0)).reshape(kh * kw * ci, co)


def _embed_1x1_as_kxk(w1x1, k):
    # Place the 1x1 shortcut weight at the centre tap of a kxk kernel so it can
    # share the kxk im2col patches of the left branch (valid for odd k with
    # pad=k//2: both convs then read exactly input[oi*s, oj*s] at that tap and
    # produce identical output grids).
    co, ci, _, _ = w1x1.shape
    w = jnp.zeros((k, k, ci, co), w1x1.dtype)
    w = w.at[k // 2, k // 2].set(w1x1[:, :, 0, 0].T)
    return w.reshape(k * k * ci, co)


def _cat_params(a, b):
    return (jnp.concatenate([a["g"], b["g"]]), jnp.concatenate([a["b"], b["b"]]))


def stem_conv(patches, wmat, gamma, beta, *, n_relu, pooled_taps=0):
    m = patches.shape[-2]
    ctot = wmat.shape[-1]
    return pl.pallas_call(
        functools.partial(_stem_kernel, n_relu, pooled_taps),
        out_shape=jax.ShapeDtypeStruct((m, ctot), jnp.float32),
        in_specs=[_VMEM] * 4,
        out_specs=_VMEM,
        compiler_params=_CPARAMS,
    )(patches.astype(MXU_DTYPE), wmat.astype(MXU_DTYPE),
      gamma.reshape(1, ctot), beta.reshape(1, ctot))


def tail_conv(patches, wmat, gamma, beta, shortcut):
    m, co = shortcut.shape
    return pl.pallas_call(
        _tail_kernel,
        out_shape=jax.ShapeDtypeStruct((m, co), jnp.float32),
        in_specs=[_VMEM] * 5,
        out_specs=_VMEM,
        compiler_params=_CPARAMS,
    )(patches.astype(MXU_DTYPE), wmat.astype(MXU_DTYPE),
      gamma.reshape(1, co), beta.reshape(1, co), shortcut)


def final_merge(pp1, t2, t3, t4, co1):
    # One kernel computes the last conv (+BN+add+ReLU) of branches 2/3/4 and the
    # avg/max-pool+add+ReLU of branch 1, writing the concatenated output once.
    m = t2[4].shape[0]
    co_total = co1 + t2[4].shape[1] + t3[4].shape[1] + t4[4].shape[1]

    def prep(t):
        p, w, g, b, s = t
        co = s.shape[1]
        return (p.astype(MXU_DTYPE), w.astype(MXU_DTYPE),
                g.reshape(1, co), b.reshape(1, co), s)

    args = (pp1,) + prep(t2) + prep(t3) + prep(t4)
    return pl.pallas_call(
        functools.partial(_final_merge_kernel, co1),
        out_shape=jax.ShapeDtypeStruct((m, co_total), jnp.float32),
        in_specs=[_VMEM] * len(args),
        out_specs=_VMEM,
        compiler_params=_CPARAMS,
    )(*args)


# ----------------------------- residual blocks --------------------------------

def branch1_stem(x, p):
    # ResidualBlock1x1v1: the two Conv1x1(s=2, pad=1)+BN+ReLU paths fused into
    # one matmul; both halves get ReLU (both Sequentials contain ReLU).
    patches, (n, oh, ow) = _im2col(x, 1, 1, 2, 1)
    wmat = jnp.concatenate([_w_to_mat(p["l"]["w"]), _w_to_mat(p["s"]["w"])], axis=1)
    gamma, beta = _cat_params(p["l"], p["s"])
    co = p["l"]["w"].shape[0]
    y = stem_conv(patches, wmat, gamma, beta, n_relu=2 * co)
    return y.reshape(n, oh, ow, 2 * co)


def v2_stem(x, p, stride):
    # ResidualBlock1x1v2 first conv; shortcut conv (if present) fused along Cout.
    patches, (n, oh, ow) = _im2col(x, 1, 1, stride, 0)
    co_l = p["l1"]["w"].shape[0]
    if "s" in p:
        wmat = jnp.concatenate([_w_to_mat(p["l1"]["w"]), _w_to_mat(p["s"]["w"])], axis=1)
        gamma, beta = _cat_params(p["l1"], p["s"])
        y = stem_conv(patches, wmat, gamma, beta, n_relu=co_l)
        left, sc = y[:, :co_l], y[:, co_l:]
    else:  # identity shortcut (stride == 1, inch == outch)
        y = stem_conv(patches, _w_to_mat(p["l1"]["w"]), p["l1"]["g"], p["l1"]["b"],
                      n_relu=co_l)
        left, sc = y, x.reshape(-1, x.shape[-1])
    return left, sc, (n, oh, ow)


def res_1x1v2(x, p, stride):
    left, sc, (n, oh, ow) = v2_stem(x, p, stride)
    out = tail_conv(left, _w_to_mat(p["l2"]["w"]), p["l2"]["g"], p["l2"]["b"], sc)
    return out.reshape(n, oh, ow, -1)


def v2_stem_avgpool(x, p):
    # AvgPool(3, s=2, pad=1) followed by the stride-2 1x1 stem of v2_3, fused:
    # only the pooled positions the conv actually reads are produced (pool-patch
    # stride 4) and the 3x3 averaging happens inside the conv kernel.
    pp, (n, oh, ow) = _pool_patches(x, 3, 4, 1)            # (9, N*4*4, Cin)
    co_l = p["l1"]["w"].shape[0]
    wmat = jnp.concatenate([_w_to_mat(p["l1"]["w"]), _w_to_mat(p["s"]["w"])], axis=1)
    gamma, beta = _cat_params(p["l1"], p["s"])
    y = stem_conv(pp, wmat, gamma, beta, n_relu=co_l, pooled_taps=pp.shape[0])
    return y[:, :co_l], y[:, co_l:], (n, oh, ow)


def kxk_stem(x, p, k, stride):
    # ResidualBlock3x3/5x5 first conv; 1x1 shortcut embedded at the centre tap
    # so it shares the kxk im2col patches -> single matmul, BN over all columns,
    # ReLU only on the left half.
    patches, (n, oh, ow) = _im2col(x, k, k, stride, k // 2)
    co_l = p["l1"]["w"].shape[0]
    wmat = jnp.concatenate([_w_to_mat(p["l1"]["w"]),
                            _embed_1x1_as_kxk(p["s"]["w"], k)], axis=1)
    gamma, beta = _cat_params(p["l1"], p["s"])
    y = stem_conv(patches, wmat, gamma, beta, n_relu=co_l)
    return y[:, :co_l].reshape(n, oh, ow, co_l), y[:, co_l:], (n, oh, ow)


def res_kxk(x, p, k, stride):
    left, sc, (n, oh, ow) = kxk_stem(x, p, k, stride)
    patches2, _ = _im2col(left, k, k, 1, k // 2)
    out = tail_conv(patches2, _w_to_mat(p["l2"]["w"]), p["l2"]["g"], p["l2"]["b"], sc)
    return out.reshape(n, oh, ow, -1)


def kxk_tail_inputs(x, p, k, stride):
    # Same as res_kxk but returns the tail-conv operands so the last conv of the
    # branch can be executed inside the shared final merge kernel.
    left, sc, (n, oh, ow) = kxk_stem(x, p, k, stride)
    patches2, _ = _im2col(left, k, k, 1, k // 2)
    return (patches2, _w_to_mat(p["l2"]["w"]), p["l2"]["g"], p["l2"]["b"], sc), (n, oh, ow)


def inception_res_forward(x_nchw, p):
    x = jnp.transpose(x_nchw, (0, 2, 3, 1)).astype(jnp.float32)   # NCHW -> NHWC
    n = x.shape[0]
    outch = p["v1"]["l"]["w"].shape[0]

    # Branch 1: ResidualBlock1x1v1(inch, outch, s=2)
    y1 = branch1_stem(x, p["v1"])                          # (N, 9, 9, 2*outch)
    pp1, (_, oh, ow) = _pool_patches(y1, 3, 2, 0)          # (9, N*4*4, 2*outch)

    # Branch 2: 1x1v2(inch->inch, s=2) -> 5x5(inch->outch, s=2)
    h2 = res_1x1v2(x, p["v2_1"], 2)
    t2, _ = kxk_tail_inputs(h2, p["c5"], 5, 2)

    # Branch 3: 1x1v2(inch->inch, s=1) -> 3x3(inch->mid, s=2) -> 3x3(mid->outch, s=2)
    h3 = res_1x1v2(x, p["v2_2"], 1)
    h3 = res_kxk(h3, p["c3_1"], 3, 2)
    t3, _ = kxk_tail_inputs(h3, p["c3_2"], 3, 2)

    # Branch 4: AvgPool(3, s=2, pad=1) -> 1x1v2(inch->outch, s=2), pool fused in.
    left4, sc4, _ = v2_stem_avgpool(x, p["v2_3"])
    t4 = (left4, _w_to_mat(p["v2_3"]["l2"]["w"]),
          p["v2_3"]["l2"]["g"], p["v2_3"]["l2"]["b"], sc4)

    out = final_merge(pp1, t2, t3, t4, outch)              # (N*4*4, 4*outch)
    out = out.reshape(n, oh, ow, -1)
    return jnp.transpose(out, (0, 3, 1, 2))                # NHWC -> NCHW


# --------------------------- deterministic init --------------------------------

def _init_conv_bn(key, ci, co, k):
    bound = 1.0 / math.sqrt(ci * k * k)
    w = jax.random.uniform(key, (co, ci, k, k), jnp.float32, -bound, bound)
    return {"w": w,
            "g": jnp.ones((co,), jnp.float32),   # BatchNorm2d default gamma
            "b": jnp.zeros((co,), jnp.float32)}  # BatchNorm2d default beta


def init_inception_params(key, inch, outch):
    mid = int((outch + inch) / 2)
    keys = iter(jax.random.split(key, 20))
    p = {}
    p["v1"] = {"l": _init_conv_bn(next(keys), inch, outch, 1),
               "s": _init_conv_bn(next(keys), inch, outch, 1)}
    p["v2_1"] = {"l1": _init_conv_bn(next(keys), inch, inch, 1),
                 "l2": _init_conv_bn(next(keys), inch, inch, 1),
                 "s": _init_conv_bn(next(keys), inch, inch, 1)}
    p["v2_2"] = {"l1": _init_conv_bn(next(keys), inch, inch, 1),
                 "l2": _init_conv_bn(next(keys), inch, inch, 1)}  # identity shortcut
    p["v2_3"] = {"l1": _init_conv_bn(next(keys), inch, outch, 1),
                 "l2": _init_conv_bn(next(keys), outch, outch, 1),
                 "s": _init_conv_bn(next(keys), inch, outch, 1)}
    p["c3_1"] = {"l1": _init_conv_bn(next(keys), inch, mid, 3),
                 "l2": _init_conv_bn(next(keys), mid, mid, 3),
                 "s": _init_conv_bn(next(keys), inch, mid, 1)}
    p["c3_2"] = {"l1": _init_conv_bn(next(keys), mid, outch, 3),
                 "l2": _init_conv_bn(next(keys), outch, outch, 3),
                 "s": _init_conv_bn(next(keys), mid, outch, 1)}
    p["c5"] = {"l1": _init_conv_bn(next(keys), inch, outch, 5),
               "l2": _init_conv_bn(next(keys), outch, outch, 5),
               "s": _init_conv_bn(next(keys), inch, outch, 1)}
    return p


if __name__ == "__main__":
    root = jax.random.PRNGKey(0)
    kx, kp = jax.random.split(root)
    inch, outch = 4, 8
    x = jax.random.normal(kx, (2, inch, 16, 16), jnp.float32)      # NCHW input
    params = init_inception_params(kp, inch, outch)

    out = jax.jit(inception_res_forward)(x, params)
    out = jax.block_until_ready(out)
    assert out.shape == (2, 4 * outch, 4, 4), out.shape
    print("KERNEL_OK")
</pallas_src>

<mosaic_0001>
module attributes {stable_mosaic.version = 11 : i64} {
  func.func @_stem_kernel(%arg0: memref<512x4xbf16, #tpu.memory_space<vmem>>, %arg1: memref<4x4xbf16, #tpu.memory_space<vmem>>, %arg2: memref<1x4xf32, #tpu.memory_space<vmem>>, %arg3: memref<1x4xf32, #tpu.memory_space<vmem>>, %arg4: memref<512x4xf32, #tpu.memory_space<vmem>>) attributes {dimension_semantics = [], scalar_prefetch = 0 : i64, scratch_operands = 0 : i64, tpu.core_type = #tpu.core_type<tc>} {
    %c0 = arith.constant 0 : index
    %c0_0 = arith.constant 0 : index
    %0 = vector.load %arg0[%c0, %c0_0] : memref<512x4xbf16, #tpu.memory_space<vmem>>, vector<512x4xbf16>
    %c0_1 = arith.constant 0 : index
    %c0_2 = arith.constant 0 : index
    %1 = vector.load %arg1[%c0_1, %c0_2] : memref<4x4xbf16, #tpu.memory_space<vmem>>, vector<4x4xbf16>
    %cst = arith.constant dense<0.000000e+00> : vector<512x4xf32>
    %2 = tpu.matmul %0, %1, %cst {dimension_numbers = #tpu.dot_dimension_numbers<[1], [0], [0], [1], [0, 0, 1, 1], [], []>} : vector<512x4xbf16>, vector<4x4xbf16>, vector<512x4xf32> -> vector<512x4xf32>
    %c0_3 = arith.constant 0 : index
    %c0_4 = arith.constant 0 : index
    %3 = vector.load %arg2[%c0_3, %c0_4] : memref<1x4xf32, #tpu.memory_space<vmem>>, vector<1x4xf32>
    %c0_5 = arith.constant 0 : index
    %c0_6 = arith.constant 0 : index
    %4 = vector.load %arg3[%c0_5, %c0_6] : memref<1x4xf32, #tpu.memory_space<vmem>>, vector<1x4xf32>
    %cst_7 = arith.constant dense<0.000000e+00> : vector<4xf32>
    %5 = vector.multi_reduction <add>, %2, %cst_7 [0] : vector<512x4xf32> to vector<4xf32>
    %6 = vector.shape_cast %5 : vector<4xf32> to vector<1x4xf32>
    %cst_8 = arith.constant 5.120000e+02 : f32
    %7 = vector.broadcast %cst_8 : f32 to vector<1x4xf32>
    %8 = arith.divf %6, %7 : vector<1x4xf32>
    %9 = vector.broadcast %8 : vector<1x4xf32> to vector<512x4xf32>
    %10 = arith.subf %2, %9 : vector<512x4xf32>
    %11 = arith.mulf %10, %10 : vector<512x4xf32>
    %cst_9 = arith.constant dense<0.000000e+00> : vector<4xf32>
    %12 = vector.multi_reduction <add>, %11, %cst_9 [0] : vector<512x4xf32> to vector<4xf32>
    %13 = vector.shape_cast %12 : vector<4xf32> to vector<1x4xf32>
    %cst_10 = arith.constant 5.120000e+02 : f32
    %14 = vector.broadcast %cst_10 : f32 to vector<1x4xf32>
    %15 = arith.divf %13, %14 : vector<1x4xf32>
    %cst_11 = arith.constant 9.99999974E-6 : f32
    %16 = vector.broadcast %cst_11 : f32 to vector<1x4xf32>
    %17 = arith.addf %15, %16 : vector<1x4xf32>
    %18 = math.rsqrt %17 : vector<1x4xf32>
    %19 = arith.mulf %3, %18 : vector<1x4xf32>
    %20 = arith.mulf %8, %19 : vector<1x4xf32>
    %21 = arith.subf %4, %20 : vector<1x4xf32>
    %22 = vector.broadcast %19 : vector<1x4xf32> to vector<512x4xf32>
    %23 = arith.mulf %2, %22 : vector<512x4xf32>
    %24 = vector.broadcast %21 : vector<1x4xf32> to vector<512x4xf32>
    %25 = arith.addf %23, %24 : vector<512x4xf32>
    %cst_12 = arith.constant 0.000000e+00 : f32
    %26 = vector.broadcast %cst_12 : f32 to vector<512x4xf32>
    %27 = arith.maximumf %25, %26 : vector<512x4xf32>
    %c0_13 = arith.constant 0 : index
    %c0_14 = arith.constant 0 : index
    %28 = vector.load %arg4[%c0_13, %c0_14] : memref<512x4xf32, #tpu.memory_space<vmem>>, vector<512x4xf32>
    tpu.vector_store %arg4[%c0_13, %c0_14], %27 {strides = array<i32>} : memref<512x4xf32, #tpu.memory_space<vmem>>, vector<512x4xf32>,
    return
  }
}

module attributes {stable_mosaic.version = 11 : i64} {
  func.func @_tail_kernel(%arg0: memref<512x4xbf16, #tpu.memory_space<vmem>>, %arg1: memref<4x4xbf16, #tpu.memory_space<vmem>>, %arg2: memref<1x4xf32, #tpu.memory_space<vmem>>, %arg3: memref<1x4xf32, #tpu.memory_space<vmem>>, %arg4: memref<512x4xf32, #tpu.memory_space<vmem>>, %arg5: memref<512x4xf32, #tpu.memory_space<vmem>>) attributes {dimension_semantics = [], scalar_prefetch = 0 : i64, scratch_operands = 0 : i64, tpu.core_type = #tpu.core_type<tc>} {
    %c0 = arith.constant 0 : index
    %c0_0 = arith.constant 0 : index
    %0 = vector.load %arg0[%c0, %c0_0] : memref<512x4xbf16, #tpu.memory_space<vmem>>, vector<512x4xbf16>
    %c0_1 = arith.constant 0 : index
    %c0_2 = arith.constant 0 : index
    %1 = vector.load %arg1[%c0_1, %c0_2] : memref<4x4xbf16, #tpu.memory_space<vmem>>, vector<4x4xbf16>
    %cst = arith.constant dense<0.000000e+00> : vector<512x4xf32>
    %2 = tpu.matmul %0, %1, %cst {dimension_numbers = #tpu.dot_dimension_numbers<[1], [0], [0], [1], [0, 0, 1, 1], [], []>} : vector<512x4xbf16>, vector<4x4xbf16>, vector<512x4xf32> -> vector<512x4xf32>
    %c0_3 = arith.constant 0 : index
    %c0_4 = arith.constant 0 : index
    %3 = vector.load %arg2[%c0_3, %c0_4] : memref<1x4xf32, #tpu.memory_space<vmem>>, vector<1x4xf32>
    %c0_5 = arith.constant 0 : index
    %c0_6 = arith.constant 0 : index
    %4 = vector.load %arg3[%c0_5, %c0_6] : memref<1x4xf32, #tpu.memory_space<vmem>>, vector<1x4xf32>
    %cst_7 = arith.constant dense<0.000000e+00> : vector<4xf32>
    %5 = vector.multi_reduction <add>, %2, %cst_7 [0] : vector<512x4xf32> to vector<4xf32>
    %6 = vector.shape_cast %5 : vector<4xf32> to vector<1x4xf32>
    %cst_8 = arith.constant 5.120000e+02 : f32
    %7 = vector.broadcast %cst_8 : f32 to vector<1x4xf32>
    %8 = arith.divf %6, %7 : vector<1x4xf32>
    %9 = vector.broadcast %8 : vector<1x4xf32> to vector<512x4xf32>
    %10 = arith.subf %2, %9 : vector<512x4xf32>
    %11 = arith.mulf %10, %10 : vector<512x4xf32>
    %cst_9 = arith.constant dense<0.000000e+00> : vector<4xf32>
    %12 = vector.multi_reduction <add>, %11, %cst_9 [0] : vector<512x4xf32> to vector<4xf32>
    %13 = vector.shape_cast %12 : vector<4xf32> to vector<1x4xf32>
    %cst_10 = arith.constant 5.120000e+02 : f32
    %14 = vector.broadcast %cst_10 : f32 to vector<1x4xf32>
    %15 = arith.divf %13, %14 : vector<1x4xf32>
    %cst_11 = arith.constant 9.99999974E-6 : f32
    %16 = vector.broadcast %cst_11 : f32 to vector<1x4xf32>
    %17 = arith.addf %15, %16 : vector<1x4xf32>
    %18 = math.rsqrt %17 : vector<1x4xf32>
    %19 = arith.mulf %3, %18 : vector<1x4xf32>
    %20 = arith.mulf %8, %19 : vector<1x4xf32>
    %21 = arith.subf %4, %20 : vector<1x4xf32>
    %22 = vector.broadcast %19 : vector<1x4xf32> to vector<512x4xf32>
    %23 = arith.mulf %2, %22 : vector<512x4xf32>
    %24 = vector.broadcast %21 : vector<1x4xf32> to vector<512x4xf32>
    %25 = arith.addf %23, %24 : vector<512x4xf32>
    %c0_12 = arith.constant 0 : index
    %c0_13 = arith.constant 0 : index
    %26 = vector.load %arg4[%c0_12, %c0_13] : memref<512x4xf32, #tpu.memory_space<vmem>>, vector<512x4xf32>
    %27 = arith.addf %25, %26 : vector<512x4xf32>
    %cst_14 = arith.constant 0.000000e+00 : f32
    %28 = vector.broadcast %cst_14 : f32 to vector<512x4xf32>
    %29 = arith.maximumf %27, %28 : vector<512x4xf32>
    %c0_15 = arith.constant 0 : index
    %c0_16 = arith.constant 0 : index
    %30 = vector.load %arg5[%c0_15, %c0_16] : memref<512x4xf32, #tpu.memory_space<vmem>>, vector<512x4xf32>
    tpu.vector_store %arg5[%c0_15, %c0_16], %29 {strides = array<i32>} : memref<512x4xf32, #tpu.memory_space<vmem>>, vector<512x4xf32>,
    return
  }
}

module attributes {stable_mosaic.version = 11 : i64} {
  func.func @_stem_kernel(%arg0: memref<128x36xbf16, #tpu.memory_space<vmem>>, %arg1: memref<36x12xbf16, #tpu.memory_space<vmem>>, %arg2: memref<1x12xf32, #tpu.memory_space<vmem>>, %arg3: memref<1x12xf32, #tpu.memory_space<vmem>>, %arg4: memref<128x12xf32, #tpu.memory_space<vmem>>) attributes {dimension_semantics = [], scalar_prefetch = 0 : i64, scratch_operands = 0 : i64, tpu.core_type = #tpu.core_type<tc>} {
    %c0 = arith.constant 0 : index
    %c0_0 = arith.constant 0 : index
    %0 = vector.load %arg0[%c0, %c0_0] : memref<128x36xbf16, #tpu.memory_space<vmem>>, vector<128x36xbf16>
    %c0_1 = arith.constant 0 : index
    %c0_2 = arith.constant 0 : index
    %1 = vector.load %arg1[%c0_1, %c0_2] : memref<36x12xbf16, #tpu.memory_space<vmem>>, vector<36x12xbf16>
    %cst = arith.constant dense<0.000000e+00> : vector<128x12xf32>
    %2 = tpu.matmul %0, %1, %cst {dimension_numbers = #tpu.dot_dimension_numbers<[1], [0], [0], [1], [0, 0, 1, 1], [], []>} : vector<128x36xbf16>, vector<36x12xbf16>, vector<128x12xf32> -> vector<128x12xf32>
    %c0_3 = arith.constant 0 : index
    %c0_4 = arith.constant 0 : index
    %3 = vector.load %arg2[%c0_3, %c0_4] : memref<1x12xf32, #tpu.memory_space<vmem>>, vector<1x12xf32>
    %c0_5 = arith.constant 0 : index
    %c0_6 = arith.constant 0 : index
    %4 = vector.load %arg3[%c0_5, %c0_6] : memref<1x12xf32, #tpu.memory_space<vmem>>, vector<1x12xf32>
    %cst_7 = arith.constant dense<0.000000e+00> : vector<12xf32>
    %5 = vector.multi_reduction <add>, %2, %cst_7 [0] : vector<128x12xf32> to vector<12xf32>
    %6 = vector.shape_cast %5 : vector<12xf32> to vector<1x12xf32>
    %cst_8 = arith.constant 1.280000e+02 : f32
    %7 = vector.broadcast %cst_8 : f32 to vector<1x12xf32>
    %8 = arith.divf %6, %7 : vector<1x12xf32>
    %9 = vector.broadcast %8 : vector<1x12xf32> to vector<128x12xf32>
    %10 = arith.subf %2, %9 : vector<128x12xf32>
    %11 = arith.mulf %10, %10 : vector<128x12xf32>
    %cst_9 = arith.constant dense<0.000000e+00> : vector<12xf32>
    %12 = vector.multi_reduction <add>, %11, %cst_9 [0] : vector<128x12xf32> to vector<12xf32>
    %13 = vector.shape_cast %12 : vector<12xf32> to vector<1x12xf32>
    %cst_10 = arith.constant 1.280000e+02 : f32
    %14 = vector.broadcast %cst_10 : f32 to vector<1x12xf32>
    %15 = arith.divf %13, %14 : vector<1x12xf32>
    %cst_11 = arith.constant 9.99999974E-6 : f32
    %16 = vector.broadcast %cst_11 : f32 to vector<1x12xf32>
    %17 = arith.addf %15, %16 : vector<1x12xf32>
    %18 = math.rsqrt %17 : vector<1x12xf32>
    %19 = arith.mulf %3, %18 : vector<1x12xf32>
    %20 = arith.mulf %8, %19 : vector<1x12xf32>
    %21 = arith.subf %4, %20 : vector<1x12xf32>
    %22 = vector.broadcast %19 : vector<1x12xf32> to vector<128x12xf32>
    %23 = arith.mulf %2, %22 : vector<128x12xf32>
    %24 = vector.broadcast %21 : vector<1x12xf32> to vector<128x12xf32>
    %25 = arith.addf %23, %24 : vector<128x12xf32>
    %26 = tpu.iota {dimensions = array<i32: 1>} : vector<128x12xi32>
    %c6_i32 = arith.constant 6 : i32
    %27 = vector.broadcast %c6_i32 : i32 to vector<128x12xi32>
    %28 = arith.cmpi slt, %26, %27 : vector<128x12xi32>
    %cst_12 = arith.constant 0.000000e+00 : f32
    %29 = vector.broadcast %cst_12 : f32 to vector<128x12xf32>
    %30 = arith.maximumf %25, %29 : vector<128x12xf32>
    %31 = arith.select %28, %30, %25 : vector<128x12xi1>, vector<128x12xf32>
    %c0_13 = arith.constant 0 : index
    %c0_14 = arith.constant 0 : index
    %32 = vector.load %arg4[%c0_13, %c0_14] : memref<128x12xf32, #tpu.memory_space<vmem>>, vector<128x12xf32>
    tpu.vector_store %arg4[%c0_13, %c0_14], %31 {strides = array<i32>} : memref<128x12xf32, #tpu.memory_space<vmem>>, vector<128x12xf32>,
    return
  }
}

module attributes {stable_mosaic.version = 11 : i64} {
  func.func @_tail_kernel(%arg0: memref<128x54xbf16, #tpu.memory_space<vmem>>, %arg1: memref<54x6xbf16, #tpu.memory_space<vmem>>, %arg2: memref<1x6xf32, #tpu.memory_space<vmem>>, %arg3: memref<1x6xf32, #tpu.memory_space<vmem>>, %arg4: memref<128x6xf32, #tpu.memory_space<vmem>>, %arg5: memref<128x6xf32, #tpu.memory_space<vmem>>) attributes {dimension_semantics = [], scalar_prefetch = 0 : i64, scratch_operands = 0 : i64, tpu.core_type = #tpu.core_type<tc>} {
    %c0 = arith.constant 0 : index
    %c0_0 = arith.constant 0 : index
    %0 = vector.load %arg0[%c0, %c0_0] : memref<128x54xbf16, #tpu.memory_space<vmem>>, vector<128x54xbf16>
    %c0_1 = arith.constant 0 : index
    %c0_2 = arith.constant 0 : index
    %1 = vector.load %arg1[%c0_1, %c0_2] : memref<54x6xbf16, #tpu.memory_space<vmem>>, vector<54x6xbf16>
    %cst = arith.constant dense<0.000000e+00> : vector<128x6xf32>
    %2 = tpu.matmul %0, %1, %cst {dimension_numbers = #tpu.dot_dimension_numbers<[1], [0], [0], [1], [0, 0, 1, 1], [], []>} : vector<128x54xbf16>, vector<54x6xbf16>, vector<128x6xf32> -> vector<128x6xf32>
    %c0_3 = arith.constant 0 : index
    %c0_4 = arith.constant 0 : index
    %3 = vector.load %arg2[%c0_3, %c0_4] : memref<1x6xf32, #tpu.memory_space<vmem>>, vector<1x6xf32>
    %c0_5 = arith.constant 0 : index
    %c0_6 = arith.constant 0 : index
    %4 = vector.load %arg3[%c0_5, %c0_6] : memref<1x6xf32, #tpu.memory_space<vmem>>, vector<1x6xf32>
    %cst_7 = arith.constant dense<0.000000e+00> : vector<6xf32>
    %5 = vector.multi_reduction <add>, %2, %cst_7 [0] : vector<128x6xf32> to vector<6xf32>
    %6 = vector.shape_cast %5 : vector<6xf32> to vector<1x6xf32>
    %cst_8 = arith.constant 1.280000e+02 : f32
    %7 = vector.broadcast %cst_8 : f32 to vector<1x6xf32>
    %8 = arith.divf %6, %7 : vector<1x6xf32>
    %9 = vector.broadcast %8 : vector<1x6xf32> to vector<128x6xf32>
    %10 = arith.subf %2, %9 : vector<128x6xf32>
    %11 = arith.mulf %10, %10 : vector<128x6xf32>
    %cst_9 = arith.constant dense<0.000000e+00> : vector<6xf32>
    %12 = vector.multi_reduction <add>, %11, %cst_9 [0] : vector<128x6xf32> to vector<6xf32>
    %13 = vector.shape_cast %12 : vector<6xf32> to vector<1x6xf32>
    %cst_10 = arith.constant 1.280000e+02 : f32
    %14 = vector.broadcast %cst_10 : f32 to vector<1x6xf32>
    %15 = arith.divf %13, %14 : vector<1x6xf32>
    %cst_11 = arith.constant 9.99999974E-6 : f32
    %16 = vector.broadcast %cst_11 : f32 to vector<1x6xf32>
    %17 = arith.addf %15, %16 : vector<1x6xf32>
    %18 = math.rsqrt %17 : vector<1x6xf32>
    %19 = arith.mulf %3, %18 : vector<1x6xf32>
    %20 = arith.mulf %8, %19 : vector<1x6xf32>
    %21 = arith.subf %4, %20 : vector<1x6xf32>
    %22 = vector.broadcast %19 : vector<1x6xf32> to vector<128x6xf32>
    %23 = arith.mulf %2, %22 : vector<128x6xf32>
    %24 = vector.broadcast %21 : vector<1x6xf32> to vector<128x6xf32>
    %25 = arith.addf %23, %24 : vector<128x6xf32>
    %c0_12 = arith.constant 0 : index
    %c0_13 = arith.constant 0 : index
    %26 = vector.load %arg4[%c0_12, %c0_13] : memref<128x6xf32, #tpu.memory_space<vmem>>, vector<128x6xf32>
    %27 = arith.addf %25, %26 : vector<128x6xf32>
    %cst_14 = arith.constant 0.000000e+00 : f32
    %28 = vector.broadcast %cst_14 : f32 to vector<128x6xf32>
    %29 = arith.maximumf %27, %28 : vector<128x6xf32>
    %c0_15 = arith.constant 0 : index
    %c0_16 = arith.constant 0 : index
    %30 = vector.load %arg5[%c0_15, %c0_16] : memref<128x6xf32, #tpu.memory_space<vmem>>, vector<128x6xf32>
    tpu.vector_store %arg5[%c0_15, %c0_16], %29 {strides = array<i32>} : memref<128x6xf32, #tpu.memory_space<vmem>>, vector<128x6xf32>,
    return
  }
}

module attributes {stable_mosaic.version = 11 : i64} {
  func.func @_stem_kernel(%arg0: memref<32x54xbf16, #tpu.memory_space<vmem>>, %arg1: memref<54x16xbf16, #tpu.memory_space<vmem>>, %arg2: memref<1x16xf32, #tpu.memory_space<vmem>>, %arg3: memref<1x16xf32, #tpu.memory_space<vmem>>, %arg4: memref<32x16xf32, #tpu.memory_space<vmem>>) attributes {dimension_semantics = [], scalar_prefetch = 0 : i64, scratch_operands = 0 : i64, tpu.core_type = #tpu.core_type<tc>} {
    %c0 = arith.constant 0 : index
    %c0_0 = arith.constant 0 : index
    %0 = vector.load %arg0[%c0, %c0_0] : memref<32x54xbf16, #tpu.memory_space<vmem>>, vector<32x54xbf16>
    %c0_1 = arith.constant 0 : index
    %c0_2 = arith.constant 0 : index
    %1 = vector.load %arg1[%c0_1, %c0_2] : memref<54x16xbf16, #tpu.memory_space<vmem>>, vector<54x16xbf16>
    %cst = arith.constant dense<0.000000e+00> : vector<32x16xf32>
    %2 = tpu.matmul %0, %1, %cst {dimension_numbers = #tpu.dot_dimension_numbers<[1], [0], [0], [1], [0, 0, 1, 1], [], []>} : vector<32x54xbf16>, vector<54x16xbf16>, vector<32x16xf32> -> vector<32x16xf32>
    %c0_3 = arith.constant 0 : index
    %c0_4 = arith.constant 0 : index
    %3 = vector.load %arg2[%c0_3, %c0_4] : memref<1x16xf32, #tpu.memory_space<vmem>>, vector<1x16xf32>
    %c0_5 = arith.constant 0 : index
    %c0_6 = arith.constant 0 : index
    %4 = vector.load %arg3[%c0_5, %c0_6] : memref<1x16xf32, #tpu.memory_space<vmem>>, vector<1x16xf32>
    %cst_7 = arith.constant dense<0.000000e+00> : vector<16xf32>
    %5 = vector.multi_reduction <add>, %2, %cst_7 [0] : vector<32x16xf32> to vector<16xf32>
    %6 = vector.shape_cast %5 : vector<16xf32> to vector<1x16xf32>
    %cst_8 = arith.constant 3.200000e+01 : f32
    %7 = vector.broadcast %cst_8 : f32 to vector<1x16xf32>
    %8 = arith.divf %6, %7 : vector<1x16xf32>
    %9 = vector.broadcast %8 : vector<1x16xf32> to vector<32x16xf32>
    %10 = arith.subf %2, %9 : vector<32x16xf32>
    %11 = arith.mulf %10, %10 : vector<32x16xf32>
    %cst_9 = arith.constant dense<0.000000e+00> : vector<16xf32>
    %12 = vector.multi_reduction <add>, %11, %cst_9 [0] : vector<32x16xf32> to vector<16xf32>
    %13 = vector.shape_cast %12 : vector<16xf32> to vector<1x16xf32>
    %cst_10 = arith.constant 3.200000e+01 : f32
    %14 = vector.broadcast %cst_10 : f32 to vector<1x16xf32>
    %15 = arith.divf %13, %14 : vector<1x16xf32>
    %cst_11 = arith.constant 9.99999974E-6 : f32
    %16 = vector.broadcast %cst_11 : f32 to vector<1x16xf32>
    %17 = arith.addf %15, %16 : vector<1x16xf32>
    %18 = math.rsqrt %17 : vector<1x16xf32>
    %19 = arith.mulf %3, %18 : vector<1x16xf32>
    %20 = arith.mulf %8, %19 : vector<1x16xf32>
    %21 = arith.subf %4, %20 : vector<1x16xf32>
    %22 = vector.broadcast %19 : vector<1x16xf32> to vector<32x16xf32>
    %23 = arith.mulf %2, %22 : vector<32x16xf32>
    %24 = vector.broadcast %21 : vector<1x16xf32> to vector<32x16xf32>
    %25 = arith.addf %23, %24 : vector<32x16xf32>
    %26 = tpu.iota {dimensions = array<i32: 1>} : vector<32x16xi32>
    %c8_i32 = arith.constant 8 : i32
    %27 = vector.broadcast %c8_i32 : i32 to vector<32x16xi32>
    %28 = arith.cmpi slt, %26, %27 : vector<32x16xi32>
    %cst_12 = arith.constant 0.000000e+00 : f32
    %29 = vector.broadcast %cst_12 : f32 to vector<32x16xf32>
    %30 = arith.maximumf %25, %29 : vector<32x16xf32>
    %31 = arith.select %28, %30, %25 : vector<32x16xi1>, vector<32x16xf32>
    %c0_13 = arith.constant 0 : index
    %c0_14 = arith.constant 0 : index
    %32 = vector.load %arg4[%c0_13, %c0_14] : memref<32x16xf32, #tpu.memory_space<vmem>>, vector<32x16xf32>
    tpu.vector_store %arg4[%c0_13, %c0_14], %31 {strides = array<i32>} : memref<32x16xf32, #tpu.memory_space<vmem>>, vector<32x16xf32>,
    return
  }
}

module attributes {stable_mosaic.version = 11 : i64} {
  func.func @_stem_kernel(%arg0: memref<128x4xbf16, #tpu.memory_space<vmem>>, %arg1: memref<4x8xbf16, #tpu.memory_space<vmem>>, %arg2: memref<1x8xf32, #tpu.memory_space<vmem>>, %arg3: memref<1x8xf32, #tpu.memory_space<vmem>>, %arg4: memref<128x8xf32, #tpu.memory_space<vmem>>) attributes {dimension_semantics = [], scalar_prefetch = 0 : i64, scratch_operands = 0 : i64, tpu.core_type = #tpu.core_type<tc>} {
    %c0 = arith.constant 0 : index
    %c0_0 = arith.constant 0 : index
    %0 = vector.load %arg0[%c0, %c0_0] : memref<128x4xbf16, #tpu.memory_space<vmem>>, vector<128x4xbf16>
    %c0_1 = arith.constant 0 : index
    %c0_2 = arith.constant 0 : index
    %1 = vector.load %arg1[%c0_1, %c0_2] : memref<4x8xbf16, #tpu.memory_space<vmem>>, vector<4x8xbf16>
    %cst = arith.constant dense<0.000000e+00> : vector<128x8xf32>
    %2 = tpu.matmul %0, %1, %cst {dimension_numbers = #tpu.dot_dimension_numbers<[1], [0], [0], [1], [0, 0, 1, 1], [], []>} : vector<128x4xbf16>, vector<4x8xbf16>, vector<128x8xf32> -> vector<128x8xf32>
    %c0_3 = arith.constant 0 : index
    %c0_4 = arith.constant 0 : index
    %3 = vector.load %arg2[%c0_3, %c0_4] : memref<1x8xf32, #tpu.memory_space<vmem>>, vector<1x8xf32>
    %c0_5 = arith.constant 0 : index
    %c0_6 = arith.constant 0 : index
    %4 = vector.load %arg3[%c0_5, %c0_6] : memref<1x8xf32, #tpu.memory_space<vmem>>, vector<1x8xf32>
    %cst_7 = arith.constant dense<0.000000e+00> : vector<8xf32>
    %5 = vector.multi_reduction <add>, %2, %cst_7 [0] : vector<128x8xf32> to vector<8xf32>
    %6 = vector.shape_cast %5 : vector<8xf32> to vector<1x8xf32>
    %cst_8 = arith.constant 1.280000e+02 : f32
    %7 = vector.broadcast %cst_8 : f32 to vector<1x8xf32>
    %8 = arith.divf %6, %7 : vector<1x8xf32>
    %9 = vector.broadcast %8 : vector<1x8xf32> to vector<128x8xf32>
    %10 = arith.subf %2, %9 : vector<128x8xf32>
    %11 = arith.mulf %10, %10 : vector<128x8xf32>
    %cst_9 = arith.constant dense<0.000000e+00> : vector<8xf32>
    %12 = vector.multi_reduction <add>, %11, %cst_9 [0] : vector<128x8xf32> to vector<8xf32>
    %13 = vector.shape_cast %12 : vector<8xf32> to vector<1x8xf32>
    %cst_10 = arith.constant 1.280000e+02 : f32
    %14 = vector.broadcast %cst_10 : f32 to vector<1x8xf32>
    %15 = arith.divf %13, %14 : vector<1x8xf32>
    %cst_11 = arith.constant 9.99999974E-6 : f32
    %16 = vector.broadcast %cst_11 : f32 to vector<1x8xf32>
    %17 = arith.addf %15, %16 : vector<1x8xf32>
    %18 = math.rsqrt %17 : vector<1x8xf32>
    %19 = arith.mulf %3, %18 : vector<1x8xf32>
    %20 = arith.mulf %8, %19 : vector<1x8xf32>
    %21 = arith.subf %4, %20 : vector<1x8xf32>
    %22 = vector.broadcast %19 : vector<1x8xf32> to vector<128x8xf32>
    %23 = arith.mulf %2, %22 : vector<128x8xf32>
    %24 = vector.broadcast %21 : vector<1x8xf32> to vector<128x8xf32>
    %25 = arith.addf %23, %24 : vector<128x8xf32>
    %26 = tpu.iota {dimensions = array<i32: 1>} : vector<128x8xi32>
    %c4_i32 = arith.constant 4 : i32
    %27 = vector.broadcast %c4_i32 : i32 to vector<128x8xi32>
    %28 = arith.cmpi slt, %26, %27 : vector<128x8xi32>
    %cst_12 = arith.constant 0.000000e+00 : f32
    %29 = vector.broadcast %cst_12 : f32 to vector<128x8xf32>
    %30 = arith.maximumf %25, %29 : vector<128x8xf32>
    %31 = arith.select %28, %30, %25 : vector<128x8xi1>, vector<128x8xf32>
    %c0_13 = arith.constant 0 : index
    %c0_14 = arith.constant 0 : index
    %32 = vector.load %arg4[%c0_13, %c0_14] : memref<128x8xf32, #tpu.memory_space<vmem>>, vector<128x8xf32>
    tpu.vector_store %arg4[%c0_13, %c0_14], %31 {strides = array<i32>} : memref<128x8xf32, #tpu.memory_space<vmem>>, vector<128x8xf32>,
    return
  }
}

module attributes {stable_mosaic.version = 11 : i64} {
  func.func @_tail_kernel(%arg0: memref<128x4xbf16, #tpu.memory_space<vmem>>, %arg1: memref<4x4xbf16, #tpu.memory_space<vmem>>, %arg2: memref<1x4xf32, #tpu.memory_space<vmem>>, %arg3: memref<1x4xf32, #tpu.memory_space<vmem>>, %arg4: memref<128x4xf32, #tpu.memory_space<vmem>>, %arg5: memref<128x4xf32, #tpu.memory_space<vmem>>) attributes {dimension_semantics = [], scalar_prefetch = 0 : i64, scratch_operands = 0 : i64, tpu.core_type = #tpu.core_type<tc>} {
    %c0 = arith.constant 0 : index
    %c0_0 = arith.constant 0 : index
    %0 = vector.load %arg0[%c0, %c0_0] : memref<128x4xbf16, #tpu.memory_space<vmem>>, vector<128x4xbf16>
    %c0_1 = arith.constant 0 : index
    %c0_2 = arith.constant 0 : index
    %1 = vector.load %arg1[%c0_1, %c0_2] : memref<4x4xbf16, #tpu.memory_space<vmem>>, vector<4x4xbf16>
    %cst = arith.constant dense<0.000000e+00> : vector<128x4xf32>
    %2 = tpu.matmul %0, %1, %cst {dimension_numbers = #tpu.dot_dimension_numbers<[1], [0], [0], [1], [0, 0, 1, 1], [], []>} : vector<128x4xbf16>, vector<4x4xbf16>, vector<128x4xf32> -> vector<128x4xf32>
    %c0_3 = arith.constant 0 : index
    %c0_4 = arith.constant 0 : index
    %3 = vector.load %arg2[%c0_3, %c0_4] : memref<1x4xf32, #tpu.memory_space<vmem>>, vector<1x4xf32>
    %c0_5 = arith.constant 0 : index
    %c0_6 = arith.constant 0 : index
    %4 = vector.load %arg3[%c0_5, %c0_6] : memref<1x4xf32, #tpu.memory_space<vmem>>, vector<1x4xf32>
    %cst_7 = arith.constant dense<0.000000e+00> : vector<4xf32>
    %5 = vector.multi_reduction <add>, %2, %cst_7 [0] : vector<128x4xf32> to vector<4xf32>
    %6 = vector.shape_cast %5 : vector<4xf32> to vector<1x4xf32>
    %cst_8 = arith.constant 1.280000e+02 : f32
    %7 = vector.broadcast %cst_8 : f32 to vector<1x4xf32>
    %8 = arith.divf %6, %7 : vector<1x4xf32>
    %9 = vector.broadcast %8 : vector<1x4xf32> to vector<128x4xf32>
    %10 = arith.subf %2, %9 : vector<128x4xf32>
    %11 = arith.mulf %10, %10 : vector<128x4xf32>
    %cst_9 = arith.constant dense<0.000000e+00> : vector<4xf32>
    %12 = vector.multi_reduction <add>, %11, %cst_9 [0] : vector<128x4xf32> to vector<4xf32>
    %13 = vector.shape_cast %12 : vector<4xf32> to vector<1x4xf32>
    %cst_10 = arith.constant 1.280000e+02 : f32
    %14 = vector.broadcast %cst_10 : f32 to vector<1x4xf32>
    %15 = arith.divf %13, %14 : vector<1x4xf32>
    %cst_11 = arith.constant 9.99999974E-6 : f32
    %16 = vector.broadcast %cst_11 : f32 to vector<1x4xf32>
    %17 = arith.addf %15, %16 : vector<1x4xf32>
    %18 = math.rsqrt %17 : vector<1x4xf32>
    %19 = arith.mulf %3, %18 : vector<1x4xf32>
    %20 = arith.mulf %8, %19 : vector<1x4xf32>
    %21 = arith.subf %4, %20 : vector<1x4xf32>
    %22 = vector.broadcast %19 : vector<1x4xf32> to vector<128x4xf32>
    %23 = arith.mulf %2, %22 : vector<128x4xf32>
    %24 = vector.broadcast %21 : vector<1x4xf32> to vector<128x4xf32>
    %25 = arith.addf %23, %24 : vector<128x4xf32>
    %c0_12 = arith.constant 0 : index
    %c0_13 = arith.constant 0 : index
    %26 = vector.load %arg4[%c0_12, %c0_13] : memref<128x4xf32, #tpu.memory_space<vmem>>, vector<128x4xf32>
    %27 = arith.addf %25, %26 : vector<128x4xf32>
    %cst_14 = arith.constant 0.000000e+00 : f32
    %28 = vector.broadcast %cst_14 : f32 to vector<128x4xf32>
    %29 = arith.maximumf %27, %28 : vector<128x4xf32>
    %c0_15 = arith.constant 0 : index
    %c0_16 = arith.constant 0 : index
    %30 = vector.load %arg5[%c0_15, %c0_16] : memref<128x4xf32, #tpu.memory_space<vmem>>, vector<128x4xf32>
    tpu.vector_store %arg5[%c0_15, %c0_16], %29 {strides = array<i32>} : memref<128x4xf32, #tpu.memory_space<vmem>>, vector<128x4xf32>,
    return
  }
}

module attributes {stable_mosaic.version = 11 : i64} {
  func.func @_stem_kernel(%arg0: memref<32x100xbf16, #tpu.memory_space<vmem>>, %arg1: memref<100x16xbf16, #tpu.memory_space<vmem>>, %arg2: memref<1x16xf32, #tpu.memory_space<vmem>>, %arg3: memref<1x16xf32, #tpu.memory_space<vmem>>, %arg4: memref<32x16xf32, #tpu.memory_space<vmem>>) attributes {dimension_semantics = [], scalar_prefetch = 0 : i64, scratch_operands = 0 : i64, tpu.core_type = #tpu.core_type<tc>} {
    %c0 = arith.constant 0 : index
    %c0_0 = arith.constant 0 : index
    %0 = vector.load %arg0[%c0, %c0_0] : memref<32x100xbf16, #tpu.memory_space<vmem>>, vector<32x100xbf16>
    %c0_1 = arith.constant 0 : index
    %c0_2 = arith.constant 0 : index
    %1 = vector.load %arg1[%c0_1, %c0_2] : memref<100x16xbf16, #tpu.memory_space<vmem>>, vector<100x16xbf16>
    %cst = arith.constant dense<0.000000e+00> : vector<32x16xf32>
    %2 = tpu.matmul %0, %1, %cst {dimension_numbers = #tpu.dot_dimension_numbers<[1], [0], [0], [1], [0, 0, 1, 1], [], []>} : vector<32x100xbf16>, vector<100x16xbf16>, vector<32x16xf32> -> vector<32x16xf32>
    %c0_3 = arith.constant 0 : index
    %c0_4 = arith.constant 0 : index
    %3 = vector.load %arg2[%c0_3, %c0_4] : memref<1x16xf32, #tpu.memory_space<vmem>>, vector<1x16xf32>
    %c0_5 = arith.constant 0 : index
    %c0_6 = arith.constant 0 : index
    %4 = vector.load %arg3[%c0_5, %c0_6] : memref<1x16xf32, #tpu.memory_space<vmem>>, vector<1x16xf32>
    %cst_7 = arith.constant dense<0.000000e+00> : vector<16xf32>
    %5 = vector.multi_reduction <add>, %2, %cst_7 [0] : vector<32x16xf32> to vector<16xf32>
    %6 = vector.shape_cast %5 : vector<16xf32> to vector<1x16xf32>
    %cst_8 = arith.constant 3.200000e+01 : f32
    %7 = vector.broadcast %cst_8 : f32 to vector<1x16xf32>
    %8 = arith.divf %6, %7 : vector<1x16xf32>
    %9 = vector.broadcast %8 : vector<1x16xf32> to vector<32x16xf32>
    %10 = arith.subf %2, %9 : vector<32x16xf32>
    %11 = arith.mulf %10, %10 : vector<32x16xf32>
    %cst_9 = arith.constant dense<0.000000e+00> : vector<16xf32>
    %12 = vector.multi_reduction <add>, %11, %cst_9 [0] : vector<32x16xf32> to vector<16xf32>
    %13 = vector.shape_cast %12 : vector<16xf32> to vector<1x16xf32>
    %cst_10 = arith.constant 3.200000e+01 : f32
    %14 = vector.broadcast %cst_10 : f32 to vector<1x16xf32>
    %15 = arith.divf %13, %14 : vector<1x16xf32>
    %cst_11 = arith.constant 9.99999974E-6 : f32
    %16 = vector.broadcast %cst_11 : f32 to vector<1x16xf32>
    %17 = arith.addf %15, %16 : vector<1x16xf32>
    %18 = math.rsqrt %17 : vector<1x16xf32>
    %19 = arith.mulf %3, %18 : vector<1x16xf32>
    %20 = arith.mulf %8, %19 : vector<1x16xf32>
    %21 = arith.subf %4, %20 : vector<1x16xf32>
    %22 = vector.broadcast %19 : vector<1x16xf32> to vector<32x16xf32>
    %23 = arith.mulf %2, %22 : vector<32x16xf32>
    %24 = vector.broadcast %21 : vector<1x16xf32> to vector<32x16xf32>
    %25 = arith.addf %23, %24 : vector<32x16xf32>
    %26 = tpu.iota {dimensions = array<i32: 1>} : vector<32x16xi32>
    %c8_i32 = arith.constant 8 : i32
    %27 = vector.broadcast %c8_i32 : i32 to vector<32x16xi32>
    %28 = arith.cmpi slt, %26, %27 : vector<32x16xi32>
    %cst_12 = arith.constant 0.000000e+00 : f32
    %29 = vector.broadcast %cst_12 : f32 to vector<32x16xf32>
    %30 = arith.maximumf %25, %29 : vector<32x16xf32>
    %31 = arith.select %28, %30, %25 : vector<32x16xi1>, vector<32x16xf32>
    %c0_13 = arith.constant 0 : index
    %c0_14 = arith.constant 0 : index
    %32 = vector.load %arg4[%c0_13, %c0_14] : memref<32x16xf32, #tpu.memory_space<vmem>>, vector<32x16xf32>
    tpu.vector_store %arg4[%c0_13, %c0_14], %31 {strides = array<i32>} : memref<32x16xf32, #tpu.memory_space<vmem>>, vector<32x16xf32>,
    return
  }
}

module attributes {stable_mosaic.version = 11 : i64} {
  func.func @_stem_kernel(%arg0: memref<162x4xbf16, #tpu.memory_space<vmem>>, %arg1: memref<4x16xbf16, #tpu.memory_space<vmem>>, %arg2: memref<1x16xf32, #tpu.memory_space<vmem>>, %arg3: memref<1x16xf32, #tpu.memory_space<vmem>>, %arg4: memref<162x16xf32, #tpu.memory_space<vmem>>) attributes {dimension_semantics = [], scalar_prefetch = 0 : i64, scratch_operands = 0 : i64, tpu.core_type = #tpu.core_type<tc>} {
    %c0 = arith.constant 0 : index
    %c0_0 = arith.constant 0 : index
    %0 = vector.load %arg0[%c0, %c0_0] : memref<162x4xbf16, #tpu.memory_space<vmem>>, vector<162x4xbf16>
    %c0_1 = arith.constant 0 : index
    %c0_2 = arith.constant 0 : index
    %1 = vector.load %arg1[%c0_1, %c0_2] : memref<4x16xbf16, #tpu.memory_space<vmem>>, vector<4x16xbf16>
    %cst = arith.constant dense<0.000000e+00> : vector<162x16xf32>
    %2 = tpu.matmul %0, %1, %cst {dimension_numbers = #tpu.dot_dimension_numbers<[1], [0], [0], [1], [0, 0, 1, 1], [], []>} : vector<162x4xbf16>, vector<4x16xbf16>, vector<162x16xf32> -> vector<162x16xf32>
    %c0_3 = arith.constant 0 : index
    %c0_4 = arith.constant 0 : index
    %3 = vector.load %arg2[%c0_3, %c0_4] : memref<1x16xf32, #tpu.memory_space<vmem>>, vector<1x16xf32>
    %c0_5 = arith.constant 0 : index
    %c0_6 = arith.constant 0 : index
    %4 = vector.load %arg3[%c0_5, %c0_6] : memref<1x16xf32, #tpu.memory_space<vmem>>, vector<1x16xf32>
    %cst_7 = arith.constant dense<0.000000e+00> : vector<16xf32>
    %5 = vector.multi_reduction <add>, %2, %cst_7 [0] : vector<162x16xf32> to vector<16xf32>
    %6 = vector.shape_cast %5 : vector<16xf32> to vector<1x16xf32>
    %cst_8 = arith.constant 1.620000e+02 : f32
    %7 = vector.broadcast %cst_8 : f32 to vector<1x16xf32>
    %8 = arith.divf %6, %7 : vector<1x16xf32>
    %9 = vector.broadcast %8 : vector<1x16xf32> to vector<162x16xf32>
    %10 = arith.subf %2, %9 : vector<162x16xf32>
    %11 = arith.mulf %10, %10 : vector<162x16xf32>
    %cst_9 = arith.constant dense<0.000000e+00> : vector<16xf32>
    %12 = vector.multi_reduction <add>, %11, %cst_9 [0] : vector<162x16xf32> to vector<16xf32>
    %13 = vector.shape_cast %12 : vector<16xf32> to vector<1x16xf32>
    %cst_10 = arith.constant 1.620000e+02 : f32
    %14 = vector.broadcast %cst_10 : f32 to vector<1x16xf32>
    %15 = arith.divf %13, %14 : vector<1x16xf32>
    %cst_11 = arith.constant 9.99999974E-6 : f32
    %16 = vector.broadcast %cst_11 : f32 to vector<1x16xf32>
    %17 = arith.addf %15, %16 : vector<1x16xf32>
    %18 = math.rsqrt %17 : vector<1x16xf32>
    %19 = arith.mulf %3, %18 : vector<1x16xf32>
    %20 = arith.mulf %8, %19 : vector<1x16xf32>
    %21 = arith.subf %4, %20 : vector<1x16xf32>
    %22 = vector.broadcast %19 : vector<1x16xf32> to vector<162x16xf32>
    %23 = arith.mulf %2, %22 : vector<162x16xf32>
    %24 = vector.broadcast %21 : vector<1x16xf32> to vector<162x16xf32>
    %25 = arith.addf %23, %24 : vector<162x16xf32>
    %cst_12 = arith.constant 0.000000e+00 : f32
    %26 = vector.broadcast %cst_12 : f32 to vector<162x16xf32>
    %27 = arith.maximumf %25, %26 : vector<162x16xf32>
    %c0_13 = arith.constant 0 : index
    %c0_14 = arith.constant 0 : index
    %28 = vector.load %arg4[%c0_13, %c0_14] : memref<162x16xf32, #tpu.memory_space<vmem>>, vector<162x16xf32>
    tpu.vector_store %arg4[%c0_13, %c0_14], %27 {strides = array<i32>} : memref<162x16xf32, #tpu.memory_space<vmem>>, vector<162x16xf32>,
    return
  }
}

module attributes {stable_mosaic.version = 11 : i64} {
  func.func @_stem_kernel(%arg0: memref<9x32x4xbf16, #tpu.memory_space<vmem>>, %arg1: memref<4x16xbf16, #tpu.memory_space<vmem>>, %arg2: memref<1x16xf32, #tpu.memory_space<vmem>>, %arg3: memref<1x16xf32, #tpu.memory_space<vmem>>, %arg4: memref<32x16xf32, #tpu.memory_space<vmem>>) attributes {dimension_semantics = [], scalar_prefetch = 0 : i64, scratch_operands = 0 : i64, tpu.core_type = #tpu.core_type<tc>} {
    %c0 = arith.constant 0 : index
    %c0_0 = arith.constant 0 : index
    %c0_1 = arith.constant 0 : index
    %0 = vector.load %arg0[%c0, %c0_0, %c0_1] : memref<9x32x4xbf16, #tpu.memory_space<vmem>>, vector<9x32x4xbf16>
    %1 = arith.extf %0 : vector<9x32x4xbf16> to vector<9x32x4xf32>
    %cst = arith.constant dense<0.000000e+00> : vector<32x4xf32>
    %2 = vector.multi_reduction <add>, %1, %cst [0] : vector<9x32x4xf32> to vector<32x4xf32>
    %cst_2 = arith.constant 9.000000e+00 : f32
    %3 = vector.broadcast %cst_2 : f32 to vector<32x4xf32>
    %4 = arith.divf %2, %3 : vector<32x4xf32>
    %5 = arith.truncf %4 : vector<32x4xf32> to vector<32x4xbf16>
    %c0_3 = arith.constant 0 : index
    %c0_4 = arith.constant 0 : index
    %6 = vector.load %arg1[%c0_3, %c0_4] : memref<4x16xbf16, #tpu.memory_space<vmem>>, vector<4x16xbf16>
    %cst_5 = arith.constant dense<0.000000e+00> : vector<32x16xf32>
    %7 = tpu.matmul %5, %6, %cst_5 {dimension_numbers = #tpu.dot_dimension_numbers<[1], [0], [0], [1], [0, 0, 1, 1], [], []>} : vector<32x4xbf16>, vector<4x16xbf16>, vector<32x16xf32> -> vector<32x16xf32>
    %c0_6 = arith.constant 0 : index
    %c0_7 = arith.constant 0 : index
    %8 = vector.load %arg2[%c0_6, %c0_7] : memref<1x16xf32, #tpu.memory_space<vmem>>, vector<1x16xf32>
    %c0_8 = arith.constant 0 : index
    %c0_9 = arith.constant 0 : index
    %9 = vector.load %arg3[%c0_8, %c0_9] : memref<1x16xf32, #tpu.memory_space<vmem>>, vector<1x16xf32>
    %cst_10 = arith.constant dense<0.000000e+00> : vector<16xf32>
    %10 = vector.multi_reduction <add>, %7, %cst_10 [0] : vector<32x16xf32> to vector<16xf32>
    %11 = vector.shape_cast %10 : vector<16xf32> to vector<1x16xf32>
    %cst_11 = arith.constant 3.200000e+01 : f32
    %12 = vector.broadcast %cst_11 : f32 to vector<1x16xf32>
    %13 = arith.divf %11, %12 : vector<1x16xf32>
    %14 = vector.broadcast %13 : vector<1x16xf32> to vector<32x16xf32>
    %15 = arith.subf %7, %14 : vector<32x16xf32>
    %16 = arith.mulf %15, %15 : vector<32x16xf32>
    %cst_12 = arith.constant dense<0.000000e+00> : vector<16xf32>
    %17 = vector.multi_reduction <add>, %16, %cst_12 [0] : vector<32x16xf32> to vector<16xf32>
    %18 = vector.shape_cast %17 : vector<16xf32> to vector<1x16xf32>
    %cst_13 = arith.constant 3.200000e+01 : f32
    %19 = vector.broadcast %cst_13 : f32 to vector<1x16xf32>
    %20 = arith.divf %18, %19 : vector<1x16xf32>
    %cst_14 = arith.constant 9.99999974E-6 : f32
    %21 = vector.broadcast %cst_14 : f32 to vector<1x16xf32>
    %22 = arith.addf %20, %21 : vector<1x16xf32>
    %23 = math.rsqrt %22 : vector<1x16xf32>
    %24 = arith.mulf %8, %23 : vector<1x16xf32>
    %25 = arith.mulf %13, %24 : vector<1x16xf32>
    %26 = arith.subf %9, %25 : vector<1x16xf32>
    %27 = vector.broadcast %24 : vector<1x16xf32> to vector<32x16xf32>
    %28 = arith.mulf %7, %27 : vector<32x16xf32>
    %29 = vector.broadcast %26 : vector<1x16xf32> to vector<32x16xf32>
    %30 = arith.addf %28, %29 : vector<32x16xf32>
    %31 = tpu.iota {dimensions = array<i32: 1>} : vector<32x16xi32>
    %c8_i32 = arith.constant 8 : i32
    %32 = vector.broadcast %c8_i32 : i32 to vector<32x16xi32>
    %33 = arith.cmpi slt, %31, %32 : vector<32x16xi32>
    %cst_15 = arith.constant 0.000000e+00 : f32
    %34 = vector.broadcast %cst_15 : f32 to vector<32x16xf32>
    %35 = arith.maximumf %30, %34 : vector<32x16xf32>
    %36 = arith.select %33, %35, %30 : vector<32x16xi1>, vector<32x16xf32>
    %c0_16 = arith.constant 0 : index
    %c0_17 = arith.constant 0 : index
    %37 = vector.load %arg4[%c0_16, %c0_17] : memref<32x16xf32, #tpu.memory_space<vmem>>, vector<32x16xf32>
    tpu.vector_store %arg4[%c0_16, %c0_17], %36 {strides = array<i32>} : memref<32x16xf32, #tpu.memory_space<vmem>>, vector<32x16xf32>,
    return
  }
}

module attributes {stable_mosaic.version = 11 : i64} {
  func.func @_final_merge_kernel(%arg0: memref<9x32x16xf32, #tpu.memory_space<vmem>>, %arg1: memref<32x200xbf16, #tpu.memory_space<vmem>>, %arg2: memref<200x8xbf16, #tpu.memory_space<vmem>>, %arg3: memref<1x8xf32, #tpu.memory_space<vmem>>, %arg4: memref<1x8xf32, #tpu.memory_space<vmem>>, %arg5: memref<32x8xf32, #tpu.memory_space<vmem>>, %arg6: memref<32x72xbf16, #tpu.memory_space<vmem>>, %arg7: memref<72x8xbf16, #tpu.memory_space<vmem>>, %arg8: memref<1x8xf32, #tpu.memory_space<vmem>>, %arg9: memref<1x8xf32, #tpu.memory_space<vmem>>, %arg10: memref<32x8xf32, #tpu.memory_space<vmem>>, %arg11: memref<32x8xbf16, #tpu.memory_space<vmem>>, %arg12: memref<8x8xbf16, #tpu.memory_space<vmem>>, %arg13: memref<1x8xf32, #tpu.memory_space<vmem>>, %arg14: memref<1x8xf32, #tpu.memory_space<vmem>>, %arg15: memref<32x8xf32, #tpu.memory_space<vmem>>, %arg16: memref<32x32xf32, #tpu.memory_space<vmem>>) attributes {dimension_semantics = [], scalar_prefetch = 0 : i64, scratch_operands = 0 : i64, tpu.core_type = #tpu.core_type<tc>} {
    %c0 = arith.constant 0 : index
    %c0_0 = arith.constant 0 : index
    %c0_1 = arith.constant 0 : index
    %0 = vector.load %arg0[%c0, %c0_0, %c0_1] : memref<9x32x16xf32, #tpu.memory_space<vmem>>, vector<9x32x16xf32>
    %1 = vector.extract_strided_slice %0 {offsets = [0, 0, 0], sizes = [9, 32, 8], strides = [1, 1, 1]} : vector<9x32x16xf32> to vector<9x32x8xf32>
    %cst = arith.constant dense<0.000000e+00> : vector<32x8xf32>
    %2 = vector.multi_reduction <add>, %1, %cst [0] : vector<9x32x8xf32> to vector<32x8xf32>
    %cst_2 = arith.constant 9.000000e+00 : f32
    %3 = vector.broadcast %cst_2 : f32 to vector<32x8xf32>
    %4 = arith.divf %2, %3 : vector<32x8xf32>
    %5 = vector.extract_strided_slice %0 {offsets = [0, 0, 8], sizes = [9, 32, 8], strides = [1, 1, 1]} : vector<9x32x16xf32> to vector<9x32x8xf32>
    %cst_3 = arith.constant dense<0xFF800000> : vector<32x8xf32>
    %6 = vector.multi_reduction <maximumf>, %5, %cst_3 [0] : vector<9x32x8xf32> to vector<32x8xf32>
    %7 = arith.addf %4, %6 : vector<32x8xf32>
    %cst_4 = arith.constant 0.000000e+00 : f32
    %8 = vector.broadcast %cst_4 : f32 to vector<32x8xf32>
    %9 = arith.maximumf %7, %8 : vector<32x8xf32>
    %c0_5 = arith.constant 0 : index
    %c0_6 = arith.constant 0 : index
    %10 = vector.load %arg1[%c0_5, %c0_6] : memref<32x200xbf16, #tpu.memory_space<vmem>>, vector<32x200xbf16>
    %c0_7 = arith.constant 0 : index
    %c0_8 = arith.constant 0 : index
    %11 = vector.load %arg2[%c0_7, %c0_8] : memref<200x8xbf16, #tpu.memory_space<vmem>>, vector<200x8xbf16>
    %cst_9 = arith.constant dense<0.000000e+00> : vector<32x8xf32>
    %12 = tpu.matmul %10, %11, %cst_9 {dimension_numbers = #tpu.dot_dimension_numbers<[1], [0], [0], [1], [0, 0, 1, 1], [], []>} : vector<32x200xbf16>, vector<200x8xbf16>, vector<32x8xf32> -> vector<32x8xf32>
    %c0_10 = arith.constant 0 : index
    %c0_11 = arith.constant 0 : index
    %13 = vector.load %arg3[%c0_10, %c0_11] : memref<1x8xf32, #tpu.memory_space<vmem>>, vector<1x8xf32>
    %c0_12 = arith.constant 0 : index
    %c0_13 = arith.constant 0 : index
    %14 = vector.load %arg4[%c0_12, %c0_13] : memref<1x8xf32, #tpu.memory_space<vmem>>, vector<1x8xf32>
    %cst_14 = arith.constant dense<0.000000e+00> : vector<8xf32>
    %15 = vector.multi_reduction <add>, %12, %cst_14 [0] : vector<32x8xf32> to vector<8xf32>
    %16 = vector.shape_cast %15 : vector<8xf32> to vector<1x8xf32>
    %cst_15 = arith.constant 3.200000e+01 : f32
    %17 = vector.broadcast %cst_15 : f32 to vector<1x8xf32>
    %18 = arith.divf %16, %17 : vector<1x8xf32>
    %19 = vector.broadcast %18 : vector<1x8xf32> to vector<32x8xf32>
    %20 = arith.subf %12, %19 : vector<32x8xf32>
    %21 = arith.mulf %20, %20 : vector<32x8xf32>
    %cst_16 = arith.constant dense<0.000000e+00> : vector<8xf32>
    %22 = vector.multi_reduction <add>, %21, %cst_16 [0] : vector<32x8xf32> to vector<8xf32>
    %23 = vector.shape_cast %22 : vector<8xf32> to vector<1x8xf32>
    %cst_17 = arith.constant 3.200000e+01 : f32
    %24 = vector.broadcast %cst_17 : f32 to vector<1x8xf32>
    %25 = arith.divf %23, %24 : vector<1x8xf32>
    %cst_18 = arith.constant 9.99999974E-6 : f32
    %26 = vector.broadcast %cst_18 : f32 to vector<1x8xf32>
    %27 = arith.addf %25, %26 : vector<1x8xf32>
    %28 = math.rsqrt %27 : vector<1x8xf32>
    %29 = arith.mulf %13, %28 : vector<1x8xf32>
    %30 = arith.mulf %18, %29 : vector<1x8xf32>
    %31 = arith.subf %14, %30 : vector<1x8xf32>
    %32 = vector.broadcast %29 : vector<1x8xf32> to vector<32x8xf32>
    %33 = arith.mulf %12, %32 : vector<32x8xf32>
    %34 = vector.broadcast %31 : vector<1x8xf32> to vector<32x8xf32>
    %35 = arith.addf %33, %34 : vector<32x8xf32>
    %c0_19 = arith.constant 0 : index
    %c0_20 = arith.constant 0 : index
    %36 = vector.load %arg5[%c0_19, %c0_20] : memref<32x8xf32, #tpu.memory_space<vmem>>, vector<32x8xf32>
    %37 = arith.addf %35, %36 : vector<32x8xf32>
    %cst_21 = arith.constant 0.000000e+00 : f32
    %38 = vector.broadcast %cst_21 : f32 to vector<32x8xf32>
    %39 = arith.maximumf %37, %38 : vector<32x8xf32>
    %c0_22 = arith.constant 0 : index
    %c0_23 = arith.constant 0 : index
    %40 = vector.load %arg6[%c0_22, %c0_23] : memref<32x72xbf16, #tpu.memory_space<vmem>>, vector<32x72xbf16>
    %c0_24 = arith.constant 0 : index
    %c0_25 = arith.constant 0 : index
    %41 = vector.load %arg7[%c0_24, %c0_25] : memref<72x8xbf16, #tpu.memory_space<vmem>>, vector<72x8xbf16>
    %cst_26 = arith.constant dense<0.000000e+00> : vector<32x8xf32>
    %42 = tpu.matmul %40, %41, %cst_26 {dimension_numbers = #tpu.dot_dimension_numbers<[1], [0], [0], [1], [0, 0, 1, 1], [], []>} : vector<32x72xbf16>, vector<72x8xbf16>, vector<32x8xf32> -> vector<32x8xf32>
    %c0_27 = arith.constant 0 : index
    %c0_28 = arith.constant 0 : index
    %43 = vector.load %arg8[%c0_27, %c0_28] : memref<1x8xf32, #tpu.memory_space<vmem>>, vector<1x8xf32>
    %c0_29 = arith.constant 0 : index
    %c0_30 = arith.constant 0 : index
    %44 = vector.load %arg9[%c0_29, %c0_30] : memref<1x8xf32, #tpu.memory_space<vmem>>, vector<1x8xf32>
    %cst_31 = arith.constant dense<0.000000e+00> : vector<8xf32>
    %45 = vector.multi_reduction <add>, %42, %cst_31 [0] : vector<32x8xf32> to vector<8xf32>
    %46 = vector.shape_cast %45 : vector<8xf32> to vector<1x8xf32>
    %cst_32 = arith.constant 3.200000e+01 : f32
    %47 = vector.broadcast %cst_32 : f32 to vector<1x8xf32>
    %48 = arith.divf %46, %47 : vector<1x8xf32>
    %49 = vector.broadcast %48 : vector<1x8xf32> to vector<32x8xf32>
    %50 = arith.subf %42, %49 : vector<32x8xf32>
    %51 = arith.mulf %50, %50 : vector<32x8xf32>
    %cst_33 = arith.constant dense<0.000000e+00> : vector<8xf32>
    %52 = vector.multi_reduction <add>, %51, %cst_33 [0] : vector<32x8xf32> to vector<8xf32>
    %53 = vector.shape_cast %52 : vector<8xf32> to vector<1x8xf32>
    %cst_34 = arith.constant 3.200000e+01 : f32
    %54 = vector.broadcast %cst_34 : f32 to vector<1x8xf32>
    %55 = arith.divf %53, %54 : vector<1x8xf32>
    %cst_35 = arith.constant 9.99999974E-6 : f32
    %56 = vector.broadcast %cst_35 : f32 to vector<1x8xf32>
    %57 = arith.addf %55, %56 : vector<1x8xf32>
    %58 = math.rsqrt %57 : vector<1x8xf32>
    %59 = arith.mulf %43, %58 : vector<1x8xf32>
    %60 = arith.mulf %48, %59 : vector<1x8xf32>
    %61 = arith.subf %44, %60 : vector<1x8xf32>
    %62 = vector.broadcast %59 : vector<1x8xf32> to vector<32x8xf32>
    %63 = arith.mulf %42, %62 : vector<32x8xf32>
    %64 = vector.broadcast %61 : vector<1x8xf32> to vector<32x8xf32>
    %65 = arith.addf %63, %64 : vector<32x8xf32>
    %c0_36 = arith.constant 0 : index
    %c0_37 = arith.constant 0 : index
    %66 = vector.load %arg10[%c0_36, %c0_37] : memref<32x8xf32, #tpu.memory_space<vmem>>, vector<32x8xf32>
    %67 = arith.addf %65, %66 : vector<32x8xf32>
    %cst_38 = arith.constant 0.000000e+00 : f32
    %68 = vector.broadcast %cst_38 : f32 to vector<32x8xf32>
    %69 = arith.maximumf %67, %68 : vector<32x8xf32>
    %c0_39 = arith.constant 0 : index
    %c0_40 = arith.constant 0 : index
    %70 = vector.load %arg11[%c0_39, %c0_40] : memref<32x8xbf16, #tpu.memory_space<vmem>>, vector<32x8xbf16>
    %c0_41 = arith.constant 0 : index
    %c0_42 = arith.constant 0 : index
    %71 = vector.load %arg12[%c0_41, %c0_42] : memref<8x8xbf16, #tpu.memory_space<vmem>>, vector<8x8xbf16>
    %cst_43 = arith.constant dense<0.000000e+00> : vector<32x8xf32>
    %72 = tpu.matmul %70, %71, %cst_43 {dimension_numbers = #tpu.dot_dimension_numbers<[1], [0], [0], [1], [0, 0, 1, 1], [], []>} : vector<32x8xbf16>, vector<8x8xbf16>, vector<32x8xf32> -> vector<32x8xf32>
    %c0_44 = arith.constant 0 : index
    %c0_45 = arith.constant 0 : index
    %73 = vector.load %arg13[%c0_44, %c0_45] : memref<1x8xf32, #tpu.memory_space<vmem>>, vector<1x8xf32>
    %c0_46 = arith.constant 0 : index
    %c0_47 = arith.constant 0 : index
    %74 = vector.load %arg14[%c0_46, %c0_47] : memref<1x8xf32, #tpu.memory_space<vmem>>, vector<1x8xf32>
    %cst_48 = arith.constant dense<0.000000e+00> : vector<8xf32>
    %75 = vector.multi_reduction <add>, %72, %cst_48 [0] : vector<32x8xf32> to vector<8xf32>
    %76 = vector.shape_cast %75 : vector<8xf32> to vector<1x8xf32>
    %cst_49 = arith.constant 3.200000e+01 : f32
    %77 = vector.broadcast %cst_49 : f32 to vector<1x8xf32>
    %78 = arith.divf %76, %77 : vector<1x8xf32>
    %79 = vector.broadcast %78 : vector<1x8xf32> to vector<32x8xf32>
    %80 = arith.subf %72, %79 : vector<32x8xf32>
    %81 = arith.mulf %80, %80 : vector<32x8xf32>
    %cst_50 = arith.constant dense<0.000000e+00> : vector<8xf32>
    %82 = vector.multi_reduction <add>, %81, %cst_50 [0] : vector<32x8xf32> to vector<8xf32>
    %83 = vector.shape_cast %82 : vector<8xf32> to vector<1x8xf32>
    %cst_51 = arith.constant 3.200000e+01 : f32
    %84 = vector.broadcast %cst_51 : f32 to vector<1x8xf32>
    %85 = arith.divf %83, %84 : vector<1x8xf32>
    %cst_52 = arith.constant 9.99999974E-6 : f32
    %86 = vector.broadcast %cst_52 : f32 to vector<1x8xf32>
    %87 = arith.addf %85, %86 : vector<1x8xf32>
    %88 = math.rsqrt %87 : vector<1x8xf32>
    %89 = arith.mulf %73, %88 : vector<1x8xf32>
    %90 = arith.mulf %78, %89 : vector<1x8xf32>
    %91 = arith.subf %74, %90 : vector<1x8xf32>
    %92 = vector.broadcast %89 : vector<1x8xf32> to vector<32x8xf32>
    %93 = arith.mulf %72, %92 : vector<32x8xf32>
    %94 = vector.broadcast %91 : vector<1x8xf32> to vector<32x8xf32>
    %95 = arith.addf %93, %94 : vector<32x8xf32>
    %c0_53 = arith.constant 0 : index
    %c0_54 = arith.constant 0 : index
    %96 = vector.load %arg15[%c0_53, %c0_54] : memref<32x8xf32, #tpu.memory_space<vmem>>, vector<32x8xf32>
    %97 = arith.addf %95, %96 : vector<32x8xf32>
    %cst_55 = arith.constant 0.000000e+00 : f32
    %98 = vector.broadcast %cst_55 : f32 to vector<32x8xf32>
    %99 = arith.maximumf %97, %98 : vector<32x8xf32>
    %100 = tpu.concatenate %9, %39, %69, %99 in 1 : vector<32x8xf32>, vector<32x8xf32>, vector<32x8xf32>, vector<32x8xf32> -> vector<32x32xf32>
    %c0_56 = arith.constant 0 : index
    %c0_57 = arith.constant 0 : index
    %101 = vector.load %arg16[%c0_56, %c0_57] : memref<32x32xf32, #tpu.memory_space<vmem>>, vector<32x32xf32>
    tpu.vector_store %arg16[%c0_56, %c0_57], %100 {strides = array<i32>} : memref<32x32xf32, #tpu.memory_space<vmem>>, vector<32x32xf32>,
    return
  }
}

</mosaic_0001>

<llo_original>
// kernel: inception_res_forward.15
$region0: #{inception_res_forward.15}
  #allocation0 [shape = 'u32[]', space=smem, size = 0x4, offset = 0x4, fixed_abs, tag = 'smem constant byte address 0x4 - core index']
  #allocation1 [shape = 'u32[144,128]{1,0:T(1,128)}', space=vmem, size = 0x12000, scoped, tag = 'internal scratch']
  %s0 = inlined_call_operand.vmem [shape: bf16[512,4], index: 0, kind: input, shape index: {}]
  %s1 = inlined_call_operand.vmem [shape: bf16[4,4], index: 1, kind: input, shape index: {}]
  %s2 = inlined_call_operand.vmem [shape: f32[1,4], index: 2, kind: input, shape index: {}]
  %s3 = inlined_call_operand.vmem [shape: f32[1,4], index: 3, kind: input, shape index: {}]
  %s4 = inlined_call_operand.vmem [shape: f32[512,4], index: 4, kind: output, shape index: {}]
  %s5 = sld [smem:[#allocation0]]
  $region26: #{inception_res_forward.15} parent=0
    _
  %s7 = ssub.s32 1, %s5
  %s8 = scalar_select 0, %s7, %s5
  // Predicated region
  $region2: #{inception_res_forward.15} parent=0 // pred_check
    _
  $region3: #{inception_res_forward.15} parent=0 // pred_check_branch
    %10 = sbr.rel (0) target = $region5
  $region4: #{inception_res_forward.15} parent=0 // pred_region
    _
  $region5: #{inception_res_forward.15} parent=0 // pred_fallthru
    _
  // Predicated region
  $region6: #{inception_res_forward.15} parent=0 // pred_check
    _
  $region7: #{inception_res_forward.15} parent=0 // pred_check_branch
    %12 = sbr.rel (0) target = $region9
  $region8: #{inception_res_forward.15} parent=0 // pred_region
    _
  $region9: #{inception_res_forward.15} parent=0 // pred_fallthru
    _
  // Predicated region
  $region10: #{inception_res_forward.15} parent=0 // pred_check
    _
  $region11: #{inception_res_forward.15} parent=0 // pred_check_branch
    %14 = sbr.rel (0) target = $region13
  $region12: #{inception_res_forward.15} parent=0 // pred_region
    _
  $region13: #{inception_res_forward.15} parent=0 // pred_fallthru
    _
  // Predicated region
  $region14: #{inception_res_forward.15} parent=0 // pred_check
    _
  $region15: #{inception_res_forward.15} parent=0 // pred_check_branch
    %16 = sbr.rel (0) target = $region17
  $region16: #{inception_res_forward.15} parent=0 // pred_region
    _
  $region17: #{inception_res_forward.15} parent=0 // pred_fallthru
    _
  %v18 = vld [vmem:[%s0] sm:$0xf]
  %v19 = vld [vmem:[%s0 + $0x4] sm:$0xf]
  %v20 = vld [vmem:[%s0 + $0x8] sm:$0xf]
  %v21 = vld [vmem:[%s0 + $0xc] sm:$0xf]
  %v22 = vld [vmem:[%s0 + $0x10] sm:$0xf]
  %v23 = vld [vmem:[%s0 + $0x14] sm:$0xf]
  %v24 = vld [vmem:[%s0 + $0x18] sm:$0xf]
  %v25 = vld [vmem:[%s0 + $0x1c] sm:$0xf]
  %v26 = vld [vmem:[%s0 + $0x20] sm:$0xf]
  %v27 = vld [vmem:[%s0 + $0x24] sm:$0xf]
  %v28 = vld [vmem:[%s0 + $0x28] sm:$0xf]
  %v29 = vld [vmem:[%s0 + $0x2c] sm:$0xf]
  %v30 = vld [vmem:[%s0 + $0x30] sm:$0xf]
  %v31 = vld [vmem:[%s0 + $0x34] sm:$0xf]
  %v32 = vld [vmem:[%s0 + $0x38] sm:$0xf]
  %v33 = vld [vmem:[%s0 + $0x3c] sm:$0xf]
  %v34 = vld [vmem:[%s0 + $0x40] sm:$0xf]
  %v35 = vld [vmem:[%s0 + $0x44] sm:$0xf]
  %v36 = vld [vmem:[%s0 + $0x48] sm:$0xf]
  %v37 = vld [vmem:[%s0 + $0x4c] sm:$0xf]
  %v38 = vld [vmem:[%s0 + $0x50] sm:$0xf]
  %v39 = vld [vmem:[%s0 + $0x54] sm:$0xf]
  %v40 = vld [vmem:[%s0 + $0x58] sm:$0xf]
  %v41 = vld [vmem:[%s0 + $0x5c] sm:$0xf]
  %v42 = vld [vmem:[%s0 + $0x60] sm:$0xf]
  %v43 = vld [vmem:[%s0 + $0x64] sm:$0xf]
  %v44 = vld [vmem:[%s0 + $0x68] sm:$0xf]
  %v45 = vld [vmem:[%s0 + $0x6c] sm:$0xf]
  %v46 = vld [vmem:[%s0 + $0x70] sm:$0xf]
  %v47 = vld [vmem:[%s0 + $0x74] sm:$0xf]
  %v48 = vld [vmem:[%s0 + $0x78] sm:$0xf]
  %v49 = vld [vmem:[%s0 + $0x7c] sm:$0xf]
  %v50 = vld [vmem:[%s0 + $0x80] sm:$0xf]
  %v51 = vld [vmem:[%s0 + $0x84] sm:$0xf]
  %v52 = vld [vmem:[%s0 + $0x88] sm:$0xf]
  %v53 = vld [vmem:[%s0 + $0x8c] sm:$0xf]
  %v54 = vld [vmem:[%s0 + $0x90] sm:$0xf]
  %v55 = vld [vmem:[%s0 + $0x94] sm:$0xf]
  %v56 = vld [vmem:[%s0 + $0x98] sm:$0xf]
  %v57 = vld [vmem:[%s0 + $0x9c] sm:$0xf]
  %v58 = vld [vmem:[%s0 + $0xa0] sm:$0xf]
  %v59 = vld [vmem:[%s0 + $0xa4] sm:$0xf]
  %v60 = vld [vmem:[%s0 + $0xa8] sm:$0xf]
  %v61 = vld [vmem:[%s0 + $0xac] sm:$0xf]
  %v62 = vld [vmem:[%s0 + $0xb0] sm:$0xf]
  %v63 = vld [vmem:[%s0 + $0xb4] sm:$0xf]
  %v64 = vld [vmem:[%s0 + $0xb8] sm:$0xf]
  %v65 = vld [vmem:[%s0 + $0xbc] sm:$0xf]
  %v66 = vld [vmem:[%s0 + $0xc0] sm:$0xf]
  %v67 = vld [vmem:[%s0 + $0xc4] sm:$0xf]
  %v68 = vld [vmem:[%s0 + $0xc8] sm:$0xf]
  %v69 = vld [vmem:[%s0 + $0xcc] sm:$0xf]
  %v70 = vld [vmem:[%s0 + $0xd0] sm:$0xf]
  %v71 = vld [vmem:[%s0 + $0xd4] sm:$0xf]
  %v72 = vld [vmem:[%s0 + $0xd8] sm:$0xf]
  %v73 = vld [vmem:[%s0 + $0xdc] sm:$0xf]
  %v74 = vld [vmem:[%s0 + $0xe0] sm:$0xf]
  %v75 = vld [vmem:[%s0 + $0xe4] sm:$0xf]
  %v76 = vld [vmem:[%s0 + $0xe8] sm:$0xf]
  %v77 = vld [vmem:[%s0 + $0xec] sm:$0xf]
  %v78 = vld [vmem:[%s0 + $0xf0] sm:$0xf]
  %v79 = vld [vmem:[%s0 + $0xf4] sm:$0xf]
  %v80 = vld [vmem:[%s0 + $0xf8] sm:$0xf]
  %v81 = vld [vmem:[%s0 + $0xfc] sm:$0xf]
  %v82 = vld [vmem:[%s1] sm:$0x3]
  %v147 = vunpack.c.l.b16 %v18
  %v148 = vunpack.c.l.b16 %v19
  %v149 = vunpack.c.l.b16 %v20
  %v150 = vunpack.c.l.b16 %v21
  %v151 = vunpack.c.l.b16 %v22
  %v152 = vunpack.c.l.b16 %v23
  %v153 = vunpack.c.l.b16 %v24
  %v154 = vunpack.c.l.b16 %v25
  %v155 = vunpack.c.l.b16 %v26
  %v156 = vunpack.c.l.b16 %v27
  %v157 = vunpack.c.l.b16 %v28
  %v158 = vunpack.c.l.b16 %v29
  %v159 = vunpack.c.l.b16 %v30
  %v160 = vunpack.c.l.b16 %v31
  %v161 = vunpack.c.l.b16 %v32
  %v162 = vunpack.c.l.b16 %v33
  %v163 = vunpack.c.l.b16 %v34
  %v164 = vunpack.c.l.b16 %v35
  %v165 = vunpack.c.l.b16 %v36
  %v166 = vunpack.c.l.b16 %v37
  %v167 = vunpack.c.l.b16 %v38
  %v168 = vunpack.c.l.b16 %v39
  %v169 = vunpack.c.l.b16 %v40
  %v170 = vunpack.c.l.b16 %v41
  %v171 = vunpack.c.l.b16 %v42
  %v172 = vunpack.c.l.b16 %v43
  %v173 = vunpack.c.l.b16 %v44
  %v174 = vunpack.c.l.b16 %v45
  %v175 = vunpack.c.l.b16 %v46
  %v176 = vunpack.c.l.b16 %v47
  %v177 = vunpack.c.l.b16 %v48
  %v178 = vunpack.c.l.b16 %v49
  %v179 = vunpack.c.l.b16 %v50
  %v180 = vunpack.c.l.b16 %v51
  %v181 = vunpack.c.l.b16 %v52
  %v182 = vunpack.c.l.b16 %v53
  %v183 = vunpack.c.l.b16 %v54
  %v184 = vunpack.c.l.b16 %v55
  %v185 = vunpack.c.l.b16 %v56
  %v186 = vunpack.c.l.b16 %v57
  %v187 = vunpack.c.l.b16 %v58
  %v188 = vunpack.c.l.b16 %v59
  %v189 = vunpack.c.l.b16 %v60
  %v190 = vunpack.c.l.b16 %v61
  %v191 = vunpack.c.l.b16 %v62
  %v192 = vunpack.c.l.b16 %v63
  %v193 = vunpack.c.l.b16 %v64
  %v194 = vunpack.c.l.b16 %v65
  %v195 = vunpack.c.l.b16 %v66
  %v196 = vunpack.c.l.b16 %v67
  %v197 = vunpack.c.l.b16 %v68
  %v198 = vunpack.c.l.b16 %v69
  %v199 = vunpack.c.l.b16 %v70
  %v200 = vunpack.c.l.b16 %v71
  %v201 = vunpack.c.l.b16 %v72
  %v202 = vunpack.c.l.b16 %v73
  %v203 = vunpack.c.l.b16 %v74
  %v204 = vunpack.c.l.b16 %v75
  %v205 = vunpack.c.l.b16 %v76
  %v206 = vunpack.c.l.b16 %v77
  %v207 = vunpack.c.l.b16 %v78
  %v208 = vunpack.c.l.b16 %v79
  %v209 = vunpack.c.l.b16 %v80
  %v210 = vunpack.c.l.b16 %v81
  %v211 = vpack.c.b16 %v148, %v147
  %v212 = vpack.c.b16 %v150, %v149
  %v213 = vpack.c.b16 %v152, %v151
  %v214 = vpack.c.b16 %v154, %v153
  %v215 = vpack.c.b16 %v156, %v155
  %v216 = vpack.c.b16 %v158, %v157
  %v217 = vpack.c.b16 %v160, %v159
  %v218 = vpack.c.b16 %v162, %v161
  %v219 = vpack.c.b16 %v164, %v163
  %v220 = vpack.c.b16 %v166, %v165
  %v221 = vpack.c.b16 %v168, %v167
  %v222 = vpack.c.b16 %v170, %v169
  %v223 = vpack.c.b16 %v172, %v171
  %v224 = vpack.c.b16 %v174, %v173
  %v225 = vpack.c.b16 %v176, %v175
  %v226 = vpack.c.b16 %v178, %v177
  %v227 = vpack.c.b16 %v180, %v179
  %v228 = vpack.c.b16 %v182, %v181
  %v229 = vpack.c.b16 %v184, %v183
  %v230 = vpack.c.b16 %v186, %v185
  %v231 = vpack.c.b16 %v188, %v187
  %v232 = vpack.c.b16 %v190, %v189
  %v233 = vpack.c.b16 %v192, %v191
  %v234 = vpack.c.b16 %v194, %v193
  %v235 = vpack.c.b16 %v196, %v195
  %v236 = vpack.c.b16 %v198, %v197
  %v237 = vpack.c.b16 %v200, %v199
  %v238 = vpack.c.b16 %v202, %v201
  %v239 = vpack.c.b16 %v204, %v203
  %v240 = vpack.c.b16 %v206, %v205
  %v241 = vpack.c.b16 %v208, %v207
  %v242 = vpack.c.b16 %v210, %v209
  %vm243 = vcmask 31744
  %v245 = vsel %vm243, %v211, 0
  %v248 = vsel %vm243, %v212, 0
  %v251 = vsel %vm243, %v213, 0
  %v254 = vsel %vm243, %v214, 0
  %v257 = vsel %vm243, %v215, 0
  %v260 = vsel %vm243, %v216, 0
  %v263 = vsel %vm243, %v217, 0
  %v266 = vsel %vm243, %v218, 0
  %v269 = vsel %vm243, %v219, 0
  %v272 = vsel %vm243, %v220, 0
  %v275 = vsel %vm243, %v221, 0
  %v278 = vsel %vm243, %v222, 0
  %v281 = vsel %vm243, %v223, 0
  %v284 = vsel %vm243, %v224, 0
  %v287 = vsel %vm243, %v225, 0
  %v290 = vsel %vm243, %v226, 0
  %v293 = vsel %vm243, %v227, 0
  %v296 = vsel %vm243, %v228, 0
  %v299 = vsel %vm243, %v229, 0
  %v302 = vsel %vm243, %v230, 0
  %v305 = vsel %vm243, %v231, 0
  %v308 = vsel %vm243, %v232, 0
  %v311 = vsel %vm243, %v233, 0
  %v314 = vsel %vm243, %v234, 0
  %v317 = vsel %vm243, %v235, 0
  %v320 = vsel %vm243, %v236, 0
  %v323 = vsel %vm243, %v237, 0
  %v326 = vsel %vm243, %v238, 0
  %v329 = vsel %vm243, %v239, 0
  %v332 = vsel %vm243, %v240, 0
  %v335 = vsel %vm243, %v241, 0
  %v338 = vsel %vm243, %v242, 0
  %vm340 = vcmask 1041408
  %v342 = vsel %vm340, %v82, 0
  %344 = vmatprep.subr.bf16.mxu0 0
  %345 = vmatpush1.bf16.msra.mxu0 0
  %346 = vmatprep.subr.bf16.mxu0 0
  %347 = vmatpush1.bf16.msra.mxu0 0
  %348 = vmatprep.subr.bf16.mxu0 0
  %349 = vmatpush1.bf16.msra.mxu0 0
  %350 = vmatprep.subr.bf16.mxu0 0
  %351 = vmatpush1.bf16.msra.mxu0 0
  %352 = vmatprep.subr.bf16.mxu0 0
  %353 = vmatpush1.bf16.msra.mxu0 0
  %354 = vmatprep.subr.bf16.mxu0 0
  %355 = vmatpush1.bf16.msra.mxu0 0
  %356 = vmatprep.subr.bf16.mxu0 0
  %357 = vmatpush1.bf16.msra.mxu0 0
  %358 = vmatprep.subr.bf16.mxu0 0
  %359 = vmatpush1.bf16.msra.mxu0 %v342
  %360 = vmatprep.subr.bf16.mxu0 0
  %361 = vmatpush2.bf16.msra.mxu0 0
  %362 = vmatprep.subr.bf16.mxu0 0
  %363 = vmatpush2.bf16.msra.mxu0 0
  %364 = vmatprep.subr.bf16.mxu0 0
  %365 = vmatpush2.bf16.msra.mxu0 0
  %366 = vmatprep.subr.bf16.mxu0 0
  %367 = vmatpush2.bf16.msra.mxu0 0
  %368 = vmatprep.subr.bf16.mxu0 0
  %369 = vmatpush2.bf16.msra.mxu0 0
  %370 = vmatprep.subr.bf16.mxu0 0
  %371 = vmatpush2.bf16.msra.mxu0 0
  %372 = vmatprep.subr.bf16.mxu0 0
  %373 = vmatpush2.bf16.msra.mxu0 0
  %374 = vmatprep.subr.bf16.mxu0 0
  %375 = vmatpush2.bf16.msra.mxu0 0
  %376 = vmatprep.mubr.bf16.mxu0 0
  %377 = vmatmul.mubr.bf16.gmra.mxu0 %v245
  %v378 = vpop.f32.mrf.mxu0
  %v379 = vadd.f32 0.0, %v378
  %v380 = vpop.f32.mrf.mxu0
  %v381 = vpop.f32.mrf.mxu0
  %v382 = vadd.f32 0.0, %v381
  %v383 = vpop.f32.mrf.mxu0
  %384 = vmatprep.mubr.bf16.mxu0 0
  %385 = vmatmul.mubr.bf16.gmra.mxu0 %v248
  %v386 = vpop.f32.mrf.mxu0
  %v387 = vadd.f32 0.0, %v386
  %v388 = vpop.f32.mrf.mxu0
  %v389 = vpop.f32.mrf.mxu0
  %v390 = vadd.f32 0.0, %v389
  %v391 = vpop.f32.mrf.mxu0
  %392 = vmatprep.mubr.bf16.mxu0 0
  %393 = vmatmul.mubr.bf16.gmra.mxu0 %v251
  %v394 = vpop.f32.mrf.mxu0
  %v395 = vadd.f32 0.0, %v394
  %v396 = vpop.f32.mrf.mxu0
  %v397 = vpop.f32.mrf.mxu0
  %v398 = vadd.f32 0.0, %v397
  %v399 = vpop.f32.mrf.mxu0
  %400 = vmatprep.mubr.bf16.mxu0 0
  %401 = vmatmul.mubr.bf16.gmra.mxu0 %v254
  %v402 = vpop.f32.mrf.mxu0
  %v403 = vadd.f32 0.0, %v402
  %v404 = vpop.f32.mrf.mxu0
  %v405 = vpop.f32.mrf.mxu0
  %v406 = vadd.f32 0.0, %v405
  %v407 = vpop.f32.mrf.mxu0
  %408 = vmatprep.mubr.bf16.mxu0 0
  %409 = vmatmul.mubr.bf16.gmra.mxu0 %v257
  %v410 = vpop.f32.mrf.mxu0
  %v411 = vadd.f32 0.0, %v410
  %v412 = vpop.f32.mrf.mxu0
  %v413 = vpop.f32.mrf.mxu0
  %v414 = vadd.f32 0.0, %v413
  %v415 = vpop.f32.mrf.mxu0
  %416 = vmatprep.mubr.bf16.mxu0 0
  %417 = vmatmul.mubr.bf16.gmra.mxu0 %v260
  %v418 = vpop.f32.mrf.mxu0
  %v419 = vadd.f32 0.0, %v418
  %v420 = vpop.f32.mrf.mxu0
  %v421 = vpop.f32.mrf.mxu0
  %v422 = vadd.f32 0.0, %v421
  %v423 = vpop.f32.mrf.mxu0
  %424 = vmatprep.mubr.bf16.mxu0 0
  %425 = vmatmul.mubr.bf16.gmra.mxu0 %v263
  %v426 = vpop.f32.mrf.mxu0
  %v427 = vadd.f32 0.0, %v426
  %v428 = vpop.f32.mrf.mxu0
  %v429 = vpop.f32.mrf.mxu0
  %v430 = vadd.f32 0.0, %v429
  %v431 = vpop.f32.mrf.mxu0
  %432 = vmatprep.mubr.bf16.mxu0 0
  %433 = vmatmul.mubr.bf16.gmra.mxu0 %v266
  %v434 = vpop.f32.mrf.mxu0
  %v435 = vadd.f32 0.0, %v434
  %v436 = vpop.f32.mrf.mxu0
  %v437 = vpop.f32.mrf.mxu0
  %v438 = vadd.f32 0.0, %v437
  %v439 = vpop.f32.mrf.mxu0
  %440 = vmatprep.mubr.bf16.mxu0 0
  %441 = vmatmul.mubr.bf16.gmra.mxu0 %v269
  %v442 = vpop.f32.mrf.mxu0
  %v443 = vadd.f32 0.0, %v442
  %v444 = vpop.f32.mrf.mxu0
  %v445 = vpop.f32.mrf.mxu0
  %v446 = vadd.f32 0.0, %v445
  %v447 = vpop.f32.mrf.mxu0
  %448 = vmatprep.mubr.bf16.mxu0 0
  %449 = vmatmul.mubr.bf16.gmra.mxu0 %v272
  %v450 = vpop.f32.mrf.mxu0
  %v451 = vadd.f32 0.0, %v450
  %v452 = vpop.f32.mrf.mxu0
  %v453 = vpop.f32.mrf.mxu0
  %v454 = vadd.f32 0.0, %v453
  %v455 = vpop.f32.mrf.mxu0
  %456 = vmatprep.mubr.bf16.mxu0 0
  %457 = vmatmul.mubr.bf16.gmra.mxu0 %v275
  %v458 = vpop.f32.mrf.mxu0
  %v459 = vadd.f32 0.0, %v458
  %v460 = vpop.f32.mrf.mxu0
  %v461 = vpop.f32.mrf.mxu0
  %v462 = vadd.f32 0.0, %v461
  %v463 = vpop.f32.mrf.mxu0
  %464 = vmatprep.mubr.bf16.mxu0 0
  %465 = vmatmul.mubr.bf16.gmra.mxu0 %v278
  %v466 = vpop.f32.mrf.mxu0
  %v467 = vadd.f32 0.0, %v466
  %v468 = vpop.f32.mrf.mxu0
  %v469 = vpop.f32.mrf.mxu0
  %v470 = vadd.f32 0.0, %v469
  %v471 = vpop.f32.mrf.mxu0
  %472 = vmatprep.mubr.bf16.mxu0 0
  %473 = vmatmul.mubr.bf16.gmra.mxu0 %v281
  %v474 = vpop.f32.mrf.mxu0
  %v475 = vadd.f32 0.0, %v474
  %v476 = vpop.f32.mrf.mxu0
  %v477 = vpop.f32.mrf.mxu0
  %v478 = vadd.f32 0.0, %v477
  %v479 = vpop.f32.mrf.mxu0
  %480 = vmatprep.mubr.bf16.mxu0 0
  %481 = vmatmul.mubr.bf16.gmra.mxu0 %v284
  %v482 = vpop.f32.mrf.mxu0
  %v483 = vadd.f32 0.0, %v482
  %v484 = vpop.f32.mrf.mxu0
  %v485 = vpop.f32.mrf.mxu0
  %v486 = vadd.f32 0.0, %v485
  %v487 = vpop.f32.mrf.mxu0
  %488 = vmatprep.mubr.bf16.mxu0 0
  %489 = vmatmul.mubr.bf16.gmra.mxu0 %v287
  %v490 = vpop.f32.mrf.mxu0
  %v491 = vadd.f32 0.0, %v490
  %v492 = vpop.f32.mrf.mxu0
  %v493 = vpop.f32.mrf.mxu0
  %v494 = vadd.f32 0.0, %v493
  %v495 = vpop.f32.mrf.mxu0
  %496 = vmatprep.mubr.bf16.mxu0 0
  %497 = vmatmul.mubr.bf16.gmra.mxu0 %v290
  %v498 = vpop.f32.mrf.mxu0
  %v499 = vadd.f32 0.0, %v498
  %v500 = vpop.f32.mrf.mxu0
  %v501 = vpop.f32.mrf.mxu0
  %v502 = vadd.f32 0.0, %v501
  %v503 = vpop.f32.mrf.mxu0
  %504 = vmatprep.mubr.bf16.mxu0 0
  %505 = vmatmul.mubr.bf16.gmra.mxu0 %v293
  %v506 = vpop.f32.mrf.mxu0
  %v507 = vadd.f32 0.0, %v506
  %v508 = vpop.f32.mrf.mxu0
  %v509 = vpop.f32.mrf.mxu0
  %v510 = vadd.f32 0.0, %v509
  %v511 = vpop.f32.mrf.mxu0
  %512 = vmatprep.mubr.bf16.mxu0 0
  %513 = vmatmul.mubr.bf16.gmra.mxu0 %v296
  %v514 = vpop.f32.mrf.mxu0
  %v515 = vadd.f32 0.0, %v514
  %v516 = vpop.f32.mrf.mxu0
  %v517 = vpop.f32.mrf.mxu0
  %v518 = vadd.f32 0.0, %v517
  %v519 = vpop.f32.mrf.mxu0
  %520 = vmatprep.mubr.bf16.mxu0 0
  %521 = vmatmul.mubr.bf16.gmra.mxu0 %v299
  %v522 = vpop.f32.mrf.mxu0
  %v523 = vadd.f32 0.0, %v522
  %v524 = vpop.f32.mrf.mxu0
  %v525 = vpop.f32.mrf.mxu0
  %v526 = vadd.f32 0.0, %v525
  %v527 = vpop.f32.mrf.mxu0
  %528 = vmatprep.mubr.bf16.mxu0 0
  %529 = vmatmul.mubr.bf16.gmra.mxu0 %v302
  %v530 = vpop.f32.mrf.mxu0
  %v531 = vadd.f32 0.0, %v530
  %v532 = vpop.f32.mrf.mxu0
  %v533 = vpop.f32.mrf.mxu0
  %v534 = vadd.f32 0.0, %v533
  %v535 = vpop.f32.mrf.mxu0
  %536 = vmatprep.mubr.bf16.mxu0 0
  %537 = vmatmul.mubr.bf16.gmra.mxu0 %v305
  %v538 = vpop.f32.mrf.mxu0
  %v539 = vadd.f32 0.0, %v538
  %v540 = vpop.f32.mrf.mxu0
  %v541 = vpop.f32.mrf.mxu0
  %v542 = vadd.f32 0.0, %v541
  %v543 = vpop.f32.mrf.mxu0
  %544 = vmatprep.mubr.bf16.mxu0 0
  %545 = vmatmul.mubr.bf16.gmra.mxu0 %v308
  %v546 = vpop.f32.mrf.mxu0
  %v547 = vadd.f32 0.0, %v546
  %v548 = vpop.f32.mrf.mxu0
  %v549 = vpop.f32.mrf.mxu0
  %v550 = vadd.f32 0.0, %v549
  %v551 = vpop.f32.mrf.mxu0
  %552 = vmatprep.mubr.bf16.mxu0 0
  %553 = vmatmul.mubr.bf16.gmra.mxu0 %v311
  %v554 = vpop.f32.mrf.mxu0
  %v555 = vadd.f32 0.0, %v554
  %v556 = vpop.f32.mrf.mxu0
  %v557 = vpop.f32.mrf.mxu0
  %v558 = vadd.f32 0.0, %v557
  %v559 = vpop.f32.mrf.mxu0
  %560 = vmatprep.mubr.bf16.mxu0 0
  %561 = vmatmul.mubr.bf16.gmra.mxu0 %v314
  %v562 = vpop.f32.mrf.mxu0
  %v563 = vadd.f32 0.0, %v562
  %v564 = vpop.f32.mrf.mxu0
  %v565 = vpop.f32.mrf.mxu0
  %v566 = vadd.f32 0.0, %v565
  %v567 = vpop.f32.mrf.mxu0
  %568 = vmatprep.mubr.bf16.mxu0 0
  %569 = vmatmul.mubr.bf16.gmra.mxu0 %v317
  %v570 = vpop.f32.mrf.mxu0
  %v571 = vadd.f32 0.0, %v570
  %v572 = vpop.f32.mrf.mxu0
  %v573 = vpop.f32.mrf.mxu0
  %v574 = vadd.f32 0.0, %v573
  %v575 = vpop.f32.mrf.mxu0
  %576 = vmatprep.mubr.bf16.mxu0 0
  %577 = vmatmul.mubr.bf16.gmra.mxu0 %v320
  %v578 = vpop.f32.mrf.mxu0
  %v579 = vadd.f32 0.0, %v578
  %v580 = vpop.f32.mrf.mxu0
  %v581 = vpop.f32.mrf.mxu0
  %v582 = vadd.f32 0.0, %v581
  %v583 = vpop.f32.mrf.mxu0
  %584 = vmatprep.mubr.bf16.mxu0 0
  %585 = vmatmul.mubr.bf16.gmra.mxu0 %v323
  %v586 = vpop.f32.mrf.mxu0
  %v587 = vadd.f32 0.0, %v586
  %v588 = vpop.f32.mrf.mxu0
  %v589 = vpop.f32.mrf.mxu0
  %v590 = vadd.f32 0.0, %v589
  %v591 = vpop.f32.mrf.mxu0
  %592 = vmatprep.mubr.bf16.mxu0 0
  %593 = vmatmul.mubr.bf16.gmra.mxu0 %v326
  %v594 = vpop.f32.mrf.mxu0
  %v595 = vadd.f32 0.0, %v594
  %v596 = vpop.f32.mrf.mxu0
  %v597 = vpop.f32.mrf.mxu0
  %v598 = vadd.f32 0.0, %v597
  %v599 = vpop.f32.mrf.mxu0
  %600 = vmatprep.mubr.bf16.mxu0 0
  %601 = vmatmul.mubr.bf16.gmra.mxu0 %v329
  %v602 = vpop.f32.mrf.mxu0
  %v603 = vadd.f32 0.0, %v602
  %v604 = vpop.f32.mrf.mxu0
  %v605 = vpop.f32.mrf.mxu0
  %v606 = vadd.f32 0.0, %v605
  %v607 = vpop.f32.mrf.mxu0
  %608 = vmatprep.mubr.bf16.mxu0 0
  %609 = vmatmul.mubr.bf16.gmra.mxu0 %v332
  %v610 = vpop.f32.mrf.mxu0
  %v611 = vadd.f32 0.0, %v610
  %v612 = vpop.f32.mrf.mxu0
  %v613 = vpop.f32.mrf.mxu0
  %v614 = vadd.f32 0.0, %v613
  %v615 = vpop.f32.mrf.mxu0
  %616 = vmatprep.mubr.bf16.mxu0 0
  %617 = vmatmul.mubr.bf16.gmra.mxu0 %v335
  %v618 = vpop.f32.mrf.mxu0
  %v619 = vadd.f32 0.0, %v618
  %v620 = vpop.f32.mrf.mxu0
  %v621 = vpop.f32.mrf.mxu0
  %v622 = vadd.f32 0.0, %v621
  %v623 = vpop.f32.mrf.mxu0
  %624 = vmatprep.mubr.bf16.mxu0 0
  %625 = vmatmul.mubr.bf16.gmra.mxu0 %v338
  %v626 = vpop.f32.mrf.mxu0
  %v627 = vadd.f32 0.0, %v626
  %v628 = vpop.f32.mrf.mxu0
  %v629 = vpop.f32.mrf.mxu0
  %v630 = vadd.f32 0.0, %v629
  %v631 = vpop.f32.mrf.mxu0
  %632 = vdwg.mxu0
  %v633 = vld [vmem:[%s2] sm:$0x1]
  %v634 = vld [vmem:[%s3] sm:$0x1]
  %v635 = vsel %vm243, %v379, 0.0
  %v636 = vsel %vm243, %v382, 0.0
  %v637 = vadd.f32 %v635, %v636
  %v638 = vsel %vm243, %v387, 0.0
  %v639 = vadd.f32 %v637, %v638
  %v640 = vsel %vm243, %v390, 0.0
  %v641 = vadd.f32 %v639, %v640
  %v642 = vsel %vm243, %v395, 0.0
  %v643 = vadd.f32 %v641, %v642
  %v644 = vsel %vm243, %v398, 0.0
  %v645 = vadd.f32 %v643, %v644
  %v646 = vsel %vm243, %v403, 0.0
  %v647 = vadd.f32 %v645, %v646
  %v648 = vsel %vm243, %v406, 0.0
  %v649 = vadd.f32 %v647, %v648
  %v650 = vsel %vm243, %v411, 0.0
  %v651 = vadd.f32 %v649, %v650
  %v652 = vsel %vm243, %v414, 0.0
  %v653 = vadd.f32 %v651, %v652
  %v654 = vsel %vm243, %v419, 0.0
  %v655 = vadd.f32 %v653, %v654
  %v656 = vsel %vm243, %v422, 0.0
  %v657 = vadd.f32 %v655, %v656
  %v658 = vsel %vm243, %v427, 0.0
  %v659 = vadd.f32 %v657, %v658
  %v660 = vsel %vm243, %v430, 0.0
  %v661 = vadd.f32 %v659, %v660
  %v662 = vsel %vm243, %v435, 0.0
  %v663 = vadd.f32 %v661, %v662
  %v664 = vsel %vm243, %v438, 0.0
  %v665 = vadd.f32 %v663, %v664
  %v666 = vsel %vm243, %v443, 0.0
  %v667 = vadd.f32 %v665, %v666
  %v668 = vsel %vm243, %v446, 0.0
  %v669 = vadd.f32 %v667, %v668
  %v670 = vsel %vm243, %v451, 0.0
  %v671 = vadd.f32 %v669, %v670
  %v672 = vsel %vm243, %v454, 0.0
  %v673 = vadd.f32 %v671, %v672
  %v674 = vsel %vm243, %v459, 0.0
  %v675 = vadd.f32 %v673, %v674
  %v676 = vsel %vm243, %v462, 0.0
  %v677 = vadd.f32 %v675, %v676
  %v678 = vsel %vm243, %v467, 0.0
  %v679 = vadd.f32 %v677, %v678
  %v680 = vsel %vm243, %v470, 0.0
  %v681 = vadd.f32 %v679, %v680
  %v682 = vsel %vm243, %v475, 0.0
  %v683 = vadd.f32 %v681, %v682
  %v684 = vsel %vm243, %v478, 0.0
  %v685 = vadd.f32 %v683, %v684
  %v686 = vsel %vm243, %v483, 0.0
  %v687 = vadd.f32 %v685, %v686
  %v688 = vsel %vm243, %v486, 0.0
  %v689 = vadd.f32 %v687, %v688
  %v690 = vsel %vm243, %v491, 0.0
  %v691 = vadd.f32 %v689, %v690
  %v692 = vsel %vm243, %v494, 0.0
  %v693 = vadd.f32 %v691, %v692
  %v694 = vsel %vm243, %v499, 0.0
  %v695 = vadd.f32 %v693, %v694
  %v696 = vsel %vm243, %v502, 0.0
  %v697 = vadd.f32 %v695, %v696
  %v698 = vsel %vm243, %v507, 0.0
  %v699 = vadd.f32 %v697, %v698
  %v700 = vsel %vm243, %v510, 0.0
  %v701 = vadd.f32 %v699, %v700
  %v702 = vsel %vm243, %v515, 0.0
  %v703 = vadd.f32 %v701, %v702
  %v704 = vsel %vm243, %v518, 0.0
  %v705 = vadd.f32 %v703, %v704
  %v706 = vsel %vm243, %v523, 0.0
  %v707 = vadd.f32 %v705, %v706
  %v708 = vsel %vm243, %v526, 0.0
  %v709 = vadd.f32 %v707, %v708
  %v710 = vsel %vm243, %v531, 0.0
  %v711 = vadd.f32 %v709, %v710
  %v712 = vsel %vm243, %v534, 0.0
  %v713 = vadd.f32 %v711, %v712
  %v714 = vsel %vm243, %v539, 0.0
  %v715 = vadd.f32 %v713, %v714
  %v716 = vsel %vm243, %v542, 0.0
  %v717 = vadd.f32 %v715, %v716
  %v718 = vsel %vm243, %v547, 0.0
  %v719 = vadd.f32 %v717, %v718
  %v720 = vsel %vm243, %v550, 0.0
  %v721 = vadd.f32 %v719, %v720
  %v722 = vsel %vm243, %v555, 0.0
  %v723 = vadd.f32 %v721, %v722
  %v724 = vsel %vm243, %v558, 0.0
  %v725 = vadd.f32 %v723, %v724
  %v726 = vsel %vm243, %v563, 0.0
  %v727 = vadd.f32 %v725, %v726
  %v728 = vsel %vm243, %v566, 0.0
  %v729 = vadd.f32 %v727, %v728
  %v730 = vsel %vm243, %v571, 0.0
  %v731 = vadd.f32 %v729, %v730
  %v732 = vsel %vm243, %v574, 0.0
  %v733 = vadd.f32 %v731, %v732
  %v734 = vsel %vm243, %v579, 0.0
  %v735 = vadd.f32 %v733, %v734
  %v736 = vsel %vm243, %v582, 0.0
  %v737 = vadd.f32 %v735, %v736
  %v738 = vsel %vm243, %v587, 0.0
  %v739 = vadd.f32 %v737, %v738
  %v740 = vsel %vm243, %v590, 0.0
  %v741 = vadd.f32 %v739, %v740
  %v742 = vsel %vm243, %v595, 0.0
  %v743 = vadd.f32 %v741, %v742
  %v744 = vsel %vm243, %v598, 0.0
  %v745 = vadd.f32 %v743, %v744
  %v746 = vsel %vm243, %v603, 0.0
  %v747 = vadd.f32 %v745, %v746
  %v748 = vsel %vm243, %v606, 0.0
  %v749 = vadd.f32 %v747, %v748
  %v750 = vsel %vm243, %v611, 0.0
  %v751 = vadd.f32 %v749, %v750
  %v752 = vsel %vm243, %v614, 0.0
  %v753 = vadd.f32 %v751, %v752
  %v754 = vsel %vm243, %v619, 0.0
  %v755 = vadd.f32 %v753, %v754
  %v756 = vsel %vm243, %v622, 0.0
  %v757 = vadd.f32 %v755, %v756
  %v758 = vsel %vm243, %v627, 0.0
  %v759 = vadd.f32 %v757, %v758
  %v760 = vsel %vm243, %v630, 0.0
  %v761 = vadd.f32 %v759, %v760
  %v762 = vrot.slane %v761, 4
  %v763 = vadd.f32 %v761, %v762
  %v764 = vrot.slane %v763, 2
  %v765 = vadd.f32 %v763, %v764
  %v766 = vrot.slane %v765, 1
  %v767 = vadd.f32 %v765, %v766
  %v768 = vrcp.pop 512.0
  %v769 = vmul.f32 %v767, %v768
  %v770 = vsub.f32 %v379, %v769
  %v771 = vsub.f32 %v382, %v769
  %v772 = vsub.f32 %v387, %v769
  %v773 = vsub.f32 %v390, %v769
  %v774 = vsub.f32 %v395, %v769
  %v775 = vsub.f32 %v398, %v769
  %v776 = vsub.f32 %v403, %v769
  %v777 = vsub.f32 %v406, %v769
  %v778 = vsub.f32 %v411, %v769
  %v779 = vsub.f32 %v414, %v769
  %v780 = vsub.f32 %v419, %v769
  %v781 = vsub.f32 %v422, %v769
  %v782 = vsub.f32 %v427, %v769
  %v783 = vsub.f32 %v430, %v769
  %v784 = vsub.f32 %v435, %v769
  %v785 = vsub.f32 %v438, %v769
  %v786 = vsub.f32 %v443, %v769
  %v787 = vsub.f32 %v446, %v769
  %v788 = vsub.f32 %v451, %v769
  %v789 = vsub.f32 %v454, %v769
  %v790 = vsub.f32 %v459, %v769
  %v791 = vsub.f32 %v462, %v769
  %v792 = vsub.f32 %v467, %v769
  %v793 = vsub.f32 %v470, %v769
  %v794 = vsub.f32 %v475, %v769
  %v795 = vsub.f32 %v478, %v769
  %v796 = vsub.f32 %v483, %v769
  %v797 = vsub.f32 %v486, %v769
  %v798 = vsub.f32 %v491, %v769
  %v799 = vsub.f32 %v494, %v769
  %v800 = vsub.f32 %v499, %v769
  %v801 = vsub.f32 %v502, %v769
  %v802 = vsub.f32 %v507, %v769
  %v803 = vsub.f32 %v510, %v769
  %v804 = vsub.f32 %v515, %v769
  %v805 = vsub.f32 %v518, %v769
  %v806 = vsub.f32 %v523, %v769
  %v807 = vsub.f32 %v526, %v769
  %v808 = vsub.f32 %v531, %v769
  %v809 = vsub.f32 %v534, %v769
  %v810 = vsub.f32 %v539, %v769
  %v811 = vsub.f32 %v542, %v769
  %v812 = vsub.f32 %v547, %v769
  %v813 = vsub.f32 %v550, %v769
  %v814 = vsub.f32 %v555, %v769
  %v815 = vsub.f32 %v558, %v769
  %v816 = vsub.f32 %v563, %v769
  %v817 = vsub.f32 %v566, %v769
  %v818 = vsub.f32 %v571, %v769
  %v819 = vsub.f32 %v574, %v769
  %v820 = vsub.f32 %v579, %v769
  %v821 = vsub.f32 %v582, %v769
  %v822 = vsub.f32 %v587, %v769
  %v823 = vsub.f32 %v590, %v769
  %v824 = vsub.f32 %v595, %v769
  %v825 = vsub.f32 %v598, %v769
  %v826 = vsub.f32 %v603, %v769
  %v827 = vsub.f32 %v606, %v769
  %v828 = vsub.f32 %v611, %v769
  %v829 = vsub.f32 %v614, %v769
  %v830 = vsub.f32 %v619, %v769
  %v831 = vsub.f32 %v622, %v769
  %v832 = vsub.f32 %v627, %v769
  %v833 = vsub.f32 %v630, %v769
  %v834 = vmul.f32 %v770, %v770
  %v835 = vmul.f32 %v771, %v771
  %v836 = vmul.f32 %v772, %v772
  %v837 = vmul.f32 %v773, %v773
  %v838 = vmul.f32 %v774, %v774
  %v839 = vmul.f32 %v775, %v775
  %v840 = vmul.f32 %v776, %v776
  %v841 = vmul.f32 %v777, %v777
  %v842 = vmul.f32 %v778, %v778
  %v843 = vmul.f32 %v779, %v779
  %v844 = vmul.f32 %v780, %v780
  %v845 = vmul.f32 %v781, %v781
  %v846 = vmul.f32 %v782, %v782
  %v847 = vmul.f32 %v783, %v783
  %v848 = vmul.f32 %v784, %v784
  %v849 = vmul.f32 %v785, %v785
  %v850 = vmul.f32 %v786, %v786
  %v851 = vmul.f32 %v787, %v787
  %v852 = vmul.f32 %v788, %v788
  %v853 = vmul.f32 %v789, %v789
  %v854 = vmul.f32 %v790, %v790
  %v855 = vmul.f32 %v791, %v791
  %v856 = vmul.f32 %v792, %v792
  %v857 = vmul.f32 %v793, %v793
  %v858 = vmul.f32 %v794, %v794
  %v859 = vmul.f32 %v795, %v795
  %v860 = vmul.f32 %v796, %v796
  %v861 = vmul.f32 %v797, %v797
  %v862 = vmul.f32 %v798, %v798
  %v863 = vmul.f32 %v799, %v799
  %v864 = vmul.f32 %v800, %v800
  %v865 = vmul.f32 %v801, %v801
  %v866 = vmul.f32 %v802, %v802
  %v867 = vmul.f32 %v803, %v803
  %v868 = vmul.f32 %v804, %v804
  %v869 = vmul.f32 %v805, %v805
  %v870 = vmul.f32 %v806, %v806
  %v871 = vmul.f32 %v807, %v807
  %v872 = vmul.f32 %v808, %v808
  %v873 = vmul.f32 %v809, %v809
  %v874 = vmul.f32 %v810, %v810
  %v875 = vmul.f32 %v811, %v811
  %v876 = vmul.f32 %v812, %v812
  %v877 = vmul.f32 %v813, %v813
  %v878 = vmul.f32 %v814, %v814
  %v879 = vmul.f32 %v815, %v815
  %v880 = vmul.f32 %v816, %v816
  %v881 = vmul.f32 %v817, %v817
  %v882 = vmul.f32 %v818, %v818
  %v883 = vmul.f32 %v819, %v819
  %v884 = vmul.f32 %v820, %v820
  %v885 = vmul.f32 %v821, %v821
  %v886 = vmul.f32 %v822, %v822
  %v887 = vmul.f32 %v823, %v823
  %v888 = vmul.f32 %v824, %v824
  %v889 = vmul.f32 %v825, %v825
  %v890 = vmul.f32 %v826, %v826
  %v891 = vmul.f32 %v827, %v827
  %v892 = vmul.f32 %v828, %v828
  %v893 = vmul.f32 %v829, %v829
  %v894 = vmul.f32 %v830, %v830
  %v895 = vmul.f32 %v831, %v831
  %v896 = vmul.f32 %v832, %v832
  %v897 = vmul.f32 %v833, %v833
  %v898 = vsel %vm243, %v834, 0.0
  %v899 = vsel %vm243, %v835, 0.0
  %v900 = vadd.f32 %v898, %v899
  %v901 = vsel %vm243, %v836, 0.0
  %v902 = vadd.f32 %v900, %v901
  %v903 = vsel %vm243, %v837, 0.0
  %v904 = vadd.f32 %v902, %v903
  %v905 = vsel %vm243, %v838, 0.0
  %v906 = vadd.f32 %v904, %v905
  %v907 = vsel %vm243, %v839, 0.0
  %v908 = vadd.f32 %v906, %v907
  %v909 = vsel %vm243, %v840, 0.0
  %v910 = vadd.f32 %v908, %v909
  %v911 = vsel %vm243, %v841, 0.0
  %v912 = vadd.f32 %v910, %v911
  %v913 = vsel %vm243, %v842, 0.0
  %v914 = vadd.f32 %v912, %v913
  %v915 = vsel %vm243, %v843, 0.0
  %v916 = vadd.f32 %v914, %v915
  %v917 = vsel %vm243, %v844, 0.0
  %v918 = vadd.f32 %v916, %v917
  %v919 = vsel %vm243, %v845, 0.0
  %v920 = vadd.f32 %v918, %v919
  %v921 = vsel %vm243, %v846, 0.0
  %v922 = vadd.f32 %v920, %v921
  %v923 = vsel %vm243, %v847, 0.0
  %v924 = vadd.f32 %v922, %v923
  %v925 = vsel %vm243, %v848, 0.0
  %v926 = vadd.f32 %v924, %v925
  %v927 = vsel %vm243, %v849, 0.0
  %v928 = vadd.f32 %v926, %v927
  %v929 = vsel %vm243, %v850, 0.0
  %v930 = vadd.f32 %v928, %v929
  %v931 = vsel %vm243, %v851, 0.0
  %v932 = vadd.f32 %v930, %v931
  %v933 = vsel %vm243, %v852, 0.0
  %v934 = vadd.f32 %v932, %v933
  %v935 = vsel %vm243, %v853, 0.0
  %v936 = vadd.f32 %v934, %v935
  %v937 = vsel %vm243, %v854, 0.0
  %v938 = vadd.f32 %v936, %v937
  %v939 = vsel %vm243, %v855, 0.0
  %v940 = vadd.f32 %v938, %v939
  %v941 = vsel %vm243, %v856, 0.0
  %v942 = vadd.f32 %v940, %v941
  %v943 = vsel %vm243, %v857, 0.0
  %v944 = vadd.f32 %v942, %v943
  %v945 = vsel %vm243, %v858, 0.0
  %v946 = vadd.f32 %v944, %v945
  %v947 = vsel %vm243, %v859, 0.0
  %v948 = vadd.f32 %v946, %v947
  %v949 = vsel %vm243, %v860, 0.0
  %v950 = vadd.f32 %v948, %v949
  %v951 = vsel %vm243, %v861, 0.0
  %v952 = vadd.f32 %v950, %v951
  %v953 = vsel %vm243, %v862, 0.0
  %v954 = vadd.f32 %v952, %v953
  %v955 = vsel %vm243, %v863, 0.0
  %v956 = vadd.f32 %v954, %v955
  %v957 = vsel %vm243, %v864, 0.0
  %v958 = vadd.f32 %v956, %v957
  %v959 = vsel %vm243, %v865, 0.0
  %v960 = vadd.f32 %v958, %v959
  %v961 = vsel %vm243, %v866, 0.0
  %v962 = vadd.f32 %v960, %v961
  %v963 = vsel %vm243, %v867, 0.0
  %v964 = vadd.f32 %v962, %v963
  %v965 = vsel %vm243, %v868, 0.0
  %v966 = vadd.f32 %v964, %v965
  %v967 = vsel %vm243, %v869, 0.0
  %v968 = vadd.f32 %v966, %v967
  %v969 = vsel %vm243, %v870, 0.0
  %v970 = vadd.f32 %v968, %v969
  %v971 = vsel %vm243, %v871, 0.0
  %v972 = vadd.f32 %v970, %v971
  %v973 = vsel %vm243, %v872, 0.0
  %v974 = vadd.f32 %v972, %v973
  %v975 = vsel %vm243, %v873, 0.0
  %v976 = vadd.f32 %v974, %v975
  %v977 = vsel %vm243, %v874, 0.0
  %v978 = vadd.f32 %v976, %v977
  %v979 = vsel %vm243, %v875, 0.0
  %v980 = vadd.f32 %v978, %v979
  %v981 = vsel %vm243, %v876, 0.0
  %v982 = vadd.f32 %v980, %v981
  %v983 = vsel %vm243, %v877, 0.0
  %v984 = vadd.f32 %v982, %v983
  %v985 = vsel %vm243, %v878, 0.0
  %v986 = vadd.f32 %v984, %v985
  %v987 = vsel %vm243, %v879, 0.0
  %v988 = vadd.f32 %v986, %v987
  %v989 = vsel %vm243, %v880, 0.0
  %v990 = vadd.f32 %v988, %v989
  %v991 = vsel %vm243, %v881, 0.0
  %v992 = vadd.f32 %v990, %v991
  %v993 = vsel %vm243, %v882, 0.0
  %v994 = vadd.f32 %v992, %v993
  %v995 = vsel %vm243, %v883, 0.0
  %v996 = vadd.f32 %v994, %v995
  %v997 = vsel %vm243, %v884, 0.0
  %v998 = vadd.f32 %v996, %v997
  %v999 = vsel %vm243, %v885, 0.0
  %v1000 = vadd.f32 %v998, %v999
  %v1001 = vsel %vm243, %v886, 0.0
  %v1002 = vadd.f32 %v1000, %v1001
  %v1003 = vsel %vm243, %v887, 0.0
  %v1004 = vadd.f32 %v1002, %v1003
  %v1005 = vsel %vm243, %v888, 0.0
  %v1006 = vadd.f32 %v1004, %v1005
  %v1007 = vsel %vm243, %v889, 0.0
  %v1008 = vadd.f32 %v1006, %v1007
  %v1009 = vsel %vm243, %v890, 0.0
  %v1010 = vadd.f32 %v1008, %v1009
  %v1011 = vsel %vm243, %v891, 0.0
  %v1012 = vadd.f32 %v1010, %v1011
  %v1013 = vsel %vm243, %v892, 0.0
  %v1014 = vadd.f32 %v1012, %v1013
  %v1015 = vsel %vm243, %v893, 0.0
  %v1016 = vadd.f32 %v1014, %v1015
  %v1017 = vsel %vm243, %v894, 0.0
  %v1018 = vadd.f32 %v1016, %v1017
  %v1019 = vsel %vm243, %v895, 0.0
  %v1020 = vadd.f32 %v1018, %v1019
  %v1021 = vsel %vm243, %v896, 0.0
  %v1022 = vadd.f32 %v1020, %v1021
  %v1023 = vsel %vm243, %v897, 0.0
  %v1024 = vadd.f32 %v1022, %v1023
  %v1025 = vrot.slane %v1024, 4
  %v1026 = vadd.f32 %v1024, %v1025
  %v1027 = vrot.slane %v1026, 2
  %v1028 = vadd.f32 %v1026, %v1027
  %v1029 = vrot.slane %v1028, 1
  %v1030 = vadd.f32 %v1028, %v1029
  %v1031 = vmul.f32 %v1030, %v768
  %v1032 = vadd.f32 %v1031, 1e-05
  %v1033 = vrsqrt.pop %v1032
  %v1034 = vmul.f32 %v633, %v1033
  %v1035 = vmul.f32 %v769, %v1034
  %v1036 = vsub.f32 %v634, %v1035
  %v1038 = vlaneseq
  %v1039 = vshrl.u32 %v1038, 7
  %v1040 = vsub.s32 0, %v1039
  %v1041 = vrot.slane %v1034, %v1040
  %v1043 = vmul.f32 %v379, %v1041
  %v1044 = vmul.f32 %v382, %v1041
  %v1045 = vmul.f32 %v387, %v1041
  %v1046 = vmul.f32 %v390, %v1041
  %v1047 = vmul.f32 %v395, %v1041
  %v1048 = vmul.f32 %v398, %v1041
  %v1049 = vmul.f32 %v403, %v1041
  %v1050 = vmul.f32 %v406, %v1041
  %v1051 = vmul.f32 %v411, %v1041
  %v1052 = vmul.f32 %v414, %v1041
  %v1053 = vmul.f32 %v419, %v1041
  %v1054 = vmul.f32 %v422, %v1041
  %v1055 = vmul.f32 %v427, %v1041
  %v1056 = vmul.f32 %v430, %v1041
  %v1057 = vmul.f32 %v435, %v1041
  %v1058 = vmul.f32 %v438, %v1041
  %v1059 = vmul.f32 %v443, %v1041
  %v1060 = vmul.f32 %v446, %v1041
  %v1061 = vmul.f32 %v451, %v1041
  %v1062 = vmul.f32 %v454, %v1041
  %v1063 = vmul.f32 %v459, %v1041
  %v1064 = vmul.f32 %v462, %v1041
  %v1065 = vmul.f32 %v467, %v1041
  %v1066 = vmul.f32 %v470, %v1041
  %v1067 = vmul.f32 %v475, %v1041
  %v1068 = vmul.f32 %v478, %v1041
  %v1069 = vmul.f32 %v483, %v1041
  %v1070 = vmul.f32 %v486, %v1041
  %v1071 = vmul.f32 %v491, %v1041
  %v1072 = vmul.f32 %v494, %v1041
  %v1073 = vmul.f32 %v499, %v1041
  %v1074 = vmul.f32 %v502, %v1041
  %v1075 = vmul.f32 %v507, %v1041
  %v1076 = vmul.f32 %v510, %v1041
  %v1077 = vmul.f32 %v515, %v1041
  %v1078 = vmul.f32 %v518, %v1041
  %v1079 = vmul.f32 %v523, %v1041
  %v1080 = vmul.f32 %v526, %v1041
  %v1081 = vmul.f32 %v531, %v1041
  %v1082 = vmul.f32 %v534, %v1041
  %v1083 = vmul.f32 %v539, %v1041
  %v1084 = vmul.f32 %v542, %v1041
  %v1085 = vmul.f32 %v547, %v1041
  %v1086 = vmul.f32 %v550, %v1041
  %v1087 = vmul.f32 %v555, %v1041
  %v1088 = vmul.f32 %v558, %v1041
  %v1089 = vmul.f32 %v563, %v1041
  %v1090 = vmul.f32 %v566, %v1041
  %v1091 = vmul.f32 %v571, %v1041
  %v1092 = vmul.f32 %v574, %v1041
  %v1093 = vmul.f32 %v579, %v1041
  %v1094 = vmul.f32 %v582, %v1041
  %v1095 = vmul.f32 %v587, %v1041
  %v1096 = vmul.f32 %v590, %v1041
  %v1097 = vmul.f32 %v595, %v1041
  %v1098 = vmul.f32 %v598, %v1041
  %v1099 = vmul.f32 %v603, %v1041
  %v1100 = vmul.f32 %v606, %v1041
  %v1101 = vmul.f32 %v611, %v1041
  %v1102 = vmul.f32 %v614, %v1041
  %v1103 = vmul.f32 %v619, %v1041
  %v1104 = vmul.f32 %v622, %v1041
  %v1105 = vmul.f32 %v627, %v1041
  %v1106 = vmul.f32 %v630, %v1041
  %v1108 = vlaneseq
  %v1109 = vshrl.u32 %v1108, 7
  %v1110 = vsub.s32 0, %v1109
  %v1111 = vrot.slane %v1036, %v1110
  %v1113 = vadd.f32 %v1043, %v1111
  %v1114 = vadd.f32 %v1044, %v1111
  %v1115 = vadd.f32 %v1045, %v1111
  %v1116 = vadd.f32 %v1046, %v1111
  %v1117 = vadd.f32 %v1047, %v1111
  %v1118 = vadd.f32 %v1048, %v1111
  %v1119 = vadd.f32 %v1049, %v1111
  %v1120 = vadd.f32 %v1050, %v1111
  %v1121 = vadd.f32 %v1051, %v1111
  %v1122 = vadd.f32 %v1052, %v1111
  %v1123 = vadd.f32 %v1053, %v1111
  %v1124 = vadd.f32 %v1054, %v1111
  %v1125 = vadd.f32 %v1055, %v1111
  %v1126 = vadd.f32 %v1056, %v1111
  %v1127 = vadd.f32 %v1057, %v1111
  %v1128 = vadd.f32 %v1058, %v1111
  %v1129 = vadd.f32 %v1059, %v1111
  %v1130 = vadd.f32 %v1060, %v1111
  %v1131 = vadd.f32 %v1061, %v1111
  %v1132 = vadd.f32 %v1062, %v1111
  %v1133 = vadd.f32 %v1063, %v1111
  %v1134 = vadd.f32 %v1064, %v1111
  %v1135 = vadd.f32 %v1065, %v1111
  %v1136 = vadd.f32 %v1066, %v1111
  %v1137 = vadd.f32 %v1067, %v1111
  %v1138 = vadd.f32 %v1068, %v1111
  %v1139 = vadd.f32 %v1069, %v1111
  %v1140 = vadd.f32 %v1070, %v1111
  %v1141 = vadd.f32 %v1071, %v1111
  %v1142 = vadd.f32 %v1072, %v1111
  %v1143 = vadd.f32 %v1073, %v1111
  %v1144 = vadd.f32 %v1074, %v1111
  %v1145 = vadd.f32 %v1075, %v1111
  %v1146 = vadd.f32 %v1076, %v1111
  %v1147 = vadd.f32 %v1077, %v1111
  %v1148 = vadd.f32 %v1078, %v1111
  %v1149 = vadd.f32 %v1079, %v1111
  %v1150 = vadd.f32 %v1080, %v1111
  %v1151 = vadd.f32 %v1081, %v1111
  %v1152 = vadd.f32 %v1082, %v1111
  %v1153 = vadd.f32 %v1083, %v1111
  %v1154 = vadd.f32 %v1084, %v1111
  %v1155 = vadd.f32 %v1085, %v1111
  %v1156 = vadd.f32 %v1086, %v1111
  %v1157 = vadd.f32 %v1087, %v1111
  %v1158 = vadd.f32 %v1088, %v1111
  %v1159 = vadd.f32 %v1089, %v1111
  %v1160 = vadd.f32 %v1090, %v1111
  %v1161 = vadd.f32 %v1091, %v1111
  %v1162 = vadd.f32 %v1092, %v1111
  %v1163 = vadd.f32 %v1093, %v1111
  %v1164 = vadd.f32 %v1094, %v1111
  %v1165 = vadd.f32 %v1095, %v1111
  %v1166 = vadd.f32 %v1096, %v1111
  %v1167 = vadd.f32 %v1097, %v1111
  %v1168 = vadd.f32 %v1098, %v1111
  %v1169 = vadd.f32 %v1099, %v1111
  %v1170 = vadd.f32 %v1100, %v1111
  %v1171 = vadd.f32 %v1101, %v1111
  %v1172 = vadd.f32 %v1102, %v1111
  %v1173 = vadd.f32 %v1103, %v1111
  %v1174 = vadd.f32 %v1104, %v1111
  %v1175 = vadd.f32 %v1105, %v1111
  %v1176 = vadd.f32 %v1106, %v1111
  %v1177 = vmax.f32 %v1113, 0.0
  %v1178 = vmax.f32 %v1114, 0.0
  %v1179 = vmax.f32 %v1115, 0.0
  %v1180 = vmax.f32 %v1116, 0.0
  %v1181 = vmax.f32 %v1117, 0.0
  %v1182 = vmax.f32 %v1118, 0.0
  %v1183 = vmax.f32 %v1119, 0.0
  %v1184 = vmax.f32 %v1120, 0.0
  %v1185 = vmax.f32 %v1121, 0.0
  %v1186 = vmax.f32 %v1122, 0.0
  %v1187 = vmax.f32 %v1123, 0.0
  %v1188 = vmax.f32 %v1124, 0.0
  %v1189 = vmax.f32 %v1125, 0.0
  %v1190 = vmax.f32 %v1126, 0.0
  %v1191 = vmax.f32 %v1127, 0.0
  %v1192 = vmax.f32 %v1128, 0.0
  %v1193 = vmax.f32 %v1129, 0.0
  %v1194 = vmax.f32 %v1130, 0.0
  %v1195 = vmax.f32 %v1131, 0.0
  %v1196 = vmax.f32 %v1132, 0.0
  %v1197 = vmax.f32 %v1133, 0.0
  %v1198 = vmax.f32 %v1134, 0.0
  %v1199 = vmax.f32 %v1135, 0.0
  %v1200 = vmax.f32 %v1136, 0.0
  %v1201 = vmax.f32 %v1137, 0.0
  %v1202 = vmax.f32 %v1138, 0.0
  %v1203 = vmax.f32 %v1139, 0.0
  %v1204 = vmax.f32 %v1140, 0.0
  %v1205 = vmax.f32 %v1141, 0.0
  %v1206 = vmax.f32 %v1142, 0.0
  %v1207 = vmax.f32 %v1143, 0.0
  %v1208 = vmax.f32 %v1144, 0.0
  %v1209 = vmax.f32 %v1145, 0.0
  %v1210 = vmax.f32 %v1146, 0.0
  %v1211 = vmax.f32 %v1147, 0.0
  %v1212 = vmax.f32 %v1148, 0.0
  %v1213 = vmax.f32 %v1149, 0.0
  %v1214 = vmax.f32 %v1150, 0.0
  %v1215 = vmax.f32 %v1151, 0.0
  %v1216 = vmax.f32 %v1152, 0.0
  %v1217 = vmax.f32 %v1153, 0.0
  %v1218 = vmax.f32 %v1154, 0.0
  %v1219 = vmax.f32 %v1155, 0.0
  %v1220 = vmax.f32 %v1156, 0.0
  %v1221 = vmax.f32 %v1157, 0.0
  %v1222 = vmax.f32 %v1158, 0.0
  %v1223 = vmax.f32 %v1159, 0.0
  %v1224 = vmax.f32 %v1160, 0.0
  %v1225 = vmax.f32 %v1161, 0.0
  %v1226 = vmax.f32 %v1162, 0.0
  %v1227 = vmax.f32 %v1163, 0.0
  %v1228 = vmax.f32 %v1164, 0.0
  %v1229 = vmax.f32 %v1165, 0.0
  %v1230 = vmax.f32 %v1166, 0.0
  %v1231 = vmax.f32 %v1167, 0.0
  %v1232 = vmax.f32 %v1168, 0.0
  %v1233 = vmax.f32 %v1169, 0.0
  %v1234 = vmax.f32 %v1170, 0.0
  %v1235 = vmax.f32 %v1171, 0.0
  %v1236 = vmax.f32 %v1172, 0.0
  %v1237 = vmax.f32 %v1173, 0.0
  %v1238 = vmax.f32 %v1174, 0.0
  %v1239 = vmax.f32 %v1175, 0.0
  %v1240 = vmax.f32 %v1176, 0.0
  %1241 = vst.msk [vmem:[%s4] sm:$0xff] %vm243, %v1177
  %1242 = vst.msk [vmem:[%s4 + $0x8] sm:$0xff] %vm243, %v1178
  %1243 = vst.msk [vmem:[%s4 + $0x10] sm:$0xff] %vm243, %v1179
  %1244 = vst.msk [vmem:[%s4 + $0x18] sm:$0xff] %vm243, %v1180
  %1245 = vst.msk [vmem:[%s4 + $0x20] sm:$0xff] %vm243, %v1181
  %1246 = vst.msk [vmem:[%s4 + $0x28] sm:$0xff] %vm243, %v1182
  %1247 = vst.msk [vmem:[%s4 + $0x30] sm:$0xff] %vm243, %v1183
  %1248 = vst.msk [vmem:[%s4 + $0x38] sm:$0xff] %vm243, %v1184
  %1249 = vst.msk [vmem:[%s4 + $0x40] sm:$0xff] %vm243, %v1185
  %1250 = vst.msk [vmem:[%s4 + $0x48] sm:$0xff] %vm243, %v1186
  %1251 = vst.msk [vmem:[%s4 + $0x50] sm:$0xff] %vm243, %v1187
  %1252 = vst.msk [vmem:[%s4 + $0x58] sm:$0xff] %vm243, %v1188
  %1253 = vst.msk [vmem:[%s4 + $0x60] sm:$0xff] %vm243, %v1189
  %1254 = vst.msk [vmem:[%s4 + $0x68] sm:$0xff] %vm243, %v1190
  %1255 = vst.msk [vmem:[%s4 + $0x70] sm:$0xff] %vm243, %v1191
  %1256 = vst.msk [vmem:[%s4 + $0x78] sm:$0xff] %vm243, %v1192
  %1257 = vst.msk [vmem:[%s4 + $0x80] sm:$0xff] %vm243, %v1193
  %1258 = vst.msk [vmem:[%s4 + $0x88] sm:$0xff] %vm243, %v1194
  %1259 = vst.msk [vmem:[%s4 + $0x90] sm:$0xff] %vm243, %v1195
  %1260 = vst.msk [vmem:[%s4 + $0x98] sm:$0xff] %vm243, %v1196
  %1261 = vst.msk [vmem:[%s4 + $0xa0] sm:$0xff] %vm243, %v1197
  %1262 = vst.msk [vmem:[%s4 + $0xa8] sm:$0xff] %vm243, %v1198
  %1263 = vst.msk [vmem:[%s4 + $0xb0] sm:$0xff] %vm243, %v1199
  %1264 = vst.msk [vmem:[%s4 + $0xb8] sm:$0xff] %vm243, %v1200
  %1265 = vst.msk [vmem:[%s4 + $0xc0] sm:$0xff] %vm243, %v1201
  %1266 = vst.msk [vmem:[%s4 + $0xc8] sm:$0xff] %vm243, %v1202
  %1267 = vst.msk [vmem:[%s4 + $0xd0] sm:$0xff] %vm243, %v1203
  %1268 = vst.msk [vmem:[%s4 + $0xd8] sm:$0xff] %vm243, %v1204
  %1269 = vst.msk [vmem:[%s4 + $0xe0] sm:$0xff] %vm243, %v1205
  %1270 = vst.msk [vmem:[%s4 + $0xe8] sm:$0xff] %vm243, %v1206
  %1271 = vst.msk [vmem:[%s4 + $0xf0] sm:$0xff] %vm243, %v1207
  %1272 = vst.msk [vmem:[%s4 + $0xf8] sm:$0xff] %vm243, %v1208
  %1273 = vst.msk [vmem:[%s4 + $0x100] sm:$0xff] %vm243, %v1209
  %1274 = vst.msk [vmem:[%s4 + $0x108] sm:$0xff] %vm243, %v1210
  %1275 = vst.msk [vmem:[%s4 + $0x110] sm:$0xff] %vm243, %v1211
  %1276 = vst.msk [vmem:[%s4 + $0x118] sm:$0xff] %vm243, %v1212
  %1277 = vst.msk [vmem:[%s4 + $0x120] sm:$0xff] %vm243, %v1213
  %1278 = vst.msk [vmem:[%s4 + $0x128] sm:$0xff] %vm243, %v1214
  %1279 = vst.msk [vmem:[%s4 + $0x130] sm:$0xff] %vm243, %v1215
  %1280 = vst.msk [vmem:[%s4 + $0x138] sm:$0xff] %vm243, %v1216
  %1281 = vst.msk [vmem:[%s4 + $0x140] sm:$0xff] %vm243, %v1217
  %1282 = vst.msk [vmem:[%s4 + $0x148] sm:$0xff] %vm243, %v1218
  %1283 = vst.msk [vmem:[%s4 + $0x150] sm:$0xff] %vm243, %v1219
  %1284 = vst.msk [vmem:[%s4 + $0x158] sm:$0xff] %vm243, %v1220
  %1285 = vst.msk [vmem:[%s4 + $0x160] sm:$0xff] %vm243, %v1221
  %1286 = vst.msk [vmem:[%s4 + $0x168] sm:$0xff] %vm243, %v1222
  %1287 = vst.msk [vmem:[%s4 + $0x170] sm:$0xff] %vm243, %v1223
  %1288 = vst.msk [vmem:[%s4 + $0x178] sm:$0xff] %vm243, %v1224
  %1289 = vst.msk [vmem:[%s4 + $0x180] sm:$0xff] %vm243, %v1225
  %1290 = vst.msk [vmem:[%s4 + $0x188] sm:$0xff] %vm243, %v1226
  %1291 = vst.msk [vmem:[%s4 + $0x190] sm:$0xff] %vm243, %v1227
  %1292 = vst.msk [vmem:[%s4 + $0x198] sm:$0xff] %vm243, %v1228
  %1293 = vst.msk [vmem:[%s4 + $0x1a0] sm:$0xff] %vm243, %v1229
  %1294 = vst.msk [vmem:[%s4 + $0x1a8] sm:$0xff] %vm243, %v1230
  %1295 = vst.msk [vmem:[%s4 + $0x1b0] sm:$0xff] %vm243, %v1231
  %1296 = vst.msk [vmem:[%s4 + $0x1b8] sm:$0xff] %vm243, %v1232
  %1297 = vst.msk [vmem:[%s4 + $0x1c0] sm:$0xff] %vm243, %v1233
  %1298 = vst.msk [vmem:[%s4 + $0x1c8] sm:$0xff] %vm243, %v1234
  %1299 = vst.msk [vmem:[%s4 + $0x1d0] sm:$0xff] %vm243, %v1235
  %1300 = vst.msk [vmem:[%s4 + $0x1d8] sm:$0xff] %vm243, %v1236
  %1301 = vst.msk [vmem:[%s4 + $0x1e0] sm:$0xff] %vm243, %v1237
  %1302 = vst.msk [vmem:[%s4 + $0x1e8] sm:$0xff] %vm243, %v1238
  %1303 = vst.msk [vmem:[%s4 + $0x1f0] sm:$0xff] %vm243, %v1239
  %1304 = vst.msk [vmem:[%s4 + $0x1f8] sm:$0xff] %vm243, %v1240
  // Predicated region
  $region18: #{inception_res_forward.15} parent=0 // pred_check
    _
  $region19: #{inception_res_forward.15} parent=0 // pred_check_branch
    %1306 = sbr.rel (0) target = $region21
  $region20: #{inception_res_forward.15} parent=0 // pred_region
    _
  $region21: #{inception_res_forward.15} parent=0 // pred_fallthru
    _
  // Predicated region
  $region22: #{inception_res_forward.15} parent=0 // pred_check
    _
  $region23: #{inception_res_forward.15} parent=0 // pred_check_branch
    %1308 = sbr.rel (0) target = $region25
  $region24: #{inception_res_forward.15} parent=0 // pred_region
    _
  $region25: #{inception_res_forward.15} parent=0 // pred_fallthru
    _

// kernel: inception_res_forward.16
$region0: #{inception_res_forward.16}
  #allocation0 [shape = 'u32[]', space=smem, size = 0x4, offset = 0x4, fixed_abs, tag = 'smem constant byte address 0x4 - core index']
  #allocation1 [shape = 'u32[144,128]{1,0:T(1,128)}', space=vmem, size = 0x12000, scoped, tag = 'internal scratch']
  %s0 = inlined_call_operand.vmem [shape: bf16[512,4], index: 0, kind: input, shape index: {}]
  %s1 = inlined_call_operand.vmem [shape: bf16[4,4], index: 1, kind: input, shape index: {}]
  %s2 = inlined_call_operand.vmem [shape: f32[1,4], index: 2, kind: input, shape index: {}]
  %s3 = inlined_call_operand.vmem [shape: f32[1,4], index: 3, kind: input, shape index: {}]
  %s4 = inlined_call_operand.vmem [shape: f32[512,4], index: 4, kind: input, shape index: {}]
  %s5 = inlined_call_operand.vmem [shape: f32[512,4], index: 5, kind: output, shape index: {}]
  %s6 = sld [smem:[#allocation0]]
  $region30: #{inception_res_forward.16} parent=0
    _
  %s8 = ssub.s32 1, %s6
  %s9 = scalar_select 0, %s8, %s6
  // Predicated region
  $region2: #{inception_res_forward.16} parent=0 // pred_check
    _
  $region3: #{inception_res_forward.16} parent=0 // pred_check_branch
    %11 = sbr.rel (0) target = $region5
  $region4: #{inception_res_forward.16} parent=0 // pred_region
    _
  $region5: #{inception_res_forward.16} parent=0 // pred_fallthru
    _
  // Predicated region
  $region6: #{inception_res_forward.16} parent=0 // pred_check
    _
  $region7: #{inception_res_forward.16} parent=0 // pred_check_branch
    %13 = sbr.rel (0) target = $region9
  $region8: #{inception_res_forward.16} parent=0 // pred_region
    _
  $region9: #{inception_res_forward.16} parent=0 // pred_fallthru
    _
  // Predicated region
  $region10: #{inception_res_forward.16} parent=0 // pred_check
    _
  $region11: #{inception_res_forward.16} parent=0 // pred_check_branch
    %15 = sbr.rel (0) target = $region13
  $region12: #{inception_res_forward.16} parent=0 // pred_region
    _
  $region13: #{inception_res_forward.16} parent=0 // pred_fallthru
    _
  // Predicated region
  $region14: #{inception_res_forward.16} parent=0 // pred_check
    _
  $region15: #{inception_res_forward.16} parent=0 // pred_check_branch
    %17 = sbr.rel (0) target = $region17
  $region16: #{inception_res_forward.16} parent=0 // pred_region
    _
  $region17: #{inception_res_forward.16} parent=0 // pred_fallthru
    _
  // Predicated region
  $region18: #{inception_res_forward.16} parent=0 // pred_check
    _
  $region19: #{inception_res_forward.16} parent=0 // pred_check_branch
    %19 = sbr.rel (0) target = $region21
  $region20: #{inception_res_forward.16} parent=0 // pred_region
    _
  $region21: #{inception_res_forward.16} parent=0 // pred_fallthru
    _
  %v21 = vld [vmem:[%s0] sm:$0xf]
  %v22 = vld [vmem:[%s0 + $0x4] sm:$0xf]
  %v23 = vld [vmem:[%s0 + $0x8] sm:$0xf]
  %v24 = vld [vmem:[%s0 + $0xc] sm:$0xf]
  %v25 = vld [vmem:[%s0 + $0x10] sm:$0xf]
  %v26 = vld [vmem:[%s0 + $0x14] sm:$0xf]
  %v27 = vld [vmem:[%s0 + $0x18] sm:$0xf]
  %v28 = vld [vmem:[%s0 + $0x1c] sm:$0xf]
  %v29 = vld [vmem:[%s0 + $0x20] sm:$0xf]
  %v30 = vld [vmem:[%s0 + $0x24] sm:$0xf]
  %v31 = vld [vmem:[%s0 + $0x28] sm:$0xf]
  %v32 = vld [vmem:[%s0 + $0x2c] sm:$0xf]
  %v33 = vld [vmem:[%s0 + $0x30] sm:$0xf]
  %v34 = vld [vmem:[%s0 + $0x34] sm:$0xf]
  %v35 = vld [vmem:[%s0 + $0x38] sm:$0xf]
  %v36 = vld [vmem:[%s0 + $0x3c] sm:$0xf]
  %v37 = vld [vmem:[%s0 + $0x40] sm:$0xf]
  %v38 = vld [vmem:[%s0 + $0x44] sm:$0xf]
  %v39 = vld [vmem:[%s0 + $0x48] sm:$0xf]
  %v40 = vld [vmem:[%s0 + $0x4c] sm:$0xf]
  %v41 = vld [vmem:[%s0 + $0x50] sm:$0xf]
  %v42 = vld [vmem:[%s0 + $0x54] sm:$0xf]
  %v43 = vld [vmem:[%s0 + $0x58] sm:$0xf]
  %v44 = vld [vmem:[%s0 + $0x5c] sm:$0xf]
  %v45 = vld [vmem:[%s0 + $0x60] sm:$0xf]
  %v46 = vld [vmem:[%s0 + $0x64] sm:$0xf]
  %v47 = vld [vmem:[%s0 + $0x68] sm:$0xf]
  %v48 = vld [vmem:[%s0 + $0x6c] sm:$0xf]
  %v49 = vld [vmem:[%s0 + $0x70] sm:$0xf]
  %v50 = vld [vmem:[%s0 + $0x74] sm:$0xf]
  %v51 = vld [vmem:[%s0 + $0x78] sm:$0xf]
  %v52 = vld [vmem:[%s0 + $0x7c] sm:$0xf]
  %v53 = vld [vmem:[%s0 + $0x80] sm:$0xf]
  %v54 = vld [vmem:[%s0 + $0x84] sm:$0xf]
  %v55 = vld [vmem:[%s0 + $0x88] sm:$0xf]
  %v56 = vld [vmem:[%s0 + $0x8c] sm:$0xf]
  %v57 = vld [vmem:[%s0 + $0x90] sm:$0xf]
  %v58 = vld [vmem:[%s0 + $0x94] sm:$0xf]
  %v59 = vld [vmem:[%s0 + $0x98] sm:$0xf]
  %v60 = vld [vmem:[%s0 + $0x9c] sm:$0xf]
  %v61 = vld [vmem:[%s0 + $0xa0] sm:$0xf]
  %v62 = vld [vmem:[%s0 + $0xa4] sm:$0xf]
  %v63 = vld [vmem:[%s0 + $0xa8] sm:$0xf]
  %v64 = vld [vmem:[%s0 + $0xac] sm:$0xf]
  %v65 = vld [vmem:[%s0 + $0xb0] sm:$0xf]
  %v66 = vld [vmem:[%s0 + $0xb4] sm:$0xf]
  %v67 = vld [vmem:[%s0 + $0xb8] sm:$0xf]
  %v68 = vld [vmem:[%s0 + $0xbc] sm:$0xf]
  %v69 = vld [vmem:[%s0 + $0xc0] sm:$0xf]
  %v70 = vld [vmem:[%s0 + $0xc4] sm:$0xf]
  %v71 = vld [vmem:[%s0 + $0xc8] sm:$0xf]
  %v72 = vld [vmem:[%s0 + $0xcc] sm:$0xf]
  %v73 = vld [vmem:[%s0 + $0xd0] sm:$0xf]
  %v74 = vld [vmem:[%s0 + $0xd4] sm:$0xf]
  %v75 = vld [vmem:[%s0 + $0xd8] sm:$0xf]
  %v76 = vld [vmem:[%s0 + $0xdc] sm:$0xf]
  %v77 = vld [vmem:[%s0 + $0xe0] sm:$0xf]
  %v78 = vld [vmem:[%s0 + $0xe4] sm:$0xf]
  %v79 = vld [vmem:[%s0 + $0xe8] sm:$0xf]
  %v80 = vld [vmem:[%s0 + $0xec] sm:$0xf]
  %v81 = vld [vmem:[%s0 + $0xf0] sm:$0xf]
  %v82 = vld [vmem:[%s0 + $0xf4] sm:$0xf]
  %v83 = vld [vmem:[%s0 + $0xf8] sm:$0xf]
  %v84 = vld [vmem:[%s0 + $0xfc] sm:$0xf]
  %v85 = vld [vmem:[%s1] sm:$0x3]
  %v150 = vunpack.c.l.b16 %v21
  %v151 = vunpack.c.l.b16 %v22
  %v152 = vunpack.c.l.b16 %v23
  %v153 = vunpack.c.l.b16 %v24
  %v154 = vunpack.c.l.b16 %v25
  %v155 = vunpack.c.l.b16 %v26
  %v156 = vunpack.c.l.b16 %v27
  %v157 = vunpack.c.l.b16 %v28
  %v158 = vunpack.c.l.b16 %v29
  %v159 = vunpack.c.l.b16 %v30
  %v160 = vunpack.c.l.b16 %v31
  %v161 = vunpack.c.l.b16 %v32
  %v162 = vunpack.c.l.b16 %v33
  %v163 = vunpack.c.l.b16 %v34
  %v164 = vunpack.c.l.b16 %v35
  %v165 = vunpack.c.l.b16 %v36
  %v166 = vunpack.c.l.b16 %v37
  %v167 = vunpack.c.l.b16 %v38
  %v168 = vunpack.c.l.b16 %v39
  %v169 = vunpack.c.l.b16 %v40
  %v170 = vunpack.c.l.b16 %v41
  %v171 = vunpack.c.l.b16 %v42
  %v172 = vunpack.c.l.b16 %v43
  %v173 = vunpack.c.l.b16 %v44
  %v174 = vunpack.c.l.b16 %v45
  %v175 = vunpack.c.l.b16 %v46
  %v176 = vunpack.c.l.b16 %v47
  %v177 = vunpack.c.l.b16 %v48
  %v178 = vunpack.c.l.b16 %v49
  %v179 = vunpack.c.l.b16 %v50
  %v180 = vunpack.c.l.b16 %v51
  %v181 = vunpack.c.l.b16 %v52
  %v182 = vunpack.c.l.b16 %v53
  %v183 = vunpack.c.l.b16 %v54
  %v184 = vunpack.c.l.b16 %v55
  %v185 = vunpack.c.l.b16 %v56
  %v186 = vunpack.c.l.b16 %v57
  %v187 = vunpack.c.l.b16 %v58
  %v188 = vunpack.c.l.b16 %v59
  %v189 = vunpack.c.l.b16 %v60
  %v190 = vunpack.c.l.b16 %v61
  %v191 = vunpack.c.l.b16 %v62
  %v192 = vunpack.c.l.b16 %v63
  %v193 = vunpack.c.l.b16 %v64
  %v194 = vunpack.c.l.b16 %v65
  %v195 = vunpack.c.l.b16 %v66
  %v196 = vunpack.c.l.b16 %v67
  %v197 = vunpack.c.l.b16 %v68
  %v198 = vunpack.c.l.b16 %v69
  %v199 = vunpack.c.l.b16 %v70
  %v200 = vunpack.c.l.b16 %v71
  %v201 = vunpack.c.l.b16 %v72
  %v202 = vunpack.c.l.b16 %v73
  %v203 = vunpack.c.l.b16 %v74
  %v204 = vunpack.c.l.b16 %v75
  %v205 = vunpack.c.l.b16 %v76
  %v206 = vunpack.c.l.b16 %v77
  %v207 = vunpack.c.l.b16 %v78
  %v208 = vunpack.c.l.b16 %v79
  %v209 = vunpack.c.l.b16 %v80
  %v210 = vunpack.c.l.b16 %v81
  %v211 = vunpack.c.l.b16 %v82
  %v212 = vunpack.c.l.b16 %v83
  %v213 = vunpack.c.l.b16 %v84
  %v214 = vpack.c.b16 %v151, %v150
  %v215 = vpack.c.b16 %v153, %v152
  %v216 = vpack.c.b16 %v155, %v154
  %v217 = vpack.c.b16 %v157, %v156
  %v218 = vpack.c.b16 %v159, %v158
  %v219 = vpack.c.b16 %v161, %v160
  %v220 = vpack.c.b16 %v163, %v162
  %v221 = vpack.c.b16 %v165, %v164
  %v222 = vpack.c.b16 %v167, %v166
  %v223 = vpack.c.b16 %v169, %v168
  %v224 = vpack.c.b16 %v171, %v170
  %v225 = vpack.c.b16 %v173, %v172
  %v226 = vpack.c.b16 %v175, %v174
  %v227 = vpack.c.b16 %v177, %v176
  %v228 = vpack.c.b16 %v179, %v178
  %v229 = vpack.c.b16 %v181, %v180
  %v230 = vpack.c.b16 %v183, %v182
  %v231 = vpack.c.b16 %v185, %v184
  %v232 = vpack.c.b16 %v187, %v186
  %v233 = vpack.c.b16 %v189, %v188
  %v234 = vpack.c.b16 %v191, %v190
  %v235 = vpack.c.b16 %v193, %v192
  %v236 = vpack.c.b16 %v195, %v194
  %v237 = vpack.c.b16 %v197, %v196
  %v238 = vpack.c.b16 %v199, %v198
  %v239 = vpack.c.b16 %v201, %v200
  %v240 = vpack.c.b16 %v203, %v202
  %v241 = vpack.c.b16 %v205, %v204
  %v242 = vpack.c.b16 %v207, %v206
  %v243 = vpack.c.b16 %v209, %v208
  %v244 = vpack.c.b16 %v211, %v210
  %v245 = vpack.c.b16 %v213, %v212
  %vm246 = vcmask 31744
  %v248 = vsel %vm246, %v214, 0
  %v251 = vsel %vm246, %v215, 0
  %v254 = vsel %vm246, %v216, 0
  %v257 = vsel %vm246, %v217, 0
  %v260 = vsel %vm246, %v218, 0
  %v263 = vsel %vm246, %v219, 0
  %v266 = vsel %vm246, %v220, 0
  %v269 = vsel %vm246, %v221, 0
  %v272 = vsel %vm246, %v222, 0
  %v275 = vsel %vm246, %v223, 0
  %v278 = vsel %vm246, %v224, 0
  %v281 = vsel %vm246, %v225, 0
  %v284 = vsel %vm246, %v226, 0
  %v287 = vsel %vm246, %v227, 0
  %v290 = vsel %vm246, %v228, 0
  %v293 = vsel %vm246, %v229, 0
  %v296 = vsel %vm246, %v230, 0
  %v299 = vsel %vm246, %v231, 0
  %v302 = vsel %vm246, %v232, 0
  %v305 = vsel %vm246, %v233, 0
  %v308 = vsel %vm246, %v234, 0
  %v311 = vsel %vm246, %v235, 0
  %v314 = vsel %vm246, %v236, 0
  %v317 = vsel %vm246, %v237, 0
  %v320 = vsel %vm246, %v238, 0
  %v323 = vsel %vm246, %v239, 0
  %v326 = vsel %vm246, %v240, 0
  %v329 = vsel %vm246, %v241, 0
  %v332 = vsel %vm246, %v242, 0
  %v335 = vsel %vm246, %v243, 0
  %v338 = vsel %vm246, %v244, 0
  %v341 = vsel %vm246, %v245, 0
  %vm343 = vcmask 1041408
  %v345 = vsel %vm343, %v85, 0
  %347 = vmatprep.subr.bf16.mxu0 0
  %348 = vmatpush1.bf16.msra.mxu0 0
  %349 = vmatprep.subr.bf16.mxu0 0
  %350 = vmatpush1.bf16.msra.mxu0 0
  %351 = vmatprep.subr.bf16.mxu0 0
  %352 = vmatpush1.bf16.msra.mxu0 0
  %353 = vmatprep.subr.bf16.mxu0 0
  %354 = vmatpush1.bf16.msra.mxu0 0
  %355 = vmatprep.subr.bf16.mxu0 0
  %356 = vmatpush1.bf16.msra.mxu0 0
  %357 = vmatprep.subr.bf16.mxu0 0
  %358 = vmatpush1.bf16.msra.mxu0 0
  %359 = vmatprep.subr.bf16.mxu0 0
  %360 = vmatpush1.bf16.msra.mxu0 0
  %361 = vmatprep.subr.bf16.mxu0 0
  %362 = vmatpush1.bf16.msra.mxu0 %v345
  %363 = vmatprep.subr.bf16.mxu0 0
  %364 = vmatpush2.bf16.msra.mxu0 0
  %365 = vmatprep.subr.bf16.mxu0 0
  %366 = vmatpush2.bf16.msra.mxu0 0
  %367 = vmatprep.subr.bf16.mxu0 0
  %368 = vmatpush2.bf16.msra.mxu0 0
  %369 = vmatprep.subr.bf16.mxu0 0
  %370 = vmatpush2.bf16.msra.mxu0 0
  %371 = vmatprep.subr.bf16.mxu0 0
  %372 = vmatpush2.bf16.msra.mxu0 0
  %373 = vmatprep.subr.bf16.mxu0 0
  %374 = vmatpush2.bf16.msra.mxu0 0
  %375 = vmatprep.subr.bf16.mxu0 0
  %376 = vmatpush2.bf16.msra.mxu0 0
  %377 = vmatprep.subr.bf16.mxu0 0
  %378 = vmatpush2.bf16.msra.mxu0 0
  %379 = vmatprep.mubr.bf16.mxu0 0
  %380 = vmatmul.mubr.bf16.gmra.mxu0 %v248
  %v381 = vpop.f32.mrf.mxu0
  %v382 = vadd.f32 0.0, %v381
  %v383 = vpop.f32.mrf.mxu0
  %v384 = vpop.f32.mrf.mxu0
  %v385 = vadd.f32 0.0, %v384
  %v386 = vpop.f32.mrf.mxu0
  %387 = vmatprep.mubr.bf16.mxu0 0
  %388 = vmatmul.mubr.bf16.gmra.mxu0 %v251
  %v389 = vpop.f32.mrf.mxu0
  %v390 = vadd.f32 0.0, %v389
  %v391 = vpop.f32.mrf.mxu0
  %v392 = vpop.f32.mrf.mxu0
  %v393 = vadd.f32 0.0, %v392
  %v394 = vpop.f32.mrf.mxu0
  %395 = vmatprep.mubr.bf16.mxu0 0
  %396 = vmatmul.mubr.bf16.gmra.mxu0 %v254
  %v397 = vpop.f32.mrf.mxu0
  %v398 = vadd.f32 0.0, %v397
  %v399 = vpop.f32.mrf.mxu0
  %v400 = vpop.f32.mrf.mxu0
  %v401 = vadd.f32 0.0, %v400
  %v402 = vpop.f32.mrf.mxu0
  %403 = vmatprep.mubr.bf16.mxu0 0
  %404 = vmatmul.mubr.bf16.gmra.mxu0 %v257
  %v405 = vpop.f32.mrf.mxu0
  %v406 = vadd.f32 0.0, %v405
  %v407 = vpop.f32.mrf.mxu0
  %v408 = vpop.f32.mrf.mxu0
  %v409 = vadd.f32 0.0, %v408
  %v410 = vpop.f32.mrf.mxu0
  %411 = vmatprep.mubr.bf16.mxu0 0
  %412 = vmatmul.mubr.bf16.gmra.mxu0 %v260
  %v413 = vpop.f32.mrf.mxu0
  %v414 = vadd.f32 0.0, %v413
  %v415 = vpop.f32.mrf.mxu0
  %v416 = vpop.f32.mrf.mxu0
  %v417 = vadd.f32 0.0, %v416
  %v418 = vpop.f32.mrf.mxu0
  %419 = vmatprep.mubr.bf16.mxu0 0
  %420 = vmatmul.mubr.bf16.gmra.mxu0 %v263
  %v421 = vpop.f32.mrf.mxu0
  %v422 = vadd.f32 0.0, %v421
  %v423 = vpop.f32.mrf.mxu0
  %v424 = vpop.f32.mrf.mxu0
  %v425 = vadd.f32 0.0, %v424
  %v426 = vpop.f32.mrf.mxu0
  %427 = vmatprep.mubr.bf16.mxu0 0
  %428 = vmatmul.mubr.bf16.gmra.mxu0 %v266
  %v429 = vpop.f32.mrf.mxu0
  %v430 = vadd.f32 0.0, %v429
  %v431 = vpop.f32.mrf.mxu0
  %v432 = vpop.f32.mrf.mxu0
  %v433 = vadd.f32 0.0, %v432
  %v434 = vpop.f32.mrf.mxu0
  %435 = vmatprep.mubr.bf16.mxu0 0
  %436 = vmatmul.mubr.bf16.gmra.mxu0 %v269
  %v437 = vpop.f32.mrf.mxu0
  %v438 = vadd.f32 0.0, %v437
  %v439 = vpop.f32.mrf.mxu0
  %v440 = vpop.f32.mrf.mxu0
  %v441 = vadd.f32 0.0, %v440
  %v442 = vpop.f32.mrf.mxu0
  %443 = vmatprep.mubr.bf16.mxu0 0
  %444 = vmatmul.mubr.bf16.gmra.mxu0 %v272
  %v445 = vpop.f32.mrf.mxu0
  %v446 = vadd.f32 0.0, %v445
  %v447 = vpop.f32.mrf.mxu0
  %v448 = vpop.f32.mrf.mxu0
  %v449 = vadd.f32 0.0, %v448
  %v450 = vpop.f32.mrf.mxu0
  %451 = vmatprep.mubr.bf16.mxu0 0
  %452 = vmatmul.mubr.bf16.gmra.mxu0 %v275
  %v453 = vpop.f32.mrf.mxu0
  %v454 = vadd.f32 0.0, %v453
  %v455 = vpop.f32.mrf.mxu0
  %v456 = vpop.f32.mrf.mxu0
  %v457 = vadd.f32 0.0, %v456
  %v458 = vpop.f32.mrf.mxu0
  %459 = vmatprep.mubr.bf16.mxu0 0
  %460 = vmatmul.mubr.bf16.gmra.mxu0 %v278
  %v461 = vpop.f32.mrf.mxu0
  %v462 = vadd.f32 0.0, %v461
  %v463 = vpop.f32.mrf.mxu0
  %v464 = vpop.f32.mrf.mxu0
  %v465 = vadd.f32 0.0, %v464
  %v466 = vpop.f32.mrf.mxu0
  %467 = vmatprep.mubr.bf16.mxu0 0
  %468 = vmatmul.mubr.bf16.gmra.mxu0 %v281
  %v469 = vpop.f32.mrf.mxu0
  %v470 = vadd.f32 0.0, %v469
  %v471 = vpop.f32.mrf.mxu0
  %v472 = vpop.f32.mrf.mxu0
  %v473 = vadd.f32 0.0, %v472
  %v474 = vpop.f32.mrf.mxu0
  %475 = vmatprep.mubr.bf16.mxu0 0
  %476 = vmatmul.mubr.bf16.gmra.mxu0 %v284
  %v477 = vpop.f32.mrf.mxu0
  %v478 = vadd.f32 0.0, %v477
  %v479 = vpop.f32.mrf.mxu0
  %v480 = vpop.f32.mrf.mxu0
  %v481 = vadd.f32 0.0, %v480
  %v482 = vpop.f32.mrf.mxu0
  %483 = vmatprep.mubr.bf16.mxu0 0
  %484 = vmatmul.mubr.bf16.gmra.mxu0 %v287
  %v485 = vpop.f32.mrf.mxu0
  %v486 = vadd.f32 0.0, %v485
  %v487 = vpop.f32.mrf.mxu0
  %v488 = vpop.f32.mrf.mxu0
  %v489 = vadd.f32 0.0, %v488
  %v490 = vpop.f32.mrf.mxu0
  %491 = vmatprep.mubr.bf16.mxu0 0
  %492 = vmatmul.mubr.bf16.gmra.mxu0 %v290
  %v493 = vpop.f32.mrf.mxu0
  %v494 = vadd.f32 0.0, %v493
  %v495 = vpop.f32.mrf.mxu0
  %v496 = vpop.f32.mrf.mxu0
  %v497 = vadd.f32 0.0, %v496
  %v498 = vpop.f32.mrf.mxu0
  %499 = vmatprep.mubr.bf16.mxu0 0
  %500 = vmatmul.mubr.bf16.gmra.mxu0 %v293
  %v501 = vpop.f32.mrf.mxu0
  %v502 = vadd.f32 0.0, %v501
  %v503 = vpop.f32.mrf.mxu0
  %v504 = vpop.f32.mrf.mxu0
  %v505 = vadd.f32 0.0, %v504
  %v506 = vpop.f32.mrf.mxu0
  %507 = vmatprep.mubr.bf16.mxu0 0
  %508 = vmatmul.mubr.bf16.gmra.mxu0 %v296
  %v509 = vpop.f32.mrf.mxu0
  %v510 = vadd.f32 0.0, %v509
  %v511 = vpop.f32.mrf.mxu0
  %v512 = vpop.f32.mrf.mxu0
  %v513 = vadd.f32 0.0, %v512
  %v514 = vpop.f32.mrf.mxu0
  %515 = vmatprep.mubr.bf16.mxu0 0
  %516 = vmatmul.mubr.bf16.gmra.mxu0 %v299
  %v517 = vpop.f32.mrf.mxu0
  %v518 = vadd.f32 0.0, %v517
  %v519 = vpop.f32.mrf.mxu0
  %v520 = vpop.f32.mrf.mxu0
  %v521 = vadd.f32 0.0, %v520
  %v522 = vpop.f32.mrf.mxu0
  %523 = vmatprep.mubr.bf16.mxu0 0
  %524 = vmatmul.mubr.bf16.gmra.mxu0 %v302
  %v525 = vpop.f32.mrf.mxu0
  %v526 = vadd.f32 0.0, %v525
  %v527 = vpop.f32.mrf.mxu0
  %v528 = vpop.f32.mrf.mxu0
  %v529 = vadd.f32 0.0, %v528
  %v530 = vpop.f32.mrf.mxu0
  %531 = vmatprep.mubr.bf16.mxu0 0
  %532 = vmatmul.mubr.bf16.gmra.mxu0 %v305
  %v533 = vpop.f32.mrf.mxu0
  %v534 = vadd.f32 0.0, %v533
  %v535 = vpop.f32.mrf.mxu0
  %v536 = vpop.f32.mrf.mxu0
  %v537 = vadd.f32 0.0, %v536
  %v538 = vpop.f32.mrf.mxu0
  %539 = vmatprep.mubr.bf16.mxu0 0
  %540 = vmatmul.mubr.bf16.gmra.mxu0 %v308
  %v541 = vpop.f32.mrf.mxu0
  %v542 = vadd.f32 0.0, %v541
  %v543 = vpop.f32.mrf.mxu0
  %v544 = vpop.f32.mrf.mxu0
  %v545 = vadd.f32 0.0, %v544
  %v546 = vpop.f32.mrf.mxu0
  %547 = vmatprep.mubr.bf16.mxu0 0
  %548 = vmatmul.mubr.bf16.gmra.mxu0 %v311
  %v549 = vpop.f32.mrf.mxu0
  %v550 = vadd.f32 0.0, %v549
  %v551 = vpop.f32.mrf.mxu0
  %v552 = vpop.f32.mrf.mxu0
  %v553 = vadd.f32 0.0, %v552
  %v554 = vpop.f32.mrf.mxu0
  %555 = vmatprep.mubr.bf16.mxu0 0
  %556 = vmatmul.mubr.bf16.gmra.mxu0 %v314
  %v557 = vpop.f32.mrf.mxu0
  %v558 = vadd.f32 0.0, %v557
  %v559 = vpop.f32.mrf.mxu0
  %v560 = vpop.f32.mrf.mxu0
  %v561 = vadd.f32 0.0, %v560
  %v562 = vpop.f32.mrf.mxu0
  %563 = vmatprep.mubr.bf16.mxu0 0
  %564 = vmatmul.mubr.bf16.gmra.mxu0 %v317
  %v565 = vpop.f32.mrf.mxu0
  %v566 = vadd.f32 0.0, %v565
  %v567 = vpop.f32.mrf.mxu0
  %v568 = vpop.f32.mrf.mxu0
  %v569 = vadd.f32 0.0, %v568
  %v570 = vpop.f32.mrf.mxu0
  %571 = vmatprep.mubr.bf16.mxu0 0
  %572 = vmatmul.mubr.bf16.gmra.mxu0 %v320
  %v573 = vpop.f32.mrf.mxu0
  %v574 = vadd.f32 0.0, %v573
  %v575 = vpop.f32.mrf.mxu0
  %v576 = vpop.f32.mrf.mxu0
  %v577 = vadd.f32 0.0, %v576
  %v578 = vpop.f32.mrf.mxu0
  %579 = vmatprep.mubr.bf16.mxu0 0
  %580 = vmatmul.mubr.bf16.gmra.mxu0 %v323
  %v581 = vpop.f32.mrf.mxu0
  %v582 = vadd.f32 0.0, %v581
  %v583 = vpop.f32.mrf.mxu0
  %v584 = vpop.f32.mrf.mxu0
  %v585 = vadd.f32 0.0, %v584
  %v586 = vpop.f32.mrf.mxu0
  %587 = vmatprep.mubr.bf16.mxu0 0
  %588 = vmatmul.mubr.bf16.gmra.mxu0 %v326
  %v589 = vpop.f32.mrf.mxu0
  %v590 = vadd.f32 0.0, %v589
  %v591 = vpop.f32.mrf.mxu0
  %v592 = vpop.f32.mrf.mxu0
  %v593 = vadd.f32 0.0, %v592
  %v594 = vpop.f32.mrf.mxu0
  %595 = vmatprep.mubr.bf16.mxu0 0
  %596 = vmatmul.mubr.bf16.gmra.mxu0 %v329
  %v597 = vpop.f32.mrf.mxu0
  %v598 = vadd.f32 0.0, %v597
  %v599 = vpop.f32.mrf.mxu0
  %v600 = vpop.f32.mrf.mxu0
  %v601 = vadd.f32 0.0, %v600
  %v602 = vpop.f32.mrf.mxu0
  %603 = vmatprep.mubr.bf16.mxu0 0
  %604 = vmatmul.mubr.bf16.gmra.mxu0 %v332
  %v605 = vpop.f32.mrf.mxu0
  %v606 = vadd.f32 0.0, %v605
  %v607 = vpop.f32.mrf.mxu0
  %v608 = vpop.f32.mrf.mxu0
  %v609 = vadd.f32 0.0, %v608
  %v610 = vpop.f32.mrf.mxu0
  %611 = vmatprep.mubr.bf16.mxu0 0
  %612 = vmatmul.mubr.bf16.gmra.mxu0 %v335
  %v613 = vpop.f32.mrf.mxu0
  %v614 = vadd.f32 0.0, %v613
  %v615 = vpop.f32.mrf.mxu0
  %v616 = vpop.f32.mrf.mxu0
  %v617 = vadd.f32 0.0, %v616
  %v618 = vpop.f32.mrf.mxu0
  %619 = vmatprep.mubr.bf16.mxu0 0
  %620 = vmatmul.mubr.bf16.gmra.mxu0 %v338
  %v621 = vpop.f32.mrf.mxu0
  %v622 = vadd.f32 0.0, %v621
  %v623 = vpop.f32.mrf.mxu0
  %v624 = vpop.f32.mrf.mxu0
  %v625 = vadd.f32 0.0, %v624
  %v626 = vpop.f32.mrf.mxu0
  %627 = vmatprep.mubr.bf16.mxu0 0
  %628 = vmatmul.mubr.bf16.gmra.mxu0 %v341
  %v629 = vpop.f32.mrf.mxu0
  %v630 = vadd.f32 0.0, %v629
  %v631 = vpop.f32.mrf.mxu0
  %v632 = vpop.f32.mrf.mxu0
  %v633 = vadd.f32 0.0, %v632
  %v634 = vpop.f32.mrf.mxu0
  %635 = vdwg.mxu0
  %v636 = vld [vmem:[%s2] sm:$0x1]
  %v637 = vld [vmem:[%s3] sm:$0x1]
  %v638 = vsel %vm246, %v382, 0.0
  %v639 = vsel %vm246, %v385, 0.0
  %v640 = vadd.f32 %v638, %v639
  %v641 = vsel %vm246, %v390, 0.0
  %v642 = vadd.f32 %v640, %v641
  %v643 = vsel %vm246, %v393, 0.0
  %v644 = vadd.f32 %v642, %v643
  %v645 = vsel %vm246, %v398, 0.0
  %v646 = vadd.f32 %v644, %v645
  %v647 = vsel %vm246, %v401, 0.0
  %v648 = vadd.f32 %v646, %v647
  %v649 = vsel %vm246, %v406, 0.0
  %v650 = vadd.f32 %v648, %v649
  %v651 = vsel %vm246, %v409, 0.0
  %v652 = vadd.f32 %v650, %v651
  %v653 = vsel %vm246, %v414, 0.0
  %v654 = vadd.f32 %v652, %v653
  %v655 = vsel %vm246, %v417, 0.0
  %v656 = vadd.f32 %v654, %v655
  %v657 = vsel %vm246, %v422, 0.0
  %v658 = vadd.f32 %v656, %v657
  %v659 = vsel %vm246, %v425, 0.0
  %v660 = vadd.f32 %v658, %v659
  %v661 = vsel %vm246, %v430, 0.0
  %v662 = vadd.f32 %v660, %v661
  %v663 = vsel %vm246, %v433, 0.0
  %v664 = vadd.f32 %v662, %v663
  %v665 = vsel %vm246, %v438, 0.0
  %v666 = vadd.f32 %v664, %v665
  %v667 = vsel %vm246, %v441, 0.0
  %v668 = vadd.f32 %v666, %v667
  %v669 = vsel %vm246, %v446, 0.0
  %v670 = vadd.f32 %v668, %v669
  %v671 = vsel %vm246, %v449, 0.0
  %v672 = vadd.f32 %v670, %v671
  %v673 = vsel %vm246, %v454, 0.0
  %v674 = vadd.f32 %v672, %v673
  %v675 = vsel %vm246, %v457, 0.0
  %v676 = vadd.f32 %v674, %v675
  %v677 = vsel %vm246, %v462, 0.0
  %v678 = vadd.f32 %v676, %v677
  %v679 = vsel %vm246, %v465, 0.0
  %v680 = vadd.f32 %v678, %v679
  %v681 = vsel %vm246, %v470, 0.0
  %v682 = vadd.f32 %v680, %v681
  %v683 = vsel %vm246, %v473, 0.0
  %v684 = vadd.f32 %v682, %v683
  %v685 = vsel %vm246, %v478, 0.0
  %v686 = vadd.f32 %v684, %v685
  %v687 = vsel %vm246, %v481, 0.0
  %v688 = vadd.f32 %v686, %v687
  %v689 = vsel %vm246, %v486, 0.0
  %v690 = vadd.f32 %v688, %v689
  %v691 = vsel %vm246, %v489, 0.0
  %v692 = vadd.f32 %v690, %v691
  %v693 = vsel %vm246, %v494, 0.0
  %v694 = vadd.f32 %v692, %v693
  %v695 = vsel %vm246, %v497, 0.0
  %v696 = vadd.f32 %v694, %v695
  %v697 = vsel %vm246, %v502, 0.0
  %v698 = vadd.f32 %v696, %v697
  %v699 = vsel %vm246, %v505, 0.0
  %v700 = vadd.f32 %v698, %v699
  %v701 = vsel %vm246, %v510, 0.0
  %v702 = vadd.f32 %v700, %v701
  %v703 = vsel %vm246, %v513, 0.0
  %v704 = vadd.f32 %v702, %v703
  %v705 = vsel %vm246, %v518, 0.0
  %v706 = vadd.f32 %v704, %v705
  %v707 = vsel %vm246, %v521, 0.0
  %v708 = vadd.f32 %v706, %v707
  %v709 = vsel %vm246, %v526, 0.0
  %v710 = vadd.f32 %v708, %v709
  %v711 = vsel %vm246, %v529, 0.0
  %v712 = vadd.f32 %v710, %v711
  %v713 = vsel %vm246, %v534, 0.0
  %v714 = vadd.f32 %v712, %v713
  %v715 = vsel %vm246, %v537, 0.0
  %v716 = vadd.f32 %v714, %v715
  %v717 = vsel %vm246, %v542, 0.0
  %v718 = vadd.f32 %v716, %v717
  %v719 = vsel %vm246, %v545, 0.0
  %v720 = vadd.f32 %v718, %v719
  %v721 = vsel %vm246, %v550, 0.0
  %v722 = vadd.f32 %v720, %v721
  %v723 = vsel %vm246, %v553, 0.0
  %v724 = vadd.f32 %v722, %v723
  %v725 = vsel %vm246, %v558, 0.0
  %v726 = vadd.f32 %v724, %v725
  %v727 = vsel %vm246, %v561, 0.0
  %v728 = vadd.f32 %v726, %v727
  %v729 = vsel %vm246, %v566, 0.0
  %v730 = vadd.f32 %v728, %v729
  %v731 = vsel %vm246, %v569, 0.0
  %v732 = vadd.f32 %v730, %v731
  %v733 = vsel %vm246, %v574, 0.0
  %v734 = vadd.f32 %v732, %v733
  %v735 = vsel %vm246, %v577, 0.0
  %v736 = vadd.f32 %v734, %v735
  %v737 = vsel %vm246, %v582, 0.0
  %v738 = vadd.f32 %v736, %v737
  %v739 = vsel %vm246, %v585, 0.0
  %v740 = vadd.f32 %v738, %v739
  %v741 = vsel %vm246, %v590, 0.0
  %v742 = vadd.f32 %v740, %v741
  %v743 = vsel %vm246, %v593, 0.0
  %v744 = vadd.f32 %v742, %v743
  %v745 = vsel %vm246, %v598, 0.0
  %v746 = vadd.f32 %v744, %v745
  %v747 = vsel %vm246, %v601, 0.0
  %v748 = vadd.f32 %v746, %v747
  %v749 = vsel %vm246, %v606, 0.0
  %v750 = vadd.f32 %v748, %v749
  %v751 = vsel %vm246, %v609, 0.0
  %v752 = vadd.f32 %v750, %v751
  %v753 = vsel %vm246, %v614, 0.0
  %v754 = vadd.f32 %v752, %v753
  %v755 = vsel %vm246, %v617, 0.0
  %v756 = vadd.f32 %v754, %v755
  %v757 = vsel %vm246, %v622, 0.0
  %v758 = vadd.f32 %v756, %v757
  %v759 = vsel %vm246, %v625, 0.0
  %v760 = vadd.f32 %v758, %v759
  %v761 = vsel %vm246, %v630, 0.0
  %v762 = vadd.f32 %v760, %v761
  %v763 = vsel %vm246, %v633, 0.0
  %v764 = vadd.f32 %v762, %v763
  %v765 = vrot.slane %v764, 4
  %v766 = vadd.f32 %v764, %v765
  %v767 = vrot.slane %v766, 2
  %v768 = vadd.f32 %v766, %v767
  %v769 = vrot.slane %v768, 1
  %v770 = vadd.f32 %v768, %v769
  %v771 = vrcp.pop 512.0
  %v772 = vmul.f32 %v770, %v771
  %v773 = vsub.f32 %v382, %v772
  %v774 = vsub.f32 %v385, %v772
  %v775 = vsub.f32 %v390, %v772
  %v776 = vsub.f32 %v393, %v772
  %v777 = vsub.f32 %v398, %v772
  %v778 = vsub.f32 %v401, %v772
  %v779 = vsub.f32 %v406, %v772
  %v780 = vsub.f32 %v409, %v772
  %v781 = vsub.f32 %v414, %v772
  %v782 = vsub.f32 %v417, %v772
  %v783 = vsub.f32 %v422, %v772
  %v784 = vsub.f32 %v425, %v772
  %v785 = vsub.f32 %v430, %v772
  %v786 = vsub.f32 %v433, %v772
  %v787 = vsub.f32 %v438, %v772
  %v788 = vsub.f32 %v441, %v772
  %v789 = vsub.f32 %v446, %v772
  %v790 = vsub.f32 %v449, %v772
  %v791 = vsub.f32 %v454, %v772
  %v792 = vsub.f32 %v457, %v772
  %v793 = vsub.f32 %v462, %v772
  %v794 = vsub.f32 %v465, %v772
  %v795 = vsub.f32 %v470, %v772
  %v796 = vsub.f32 %v473, %v772
  %v797 = vsub.f32 %v478, %v772
  %v798 = vsub.f32 %v481, %v772
  %v799 = vsub.f32 %v486, %v772
  %v800 = vsub.f32 %v489, %v772
  %v801 = vsub.f32 %v494, %v772
  %v802 = vsub.f32 %v497, %v772
  %v803 = vsub.f32 %v502, %v772
  %v804 = vsub.f32 %v505, %v772
  %v805 = vsub.f32 %v510, %v772
  %v806 = vsub.f32 %v513, %v772
  %v807 = vsub.f32 %v518, %v772
  %v808 = vsub.f32 %v521, %v772
  %v809 = vsub.f32 %v526, %v772
  %v810 = vsub.f32 %v529, %v772
  %v811 = vsub.f32 %v534, %v772
  %v812 = vsub.f32 %v537, %v772
  %v813 = vsub.f32 %v542, %v772
  %v814 = vsub.f32 %v545, %v772
  %v815 = vsub.f32 %v550, %v772
  %v816 = vsub.f32 %v553, %v772
  %v817 = vsub.f32 %v558, %v772
  %v818 = vsub.f32 %v561, %v772
  %v819 = vsub.f32 %v566, %v772
  %v820 = vsub.f32 %v569, %v772
  %v821 = vsub.f32 %v574, %v772
  %v822 = vsub.f32 %v577, %v772
  %v823 = vsub.f32 %v582, %v772
  %v824 = vsub.f32 %v585, %v772
  %v825 = vsub.f32 %v590, %v772
  %v826 = vsub.f32 %v593, %v772
  %v827 = vsub.f32 %v598, %v772
  %v828 = vsub.f32 %v601, %v772
  %v829 = vsub.f32 %v606, %v772
  %v830 = vsub.f32 %v609, %v772
  %v831 = vsub.f32 %v614, %v772
  %v832 = vsub.f32 %v617, %v772
  %v833 = vsub.f32 %v622, %v772
  %v834 = vsub.f32 %v625, %v772
  %v835 = vsub.f32 %v630, %v772
  %v836 = vsub.f32 %v633, %v772
  %v837 = vmul.f32 %v773, %v773
  %v838 = vmul.f32 %v774, %v774
  %v839 = vmul.f32 %v775, %v775
  %v840 = vmul.f32 %v776, %v776
  %v841 = vmul.f32 %v777, %v777
  %v842 = vmul.f32 %v778, %v778
  %v843 = vmul.f32 %v779, %v779
  %v844 = vmul.f32 %v780, %v780
  %v845 = vmul.f32 %v781, %v781
  %v846 = vmul.f32 %v782, %v782
  %v847 = vmul.f32 %v783, %v783
  %v848 = vmul.f32 %v784, %v784
  %v849 = vmul.f32 %v785, %v785
  %v850 = vmul.f32 %v786, %v786
  %v851 = vmul.f32 %v787, %v787
  %v852 = vmul.f32 %v788, %v788
  %v853 = vmul.f32 %v789, %v789
  %v854 = vmul.f32 %v790, %v790
  %v855 = vmul.f32 %v791, %v791
  %v856 = vmul.f32 %v792, %v792
  %v857 = vmul.f32 %v793, %v793
  %v858 = vmul.f32 %v794, %v794
  %v859 = vmul.f32 %v795, %v795
  %v860 = vmul.f32 %v796, %v796
  %v861 = vmul.f32 %v797, %v797
  %v862 = vmul.f32 %v798, %v798
  %v863 = vmul.f32 %v799, %v799
  %v864 = vmul.f32 %v800, %v800
  %v865 = vmul.f32 %v801, %v801
  %v866 = vmul.f32 %v802, %v802
  %v867 = vmul.f32 %v803, %v803
  %v868 = vmul.f32 %v804, %v804
  %v869 = vmul.f32 %v805, %v805
  %v870 = vmul.f32 %v806, %v806
  %v871 = vmul.f32 %v807, %v807
  %v872 = vmul.f32 %v808, %v808
  %v873 = vmul.f32 %v809, %v809
  %v874 = vmul.f32 %v810, %v810
  %v875 = vmul.f32 %v811, %v811
  %v876 = vmul.f32 %v812, %v812
  %v877 = vmul.f32 %v813, %v813
  %v878 = vmul.f32 %v814, %v814
  %v879 = vmul.f32 %v815, %v815
  %v880 = vmul.f32 %v816, %v816
  %v881 = vmul.f32 %v817, %v817
  %v882 = vmul.f32 %v818, %v818
  %v883 = vmul.f32 %v819, %v819
  %v884 = vmul.f32 %v820, %v820
  %v885 = vmul.f32 %v821, %v821
  %v886 = vmul.f32 %v822, %v822
  %v887 = vmul.f32 %v823, %v823
  %v888 = vmul.f32 %v824, %v824
  %v889 = vmul.f32 %v825, %v825
  %v890 = vmul.f32 %v826, %v826
  %v891 = vmul.f32 %v827, %v827
  %v892 = vmul.f32 %v828, %v828
  %v893 = vmul.f32 %v829, %v829
  %v894 = vmul.f32 %v830, %v830
  %v895 = vmul.f32 %v831, %v831
  %v896 = vmul.f32 %v832, %v832
  %v897 = vmul.f32 %v833, %v833
  %v898 = vmul.f32 %v834, %v834
  %v899 = vmul.f32 %v835, %v835
  %v900 = vmul.f32 %v836, %v836
  %v901 = vsel %vm246, %v837, 0.0
  %v902 = vsel %vm246, %v838, 0.0
  %v903 = vadd.f32 %v901, %v902
  %v904 = vsel %vm246, %v839, 0.0
  %v905 = vadd.f32 %v903, %v904
  %v906 = vsel %vm246, %v840, 0.0
  %v907 = vadd.f32 %v905, %v906
  %v908 = vsel %vm246, %v841, 0.0
  %v909 = vadd.f32 %v907, %v908
  %v910 = vsel %vm246, %v842, 0.0
  %v911 = vadd.f32 %v909, %v910
  %v912 = vsel %vm246, %v843, 0.0
  %v913 = vadd.f32 %v911, %v912
  %v914 = vsel %vm246, %v844, 0.0
  %v915 = vadd.f32 %v913, %v914
  %v916 = vsel %vm246, %v845, 0.0
  %v917 = vadd.f32 %v915, %v916
  %v918 = vsel %vm246, %v846, 0.0
  %v919 = vadd.f32 %v917, %v918
  %v920 = vsel %vm246, %v847, 0.0
  %v921 = vadd.f32 %v919, %v920
  %v922 = vsel %vm246, %v848, 0.0
  %v923 = vadd.f32 %v921, %v922
  %v924 = vsel %vm246, %v849, 0.0
  %v925 = vadd.f32 %v923, %v924
  %v926 = vsel %vm246, %v850, 0.0
  %v927 = vadd.f32 %v925, %v926
  %v928 = vsel %vm246, %v851, 0.0
  %v929 = vadd.f32 %v927, %v928
  %v930 = vsel %vm246, %v852, 0.0
  %v931 = vadd.f32 %v929, %v930
  %v932 = vsel %vm246, %v853, 0.0
  %v933 = vadd.f32 %v931, %v932
  %v934 = vsel %vm246, %v854, 0.0
  %v935 = vadd.f32 %v933, %v934
  %v936 = vsel %vm246, %v855, 0.0
  %v937 = vadd.f32 %v935, %v936
  %v938 = vsel %vm246, %v856, 0.0
  %v939 = vadd.f32 %v937, %v938
  %v940 = vsel %vm246, %v857, 0.0
  %v941 = vadd.f32 %v939, %v940
  %v942 = vsel %vm246, %v858, 0.0
  %v943 = vadd.f32 %v941, %v942
  %v944 = vsel %vm246, %v859, 0.0
  %v945 = vadd.f32 %v943, %v944
  %v946 = vsel %vm246, %v860, 0.0
  %v947 = vadd.f32 %v945, %v946
  %v948 = vsel %vm246, %v861, 0.0
  %v949 = vadd.f32 %v947, %v948
  %v950 = vsel %vm246, %v862, 0.0
  %v951 = vadd.f32 %v949, %v950
  %v952 = vsel %vm246, %v863, 0.0
  %v953 = vadd.f32 %v951, %v952
  %v954 = vsel %vm246, %v864, 0.0
  %v955 = vadd.f32 %v953, %v954
  %v956 = vsel %vm246, %v865, 0.0
  %v957 = vadd.f32 %v955, %v956
  %v958 = vsel %vm246, %v866, 0.0
  %v959 = vadd.f32 %v957, %v958
  %v960 = vsel %vm246, %v867, 0.0
  %v961 = vadd.f32 %v959, %v960
  %v962 = vsel %vm246, %v868, 0.0
  %v963 = vadd.f32 %v961, %v962
  %v964 = vsel %vm246, %v869, 0.0
  %v965 = vadd.f32 %v963, %v964
  %v966 = vsel %vm246, %v870, 0.0
  %v967 = vadd.f32 %v965, %v966
  %v968 = vsel %vm246, %v871, 0.0
  %v969 = vadd.f32 %v967, %v968
  %v970 = vsel %vm246, %v872, 0.0
  %v971 = vadd.f32 %v969, %v970
  %v972 = vsel %vm246, %v873, 0.0
  %v973 = vadd.f32 %v971, %v972
  %v974 = vsel %vm246, %v874, 0.0
  %v975 = vadd.f32 %v973, %v974
  %v976 = vsel %vm246, %v875, 0.0
  %v977 = vadd.f32 %v975, %v976
  %v978 = vsel %vm246, %v876, 0.0
  %v979 = vadd.f32 %v977, %v978
  %v980 = vsel %vm246, %v877, 0.0
  %v981 = vadd.f32 %v979, %v980
  %v982 = vsel %vm246, %v878, 0.0
  %v983 = vadd.f32 %v981, %v982
  %v984 = vsel %vm246, %v879, 0.0
  %v985 = vadd.f32 %v983, %v984
  %v986 = vsel %vm246, %v880, 0.0
  %v987 = vadd.f32 %v985, %v986
  %v988 = vsel %vm246, %v881, 0.0
  %v989 = vadd.f32 %v987, %v988
  %v990 = vsel %vm246, %v882, 0.0
  %v991 = vadd.f32 %v989, %v990
  %v992 = vsel %vm246, %v883, 0.0
  %v993 = vadd.f32 %v991, %v992
  %v994 = vsel %vm246, %v884, 0.0
  %v995 = vadd.f32 %v993, %v994
  %v996 = vsel %vm246, %v885, 0.0
  %v997 = vadd.f32 %v995, %v996
  %v998 = vsel %vm246, %v886, 0.0
  %v999 = vadd.f32 %v997, %v998
  %v1000 = vsel %vm246, %v887, 0.0
  %v1001 = vadd.f32 %v999, %v1000
  %v1002 = vsel %vm246, %v888, 0.0
  %v1003 = vadd.f32 %v1001, %v1002
  %v1004 = vsel %vm246, %v889, 0.0
  %v1005 = vadd.f32 %v1003, %v1004
  %v1006 = vsel %vm246, %v890, 0.0
  %v1007 = vadd.f32 %v1005, %v1006
  %v1008 = vsel %vm246, %v891, 0.0
  %v1009 = vadd.f32 %v1007, %v1008
  %v1010 = vsel %vm246, %v892, 0.0
  %v1011 = vadd.f32 %v1009, %v1010
  %v1012 = vsel %vm246, %v893, 0.0
  %v1013 = vadd.f32 %v1011, %v1012
  %v1014 = vsel %vm246, %v894, 0.0
  %v1015 = vadd.f32 %v1013, %v1014
  %v1016 = vsel %vm246, %v895, 0.0
  %v1017 = vadd.f32 %v1015, %v1016
  %v1018 = vsel %vm246, %v896, 0.0
  %v1019 = vadd.f32 %v1017, %v1018
  %v1020 = vsel %vm246, %v897, 0.0
  %v1021 = vadd.f32 %v1019, %v1020
  %v1022 = vsel %vm246, %v898, 0.0
  %v1023 = vadd.f32 %v1021, %v1022
  %v1024 = vsel %vm246, %v899, 0.0
  %v1025 = vadd.f32 %v1023, %v1024
  %v1026 = vsel %vm246, %v900, 0.0
  %v1027 = vadd.f32 %v1025, %v1026
  %v1028 = vrot.slane %v1027, 4
  %v1029 = vadd.f32 %v1027, %v1028
  %v1030 = vrot.slane %v1029, 2
  %v1031 = vadd.f32 %v1029, %v1030
  %v1032 = vrot.slane %v1031, 1
  %v1033 = vadd.f32 %v1031, %v1032
  %v1034 = vmul.f32 %v1033, %v771
  %v1035 = vadd.f32 %v1034, 1e-05
  %v1036 = vrsqrt.pop %v1035
  %v1037 = vmul.f32 %v636, %v1036
  %v1038 = vmul.f32 %v772, %v1037
  %v1039 = vsub.f32 %v637, %v1038
  %v1041 = vlaneseq
  %v1042 = vshrl.u32 %v1041, 7
  %v1043 = vsub.s32 0, %v1042
  %v1044 = vrot.slane %v1037, %v1043
  %v1046 = vmul.f32 %v382, %v1044
  %v1047 = vmul.f32 %v385, %v1044
  %v1048 = vmul.f32 %v390, %v1044
  %v1049 = vmul.f32 %v393, %v1044
  %v1050 = vmul.f32 %v398, %v1044
  %v1051 = vmul.f32 %v401, %v1044
  %v1052 = vmul.f32 %v406, %v1044
  %v1053 = vmul.f32 %v409, %v1044
  %v1054 = vmul.f32 %v414, %v1044
  %v1055 = vmul.f32 %v417, %v1044
  %v1056 = vmul.f32 %v422, %v1044
  %v1057 = vmul.f32 %v425, %v1044
  %v1058 = vmul.f32 %v430, %v1044
  %v1059 = vmul.f32 %v433, %v1044
  %v1060 = vmul.f32 %v438, %v1044
  %v1061 = vmul.f32 %v441, %v1044
  %v1062 = vmul.f32 %v446, %v1044
  %v1063 = vmul.f32 %v449, %v1044
  %v1064 = vmul.f32 %v454, %v1044
  %v1065 = vmul.f32 %v457, %v1044
  %v1066 = vmul.f32 %v462, %v1044
  %v1067 = vmul.f32 %v465, %v1044
  %v1068 = vmul.f32 %v470, %v1044
  %v1069 = vmul.f32 %v473, %v1044
  %v1070 = vmul.f32 %v478, %v1044
  %v1071 = vmul.f32 %v481, %v1044
  %v1072 = vmul.f32 %v486, %v1044
  %v1073 = vmul.f32 %v489, %v1044
  %v1074 = vmul.f32 %v494, %v1044
  %v1075 = vmul.f32 %v497, %v1044
  %v1076 = vmul.f32 %v502, %v1044
  %v1077 = vmul.f32 %v505, %v1044
  %v1078 = vmul.f32 %v510, %v1044
  %v1079 = vmul.f32 %v513, %v1044
  %v1080 = vmul.f32 %v518, %v1044
  %v1081 = vmul.f32 %v521, %v1044
  %v1082 = vmul.f32 %v526, %v1044
  %v1083 = vmul.f32 %v529, %v1044
  %v1084 = vmul.f32 %v534, %v1044
  %v1085 = vmul.f32 %v537, %v1044
  %v1086 = vmul.f32 %v542, %v1044
  %v1087 = vmul.f32 %v545, %v1044
  %v1088 = vmul.f32 %v550, %v1044
  %v1089 = vmul.f32 %v553, %v1044
  %v1090 = vmul.f32 %v558, %v1044
  %v1091 = vmul.f32 %v561, %v1044
  %v1092 = vmul.f32 %v566, %v1044
  %v1093 = vmul.f32 %v569, %v1044
  %v1094 = vmul.f32 %v574, %v1044
  %v1095 = vmul.f32 %v577, %v1044
  %v1096 = vmul.f32 %v582, %v1044
  %v1097 = vmul.f32 %v585, %v1044
  %v1098 = vmul.f32 %v590, %v1044
  %v1099 = vmul.f32 %v593, %v1044
  %v1100 = vmul.f32 %v598, %v1044
  %v1101 = vmul.f32 %v601, %v1044
  %v1102 = vmul.f32 %v606, %v1044
  %v1103 = vmul.f32 %v609, %v1044
  %v1104 = vmul.f32 %v614, %v1044
  %v1105 = vmul.f32 %v617, %v1044
  %v1106 = vmul.f32 %v622, %v1044
  %v1107 = vmul.f32 %v625, %v1044
  %v1108 = vmul.f32 %v630, %v1044
  %v1109 = vmul.f32 %v633, %v1044
  %v1111 = vlaneseq
  %v1112 = vshrl.u32 %v1111, 7
  %v1113 = vsub.s32 0, %v1112
  %v1114 = vrot.slane %v1039, %v1113
  %v1116 = vadd.f32 %v1046, %v1114
  %v1117 = vadd.f32 %v1047, %v1114
  %v1118 = vadd.f32 %v1048, %v1114
  %v1119 = vadd.f32 %v1049, %v1114
  %v1120 = vadd.f32 %v1050, %v1114
  %v1121 = vadd.f32 %v1051, %v1114
  %v1122 = vadd.f32 %v1052, %v1114
  %v1123 = vadd.f32 %v1053, %v1114
  %v1124 = vadd.f32 %v1054, %v1114
  %v1125 = vadd.f32 %v1055, %v1114
  %v1126 = vadd.f32 %v1056, %v1114
  %v1127 = vadd.f32 %v1057, %v1114
  %v1128 = vadd.f32 %v1058, %v1114
  %v1129 = vadd.f32 %v1059, %v1114
  %v1130 = vadd.f32 %v1060, %v1114
  %v1131 = vadd.f32 %v1061, %v1114
  %v1132 = vadd.f32 %v1062, %v1114
  %v1133 = vadd.f32 %v1063, %v1114
  %v1134 = vadd.f32 %v1064, %v1114
  %v1135 = vadd.f32 %v1065, %v1114
  %v1136 = vadd.f32 %v1066, %v1114
  %v1137 = vadd.f32 %v1067, %v1114
  %v1138 = vadd.f32 %v1068, %v1114
  %v1139 = vadd.f32 %v1069, %v1114
  %v1140 = vadd.f32 %v1070, %v1114
  %v1141 = vadd.f32 %v1071, %v1114
  %v1142 = vadd.f32 %v1072, %v1114
  %v1143 = vadd.f32 %v1073, %v1114
  %v1144 = vadd.f32 %v1074, %v1114
  %v1145 = vadd.f32 %v1075, %v1114
  %v1146 = vadd.f32 %v1076, %v1114
  %v1147 = vadd.f32 %v1077, %v1114
  %v1148 = vadd.f32 %v1078, %v1114
  %v1149 = vadd.f32 %v1079, %v1114
  %v1150 = vadd.f32 %v1080, %v1114
  %v1151 = vadd.f32 %v1081, %v1114
  %v1152 = vadd.f32 %v1082, %v1114
  %v1153 = vadd.f32 %v1083, %v1114
  %v1154 = vadd.f32 %v1084, %v1114
  %v1155 = vadd.f32 %v1085, %v1114
  %v1156 = vadd.f32 %v1086, %v1114
  %v1157 = vadd.f32 %v1087, %v1114
  %v1158 = vadd.f32 %v1088, %v1114
  %v1159 = vadd.f32 %v1089, %v1114
  %v1160 = vadd.f32 %v1090, %v1114
  %v1161 = vadd.f32 %v1091, %v1114
  %v1162 = vadd.f32 %v1092, %v1114
  %v1163 = vadd.f32 %v1093, %v1114
  %v1164 = vadd.f32 %v1094, %v1114
  %v1165 = vadd.f32 %v1095, %v1114
  %v1166 = vadd.f32 %v1096, %v1114
  %v1167 = vadd.f32 %v1097, %v1114
  %v1168 = vadd.f32 %v1098, %v1114
  %v1169 = vadd.f32 %v1099, %v1114
  %v1170 = vadd.f32 %v1100, %v1114
  %v1171 = vadd.f32 %v1101, %v1114
  %v1172 = vadd.f32 %v1102, %v1114
  %v1173 = vadd.f32 %v1103, %v1114
  %v1174 = vadd.f32 %v1104, %v1114
  %v1175 = vadd.f32 %v1105, %v1114
  %v1176 = vadd.f32 %v1106, %v1114
  %v1177 = vadd.f32 %v1107, %v1114
  %v1178 = vadd.f32 %v1108, %v1114
  %v1179 = vadd.f32 %v1109, %v1114
  %v1180 = vld [vmem:[%s4] sm:$0xff]
  %v1181 = vld [vmem:[%s4 + $0x8] sm:$0xff]
  %v1182 = vld [vmem:[%s4 + $0x10] sm:$0xff]
  %v1183 = vld [vmem:[%s4 + $0x18] sm:$0xff]
  %v1184 = vld [vmem:[%s4 + $0x20] sm:$0xff]
  %v1185 = vld [vmem:[%s4 + $0x28] sm:$0xff]
  %v1186 = vld [vmem:[%s4 + $0x30] sm:$0xff]
  %v1187 = vld [vmem:[%s4 + $0x38] sm:$0xff]
  %v1188 = vld [vmem:[%s4 + $0x40] sm:$0xff]
  %v1189 = vld [vmem:[%s4 + $0x48] sm:$0xff]
  %v1190 = vld [vmem:[%s4 + $0x50] sm:$0xff]
  %v1191 = vld [vmem:[%s4 + $0x58] sm:$0xff]
  %v1192 = vld [vmem:[%s4 + $0x60] sm:$0xff]
  %v1193 = vld [vmem:[%s4 + $0x68] sm:$0xff]
  %v1194 = vld [vmem:[%s4 + $0x70] sm:$0xff]
  %v1195 = vld [vmem:[%s4 + $0x78] sm:$0xff]
  %v1196 = vld [vmem:[%s4 + $0x80] sm:$0xff]
  %v1197 = vld [vmem:[%s4 + $0x88] sm:$0xff]
  %v1198 = vld [vmem:[%s4 + $0x90] sm:$0xff]
  %v1199 = vld [vmem:[%s4 + $0x98] sm:$0xff]
  %v1200 = vld [vmem:[%s4 + $0xa0] sm:$0xff]
  %v1201 = vld [vmem:[%s4 + $0xa8] sm:$0xff]
  %v1202 = vld [vmem:[%s4 + $0xb0] sm:$0xff]
  %v1203 = vld [vmem:[%s4 + $0xb8] sm:$0xff]
  %v1204 = vld [vmem:[%s4 + $0xc0] sm:$0xff]
  %v1205 = vld [vmem:[%s4 + $0xc8] sm:$0xff]
  %v1206 = vld [vmem:[%s4 + $0xd0] sm:$0xff]
  %v1207 = vld [vmem:[%s4 + $0xd8] sm:$0xff]
  %v1208 = vld [vmem:[%s4 + $0xe0] sm:$0xff]
  %v1209 = vld [vmem:[%s4 + $0xe8] sm:$0xff]
  %v1210 = vld [vmem:[%s4 + $0xf0] sm:$0xff]
  %v1211 = vld [vmem:[%s4 + $0xf8] sm:$0xff]
  %v1212 = vld [vmem:[%s4 + $0x100] sm:$0xff]
  %v1213 = vld [vmem:[%s4 + $0x108] sm:$0xff]
  %v1214 = vld [vmem:[%s4 + $0x110] sm:$0xff]
  %v1215 = vld [vmem:[%s4 + $0x118] sm:$0xff]
  %v1216 = vld [vmem:[%s4 + $0x120] sm:$0xff]
  %v1217 = vld [vmem:[%s4 + $0x128] sm:$0xff]
  %v1218 = vld [vmem:[%s4 + $0x130] sm:$0xff]
  %v1219 = vld [vmem:[%s4 + $0x138] sm:$0xff]
  %v1220 = vld [vmem:[%s4 + $0x140] sm:$0xff]
  %v1221 = vld [vmem:[%s4 + $0x148] sm:$0xff]
  %v1222 = vld [vmem:[%s4 + $0x150] sm:$0xff]
  %v1223 = vld [vmem:[%s4 + $0x158] sm:$0xff]
  %v1224 = vld [vmem:[%s4 + $0x160] sm:$0xff]
  %v1225 = vld [vmem:[%s4 + $0x168] sm:$0xff]
  %v1226 = vld [vmem:[%s4 + $0x170] sm:$0xff]
  %v1227 = vld [vmem:[%s4 + $0x178] sm:$0xff]
  %v1228 = vld [vmem:[%s4 + $0x180] sm:$0xff]
  %v1229 = vld [vmem:[%s4 + $0x188] sm:$0xff]
  %v1230 = vld [vmem:[%s4 + $0x190] sm:$0xff]
  %v1231 = vld [vmem:[%s4 + $0x198] sm:$0xff]
  %v1232 = vld [vmem:[%s4 + $0x1a0] sm:$0xff]
  %v1233 = vld [vmem:[%s4 + $0x1a8] sm:$0xff]
  %v1234 = vld [vmem:[%s4 + $0x1b0] sm:$0xff]
  %v1235 = vld [vmem:[%s4 + $0x1b8] sm:$0xff]
  %v1236 = vld [vmem:[%s4 + $0x1c0] sm:$0xff]
  %v1237 = vld [vmem:[%s4 + $0x1c8] sm:$0xff]
  %v1238 = vld [vmem:[%s4 + $0x1d0] sm:$0xff]
  %v1239 = vld [vmem:[%s4 + $0x1d8] sm:$0xff]
  %v1240 = vld [vmem:[%s4 + $0x1e0] sm:$0xff]
  %v1241 = vld [vmem:[%s4 + $0x1e8] sm:$0xff]
  %v1242 = vld [vmem:[%s4 + $0x1f0] sm:$0xff]
  %v1243 = vld [vmem:[%s4 + $0x1f8] sm:$0xff]
  %v1244 = vadd.f32 %v1116, %v1180
  %v1245 = vadd.f32 %v1117, %v1181
  %v1246 = vadd.f32 %v1118, %v1182
  %v1247 = vadd.f32 %v1119, %v1183
  %v1248 = vadd.f32 %v1120, %v1184
  %v1249 = vadd.f32 %v1121, %v1185
  %v1250 = vadd.f32 %v1122, %v1186
  %v1251 = vadd.f32 %v1123, %v1187
  %v1252 = vadd.f32 %v1124, %v1188
  %v1253 = vadd.f32 %v1125, %v1189
  %v1254 = vadd.f32 %v1126, %v1190
  %v1255 = vadd.f32 %v1127, %v1191
  %v1256 = vadd.f32 %v1128, %v1192
  %v1257 = vadd.f32 %v1129, %v1193
  %v1258 = vadd.f32 %v1130, %v1194
  %v1259 = vadd.f32 %v1131, %v1195
  %v1260 = vadd.f32 %v1132, %v1196
  %v1261 = vadd.f32 %v1133, %v1197
  %v1262 = vadd.f32 %v1134, %v1198
  %v1263 = vadd.f32 %v1135, %v1199
  %v1264 = vadd.f32 %v1136, %v1200
  %v1265 = vadd.f32 %v1137, %v1201
  %v1266 = vadd.f32 %v1138, %v1202
  %v1267 = vadd.f32 %v1139, %v1203
  %v1268 = vadd.f32 %v1140, %v1204
  %v1269 = vadd.f32 %v1141, %v1205
  %v1270 = vadd.f32 %v1142, %v1206
  %v1271 = vadd.f32 %v1143, %v1207
  %v1272 = vadd.f32 %v1144, %v1208
  %v1273 = vadd.f32 %v1145, %v1209
  %v1274 = vadd.f32 %v1146, %v1210
  %v1275 = vadd.f32 %v1147, %v1211
  %v1276 = vadd.f32 %v1148, %v1212
  %v1277 = vadd.f32 %v1149, %v1213
  %v1278 = vadd.f32 %v1150, %v1214
  %v1279 = vadd.f32 %v1151, %v1215
  %v1280 = vadd.f32 %v1152, %v1216
  %v1281 = vadd.f32 %v1153, %v1217
  %v1282 = vadd.f32 %v1154, %v1218
  %v1283 = vadd.f32 %v1155, %v1219
  %v1284 = vadd.f32 %v1156, %v1220
  %v1285 = vadd.f32 %v1157, %v1221
  %v1286 = vadd.f32 %v1158, %v1222
  %v1287 = vadd.f32 %v1159, %v1223
  %v1288 = vadd.f32 %v1160, %v1224
  %v1289 = vadd.f32 %v1161, %v1225
  %v1290 = vadd.f32 %v1162, %v1226
  %v1291 = vadd.f32 %v1163, %v1227
  %v1292 = vadd.f32 %v1164, %v1228
  %v1293 = vadd.f32 %v1165, %v1229
  %v1294 = vadd.f32 %v1166, %v1230
  %v1295 = vadd.f32 %v1167, %v1231
  %v1296 = vadd.f32 %v1168, %v1232
  %v1297 = vadd.f32 %v1169, %v1233
  %v1298 = vadd.f32 %v1170, %v1234
  %v1299 = vadd.f32 %v1171, %v1235
  %v1300 = vadd.f32 %v1172, %v1236
  %v1301 = vadd.f32 %v1173, %v1237
  %v1302 = vadd.f32 %v1174, %v1238
  %v1303 = vadd.f32 %v1175, %v1239
  %v1304 = vadd.f32 %v1176, %v1240
  %v1305 = vadd.f32 %v1177, %v1241
  %v1306 = vadd.f32 %v1178, %v1242
  %v1307 = vadd.f32 %v1179, %v1243
  %v1308 = vmax.f32 %v1244, 0.0
  %v1309 = vmax.f32 %v1245, 0.0
  %v1310 = vmax.f32 %v1246, 0.0
  %v1311 = vmax.f32 %v1247, 0.0
  %v1312 = vmax.f32 %v1248, 0.0
  %v1313 = vmax.f32 %v1249, 0.0
  %v1314 = vmax.f32 %v1250, 0.0
  %v1315 = vmax.f32 %v1251, 0.0
  %v1316 = vmax.f32 %v1252, 0.0
  %v1317 = vmax.f32 %v1253, 0.0
  %v1318 = vmax.f32 %v1254, 0.0
  %v1319 = vmax.f32 %v1255, 0.0
  %v1320 = vmax.f32 %v1256, 0.0
  %v1321 = vmax.f32 %v1257, 0.0
  %v1322 = vmax.f32 %v1258, 0.0
  %v1323 = vmax.f32 %v1259, 0.0
  %v1324 = vmax.f32 %v1260, 0.0
  %v1325 = vmax.f32 %v1261, 0.0
  %v1326 = vmax.f32 %v1262, 0.0
  %v1327 = vmax.f32 %v1263, 0.0
  %v1328 = vmax.f32 %v1264, 0.0
  %v1329 = vmax.f32 %v1265, 0.0
  %v1330 = vmax.f32 %v1266, 0.0
  %v1331 = vmax.f32 %v1267, 0.0
  %v1332 = vmax.f32 %v1268, 0.0
  %v1333 = vmax.f32 %v1269, 0.0
  %v1334 = vmax.f32 %v1270, 0.0
  %v1335 = vmax.f32 %v1271, 0.0
  %v1336 = vmax.f32 %v1272, 0.0
  %v1337 = vmax.f32 %v1273, 0.0
  %v1338 = vmax.f32 %v1274, 0.0
  %v1339 = vmax.f32 %v1275, 0.0
  %v1340 = vmax.f32 %v1276, 0.0
  %v1341 = vmax.f32 %v1277, 0.0
  %v1342 = vmax.f32 %v1278, 0.0
  %v1343 = vmax.f32 %v1279, 0.0
  %v1344 = vmax.f32 %v1280, 0.0
  %v1345 = vmax.f32 %v1281, 0.0
  %v1346 = vmax.f32 %v1282, 0.0
  %v1347 = vmax.f32 %v1283, 0.0
  %v1348 = vmax.f32 %v1284, 0.0
  %v1349 = vmax.f32 %v1285, 0.0
  %v1350 = vmax.f32 %v1286, 0.0
  %v1351 = vmax.f32 %v1287, 0.0
  %v1352 = vmax.f32 %v1288, 0.0
  %v1353 = vmax.f32 %v1289, 0.0
  %v1354 = vmax.f32 %v1290, 0.0
  %v1355 = vmax.f32 %v1291, 0.0
  %v1356 = vmax.f32 %v1292, 0.0
  %v1357 = vmax.f32 %v1293, 0.0
  %v1358 = vmax.f32 %v1294, 0.0
  %v1359 = vmax.f32 %v1295, 0.0
  %v1360 = vmax.f32 %v1296, 0.0
  %v1361 = vmax.f32 %v1297, 0.0
  %v1362 = vmax.f32 %v1298, 0.0
  %v1363 = vmax.f32 %v1299, 0.0
  %v1364 = vmax.f32 %v1300, 0.0
  %v1365 = vmax.f32 %v1301, 0.0
  %v1366 = vmax.f32 %v1302, 0.0
  %v1367 = vmax.f32 %v1303, 0.0
  %v1368 = vmax.f32 %v1304, 0.0
  %v1369 = vmax.f32 %v1305, 0.0
  %v1370 = vmax.f32 %v1306, 0.0
  %v1371 = vmax.f32 %v1307, 0.0
  %1372 = vst.msk [vmem:[%s5] sm:$0xff] %vm246, %v1308
  %1373 = vst.msk [vmem:[%s5 + $0x8] sm:$0xff] %vm246, %v1309
  %1374 = vst.msk [vmem:[%s5 + $0x10] sm:$0xff] %vm246, %v1310
  %1375 = vst.msk [vmem:[%s5 + $0x18] sm:$0xff] %vm246, %v1311
  %1376 = vst.msk [vmem:[%s5 + $0x20] sm:$0xff] %vm246, %v1312
  %1377 = vst.msk [vmem:[%s5 + $0x28] sm:$0xff] %vm246, %v1313
  %1378 = vst.msk [vmem:[%s5 + $0x30] sm:$0xff] %vm246, %v1314
  %1379 = vst.msk [vmem:[%s5 + $0x38] sm:$0xff] %vm246, %v1315
  %1380 = vst.msk [vmem:[%s5 + $0x40] sm:$0xff] %vm246, %v1316
  %1381 = vst.msk [vmem:[%s5 + $0x48] sm:$0xff] %vm246, %v1317
  %1382 = vst.msk [vmem:[%s5 + $0x50] sm:$0xff] %vm246, %v1318
  %1383 = vst.msk [vmem:[%s5 + $0x58] sm:$0xff] %vm246, %v1319
  %1384 = vst.msk [vmem:[%s5 + $0x60] sm:$0xff] %vm246, %v1320
  %1385 = vst.msk [vmem:[%s5 + $0x68] sm:$0xff] %vm246, %v1321
  %1386 = vst.msk [vmem:[%s5 + $0x70] sm:$0xff] %vm246, %v1322
  %1387 = vst.msk [vmem:[%s5 + $0x78] sm:$0xff] %vm246, %v1323
  %1388 = vst.msk [vmem:[%s5 + $0x80] sm:$0xff] %vm246, %v1324
  %1389 = vst.msk [vmem:[%s5 + $0x88] sm:$0xff] %vm246, %v1325
  %1390 = vst.msk [vmem:[%s5 + $0x90] sm:$0xff] %vm246, %v1326
  %1391 = vst.msk [vmem:[%s5 + $0x98] sm:$0xff] %vm246, %v1327
  %1392 = vst.msk [vmem:[%s5 + $0xa0] sm:$0xff] %vm246, %v1328
  %1393 = vst.msk [vmem:[%s5 + $0xa8] sm:$0xff] %vm246, %v1329
  %1394 = vst.msk [vmem:[%s5 + $0xb0] sm:$0xff] %vm246, %v1330
  %1395 = vst.msk [vmem:[%s5 + $0xb8] sm:$0xff] %vm246, %v1331
  %1396 = vst.msk [vmem:[%s5 + $0xc0] sm:$0xff] %vm246, %v1332
  %1397 = vst.msk [vmem:[%s5 + $0xc8] sm:$0xff] %vm246, %v1333
  %1398 = vst.msk [vmem:[%s5 + $0xd0] sm:$0xff] %vm246, %v1334
  %1399 = vst.msk [vmem:[%s5 + $0xd8] sm:$0xff] %vm246, %v1335
  %1400 = vst.msk [vmem:[%s5 + $0xe0] sm:$0xff] %vm246, %v1336
  %1401 = vst.msk [vmem:[%s5 + $0xe8] sm:$0xff] %vm246, %v1337
  %1402 = vst.msk [vmem:[%s5 + $0xf0] sm:$0xff] %vm246, %v1338
  %1403 = vst.msk [vmem:[%s5 + $0xf8] sm:$0xff] %vm246, %v1339
  %1404 = vst.msk [vmem:[%s5 + $0x100] sm:$0xff] %vm246, %v1340
  %1405 = vst.msk [vmem:[%s5 + $0x108] sm:$0xff] %vm246, %v1341
  %1406 = vst.msk [vmem:[%s5 + $0x110] sm:$0xff] %vm246, %v1342
  %1407 = vst.msk [vmem:[%s5 + $0x118] sm:$0xff] %vm246, %v1343
  %1408 = vst.msk [vmem:[%s5 + $0x120] sm:$0xff] %vm246, %v1344
  %1409 = vst.msk [vmem:[%s5 + $0x128] sm:$0xff] %vm246, %v1345
  %1410 = vst.msk [vmem:[%s5 + $0x130] sm:$0xff] %vm246, %v1346
  %1411 = vst.msk [vmem:[%s5 + $0x138] sm:$0xff] %vm246, %v1347
  %1412 = vst.msk [vmem:[%s5 + $0x140] sm:$0xff] %vm246, %v1348
  %1413 = vst.msk [vmem:[%s5 + $0x148] sm:$0xff] %vm246, %v1349
  %1414 = vst.msk [vmem:[%s5 + $0x150] sm:$0xff] %vm246, %v1350
  %1415 = vst.msk [vmem:[%s5 + $0x158] sm:$0xff] %vm246, %v1351
  %1416 = vst.msk [vmem:[%s5 + $0x160] sm:$0xff] %vm246, %v1352
  %1417 = vst.msk [vmem:[%s5 + $0x168] sm:$0xff] %vm246, %v1353
  %1418 = vst.msk [vmem:[%s5 + $0x170] sm:$0xff] %vm246, %v1354
  %1419 = vst.msk [vmem:[%s5 + $0x178] sm:$0xff] %vm246, %v1355
  %1420 = vst.msk [vmem:[%s5 + $0x180] sm:$0xff] %vm246, %v1356
  %1421 = vst.msk [vmem:[%s5 + $0x188] sm:$0xff] %vm246, %v1357
  %1422 = vst.msk [vmem:[%s5 + $0x190] sm:$0xff] %vm246, %v1358
  %1423 = vst.msk [vmem:[%s5 + $0x198] sm:$0xff] %vm246, %v1359
  %1424 = vst.msk [vmem:[%s5 + $0x1a0] sm:$0xff] %vm246, %v1360
  %1425 = vst.msk [vmem:[%s5 + $0x1a8] sm:$0xff] %vm246, %v1361
  %1426 = vst.msk [vmem:[%s5 + $0x1b0] sm:$0xff] %vm246, %v1362
  %1427 = vst.msk [vmem:[%s5 + $0x1b8] sm:$0xff] %vm246, %v1363
  %1428 = vst.msk [vmem:[%s5 + $0x1c0] sm:$0xff] %vm246, %v1364
  %1429 = vst.msk [vmem:[%s5 + $0x1c8] sm:$0xff] %vm246, %v1365
  %1430 = vst.msk [vmem:[%s5 + $0x1d0] sm:$0xff] %vm246, %v1366
  %1431 = vst.msk [vmem:[%s5 + $0x1d8] sm:$0xff] %vm246, %v1367
  %1432 = vst.msk [vmem:[%s5 + $0x1e0] sm:$0xff] %vm246, %v1368
  %1433 = vst.msk [vmem:[%s5 + $0x1e8] sm:$0xff] %vm246, %v1369
  %1434 = vst.msk [vmem:[%s5 + $0x1f0] sm:$0xff] %vm246, %v1370
  %1435 = vst.msk [vmem:[%s5 + $0x1f8] sm:$0xff] %vm246, %v1371
  // Predicated region
  $region22: #{inception_res_forward.16} parent=0 // pred_check
    _
  $region23: #{inception_res_forward.16} parent=0 // pred_check_branch
    %1437 = sbr.rel (0) target = $region25
  $region24: #{inception_res_forward.16} parent=0 // pred_region
    _
  $region25: #{inception_res_forward.16} parent=0 // pred_fallthru
    _
  // Predicated region
  $region26: #{inception_res_forward.16} parent=0 // pred_check
    _
  $region27: #{inception_res_forward.16} parent=0 // pred_check_branch
    %1439 = sbr.rel (0) target = $region29
  $region28: #{inception_res_forward.16} parent=0 // pred_region
    _
  $region29: #{inception_res_forward.16} parent=0 // pred_fallthru
    _

// kernel: inception_res_forward.17
$region0: #{inception_res_forward.17}
  #allocation0 [shape = 'u32[]', space=smem, size = 0x4, offset = 0x4, fixed_abs, tag = 'smem constant byte address 0x4 - core index']
  #allocation1 [shape = 'u32[144,128]{1,0:T(1,128)}', space=vmem, size = 0x12000, scoped, tag = 'internal scratch']
  %s0 = inlined_call_operand.vmem [shape: bf16[128,36], index: 0, kind: input, shape index: {}]
  %s1 = inlined_call_operand.vmem [shape: bf16[36,12], index: 1, kind: input, shape index: {}]
  %s2 = inlined_call_operand.vmem [shape: f32[1,12], index: 2, kind: input, shape index: {}]
  %s3 = inlined_call_operand.vmem [shape: f32[1,12], index: 3, kind: input, shape index: {}]
  %s4 = inlined_call_operand.vmem [shape: f32[128,12], index: 4, kind: output, shape index: {}]
  %s5 = sld [smem:[#allocation0]]
  $region26: #{inception_res_forward.17} parent=0
    _
  %s7 = ssub.s32 1, %s5
  %s8 = scalar_select 0, %s7, %s5
  // Predicated region
  $region2: #{inception_res_forward.17} parent=0 // pred_check
    _
  $region3: #{inception_res_forward.17} parent=0 // pred_check_branch
    %10 = sbr.rel (0) target = $region5
  $region4: #{inception_res_forward.17} parent=0 // pred_region
    _
  $region5: #{inception_res_forward.17} parent=0 // pred_fallthru
    _
  // Predicated region
  $region6: #{inception_res_forward.17} parent=0 // pred_check
    _
  $region7: #{inception_res_forward.17} parent=0 // pred_check_branch
    %12 = sbr.rel (0) target = $region9
  $region8: #{inception_res_forward.17} parent=0 // pred_region
    _
  $region9: #{inception_res_forward.17} parent=0 // pred_fallthru
    _
  // Predicated region
  $region10: #{inception_res_forward.17} parent=0 // pred_check
    _
  $region11: #{inception_res_forward.17} parent=0 // pred_check_branch
    %14 = sbr.rel (0) target = $region13
  $region12: #{inception_res_forward.17} parent=0 // pred_region
    _
  $region13: #{inception_res_forward.17} parent=0 // pred_fallthru
    _
  // Predicated region
  $region14: #{inception_res_forward.17} parent=0 // pred_check
    _
  $region15: #{inception_res_forward.17} parent=0 // pred_check_branch
    %16 = sbr.rel (0) target = $region17
  $region16: #{inception_res_forward.17} parent=0 // pred_region
    _
  $region17: #{inception_res_forward.17} parent=0 // pred_fallthru
    _
  %v18 = vld [vmem:[%s0] sm:$0xf]
  %v19 = vld [vmem:[%s0 + $0x4] sm:$0xf]
  %v20 = vld [vmem:[%s0 + $0x8] sm:$0xf]
  %v21 = vld [vmem:[%s0 + $0xc] sm:$0xf]
  %v22 = vld [vmem:[%s0 + $0x10] sm:$0xf]
  %v23 = vld [vmem:[%s0 + $0x14] sm:$0xf]
  %v24 = vld [vmem:[%s0 + $0x18] sm:$0xf]
  %v25 = vld [vmem:[%s0 + $0x1c] sm:$0xf]
  %v26 = vld [vmem:[%s0 + $0x20] sm:$0xf]
  %v27 = vld [vmem:[%s0 + $0x24] sm:$0xf]
  %v28 = vld [vmem:[%s0 + $0x28] sm:$0xf]
  %v29 = vld [vmem:[%s0 + $0x2c] sm:$0xf]
  %v30 = vld [vmem:[%s0 + $0x30] sm:$0xf]
  %v31 = vld [vmem:[%s0 + $0x34] sm:$0xf]
  %v32 = vld [vmem:[%s0 + $0x38] sm:$0xf]
  %v33 = vld [vmem:[%s0 + $0x3c] sm:$0xf]
  %v34 = vld [vmem:[%s1] sm:$0xf]
  %v35 = vld [vmem:[%s1 + $0x4] sm:$0xf]
  %v36 = vld [vmem:[%s1 + $0x8] sm:$0xf]
  %v37 = vld [vmem:[%s1 + $0xc] sm:$0xf]
  %v38 = vld [vmem:[%s1 + $0x10] sm:$0x3]
  %v55 = vunpack.c.l.b16 %v18
  %v56 = vunpack.c.l.b16 %v19
  %v57 = vunpack.c.l.b16 %v20
  %v58 = vunpack.c.l.b16 %v21
  %v59 = vunpack.c.l.b16 %v22
  %v60 = vunpack.c.l.b16 %v23
  %v61 = vunpack.c.l.b16 %v24
  %v62 = vunpack.c.l.b16 %v25
  %v63 = vunpack.c.l.b16 %v26
  %v64 = vunpack.c.l.b16 %v27
  %v65 = vunpack.c.l.b16 %v28
  %v66 = vunpack.c.l.b16 %v29
  %v67 = vunpack.c.l.b16 %v30
  %v68 = vunpack.c.l.b16 %v31
  %v69 = vunpack.c.l.b16 %v32
  %v70 = vunpack.c.l.b16 %v33
  %v71 = vpack.c.b16 %v56, %v55
  %v72 = vpack.c.b16 %v58, %v57
  %v73 = vpack.c.b16 %v60, %v59
  %v74 = vpack.c.b16 %v62, %v61
  %v75 = vpack.c.b16 %v64, %v63
  %v76 = vpack.c.b16 %v66, %v65
  %v77 = vpack.c.b16 %v68, %v67
  %v78 = vpack.c.b16 %v70, %v69
  %v84 = vunpack.c.l.b16 %v34
  %v85 = vunpack.c.l.b16 %v35
  %v86 = vunpack.c.l.b16 %v36
  %v87 = vunpack.c.l.b16 %v37
  %v88 = vunpack.c.l.b16 %v38
  %v89 = vpack.c.b16 %v85, %v84
  %v90 = vpack.c.b16 %v87, %v86
  %v91 = vpack.c.b16 %v88, %v88
  %vm94 = vcmask 293888
  %v96 = vsel %vm94, %v71, 0
  %v99 = vsel %vm94, %v72, 0
  %v102 = vsel %vm94, %v73, 0
  %v105 = vsel %vm94, %v74, 0
  %v108 = vsel %vm94, %v75, 0
  %v111 = vsel %vm94, %v76, 0
  %v114 = vsel %vm94, %v77, 0
  %v117 = vsel %vm94, %v78, 0
  %vm119 = vcmask 1041408
  %v121 = vsel %vm119, %v91, 0
  %123 = vmatprep.subr.bf16.mxu0 0
  %124 = vmatpush1.bf16.msra.mxu0 0
  %125 = vmatprep.subr.bf16.mxu0 0
  %126 = vmatpush1.bf16.msra.mxu0 0
  %127 = vmatprep.subr.bf16.mxu0 0
  %128 = vmatpush1.bf16.msra.mxu0 0
  %129 = vmatprep.subr.bf16.mxu0 0
  %130 = vmatpush1.bf16.msra.mxu0 0
  %131 = vmatprep.subr.bf16.mxu0 0
  %132 = vmatpush1.bf16.msra.mxu0 0
  %133 = vmatprep.subr.bf16.mxu0 0
  %134 = vmatpush1.bf16.msra.mxu0 %v121
  %135 = vmatprep.subr.bf16.mxu0 0
  %136 = vmatpush1.bf16.msra.mxu0 %v90
  %137 = vmatprep.subr.bf16.mxu0 0
  %138 = vmatpush1.bf16.msra.mxu0 %v89
  %139 = vmatprep.subr.bf16.mxu0 0
  %140 = vmatpush2.bf16.msra.mxu0 0
  %141 = vmatprep.subr.bf16.mxu0 0
  %142 = vmatpush2.bf16.msra.mxu0 0
  %143 = vmatprep.subr.bf16.mxu0 0
  %144 = vmatpush2.bf16.msra.mxu0 0
  %145 = vmatprep.subr.bf16.mxu0 0
  %146 = vmatpush2.bf16.msra.mxu0 0
  %147 = vmatprep.subr.bf16.mxu0 0
  %148 = vmatpush2.bf16.msra.mxu0 0
  %149 = vmatprep.subr.bf16.mxu0 0
  %150 = vmatpush2.bf16.msra.mxu0 0
  %151 = vmatprep.subr.bf16.mxu0 0
  %152 = vmatpush2.bf16.msra.mxu0 0
  %153 = vmatprep.subr.bf16.mxu0 0
  %154 = vmatpush2.bf16.msra.mxu0 0
  %155 = vmatprep.mubr.bf16.mxu0 0
  %156 = vmatmul.mubr.bf16.gmra.mxu0 %v96
  %v157 = vpop.f32.mrf.mxu0
  %v158 = vadd.f32 0.0, %v157
  %v159 = vpop.f32.mrf.mxu0
  %v160 = vpop.f32.mrf.mxu0
  %v161 = vadd.f32 0.0, %v160
  %v162 = vpop.f32.mrf.mxu0
  %163 = vmatprep.mubr.bf16.mxu0 0
  %164 = vmatmul.mubr.bf16.gmra.mxu0 %v99
  %v165 = vpop.f32.mrf.mxu0
  %v166 = vadd.f32 0.0, %v165
  %v167 = vpop.f32.mrf.mxu0
  %v168 = vpop.f32.mrf.mxu0
  %v169 = vadd.f32 0.0, %v168
  %v170 = vpop.f32.mrf.mxu0
  %171 = vmatprep.mubr.bf16.mxu0 0
  %172 = vmatmul.mubr.bf16.gmra.mxu0 %v102
  %v173 = vpop.f32.mrf.mxu0
  %v174 = vadd.f32 0.0, %v173
  %v175 = vpop.f32.mrf.mxu0
  %v176 = vpop.f32.mrf.mxu0
  %v177 = vadd.f32 0.0, %v176
  %v178 = vpop.f32.mrf.mxu0
  %179 = vmatprep.mubr.bf16.mxu0 0
  %180 = vmatmul.mubr.bf16.gmra.mxu0 %v105
  %v181 = vpop.f32.mrf.mxu0
  %v182 = vadd.f32 0.0, %v181
  %v183 = vpop.f32.mrf.mxu0
  %v184 = vpop.f32.mrf.mxu0
  %v185 = vadd.f32 0.0, %v184
  %v186 = vpop.f32.mrf.mxu0
  %187 = vmatprep.mubr.bf16.mxu0 0
  %188 = vmatmul.mubr.bf16.gmra.mxu0 %v108
  %v189 = vpop.f32.mrf.mxu0
  %v190 = vadd.f32 0.0, %v189
  %v191 = vpop.f32.mrf.mxu0
  %v192 = vpop.f32.mrf.mxu0
  %v193 = vadd.f32 0.0, %v192
  %v194 = vpop.f32.mrf.mxu0
  %195 = vmatprep.mubr.bf16.mxu0 0
  %196 = vmatmul.mubr.bf16.gmra.mxu0 %v111
  %v197 = vpop.f32.mrf.mxu0
  %v198 = vadd.f32 0.0, %v197
  %v199 = vpop.f32.mrf.mxu0
  %v200 = vpop.f32.mrf.mxu0
  %v201 = vadd.f32 0.0, %v200
  %v202 = vpop.f32.mrf.mxu0
  %203 = vmatprep.mubr.bf16.mxu0 0
  %204 = vmatmul.mubr.bf16.gmra.mxu0 %v114
  %v205 = vpop.f32.mrf.mxu0
  %v206 = vadd.f32 0.0, %v205
  %v207 = vpop.f32.mrf.mxu0
  %v208 = vpop.f32.mrf.mxu0
  %v209 = vadd.f32 0.0, %v208
  %v210 = vpop.f32.mrf.mxu0
  %211 = vmatprep.mubr.bf16.mxu0 0
  %212 = vmatmul.mubr.bf16.gmra.mxu0 %v117
  %v213 = vpop.f32.mrf.mxu0
  %v214 = vadd.f32 0.0, %v213
  %v215 = vpop.f32.mrf.mxu0
  %v216 = vpop.f32.mrf.mxu0
  %v217 = vadd.f32 0.0, %v216
  %v218 = vpop.f32.mrf.mxu0
  %219 = vdwg.mxu0
  %v220 = vld [vmem:[%s2] sm:$0x1]
  %v221 = vld [vmem:[%s3] sm:$0x1]
  %vm222 = vcmask 97280
  %v223 = vsel %vm222, %v158, 0.0
  %v224 = vsel %vm222, %v161, 0.0
  %v225 = vadd.f32 %v223, %v224
  %v226 = vsel %vm222, %v166, 0.0
  %v227 = vadd.f32 %v225, %v226
  %v228 = vsel %vm222, %v169, 0.0
  %v229 = vadd.f32 %v227, %v228
  %v230 = vsel %vm222, %v174, 0.0
  %v231 = vadd.f32 %v229, %v230
  %v232 = vsel %vm222, %v177, 0.0
  %v233 = vadd.f32 %v231, %v232
  %v234 = vsel %vm222, %v182, 0.0
  %v235 = vadd.f32 %v233, %v234
  %v236 = vsel %vm222, %v185, 0.0
  %v237 = vadd.f32 %v235, %v236
  %v238 = vsel %vm222, %v190, 0.0
  %v239 = vadd.f32 %v237, %v238
  %v240 = vsel %vm222, %v193, 0.0
  %v241 = vadd.f32 %v239, %v240
  %v242 = vsel %vm222, %v198, 0.0
  %v243 = vadd.f32 %v241, %v242
  %v244 = vsel %vm222, %v201, 0.0
  %v245 = vadd.f32 %v243, %v244
  %v246 = vsel %vm222, %v206, 0.0
  %v247 = vadd.f32 %v245, %v246
  %v248 = vsel %vm222, %v209, 0.0
  %v249 = vadd.f32 %v247, %v248
  %v250 = vsel %vm222, %v214, 0.0
  %v251 = vadd.f32 %v249, %v250
  %v252 = vsel %vm222, %v217, 0.0
  %v253 = vadd.f32 %v251, %v252
  %v254 = vrot.slane %v253, 4
  %v255 = vadd.f32 %v253, %v254
  %v256 = vrot.slane %v255, 2
  %v257 = vadd.f32 %v255, %v256
  %v258 = vrot.slane %v257, 1
  %v259 = vadd.f32 %v257, %v258
  %v260 = vrcp.pop 128.0
  %v261 = vmul.f32 %v259, %v260
  %v262 = vsub.f32 %v158, %v261
  %v263 = vsub.f32 %v161, %v261
  %v264 = vsub.f32 %v166, %v261
  %v265 = vsub.f32 %v169, %v261
  %v266 = vsub.f32 %v174, %v261
  %v267 = vsub.f32 %v177, %v261
  %v268 = vsub.f32 %v182, %v261
  %v269 = vsub.f32 %v185, %v261
  %v270 = vsub.f32 %v190, %v261
  %v271 = vsub.f32 %v193, %v261
  %v272 = vsub.f32 %v198, %v261
  %v273 = vsub.f32 %v201, %v261
  %v274 = vsub.f32 %v206, %v261
  %v275 = vsub.f32 %v209, %v261
  %v276 = vsub.f32 %v214, %v261
  %v277 = vsub.f32 %v217, %v261
  %v278 = vmul.f32 %v262, %v262
  %v279 = vmul.f32 %v263, %v263
  %v280 = vmul.f32 %v264, %v264
  %v281 = vmul.f32 %v265, %v265
  %v282 = vmul.f32 %v266, %v266
  %v283 = vmul.f32 %v267, %v267
  %v284 = vmul.f32 %v268, %v268
  %v285 = vmul.f32 %v269, %v269
  %v286 = vmul.f32 %v270, %v270
  %v287 = vmul.f32 %v271, %v271
  %v288 = vmul.f32 %v272, %v272
  %v289 = vmul.f32 %v273, %v273
  %v290 = vmul.f32 %v274, %v274
  %v291 = vmul.f32 %v275, %v275
  %v292 = vmul.f32 %v276, %v276
  %v293 = vmul.f32 %v277, %v277
  %v294 = vsel %vm222, %v278, 0.0
  %v295 = vsel %vm222, %v279, 0.0
  %v296 = vadd.f32 %v294, %v295
  %v297 = vsel %vm222, %v280, 0.0
  %v298 = vadd.f32 %v296, %v297
  %v299 = vsel %vm222, %v281, 0.0
  %v300 = vadd.f32 %v298, %v299
  %v301 = vsel %vm222, %v282, 0.0
  %v302 = vadd.f32 %v300, %v301
  %v303 = vsel %vm222, %v283, 0.0
  %v304 = vadd.f32 %v302, %v303
  %v305 = vsel %vm222, %v284, 0.0
  %v306 = vadd.f32 %v304, %v305
  %v307 = vsel %vm222, %v285, 0.0
  %v308 = vadd.f32 %v306, %v307
  %v309 = vsel %vm222, %v286, 0.0
  %v310 = vadd.f32 %v308, %v309
  %v311 = vsel %vm222, %v287, 0.0
  %v312 = vadd.f32 %v310, %v311
  %v313 = vsel %vm222, %v288, 0.0
  %v314 = vadd.f32 %v312, %v313
  %v315 = vsel %vm222, %v289, 0.0
  %v316 = vadd.f32 %v314, %v315
  %v317 = vsel %vm222, %v290, 0.0
  %v318 = vadd.f32 %v316, %v317
  %v319 = vsel %vm222, %v291, 0.0
  %v320 = vadd.f32 %v318, %v319
  %v321 = vsel %vm222, %v292, 0.0
  %v322 = vadd.f32 %v320, %v321
  %v323 = vsel %vm222, %v293, 0.0
  %v324 = vadd.f32 %v322, %v323
  %v325 = vrot.slane %v324, 4
  %v326 = vadd.f32 %v324, %v325
  %v327 = vrot.slane %v326, 2
  %v328 = vadd.f32 %v326, %v327
  %v329 = vrot.slane %v328, 1
  %v330 = vadd.f32 %v328, %v329
  %v331 = vmul.f32 %v330, %v260
  %v332 = vadd.f32 %v331, 1e-05
  %v333 = vrsqrt.pop %v332
  %v334 = vmul.f32 %v220, %v333
  %v335 = vmul.f32 %v261, %v334
  %v336 = vsub.f32 %v221, %v335
  %v338 = vlaneseq
  %v339 = vshrl.u32 %v338, 7
  %v340 = vsub.s32 0, %v339
  %v341 = vrot.slane %v334, %v340
  %v343 = vmul.f32 %v158, %v341
  %v344 = vmul.f32 %v161, %v341
  %v345 = vmul.f32 %v166, %v341
  %v346 = vmul.f32 %v169, %v341
  %v347 = vmul.f32 %v174, %v341
  %v348 = vmul.f32 %v177, %v341
  %v349 = vmul.f32 %v182, %v341
  %v350 = vmul.f32 %v185, %v341
  %v351 = vmul.f32 %v190, %v341
  %v352 = vmul.f32 %v193, %v341
  %v353 = vmul.f32 %v198, %v341
  %v354 = vmul.f32 %v201, %v341
  %v355 = vmul.f32 %v206, %v341
  %v356 = vmul.f32 %v209, %v341
  %v357 = vmul.f32 %v214, %v341
  %v358 = vmul.f32 %v217, %v341
  %v360 = vlaneseq
  %v361 = vshrl.u32 %v360, 7
  %v362 = vsub.s32 0, %v361
  %v363 = vrot.slane %v336, %v362
  %v365 = vadd.f32 %v343, %v363
  %v366 = vadd.f32 %v344, %v363
  %v367 = vadd.f32 %v345, %v363
  %v368 = vadd.f32 %v346, %v363
  %v369 = vadd.f32 %v347, %v363
  %v370 = vadd.f32 %v348, %v363
  %v371 = vadd.f32 %v349, %v363
  %v372 = vadd.f32 %v350, %v363
  %v373 = vadd.f32 %v351, %v363
  %v374 = vadd.f32 %v352, %v363
  %v375 = vadd.f32 %v353, %v363
  %v376 = vadd.f32 %v354, %v363
  %v377 = vadd.f32 %v355, %v363
  %v378 = vadd.f32 %v356, %v363
  %v379 = vadd.f32 %v357, %v363
  %v380 = vadd.f32 %v358, %v363
  %v381 = vlaneseq
  %v382 = vand.u32 %v381, 127
  %vm383 = vcmp.lt.s32.totalorder %v382, 6
  %v384 = vmax.f32 %v365, 0.0
  %v385 = vmax.f32 %v366, 0.0
  %v386 = vmax.f32 %v367, 0.0
  %v387 = vmax.f32 %v368, 0.0
  %v388 = vmax.f32 %v369, 0.0
  %v389 = vmax.f32 %v370, 0.0
  %v390 = vmax.f32 %v371, 0.0
  %v391 = vmax.f32 %v372, 0.0
  %v392 = vmax.f32 %v373, 0.0
  %v393 = vmax.f32 %v374, 0.0
  %v394 = vmax.f32 %v375, 0.0
  %v395 = vmax.f32 %v376, 0.0
  %v396 = vmax.f32 %v377, 0.0
  %v397 = vmax.f32 %v378, 0.0
  %v398 = vmax.f32 %v379, 0.0
  %v399 = vmax.f32 %v380, 0.0
  %v400 = vsel %vm383, %v384, %v365
  %v401 = vsel %vm383, %v385, %v366
  %v402 = vsel %vm383, %v386, %v367
  %v403 = vsel %vm383, %v387, %v368
  %v404 = vsel %vm383, %v388, %v369
  %v405 = vsel %vm383, %v389, %v370
  %v406 = vsel %vm383, %v390, %v371
  %v407 = vsel %vm383, %v391, %v372
  %v408 = vsel %vm383, %v392, %v373
  %v409 = vsel %vm383, %v393, %v374
  %v410 = vsel %vm383, %v394, %v375
  %v411 = vsel %vm383, %v395, %v376
  %v412 = vsel %vm383, %v396, %v377
  %v413 = vsel %vm383, %v397, %v378
  %v414 = vsel %vm383, %v398, %v379
  %v415 = vsel %vm383, %v399, %v380
  %416 = vst.msk [vmem:[%s4] sm:$0xff] %vm222, %v400
  %417 = vst.msk [vmem:[%s4 + $0x8] sm:$0xff] %vm222, %v401
  %418 = vst.msk [vmem:[%s4 + $0x10] sm:$0xff] %vm222, %v402
  %419 = vst.msk [vmem:[%s4 + $0x18] sm:$0xff] %vm222, %v403
  %420 = vst.msk [vmem:[%s4 + $0x20] sm:$0xff] %vm222, %v404
  %421 = vst.msk [vmem:[%s4 + $0x28] sm:$0xff] %vm222, %v405
  %422 = vst.msk [vmem:[%s4 + $0x30] sm:$0xff] %vm222, %v406
  %423 = vst.msk [vmem:[%s4 + $0x38] sm:$0xff] %vm222, %v407
  %424 = vst.msk [vmem:[%s4 + $0x40] sm:$0xff] %vm222, %v408
  %425 = vst.msk [vmem:[%s4 + $0x48] sm:$0xff] %vm222, %v409
  %426 = vst.msk [vmem:[%s4 + $0x50] sm:$0xff] %vm222, %v410
  %427 = vst.msk [vmem:[%s4 + $0x58] sm:$0xff] %vm222, %v411
  %428 = vst.msk [vmem:[%s4 + $0x60] sm:$0xff] %vm222, %v412
  %429 = vst.msk [vmem:[%s4 + $0x68] sm:$0xff] %vm222, %v413
  %430 = vst.msk [vmem:[%s4 + $0x70] sm:$0xff] %vm222, %v414
  %431 = vst.msk [vmem:[%s4 + $0x78] sm:$0xff] %vm222, %v415
  // Predicated region
  $region18: #{inception_res_forward.17} parent=0 // pred_check
    _
  $region19: #{inception_res_forward.17} parent=0 // pred_check_branch
    %433 = sbr.rel (0) target = $region21
  $region20: #{inception_res_forward.17} parent=0 // pred_region
    _
  $region21: #{inception_res_forward.17} parent=0 // pred_fallthru
    _
  // Predicated region
  $region22: #{inception_res_forward.17} parent=0 // pred_check
    _
  $region23: #{inception_res_forward.17} parent=0 // pred_check_branch
    %435 = sbr.rel (0) target = $region25
  $region24: #{inception_res_forward.17} parent=0 // pred_region
    _
  $region25: #{inception_res_forward.17} parent=0 // pred_fallthru
    _

// kernel: inception_res_forward.18
$region0: #{inception_res_forward.18}
  #allocation0 [shape = 'u32[]', space=smem, size = 0x4, offset = 0x4, fixed_abs, tag = 'smem constant byte address 0x4 - core index']
  #allocation1 [shape = 'u32[144,128]{1,0:T(1,128)}', space=vmem, size = 0x12000, scoped, tag = 'internal scratch']
  %s0 = inlined_call_operand.vmem [shape: bf16[128,54], index: 0, kind: input, shape index: {}]
  %s1 = inlined_call_operand.vmem [shape: bf16[54,6], index: 1, kind: input, shape index: {}]
  %s2 = inlined_call_operand.vmem [shape: f32[1,6], index: 2, kind: input, shape index: {}]
  %s3 = inlined_call_operand.vmem [shape: f32[1,6], index: 3, kind: input, shape index: {}]
  %s4 = inlined_call_operand.vmem [shape: f32[128,6], index: 4, kind: input, shape index: {}]
  %s5 = inlined_call_operand.vmem [shape: f32[128,6], index: 5, kind: output, shape index: {}]
  %s6 = sld [smem:[#allocation0]]
  $region30: #{inception_res_forward.18} parent=0
    _
  %s8 = ssub.s32 1, %s6
  %s9 = scalar_select 0, %s8, %s6
  // Predicated region
  $region2: #{inception_res_forward.18} parent=0 // pred_check
    _
  $region3: #{inception_res_forward.18} parent=0 // pred_check_branch
    %11 = sbr.rel (0) target = $region5
  $region4: #{inception_res_forward.18} parent=0 // pred_region
    _
  $region5: #{inception_res_forward.18} parent=0 // pred_fallthru
    _
  // Predicated region
  $region6: #{inception_res_forward.18} parent=0 // pred_check
    _
  $region7: #{inception_res_forward.18} parent=0 // pred_check_branch
    %13 = sbr.rel (0) target = $region9
  $region8: #{inception_res_forward.18} parent=0 // pred_region
    _
  $region9: #{inception_res_forward.18} parent=0 // pred_fallthru
    _
  // Predicated region
  $region10: #{inception_res_forward.18} parent=0 // pred_check
    _
  $region11: #{inception_res_forward.18} parent=0 // pred_check_branch
    %15 = sbr.rel (0) target = $region13
  $region12: #{inception_res_forward.18} parent=0 // pred_region
    _
  $region13: #{inception_res_forward.18} parent=0 // pred_fallthru
    _
  // Predicated region
  $region14: #{inception_res_forward.18} parent=0 // pred_check
    _
  $region15: #{inception_res_forward.18} parent=0 // pred_check_branch
    %17 = sbr.rel (0) target = $region17
  $region16: #{inception_res_forward.18} parent=0 // pred_region
    _
  $region17: #{inception_res_forward.18} parent=0 // pred_fallthru
    _
  // Predicated region
  $region18: #{inception_res_forward.18} parent=0 // pred_check
    _
  $region19: #{inception_res_forward.18} parent=0 // pred_check_branch
    %19 = sbr.rel (0) target = $region21
  $region20: #{inception_res_forward.18} parent=0 // pred_region
    _
  $region21: #{inception_res_forward.18} parent=0 // pred_fallthru
    _
  %v21 = vld [vmem:[%s0] sm:$0xf]
  %v22 = vld [vmem:[%s0 + $0x4] sm:$0xf]
  %v23 = vld [vmem:[%s0 + $0x8] sm:$0xf]
  %v24 = vld [vmem:[%s0 + $0xc] sm:$0xf]
  %v25 = vld [vmem:[%s0 + $0x10] sm:$0xf]
  %v26 = vld [vmem:[%s0 + $0x14] sm:$0xf]
  %v27 = vld [vmem:[%s0 + $0x18] sm:$0xf]
  %v28 = vld [vmem:[%s0 + $0x1c] sm:$0xf]
  %v29 = vld [vmem:[%s0 + $0x20] sm:$0xf]
  %v30 = vld [vmem:[%s0 + $0x24] sm:$0xf]
  %v31 = vld [vmem:[%s0 + $0x28] sm:$0xf]
  %v32 = vld [vmem:[%s0 + $0x2c] sm:$0xf]
  %v33 = vld [vmem:[%s0 + $0x30] sm:$0xf]
  %v34 = vld [vmem:[%s0 + $0x34] sm:$0xf]
  %v35 = vld [vmem:[%s0 + $0x38] sm:$0xf]
  %v36 = vld [vmem:[%s0 + $0x3c] sm:$0xf]
  %v37 = vld [vmem:[%s1] sm:$0xf]
  %v38 = vld [vmem:[%s1 + $0x4] sm:$0xf]
  %v39 = vld [vmem:[%s1 + $0x8] sm:$0xf]
  %v40 = vld [vmem:[%s1 + $0xc] sm:$0xf]
  %v41 = vld [vmem:[%s1 + $0x10] sm:$0xf]
  %v42 = vld [vmem:[%s1 + $0x14] sm:$0xf]
  %v43 = vld [vmem:[%s1 + $0x18] sm:$0x7]
  %v60 = vunpack.c.l.b16 %v21
  %v61 = vunpack.c.l.b16 %v22
  %v62 = vunpack.c.l.b16 %v23
  %v63 = vunpack.c.l.b16 %v24
  %v64 = vunpack.c.l.b16 %v25
  %v65 = vunpack.c.l.b16 %v26
  %v66 = vunpack.c.l.b16 %v27
  %v67 = vunpack.c.l.b16 %v28
  %v68 = vunpack.c.l.b16 %v29
  %v69 = vunpack.c.l.b16 %v30
  %v70 = vunpack.c.l.b16 %v31
  %v71 = vunpack.c.l.b16 %v32
  %v72 = vunpack.c.l.b16 %v33
  %v73 = vunpack.c.l.b16 %v34
  %v74 = vunpack.c.l.b16 %v35
  %v75 = vunpack.c.l.b16 %v36
  %v76 = vpack.c.b16 %v61, %v60
  %v77 = vpack.c.b16 %v63, %v62
  %v78 = vpack.c.b16 %v65, %v64
  %v79 = vpack.c.b16 %v67, %v66
  %v80 = vpack.c.b16 %v69, %v68
  %v81 = vpack.c.b16 %v71, %v70
  %v82 = vpack.c.b16 %v73, %v72
  %v83 = vpack.c.b16 %v75, %v74
  %v91 = vunpack.c.l.b16 %v37
  %v92 = vunpack.c.l.b16 %v38
  %v93 = vunpack.c.l.b16 %v39
  %v94 = vunpack.c.l.b16 %v40
  %v95 = vunpack.c.l.b16 %v41
  %v96 = vunpack.c.l.b16 %v42
  %v97 = vunpack.c.l.b16 %v43
  %v98 = vpack.c.b16 %v92, %v91
  %v99 = vpack.c.b16 %v94, %v93
  %v100 = vpack.c.b16 %v96, %v95
  %v101 = vpack.c.b16 %v97, %v97
  %vm105 = vcmask 441344
  %v107 = vsel %vm105, %v76, 0
  %v110 = vsel %vm105, %v77, 0
  %v113 = vsel %vm105, %v78, 0
  %v116 = vsel %vm105, %v79, 0
  %v119 = vsel %vm105, %v80, 0
  %v122 = vsel %vm105, %v81, 0
  %v125 = vsel %vm105, %v82, 0
  %v128 = vsel %vm105, %v83, 0
  %vm130 = vcmask 1042432
  %v132 = vsel %vm130, %v101, 0
  %134 = vmatprep.subr.bf16.mxu0 0
  %135 = vmatpush1.bf16.msra.mxu0 0
  %136 = vmatprep.subr.bf16.mxu0 0
  %137 = vmatpush1.bf16.msra.mxu0 0
  %138 = vmatprep.subr.bf16.mxu0 0
  %139 = vmatpush1.bf16.msra.mxu0 0
  %140 = vmatprep.subr.bf16.mxu0 0
  %141 = vmatpush1.bf16.msra.mxu0 0
  %142 = vmatprep.subr.bf16.mxu0 0
  %143 = vmatpush1.bf16.msra.mxu0 %v132
  %144 = vmatprep.subr.bf16.mxu0 0
  %145 = vmatpush1.bf16.msra.mxu0 %v100
  %146 = vmatprep.subr.bf16.mxu0 0
  %147 = vmatpush1.bf16.msra.mxu0 %v99
  %148 = vmatprep.subr.bf16.mxu0 0
  %149 = vmatpush1.bf16.msra.mxu0 %v98
  %150 = vmatprep.subr.bf16.mxu0 0
  %151 = vmatpush2.bf16.msra.mxu0 0
  %152 = vmatprep.subr.bf16.mxu0 0
  %153 = vmatpush2.bf16.msra.mxu0 0
  %154 = vmatprep.subr.bf16.mxu0 0
  %155 = vmatpush2.bf16.msra.mxu0 0
  %156 = vmatprep.subr.bf16.mxu0 0
  %157 = vmatpush2.bf16.msra.mxu0 0
  %158 = vmatprep.subr.bf16.mxu0 0
  %159 = vmatpush2.bf16.msra.mxu0 0
  %160 = vmatprep.subr.bf16.mxu0 0
  %161 = vmatpush2.bf16.msra.mxu0 0
  %162 = vmatprep.subr.bf16.mxu0 0
  %163 = vmatpush2.bf16.msra.mxu0 0
  %164 = vmatprep.subr.bf16.mxu0 0
  %165 = vmatpush2.bf16.msra.mxu0 0
  %166 = vmatprep.mubr.bf16.mxu0 0
  %167 = vmatmul.mubr.bf16.gmra.mxu0 %v107
  %v168 = vpop.f32.mrf.mxu0
  %v169 = vadd.f32 0.0, %v168
  %v170 = vpop.f32.mrf.mxu0
  %v171 = vpop.f32.mrf.mxu0
  %v172 = vadd.f32 0.0, %v171
  %v173 = vpop.f32.mrf.mxu0
  %174 = vmatprep.mubr.bf16.mxu0 0
  %175 = vmatmul.mubr.bf16.gmra.mxu0 %v110
  %v176 = vpop.f32.mrf.mxu0
  %v177 = vadd.f32 0.0, %v176
  %v178 = vpop.f32.mrf.mxu0
  %v179 = vpop.f32.mrf.mxu0
  %v180 = vadd.f32 0.0, %v179
  %v181 = vpop.f32.mrf.mxu0
  %182 = vmatprep.mubr.bf16.mxu0 0
  %183 = vmatmul.mubr.bf16.gmra.mxu0 %v113
  %v184 = vpop.f32.mrf.mxu0
  %v185 = vadd.f32 0.0, %v184
  %v186 = vpop.f32.mrf.mxu0
  %v187 = vpop.f32.mrf.mxu0
  %v188 = vadd.f32 0.0, %v187
  %v189 = vpop.f32.mrf.mxu0
  %190 = vmatprep.mubr.bf16.mxu0 0
  %191 = vmatmul.mubr.bf16.gmra.mxu0 %v116
  %v192 = vpop.f32.mrf.mxu0
  %v193 = vadd.f32 0.0, %v192
  %v194 = vpop.f32.mrf.mxu0
  %v195 = vpop.f32.mrf.mxu0
  %v196 = vadd.f32 0.0, %v195
  %v197 = vpop.f32.mrf.mxu0
  %198 = vmatprep.mubr.bf16.mxu0 0
  %199 = vmatmul.mubr.bf16.gmra.mxu0 %v119
  %v200 = vpop.f32.mrf.mxu0
  %v201 = vadd.f32 0.0, %v200
  %v202 = vpop.f32.mrf.mxu0
  %v203 = vpop.f32.mrf.mxu0
  %v204 = vadd.f32 0.0, %v203
  %v205 = vpop.f32.mrf.mxu0
  %206 = vmatprep.mubr.bf16.mxu0 0
  %207 = vmatmul.mubr.bf16.gmra.mxu0 %v122
  %v208 = vpop.f32.mrf.mxu0
  %v209 = vadd.f32 0.0, %v208
  %v210 = vpop.f32.mrf.mxu0
  %v211 = vpop.f32.mrf.mxu0
  %v212 = vadd.f32 0.0, %v211
  %v213 = vpop.f32.mrf.mxu0
  %214 = vmatprep.mubr.bf16.mxu0 0
  %215 = vmatmul.mubr.bf16.gmra.mxu0 %v125
  %v216 = vpop.f32.mrf.mxu0
  %v217 = vadd.f32 0.0, %v216
  %v218 = vpop.f32.mrf.mxu0
  %v219 = vpop.f32.mrf.mxu0
  %v220 = vadd.f32 0.0, %v219
  %v221 = vpop.f32.mrf.mxu0
  %222 = vmatprep.mubr.bf16.mxu0 0
  %223 = vmatmul.mubr.bf16.gmra.mxu0 %v128
  %v224 = vpop.f32.mrf.mxu0
  %v225 = vadd.f32 0.0, %v224
  %v226 = vpop.f32.mrf.mxu0
  %v227 = vpop.f32.mrf.mxu0
  %v228 = vadd.f32 0.0, %v227
  %v229 = vpop.f32.mrf.mxu0
  %230 = vdwg.mxu0
  %v231 = vld [vmem:[%s2] sm:$0x1]
  %v232 = vld [vmem:[%s3] sm:$0x1]
  %vm233 = vcmask 48128
  %v234 = vsel %vm233, %v169, 0.0
  %v235 = vsel %vm233, %v172, 0.0
  %v236 = vadd.f32 %v234, %v235
  %v237 = vsel %vm233, %v177, 0.0
  %v238 = vadd.f32 %v236, %v237
  %v239 = vsel %vm233, %v180, 0.0
  %v240 = vadd.f32 %v238, %v239
  %v241 = vsel %vm233, %v185, 0.0
  %v242 = vadd.f32 %v240, %v241
  %v243 = vsel %vm233, %v188, 0.0
  %v244 = vadd.f32 %v242, %v243
  %v245 = vsel %vm233, %v193, 0.0
  %v246 = vadd.f32 %v244, %v245
  %v247 = vsel %vm233, %v196, 0.0
  %v248 = vadd.f32 %v246, %v247
  %v249 = vsel %vm233, %v201, 0.0
  %v250 = vadd.f32 %v248, %v249
  %v251 = vsel %vm233, %v204, 0.0
  %v252 = vadd.f32 %v250, %v251
  %v253 = vsel %vm233, %v209, 0.0
  %v254 = vadd.f32 %v252, %v253
  %v255 = vsel %vm233, %v212, 0.0
  %v256 = vadd.f32 %v254, %v255
  %v257 = vsel %vm233, %v217, 0.0
  %v258 = vadd.f32 %v256, %v257
  %v259 = vsel %vm233, %v220, 0.0
  %v260 = vadd.f32 %v258, %v259
  %v261 = vsel %vm233, %v225, 0.0
  %v262 = vadd.f32 %v260, %v261
  %v263 = vsel %vm233, %v228, 0.0
  %v264 = vadd.f32 %v262, %v263
  %v265 = vrot.slane %v264, 4
  %v266 = vadd.f32 %v264, %v265
  %v267 = vrot.slane %v266, 2
  %v268 = vadd.f32 %v266, %v267
  %v269 = vrot.slane %v268, 1
  %v270 = vadd.f32 %v268, %v269
  %v271 = vrcp.pop 128.0
  %v272 = vmul.f32 %v270, %v271
  %v273 = vsub.f32 %v169, %v272
  %v274 = vsub.f32 %v172, %v272
  %v275 = vsub.f32 %v177, %v272
  %v276 = vsub.f32 %v180, %v272
  %v277 = vsub.f32 %v185, %v272
  %v278 = vsub.f32 %v188, %v272
  %v279 = vsub.f32 %v193, %v272
  %v280 = vsub.f32 %v196, %v272
  %v281 = vsub.f32 %v201, %v272
  %v282 = vsub.f32 %v204, %v272
  %v283 = vsub.f32 %v209, %v272
  %v284 = vsub.f32 %v212, %v272
  %v285 = vsub.f32 %v217, %v272
  %v286 = vsub.f32 %v220, %v272
  %v287 = vsub.f32 %v225, %v272
  %v288 = vsub.f32 %v228, %v272
  %v289 = vmul.f32 %v273, %v273
  %v290 = vmul.f32 %v274, %v274
  %v291 = vmul.f32 %v275, %v275
  %v292 = vmul.f32 %v276, %v276
  %v293 = vmul.f32 %v277, %v277
  %v294 = vmul.f32 %v278, %v278
  %v295 = vmul.f32 %v279, %v279
  %v296 = vmul.f32 %v280, %v280
  %v297 = vmul.f32 %v281, %v281
  %v298 = vmul.f32 %v282, %v282
  %v299 = vmul.f32 %v283, %v283
  %v300 = vmul.f32 %v284, %v284
  %v301 = vmul.f32 %v285, %v285
  %v302 = vmul.f32 %v286, %v286
  %v303 = vmul.f32 %v287, %v287
  %v304 = vmul.f32 %v288, %v288
  %v305 = vsel %vm233, %v289, 0.0
  %v306 = vsel %vm233, %v290, 0.0
  %v307 = vadd.f32 %v305, %v306
  %v308 = vsel %vm233, %v291, 0.0
  %v309 = vadd.f32 %v307, %v308
  %v310 = vsel %vm233, %v292, 0.0
  %v311 = vadd.f32 %v309, %v310
  %v312 = vsel %vm233, %v293, 0.0
  %v313 = vadd.f32 %v311, %v312
  %v314 = vsel %vm233, %v294, 0.0
  %v315 = vadd.f32 %v313, %v314
  %v316 = vsel %vm233, %v295, 0.0
  %v317 = vadd.f32 %v315, %v316
  %v318 = vsel %vm233, %v296, 0.0
  %v319 = vadd.f32 %v317, %v318
  %v320 = vsel %vm233, %v297, 0.0
  %v321 = vadd.f32 %v319, %v320
  %v322 = vsel %vm233, %v298, 0.0
  %v323 = vadd.f32 %v321, %v322
  %v324 = vsel %vm233, %v299, 0.0
  %v325 = vadd.f32 %v323, %v324
  %v326 = vsel %vm233, %v300, 0.0
  %v327 = vadd.f32 %v325, %v326
  %v328 = vsel %vm233, %v301, 0.0
  %v329 = vadd.f32 %v327, %v328
  %v330 = vsel %vm233, %v302, 0.0
  %v331 = vadd.f32 %v329, %v330
  %v332 = vsel %vm233, %v303, 0.0
  %v333 = vadd.f32 %v331, %v332
  %v334 = vsel %vm233, %v304, 0.0
  %v335 = vadd.f32 %v333, %v334
  %v336 = vrot.slane %v335, 4
  %v337 = vadd.f32 %v335, %v336
  %v338 = vrot.slane %v337, 2
  %v339 = vadd.f32 %v337, %v338
  %v340 = vrot.slane %v339, 1
  %v341 = vadd.f32 %v339, %v340
  %v342 = vmul.f32 %v341, %v271
  %v343 = vadd.f32 %v342, 1e-05
  %v344 = vrsqrt.pop %v343
  %v345 = vmul.f32 %v231, %v344
  %v346 = vmul.f32 %v272, %v345
  %v347 = vsub.f32 %v232, %v346
  %v349 = vlaneseq
  %v350 = vshrl.u32 %v349, 7
  %v351 = vsub.s32 0, %v350
  %v352 = vrot.slane %v345, %v351
  %v354 = vmul.f32 %v169, %v352
  %v355 = vmul.f32 %v172, %v352
  %v356 = vmul.f32 %v177, %v352
  %v357 = vmul.f32 %v180, %v352
  %v358 = vmul.f32 %v185, %v352
  %v359 = vmul.f32 %v188, %v352
  %v360 = vmul.f32 %v193, %v352
  %v361 = vmul.f32 %v196, %v352
  %v362 = vmul.f32 %v201, %v352
  %v363 = vmul.f32 %v204, %v352
  %v364 = vmul.f32 %v209, %v352
  %v365 = vmul.f32 %v212, %v352
  %v366 = vmul.f32 %v217, %v352
  %v367 = vmul.f32 %v220, %v352
  %v368 = vmul.f32 %v225, %v352
  %v369 = vmul.f32 %v228, %v352
  %v371 = vlaneseq
  %v372 = vshrl.u32 %v371, 7
  %v373 = vsub.s32 0, %v372
  %v374 = vrot.slane %v347, %v373
  %v376 = vadd.f32 %v354, %v374
  %v377 = vadd.f32 %v355, %v374
  %v378 = vadd.f32 %v356, %v374
  %v379 = vadd.f32 %v357, %v374
  %v380 = vadd.f32 %v358, %v374
  %v381 = vadd.f32 %v359, %v374
  %v382 = vadd.f32 %v360, %v374
  %v383 = vadd.f32 %v361, %v374
  %v384 = vadd.f32 %v362, %v374
  %v385 = vadd.f32 %v363, %v374
  %v386 = vadd.f32 %v364, %v374
  %v387 = vadd.f32 %v365, %v374
  %v388 = vadd.f32 %v366, %v374
  %v389 = vadd.f32 %v367, %v374
  %v390 = vadd.f32 %v368, %v374
  %v391 = vadd.f32 %v369, %v374
  %v392 = vld [vmem:[%s4] sm:$0xff]
  %v393 = vld [vmem:[%s4 + $0x8] sm:$0xff]
  %v394 = vld [vmem:[%s4 + $0x10] sm:$0xff]
  %v395 = vld [vmem:[%s4 + $0x18] sm:$0xff]
  %v396 = vld [vmem:[%s4 + $0x20] sm:$0xff]
  %v397 = vld [vmem:[%s4 + $0x28] sm:$0xff]
  %v398 = vld [vmem:[%s4 + $0x30] sm:$0xff]
  %v399 = vld [vmem:[%s4 + $0x38] sm:$0xff]
  %v400 = vld [vmem:[%s4 + $0x40] sm:$0xff]
  %v401 = vld [vmem:[%s4 + $0x48] sm:$0xff]
  %v402 = vld [vmem:[%s4 + $0x50] sm:$0xff]
  %v403 = vld [vmem:[%s4 + $0x58] sm:$0xff]
  %v404 = vld [vmem:[%s4 + $0x60] sm:$0xff]
  %v405 = vld [vmem:[%s4 + $0x68] sm:$0xff]
  %v406 = vld [vmem:[%s4 + $0x70] sm:$0xff]
  %v407 = vld [vmem:[%s4 + $0x78] sm:$0xff]
  %v408 = vadd.f32 %v376, %v392
  %v409 = vadd.f32 %v377, %v393
  %v410 = vadd.f32 %v378, %v394
  %v411 = vadd.f32 %v379, %v395
  %v412 = vadd.f32 %v380, %v396
  %v413 = vadd.f32 %v381, %v397
  %v414 = vadd.f32 %v382, %v398
  %v415 = vadd.f32 %v383, %v399
  %v416 = vadd.f32 %v384, %v400
  %v417 = vadd.f32 %v385, %v401
  %v418 = vadd.f32 %v386, %v402
  %v419 = vadd.f32 %v387, %v403
  %v420 = vadd.f32 %v388, %v404
  %v421 = vadd.f32 %v389, %v405
  %v422 = vadd.f32 %v390, %v406
  %v423 = vadd.f32 %v391, %v407
  %v424 = vmax.f32 %v408, 0.0
  %v425 = vmax.f32 %v409, 0.0
  %v426 = vmax.f32 %v410, 0.0
  %v427 = vmax.f32 %v411, 0.0
  %v428 = vmax.f32 %v412, 0.0
  %v429 = vmax.f32 %v413, 0.0
  %v430 = vmax.f32 %v414, 0.0
  %v431 = vmax.f32 %v415, 0.0
  %v432 = vmax.f32 %v416, 0.0
  %v433 = vmax.f32 %v417, 0.0
  %v434 = vmax.f32 %v418, 0.0
  %v435 = vmax.f32 %v419, 0.0
  %v436 = vmax.f32 %v420, 0.0
  %v437 = vmax.f32 %v421, 0.0
  %v438 = vmax.f32 %v422, 0.0
  %v439 = vmax.f32 %v423, 0.0
  %440 = vst.msk [vmem:[%s5] sm:$0xff] %vm233, %v424
  %441 = vst.msk [vmem:[%s5 + $0x8] sm:$0xff] %vm233, %v425
  %442 = vst.msk [vmem:[%s5 + $0x10] sm:$0xff] %vm233, %v426
  %443 = vst.msk [vmem:[%s5 + $0x18] sm:$0xff] %vm233, %v427
  %444 = vst.msk [vmem:[%s5 + $0x20] sm:$0xff] %vm233, %v428
  %445 = vst.msk [vmem:[%s5 + $0x28] sm:$0xff] %vm233, %v429
  %446 = vst.msk [vmem:[%s5 + $0x30] sm:$0xff] %vm233, %v430
  %447 = vst.msk [vmem:[%s5 + $0x38] sm:$0xff] %vm233, %v431
  %448 = vst.msk [vmem:[%s5 + $0x40] sm:$0xff] %vm233, %v432
  %449 = vst.msk [vmem:[%s5 + $0x48] sm:$0xff] %vm233, %v433
  %450 = vst.msk [vmem:[%s5 + $0x50] sm:$0xff] %vm233, %v434
  %451 = vst.msk [vmem:[%s5 + $0x58] sm:$0xff] %vm233, %v435
  %452 = vst.msk [vmem:[%s5 + $0x60] sm:$0xff] %vm233, %v436
  %453 = vst.msk [vmem:[%s5 + $0x68] sm:$0xff] %vm233, %v437
  %454 = vst.msk [vmem:[%s5 + $0x70] sm:$0xff] %vm233, %v438
  %455 = vst.msk [vmem:[%s5 + $0x78] sm:$0xff] %vm233, %v439
  // Predicated region
  $region22: #{inception_res_forward.18} parent=0 // pred_check
    _
  $region23: #{inception_res_forward.18} parent=0 // pred_check_branch
    %457 = sbr.rel (0) target = $region25
  $region24: #{inception_res_forward.18} parent=0 // pred_region
    _
  $region25: #{inception_res_forward.18} parent=0 // pred_fallthru
    _
  // Predicated region
  $region26: #{inception_res_forward.18} parent=0 // pred_check
    _
  $region27: #{inception_res_forward.18} parent=0 // pred_check_branch
    %459 = sbr.rel (0) target = $region29
  $region28: #{inception_res_forward.18} parent=0 // pred_region
    _
  $region29: #{inception_res_forward.18} parent=0 // pred_fallthru
    _

// kernel: inception_res_forward.19
$region0: #{inception_res_forward.19}
  #allocation0 [shape = 'u32[]', space=smem, size = 0x4, offset = 0x4, fixed_abs, tag = 'smem constant byte address 0x4 - core index']
  #allocation1 [shape = 'u32[144,128]{1,0:T(1,128)}', space=vmem, size = 0x12000, scoped, tag = 'internal scratch']
  %s0 = inlined_call_operand.vmem [shape: bf16[32,54], index: 0, kind: input, shape index: {}]
  %s1 = inlined_call_operand.vmem [shape: bf16[54,16], index: 1, kind: input, shape index: {}]
  %s2 = inlined_call_operand.vmem [shape: f32[1,16], index: 2, kind: input, shape index: {}]
  %s3 = inlined_call_operand.vmem [shape: f32[1,16], index: 3, kind: input, shape index: {}]
  %s4 = inlined_call_operand.vmem [shape: f32[32,16], index: 4, kind: output, shape index: {}]
  %s5 = sld [smem:[#allocation0]]
  $region26: #{inception_res_forward.19} parent=0
    _
  %s7 = ssub.s32 1, %s5
  %s8 = scalar_select 0, %s7, %s5
  // Predicated region
  $region2: #{inception_res_forward.19} parent=0 // pred_check
    _
  $region3: #{inception_res_forward.19} parent=0 // pred_check_branch
    %10 = sbr.rel (0) target = $region5
  $region4: #{inception_res_forward.19} parent=0 // pred_region
    _
  $region5: #{inception_res_forward.19} parent=0 // pred_fallthru
    _
  // Predicated region
  $region6: #{inception_res_forward.19} parent=0 // pred_check
    _
  $region7: #{inception_res_forward.19} parent=0 // pred_check_branch
    %12 = sbr.rel (0) target = $region9
  $region8: #{inception_res_forward.19} parent=0 // pred_region
    _
  $region9: #{inception_res_forward.19} parent=0 // pred_fallthru
    _
  // Predicated region
  $region10: #{inception_res_forward.19} parent=0 // pred_check
    _
  $region11: #{inception_res_forward.19} parent=0 // pred_check_branch
    %14 = sbr.rel (0) target = $region13
  $region12: #{inception_res_forward.19} parent=0 // pred_region
    _
  $region13: #{inception_res_forward.19} parent=0 // pred_fallthru
    _
  // Predicated region
  $region14: #{inception_res_forward.19} parent=0 // pred_check
    _
  $region15: #{inception_res_forward.19} parent=0 // pred_check_branch
    %16 = sbr.rel (0) target = $region17
  $region16: #{inception_res_forward.19} parent=0 // pred_region
    _
  $region17: #{inception_res_forward.19} parent=0 // pred_fallthru
    _
  %v18 = vld [vmem:[%s0] sm:$0xf]
  %v19 = vld [vmem:[%s0 + $0x4] sm:$0xf]
  %v20 = vld [vmem:[%s0 + $0x8] sm:$0xf]
  %v21 = vld [vmem:[%s0 + $0xc] sm:$0xf]
  %v22 = vld [vmem:[%s1] sm:$0xf]
  %v23 = vld [vmem:[%s1 + $0x4] sm:$0xf]
  %v24 = vld [vmem:[%s1 + $0x8] sm:$0xf]
  %v25 = vld [vmem:[%s1 + $0xc] sm:$0xf]
  %v26 = vld [vmem:[%s1 + $0x10] sm:$0xf]
  %v27 = vld [vmem:[%s1 + $0x14] sm:$0xf]
  %v28 = vld [vmem:[%s1 + $0x18] sm:$0x7]
  %v33 = vunpack.c.l.b16 %v18
  %v34 = vunpack.c.l.b16 %v19
  %v35 = vunpack.c.l.b16 %v20
  %v36 = vunpack.c.l.b16 %v21
  %v37 = vpack.c.b16 %v34, %v33
  %v38 = vpack.c.b16 %v36, %v35
  %v46 = vunpack.c.l.b16 %v22
  %v47 = vunpack.c.l.b16 %v23
  %v48 = vunpack.c.l.b16 %v24
  %v49 = vunpack.c.l.b16 %v25
  %v50 = vunpack.c.l.b16 %v26
  %v51 = vunpack.c.l.b16 %v27
  %v52 = vunpack.c.l.b16 %v28
  %v53 = vpack.c.b16 %v47, %v46
  %v54 = vpack.c.b16 %v49, %v48
  %v55 = vpack.c.b16 %v51, %v50
  %v56 = vpack.c.b16 %v52, %v52
  %vm60 = vcmask 441344
  %v62 = vsel %vm60, %v37, 0
  %v65 = vsel %vm60, %v38, 0
  %vm67 = vcmask 1042432
  %v69 = vsel %vm67, %v56, 0
  %71 = vmatprep.subr.bf16.mxu0 0
  %72 = vmatpush1.bf16.msra.mxu0 0
  %73 = vmatprep.subr.bf16.mxu0 0
  %74 = vmatpush1.bf16.msra.mxu0 0
  %75 = vmatprep.subr.bf16.mxu0 0
  %76 = vmatpush1.bf16.msra.mxu0 0
  %77 = vmatprep.subr.bf16.mxu0 0
  %78 = vmatpush1.bf16.msra.mxu0 0
  %79 = vmatprep.subr.bf16.mxu0 0
  %80 = vmatpush1.bf16.msra.mxu0 %v69
  %81 = vmatprep.subr.bf16.mxu0 0
  %82 = vmatpush1.bf16.msra.mxu0 %v55
  %83 = vmatprep.subr.bf16.mxu0 0
  %84 = vmatpush1.bf16.msra.mxu0 %v54
  %85 = vmatprep.subr.bf16.mxu0 0
  %86 = vmatpush1.bf16.msra.mxu0 %v53
  %87 = vmatprep.subr.bf16.mxu0 0
  %88 = vmatpush2.bf16.msra.mxu0 0
  %89 = vmatprep.subr.bf16.mxu0 0
  %90 = vmatpush2.bf16.msra.mxu0 0
  %91 = vmatprep.subr.bf16.mxu0 0
  %92 = vmatpush2.bf16.msra.mxu0 0
  %93 = vmatprep.subr.bf16.mxu0 0
  %94 = vmatpush2.bf16.msra.mxu0 0
  %95 = vmatprep.subr.bf16.mxu0 0
  %96 = vmatpush2.bf16.msra.mxu0 0
  %97 = vmatprep.subr.bf16.mxu0 0
  %98 = vmatpush2.bf16.msra.mxu0 0
  %99 = vmatprep.subr.bf16.mxu0 0
  %100 = vmatpush2.bf16.msra.mxu0 0
  %101 = vmatprep.subr.bf16.mxu0 0
  %102 = vmatpush2.bf16.msra.mxu0 0
  %103 = vmatprep.mubr.bf16.mxu0 0
  %104 = vmatmul.mubr.bf16.gmra.mxu0 %v62
  %v105 = vpop.f32.mrf.mxu0
  %v106 = vadd.f32 0.0, %v105
  %v107 = vpop.f32.mrf.mxu0
  %v108 = vpop.f32.mrf.mxu0
  %v109 = vadd.f32 0.0, %v108
  %v110 = vpop.f32.mrf.mxu0
  %111 = vmatprep.mubr.bf16.mxu0 0
  %112 = vmatmul.mubr.bf16.gmra.mxu0 %v65
  %v113 = vpop.f32.mrf.mxu0
  %v114 = vadd.f32 0.0, %v113
  %v115 = vpop.f32.mrf.mxu0
  %v116 = vpop.f32.mrf.mxu0
  %v117 = vadd.f32 0.0, %v116
  %v118 = vpop.f32.mrf.mxu0
  %119 = vdwg.mxu0
  %v120 = vld [vmem:[%s2] sm:$0x1]
  %v121 = vld [vmem:[%s3] sm:$0x1]
  %vm122 = vcmask 130048
  %v123 = vsel %vm122, %v106, 0.0
  %v124 = vsel %vm122, %v109, 0.0
  %v125 = vadd.f32 %v123, %v124
  %v126 = vsel %vm122, %v114, 0.0
  %v127 = vadd.f32 %v125, %v126
  %v128 = vsel %vm122, %v117, 0.0
  %v129 = vadd.f32 %v127, %v128
  %v130 = vrot.slane %v129, 4
  %v131 = vadd.f32 %v129, %v130
  %v132 = vrot.slane %v131, 2
  %v133 = vadd.f32 %v131, %v132
  %v134 = vrot.slane %v133, 1
  %v135 = vadd.f32 %v133, %v134
  %v136 = vrcp.pop 32.0
  %v137 = vmul.f32 %v135, %v136
  %v138 = vsub.f32 %v106, %v137
  %v139 = vsub.f32 %v109, %v137
  %v140 = vsub.f32 %v114, %v137
  %v141 = vsub.f32 %v117, %v137
  %v142 = vmul.f32 %v138, %v138
  %v143 = vmul.f32 %v139, %v139
  %v144 = vmul.f32 %v140, %v140
  %v145 = vmul.f32 %v141, %v141
  %v146 = vsel %vm122, %v142, 0.0
  %v147 = vsel %vm122, %v143, 0.0
  %v148 = vadd.f32 %v146, %v147
  %v149 = vsel %vm122, %v144, 0.0
  %v150 = vadd.f32 %v148, %v149
  %v151 = vsel %vm122, %v145, 0.0
  %v152 = vadd.f32 %v150, %v151
  %v153 = vrot.slane %v152, 4
  %v154 = vadd.f32 %v152, %v153
  %v155 = vrot.slane %v154, 2
  %v156 = vadd.f32 %v154, %v155
  %v157 = vrot.slane %v156, 1
  %v158 = vadd.f32 %v156, %v157
  %v159 = vmul.f32 %v158, %v136
  %v160 = vadd.f32 %v159, 1e-05
  %v161 = vrsqrt.pop %v160
  %v162 = vmul.f32 %v120, %v161
  %v163 = vmul.f32 %v137, %v162
  %v164 = vsub.f32 %v121, %v163
  %v166 = vlaneseq
  %v167 = vshrl.u32 %v166, 7
  %v168 = vsub.s32 0, %v167
  %v169 = vrot.slane %v162, %v168
  %v171 = vmul.f32 %v106, %v169
  %v172 = vmul.f32 %v109, %v169
  %v173 = vmul.f32 %v114, %v169
  %v174 = vmul.f32 %v117, %v169
  %v176 = vlaneseq
  %v177 = vshrl.u32 %v176, 7
  %v178 = vsub.s32 0, %v177
  %v179 = vrot.slane %v164, %v178
  %v181 = vadd.f32 %v171, %v179
  %v182 = vadd.f32 %v172, %v179
  %v183 = vadd.f32 %v173, %v179
  %v184 = vadd.f32 %v174, %v179
  %v185 = vlaneseq
  %v186 = vand.u32 %v185, 127
  %vm187 = vcmp.lt.s32.totalorder %v186, 8
  %v188 = vmax.f32 %v181, 0.0
  %v189 = vmax.f32 %v182, 0.0
  %v190 = vmax.f32 %v183, 0.0
  %v191 = vmax.f32 %v184, 0.0
  %v192 = vsel %vm187, %v188, %v181
  %v193 = vsel %vm187, %v189, %v182
  %v194 = vsel %vm187, %v190, %v183
  %v195 = vsel %vm187, %v191, %v184
  %196 = vst.msk [vmem:[%s4] sm:$0xff] %vm122, %v192
  %197 = vst.msk [vmem:[%s4 + $0x8] sm:$0xff] %vm122, %v193
  %198 = vst.msk [vmem:[%s4 + $0x10] sm:$0xff] %vm122, %v194
  %199 = vst.msk [vmem:[%s4 + $0x18] sm:$0xff] %vm122, %v195
  // Predicated region
  $region18: #{inception_res_forward.19} parent=0 // pred_check
    _
  $region19: #{inception_res_forward.19} parent=0 // pred_check_branch
    %201 = sbr.rel (0) target = $region21
  $region20: #{inception_res_forward.19} parent=0 // pred_region
    _
  $region21: #{inception_res_forward.19} parent=0 // pred_fallthru
    _
  // Predicated region
  $region22: #{inception_res_forward.19} parent=0 // pred_check
    _
  $region23: #{inception_res_forward.19} parent=0 // pred_check_branch
    %203 = sbr.rel (0) target = $region25
  $region24: #{inception_res_forward.19} parent=0 // pred_region
    _
  $region25: #{inception_res_forward.19} parent=0 // pred_fallthru
    _

// kernel: inception_res_forward.12
$region0: #{inception_res_forward.12}
  #allocation0 [shape = 'u32[]', space=smem, size = 0x4, offset = 0x4, fixed_abs, tag = 'smem constant byte address 0x4 - core index']
  #allocation1 [shape = 'u32[144,128]{1,0:T(1,128)}', space=vmem, size = 0x12000, scoped, tag = 'internal scratch']
  %s0 = inlined_call_operand.vmem [shape: bf16[128,4], index: 0, kind: input, shape index: {}]
  %s1 = inlined_call_operand.vmem [shape: bf16[4,8], index: 1, kind: input, shape index: {}]
  %s2 = inlined_call_operand.vmem [shape: f32[1,8], index: 2, kind: input, shape index: {}]
  %s3 = inlined_call_operand.vmem [shape: f32[1,8], index: 3, kind: input, shape index: {}]
  %s4 = inlined_call_operand.vmem [shape: f32[128,8], index: 4, kind: output, shape index: {}]
  %s5 = sld [smem:[#allocation0]]
  $region26: #{inception_res_forward.12} parent=0
    _
  %s7 = ssub.s32 1, %s5
  %s8 = scalar_select 0, %s7, %s5
  // Predicated region
  $region2: #{inception_res_forward.12} parent=0 // pred_check
    _
  $region3: #{inception_res_forward.12} parent=0 // pred_check_branch
    %10 = sbr.rel (0) target = $region5
  $region4: #{inception_res_forward.12} parent=0 // pred_region
    _
  $region5: #{inception_res_forward.12} parent=0 // pred_fallthru
    _
  // Predicated region
  $region6: #{inception_res_forward.12} parent=0 // pred_check
    _
  $region7: #{inception_res_forward.12} parent=0 // pred_check_branch
    %12 = sbr.rel (0) target = $region9
  $region8: #{inception_res_forward.12} parent=0 // pred_region
    _
  $region9: #{inception_res_forward.12} parent=0 // pred_fallthru
    _
  // Predicated region
  $region10: #{inception_res_forward.12} parent=0 // pred_check
    _
  $region11: #{inception_res_forward.12} parent=0 // pred_check_branch
    %14 = sbr.rel (0) target = $region13
  $region12: #{inception_res_forward.12} parent=0 // pred_region
    _
  $region13: #{inception_res_forward.12} parent=0 // pred_fallthru
    _
  // Predicated region
  $region14: #{inception_res_forward.12} parent=0 // pred_check
    _
  $region15: #{inception_res_forward.12} parent=0 // pred_check_branch
    %16 = sbr.rel (0) target = $region17
  $region16: #{inception_res_forward.12} parent=0 // pred_region
    _
  $region17: #{inception_res_forward.12} parent=0 // pred_fallthru
    _
  %v18 = vld [vmem:[%s0] sm:$0xf]
  %v19 = vld [vmem:[%s0 + $0x4] sm:$0xf]
  %v20 = vld [vmem:[%s0 + $0x8] sm:$0xf]
  %v21 = vld [vmem:[%s0 + $0xc] sm:$0xf]
  %v22 = vld [vmem:[%s0 + $0x10] sm:$0xf]
  %v23 = vld [vmem:[%s0 + $0x14] sm:$0xf]
  %v24 = vld [vmem:[%s0 + $0x18] sm:$0xf]
  %v25 = vld [vmem:[%s0 + $0x1c] sm:$0xf]
  %v26 = vld [vmem:[%s0 + $0x20] sm:$0xf]
  %v27 = vld [vmem:[%s0 + $0x24] sm:$0xf]
  %v28 = vld [vmem:[%s0 + $0x28] sm:$0xf]
  %v29 = vld [vmem:[%s0 + $0x2c] sm:$0xf]
  %v30 = vld [vmem:[%s0 + $0x30] sm:$0xf]
  %v31 = vld [vmem:[%s0 + $0x34] sm:$0xf]
  %v32 = vld [vmem:[%s0 + $0x38] sm:$0xf]
  %v33 = vld [vmem:[%s0 + $0x3c] sm:$0xf]
  %v34 = vld [vmem:[%s1] sm:$0x3]
  %v51 = vunpack.c.l.b16 %v18
  %v52 = vunpack.c.l.b16 %v19
  %v53 = vunpack.c.l.b16 %v20
  %v54 = vunpack.c.l.b16 %v21
  %v55 = vunpack.c.l.b16 %v22
  %v56 = vunpack.c.l.b16 %v23
  %v57 = vunpack.c.l.b16 %v24
  %v58 = vunpack.c.l.b16 %v25
  %v59 = vunpack.c.l.b16 %v26
  %v60 = vunpack.c.l.b16 %v27
  %v61 = vunpack.c.l.b16 %v28
  %v62 = vunpack.c.l.b16 %v29
  %v63 = vunpack.c.l.b16 %v30
  %v64 = vunpack.c.l.b16 %v31
  %v65 = vunpack.c.l.b16 %v32
  %v66 = vunpack.c.l.b16 %v33
  %v67 = vpack.c.b16 %v52, %v51
  %v68 = vpack.c.b16 %v54, %v53
  %v69 = vpack.c.b16 %v56, %v55
  %v70 = vpack.c.b16 %v58, %v57
  %v71 = vpack.c.b16 %v60, %v59
  %v72 = vpack.c.b16 %v62, %v61
  %v73 = vpack.c.b16 %v64, %v63
  %v74 = vpack.c.b16 %v66, %v65
  %vm75 = vcmask 31744
  %v77 = vsel %vm75, %v67, 0
  %v80 = vsel %vm75, %v68, 0
  %v83 = vsel %vm75, %v69, 0
  %v86 = vsel %vm75, %v70, 0
  %v89 = vsel %vm75, %v71, 0
  %v92 = vsel %vm75, %v72, 0
  %v95 = vsel %vm75, %v73, 0
  %v98 = vsel %vm75, %v74, 0
  %vm100 = vcmask 1041408
  %v102 = vsel %vm100, %v34, 0
  %104 = vmatprep.subr.bf16.mxu0 0
  %105 = vmatpush1.bf16.msra.mxu0 0
  %106 = vmatprep.subr.bf16.mxu0 0
  %107 = vmatpush1.bf16.msra.mxu0 0
  %108 = vmatprep.subr.bf16.mxu0 0
  %109 = vmatpush1.bf16.msra.mxu0 0
  %110 = vmatprep.subr.bf16.mxu0 0
  %111 = vmatpush1.bf16.msra.mxu0 0
  %112 = vmatprep.subr.bf16.mxu0 0
  %113 = vmatpush1.bf16.msra.mxu0 0
  %114 = vmatprep.subr.bf16.mxu0 0
  %115 = vmatpush1.bf16.msra.mxu0 0
  %116 = vmatprep.subr.bf16.mxu0 0
  %117 = vmatpush1.bf16.msra.mxu0 0
  %118 = vmatprep.subr.bf16.mxu0 0
  %119 = vmatpush1.bf16.msra.mxu0 %v102
  %120 = vmatprep.subr.bf16.mxu0 0
  %121 = vmatpush2.bf16.msra.mxu0 0
  %122 = vmatprep.subr.bf16.mxu0 0
  %123 = vmatpush2.bf16.msra.mxu0 0
  %124 = vmatprep.subr.bf16.mxu0 0
  %125 = vmatpush2.bf16.msra.mxu0 0
  %126 = vmatprep.subr.bf16.mxu0 0
  %127 = vmatpush2.bf16.msra.mxu0 0
  %128 = vmatprep.subr.bf16.mxu0 0
  %129 = vmatpush2.bf16.msra.mxu0 0
  %130 = vmatprep.subr.bf16.mxu0 0
  %131 = vmatpush2.bf16.msra.mxu0 0
  %132 = vmatprep.subr.bf16.mxu0 0
  %133 = vmatpush2.bf16.msra.mxu0 0
  %134 = vmatprep.subr.bf16.mxu0 0
  %135 = vmatpush2.bf16.msra.mxu0 0
  %136 = vmatprep.mubr.bf16.mxu0 0
  %137 = vmatmul.mubr.bf16.gmra.mxu0 %v77
  %v138 = vpop.f32.mrf.mxu0
  %v139 = vadd.f32 0.0, %v138
  %v140 = vpop.f32.mrf.mxu0
  %v141 = vpop.f32.mrf.mxu0
  %v142 = vadd.f32 0.0, %v141
  %v143 = vpop.f32.mrf.mxu0
  %144 = vmatprep.mubr.bf16.mxu0 0
  %145 = vmatmul.mubr.bf16.gmra.mxu0 %v80
  %v146 = vpop.f32.mrf.mxu0
  %v147 = vadd.f32 0.0, %v146
  %v148 = vpop.f32.mrf.mxu0
  %v149 = vpop.f32.mrf.mxu0
  %v150 = vadd.f32 0.0, %v149
  %v151 = vpop.f32.mrf.mxu0
  %152 = vmatprep.mubr.bf16.mxu0 0
  %153 = vmatmul.mubr.bf16.gmra.mxu0 %v83
  %v154 = vpop.f32.mrf.mxu0
  %v155 = vadd.f32 0.0, %v154
  %v156 = vpop.f32.mrf.mxu0
  %v157 = vpop.f32.mrf.mxu0
  %v158 = vadd.f32 0.0, %v157
  %v159 = vpop.f32.mrf.mxu0
  %160 = vmatprep.mubr.bf16.mxu0 0
  %161 = vmatmul.mubr.bf16.gmra.mxu0 %v86
  %v162 = vpop.f32.mrf.mxu0
  %v163 = vadd.f32 0.0, %v162
  %v164 = vpop.f32.mrf.mxu0
  %v165 = vpop.f32.mrf.mxu0
  %v166 = vadd.f32 0.0, %v165
  %v167 = vpop.f32.mrf.mxu0
  %168 = vmatprep.mubr.bf16.mxu0 0
  %169 = vmatmul.mubr.bf16.gmra.mxu0 %v89
  %v170 = vpop.f32.mrf.mxu0
  %v171 = vadd.f32 0.0, %v170
  %v172 = vpop.f32.mrf.mxu0
  %v173 = vpop.f32.mrf.mxu0
  %v174 = vadd.f32 0.0, %v173
  %v175 = vpop.f32.mrf.mxu0
  %176 = vmatprep.mubr.bf16.mxu0 0
  %177 = vmatmul.mubr.bf16.gmra.mxu0 %v92
  %v178 = vpop.f32.mrf.mxu0
  %v179 = vadd.f32 0.0, %v178
  %v180 = vpop.f32.mrf.mxu0
  %v181 = vpop.f32.mrf.mxu0
  %v182 = vadd.f32 0.0, %v181
  %v183 = vpop.f32.mrf.mxu0
  %184 = vmatprep.mubr.bf16.mxu0 0
  %185 = vmatmul.mubr.bf16.gmra.mxu0 %v95
  %v186 = vpop.f32.mrf.mxu0
  %v187 = vadd.f32 0.0, %v186
  %v188 = vpop.f32.mrf.mxu0
  %v189 = vpop.f32.mrf.mxu0
  %v190 = vadd.f32 0.0, %v189
  %v191 = vpop.f32.mrf.mxu0
  %192 = vmatprep.mubr.bf16.mxu0 0
  %193 = vmatmul.mubr.bf16.gmra.mxu0 %v98
  %v194 = vpop.f32.mrf.mxu0
  %v195 = vadd.f32 0.0, %v194
  %v196 = vpop.f32.mrf.mxu0
  %v197 = vpop.f32.mrf.mxu0
  %v198 = vadd.f32 0.0, %v197
  %v199 = vpop.f32.mrf.mxu0
  %200 = vdwg.mxu0
  %v201 = vld [vmem:[%s2] sm:$0x1]
  %v202 = vld [vmem:[%s3] sm:$0x1]
  %vm203 = vcmask 64512
  %v204 = vsel %vm203, %v139, 0.0
  %v205 = vsel %vm203, %v142, 0.0
  %v206 = vadd.f32 %v204, %v205
  %v207 = vsel %vm203, %v147, 0.0
  %v208 = vadd.f32 %v206, %v207
  %v209 = vsel %vm203, %v150, 0.0
  %v210 = vadd.f32 %v208, %v209
  %v211 = vsel %vm203, %v155, 0.0
  %v212 = vadd.f32 %v210, %v211
  %v213 = vsel %vm203, %v158, 0.0
  %v214 = vadd.f32 %v212, %v213
  %v215 = vsel %vm203, %v163, 0.0
  %v216 = vadd.f32 %v214, %v215
  %v217 = vsel %vm203, %v166, 0.0
  %v218 = vadd.f32 %v216, %v217
  %v219 = vsel %vm203, %v171, 0.0
  %v220 = vadd.f32 %v218, %v219
  %v221 = vsel %vm203, %v174, 0.0
  %v222 = vadd.f32 %v220, %v221
  %v223 = vsel %vm203, %v179, 0.0
  %v224 = vadd.f32 %v222, %v223
  %v225 = vsel %vm203, %v182, 0.0
  %v226 = vadd.f32 %v224, %v225
  %v227 = vsel %vm203, %v187, 0.0
  %v228 = vadd.f32 %v226, %v227
  %v229 = vsel %vm203, %v190, 0.0
  %v230 = vadd.f32 %v228, %v229
  %v231 = vsel %vm203, %v195, 0.0
  %v232 = vadd.f32 %v230, %v231
  %v233 = vsel %vm203, %v198, 0.0
  %v234 = vadd.f32 %v232, %v233
  %v235 = vrot.slane %v234, 4
  %v236 = vadd.f32 %v234, %v235
  %v237 = vrot.slane %v236, 2
  %v238 = vadd.f32 %v236, %v237
  %v239 = vrot.slane %v238, 1
  %v240 = vadd.f32 %v238, %v239
  %v241 = vrcp.pop 128.0
  %v242 = vmul.f32 %v240, %v241
  %v243 = vsub.f32 %v139, %v242
  %v244 = vsub.f32 %v142, %v242
  %v245 = vsub.f32 %v147, %v242
  %v246 = vsub.f32 %v150, %v242
  %v247 = vsub.f32 %v155, %v242
  %v248 = vsub.f32 %v158, %v242
  %v249 = vsub.f32 %v163, %v242
  %v250 = vsub.f32 %v166, %v242
  %v251 = vsub.f32 %v171, %v242
  %v252 = vsub.f32 %v174, %v242
  %v253 = vsub.f32 %v179, %v242
  %v254 = vsub.f32 %v182, %v242
  %v255 = vsub.f32 %v187, %v242
  %v256 = vsub.f32 %v190, %v242
  %v257 = vsub.f32 %v195, %v242
  %v258 = vsub.f32 %v198, %v242
  %v259 = vmul.f32 %v243, %v243
  %v260 = vmul.f32 %v244, %v244
  %v261 = vmul.f32 %v245, %v245
  %v262 = vmul.f32 %v246, %v246
  %v263 = vmul.f32 %v247, %v247
  %v264 = vmul.f32 %v248, %v248
  %v265 = vmul.f32 %v249, %v249
  %v266 = vmul.f32 %v250, %v250
  %v267 = vmul.f32 %v251, %v251
  %v268 = vmul.f32 %v252, %v252
  %v269 = vmul.f32 %v253, %v253
  %v270 = vmul.f32 %v254, %v254
  %v271 = vmul.f32 %v255, %v255
  %v272 = vmul.f32 %v256, %v256
  %v273 = vmul.f32 %v257, %v257
  %v274 = vmul.f32 %v258, %v258
  %v275 = vsel %vm203, %v259, 0.0
  %v276 = vsel %vm203, %v260, 0.0
  %v277 = vadd.f32 %v275, %v276
  %v278 = vsel %vm203, %v261, 0.0
  %v279 = vadd.f32 %v277, %v278
  %v280 = vsel %vm203, %v262, 0.0
  %v281 = vadd.f32 %v279, %v280
  %v282 = vsel %vm203, %v263, 0.0
  %v283 = vadd.f32 %v281, %v282
  %v284 = vsel %vm203, %v264, 0.0
  %v285 = vadd.f32 %v283, %v284
  %v286 = vsel %vm203, %v265, 0.0
  %v287 = vadd.f32 %v285, %v286
  %v288 = vsel %vm203, %v266, 0.0
  %v289 = vadd.f32 %v287, %v288
  %v290 = vsel %vm203, %v267, 0.0
  %v291 = vadd.f32 %v289, %v290
  %v292 = vsel %vm203, %v268, 0.0
  %v293 = vadd.f32 %v291, %v292
  %v294 = vsel %vm203, %v269, 0.0
  %v295 = vadd.f32 %v293, %v294
  %v296 = vsel %vm203, %v270, 0.0
  %v297 = vadd.f32 %v295, %v296
  %v298 = vsel %vm203, %v271, 0.0
  %v299 = vadd.f32 %v297, %v298
  %v300 = vsel %vm203, %v272, 0.0
  %v301 = vadd.f32 %v299, %v300
  %v302 = vsel %vm203, %v273, 0.0
  %v303 = vadd.f32 %v301, %v302
  %v304 = vsel %vm203, %v274, 0.0
  %v305 = vadd.f32 %v303, %v304
  %v306 = vrot.slane %v305, 4
  %v307 = vadd.f32 %v305, %v306
  %v308 = vrot.slane %v307, 2
  %v309 = vadd.f32 %v307, %v308
  %v310 = vrot.slane %v309, 1
  %v311 = vadd.f32 %v309, %v310
  %v312 = vmul.f32 %v311, %v241
  %v313 = vadd.f32 %v312, 1e-05
  %v314 = vrsqrt.pop %v313
  %v315 = vmul.f32 %v201, %v314
  %v316 = vmul.f32 %v242, %v315
  %v317 = vsub.f32 %v202, %v316
  %v319 = vlaneseq
  %v320 = vshrl.u32 %v319, 7
  %v321 = vsub.s32 0, %v320
  %v322 = vrot.slane %v315, %v321
  %v324 = vmul.f32 %v139, %v322
  %v325 = vmul.f32 %v142, %v322
  %v326 = vmul.f32 %v147, %v322
  %v327 = vmul.f32 %v150, %v322
  %v328 = vmul.f32 %v155, %v322
  %v329 = vmul.f32 %v158, %v322
  %v330 = vmul.f32 %v163, %v322
  %v331 = vmul.f32 %v166, %v322
  %v332 = vmul.f32 %v171, %v322
  %v333 = vmul.f32 %v174, %v322
  %v334 = vmul.f32 %v179, %v322
  %v335 = vmul.f32 %v182, %v322
  %v336 = vmul.f32 %v187, %v322
  %v337 = vmul.f32 %v190, %v322
  %v338 = vmul.f32 %v195, %v322
  %v339 = vmul.f32 %v198, %v322
  %v341 = vlaneseq
  %v342 = vshrl.u32 %v341, 7
  %v343 = vsub.s32 0, %v342
  %v344 = vrot.slane %v317, %v343
  %v346 = vadd.f32 %v324, %v344
  %v347 = vadd.f32 %v325, %v344
  %v348 = vadd.f32 %v326, %v344
  %v349 = vadd.f32 %v327, %v344
  %v350 = vadd.f32 %v328, %v344
  %v351 = vadd.f32 %v329, %v344
  %v352 = vadd.f32 %v330, %v344
  %v353 = vadd.f32 %v331, %v344
  %v354 = vadd.f32 %v332, %v344
  %v355 = vadd.f32 %v333, %v344
  %v356 = vadd.f32 %v334, %v344
  %v357 = vadd.f32 %v335, %v344
  %v358 = vadd.f32 %v336, %v344
  %v359 = vadd.f32 %v337, %v344
  %v360 = vadd.f32 %v338, %v344
  %v361 = vadd.f32 %v339, %v344
  %v362 = vlaneseq
  %v363 = vand.u32 %v362, 127
  %vm364 = vcmp.lt.s32.totalorder %v363, 4
  %v365 = vmax.f32 %v346, 0.0
  %v366 = vmax.f32 %v347, 0.0
  %v367 = vmax.f32 %v348, 0.0
  %v368 = vmax.f32 %v349, 0.0
  %v369 = vmax.f32 %v350, 0.0
  %v370 = vmax.f32 %v351, 0.0
  %v371 = vmax.f32 %v352, 0.0
  %v372 = vmax.f32 %v353, 0.0
  %v373 = vmax.f32 %v354, 0.0
  %v374 = vmax.f32 %v355, 0.0
  %v375 = vmax.f32 %v356, 0.0
  %v376 = vmax.f32 %v357, 0.0
  %v377 = vmax.f32 %v358, 0.0
  %v378 = vmax.f32 %v359, 0.0
  %v379 = vmax.f32 %v360, 0.0
  %v380 = vmax.f32 %v361, 0.0
  %v381 = vsel %vm364, %v365, %v346
  %v382 = vsel %vm364, %v366, %v347
  %v383 = vsel %vm364, %v367, %v348
  %v384 = vsel %vm364, %v368, %v349
  %v385 = vsel %vm364, %v369, %v350
  %v386 = vsel %vm364, %v370, %v351
  %v387 = vsel %vm364, %v371, %v352
  %v388 = vsel %vm364, %v372, %v353
  %v389 = vsel %vm364, %v373, %v354
  %v390 = vsel %vm364, %v374, %v355
  %v391 = vsel %vm364, %v375, %v356
  %v392 = vsel %vm364, %v376, %v357
  %v393 = vsel %vm364, %v377, %v358
  %v394 = vsel %vm364, %v378, %v359
  %v395 = vsel %vm364, %v379, %v360
  %v396 = vsel %vm364, %v380, %v361
  %397 = vst.msk [vmem:[%s4] sm:$0xff] %vm203, %v381
  %398 = vst.msk [vmem:[%s4 + $0x8] sm:$0xff] %vm203, %v382
  %399 = vst.msk [vmem:[%s4 + $0x10] sm:$0xff] %vm203, %v383
  %400 = vst.msk [vmem:[%s4 + $0x18] sm:$0xff] %vm203, %v384
  %401 = vst.msk [vmem:[%s4 + $0x20] sm:$0xff] %vm203, %v385
  %402 = vst.msk [vmem:[%s4 + $0x28] sm:$0xff] %vm203, %v386
  %403 = vst.msk [vmem:[%s4 + $0x30] sm:$0xff] %vm203, %v387
  %404 = vst.msk [vmem:[%s4 + $0x38] sm:$0xff] %vm203, %v388
  %405 = vst.msk [vmem:[%s4 + $0x40] sm:$0xff] %vm203, %v389
  %406 = vst.msk [vmem:[%s4 + $0x48] sm:$0xff] %vm203, %v390
  %407 = vst.msk [vmem:[%s4 + $0x50] sm:$0xff] %vm203, %v391
  %408 = vst.msk [vmem:[%s4 + $0x58] sm:$0xff] %vm203, %v392
  %409 = vst.msk [vmem:[%s4 + $0x60] sm:$0xff] %vm203, %v393
  %410 = vst.msk [vmem:[%s4 + $0x68] sm:$0xff] %vm203, %v394
  %411 = vst.msk [vmem:[%s4 + $0x70] sm:$0xff] %vm203, %v395
  %412 = vst.msk [vmem:[%s4 + $0x78] sm:$0xff] %vm203, %v396
  // Predicated region
  $region18: #{inception_res_forward.12} parent=0 // pred_check
    _
  $region19: #{inception_res_forward.12} parent=0 // pred_check_branch
    %414 = sbr.rel (0) target = $region21
  $region20: #{inception_res_forward.12} parent=0 // pred_region
    _
  $region21: #{inception_res_forward.12} parent=0 // pred_fallthru
    _
  // Predicated region
  $region22: #{inception_res_forward.12} parent=0 // pred_check
    _
  $region23: #{inception_res_forward.12} parent=0 // pred_check_branch
    %416 = sbr.rel (0) target = $region25
  $region24: #{inception_res_forward.12} parent=0 // pred_region
    _
  $region25: #{inception_res_forward.12} parent=0 // pred_fallthru
    _

// kernel: inception_res_forward.13
$region0: #{inception_res_forward.13}
  #allocation0 [shape = 'u32[]', space=smem, size = 0x4, offset = 0x4, fixed_abs, tag = 'smem constant byte address 0x4 - core index']
  #allocation1 [shape = 'u32[144,128]{1,0:T(1,128)}', space=vmem, size = 0x12000, scoped, tag = 'internal scratch']
  %s0 = inlined_call_operand.vmem [shape: bf16[128,4], index: 0, kind: input, shape index: {}]
  %s1 = inlined_call_operand.vmem [shape: bf16[4,4], index: 1, kind: input, shape index: {}]
  %s2 = inlined_call_operand.vmem [shape: f32[1,4], index: 2, kind: input, shape index: {}]
  %s3 = inlined_call_operand.vmem [shape: f32[1,4], index: 3, kind: input, shape index: {}]
  %s4 = inlined_call_operand.vmem [shape: f32[128,4], index: 4, kind: input, shape index: {}]
  %s5 = inlined_call_operand.vmem [shape: f32[128,4], index: 5, kind: output, shape index: {}]
  %s6 = sld [smem:[#allocation0]]
  $region30: #{inception_res_forward.13} parent=0
    _
  %s8 = ssub.s32 1, %s6
  %s9 = scalar_select 0, %s8, %s6
  // Predicated region
  $region2: #{inception_res_forward.13} parent=0 // pred_check
    _
  $region3: #{inception_res_forward.13} parent=0 // pred_check_branch
    %11 = sbr.rel (0) target = $region5
  $region4: #{inception_res_forward.13} parent=0 // pred_region
    _
  $region5: #{inception_res_forward.13} parent=0 // pred_fallthru
    _
  // Predicated region
  $region6: #{inception_res_forward.13} parent=0 // pred_check
    _
  $region7: #{inception_res_forward.13} parent=0 // pred_check_branch
    %13 = sbr.rel (0) target = $region9
  $region8: #{inception_res_forward.13} parent=0 // pred_region
    _
  $region9: #{inception_res_forward.13} parent=0 // pred_fallthru
    _
  // Predicated region
  $region10: #{inception_res_forward.13} parent=0 // pred_check
    _
  $region11: #{inception_res_forward.13} parent=0 // pred_check_branch
    %15 = sbr.rel (0) target = $region13
  $region12: #{inception_res_forward.13} parent=0 // pred_region
    _
  $region13: #{inception_res_forward.13} parent=0 // pred_fallthru
    _
  // Predicated region
  $region14: #{inception_res_forward.13} parent=0 // pred_check
    _
  $region15: #{inception_res_forward.13} parent=0 // pred_check_branch
    %17 = sbr.rel (0) target = $region17
  $region16: #{inception_res_forward.13} parent=0 // pred_region
    _
  $region17: #{inception_res_forward.13} parent=0 // pred_fallthru
    _
  // Predicated region
  $region18: #{inception_res_forward.13} parent=0 // pred_check
    _
  $region19: #{inception_res_forward.13} parent=0 // pred_check_branch
    %19 = sbr.rel (0) target = $region21
  $region20: #{inception_res_forward.13} parent=0 // pred_region
    _
  $region21: #{inception_res_forward.13} parent=0 // pred_fallthru
    _
  %v21 = vld [vmem:[%s0] sm:$0xf]
  %v22 = vld [vmem:[%s0 + $0x4] sm:$0xf]
  %v23 = vld [vmem:[%s0 + $0x8] sm:$0xf]
  %v24 = vld [vmem:[%s0 + $0xc] sm:$0xf]
  %v25 = vld [vmem:[%s0 + $0x10] sm:$0xf]
  %v26 = vld [vmem:[%s0 + $0x14] sm:$0xf]
  %v27 = vld [vmem:[%s0 + $0x18] sm:$0xf]
  %v28 = vld [vmem:[%s0 + $0x1c] sm:$0xf]
  %v29 = vld [vmem:[%s0 + $0x20] sm:$0xf]
  %v30 = vld [vmem:[%s0 + $0x24] sm:$0xf]
  %v31 = vld [vmem:[%s0 + $0x28] sm:$0xf]
  %v32 = vld [vmem:[%s0 + $0x2c] sm:$0xf]
  %v33 = vld [vmem:[%s0 + $0x30] sm:$0xf]
  %v34 = vld [vmem:[%s0 + $0x34] sm:$0xf]
  %v35 = vld [vmem:[%s0 + $0x38] sm:$0xf]
  %v36 = vld [vmem:[%s0 + $0x3c] sm:$0xf]
  %v37 = vld [vmem:[%s1] sm:$0x3]
  %v54 = vunpack.c.l.b16 %v21
  %v55 = vunpack.c.l.b16 %v22
  %v56 = vunpack.c.l.b16 %v23
  %v57 = vunpack.c.l.b16 %v24
  %v58 = vunpack.c.l.b16 %v25
  %v59 = vunpack.c.l.b16 %v26
  %v60 = vunpack.c.l.b16 %v27
  %v61 = vunpack.c.l.b16 %v28
  %v62 = vunpack.c.l.b16 %v29
  %v63 = vunpack.c.l.b16 %v30
  %v64 = vunpack.c.l.b16 %v31
  %v65 = vunpack.c.l.b16 %v32
  %v66 = vunpack.c.l.b16 %v33
  %v67 = vunpack.c.l.b16 %v34
  %v68 = vunpack.c.l.b16 %v35
  %v69 = vunpack.c.l.b16 %v36
  %v70 = vpack.c.b16 %v55, %v54
  %v71 = vpack.c.b16 %v57, %v56
  %v72 = vpack.c.b16 %v59, %v58
  %v73 = vpack.c.b16 %v61, %v60
  %v74 = vpack.c.b16 %v63, %v62
  %v75 = vpack.c.b16 %v65, %v64
  %v76 = vpack.c.b16 %v67, %v66
  %v77 = vpack.c.b16 %v69, %v68
  %vm78 = vcmask 31744
  %v80 = vsel %vm78, %v70, 0
  %v83 = vsel %vm78, %v71, 0
  %v86 = vsel %vm78, %v72, 0
  %v89 = vsel %vm78, %v73, 0
  %v92 = vsel %vm78, %v74, 0
  %v95 = vsel %vm78, %v75, 0
  %v98 = vsel %vm78, %v76, 0
  %v101 = vsel %vm78, %v77, 0
  %vm103 = vcmask 1041408
  %v105 = vsel %vm103, %v37, 0
  %107 = vmatprep.subr.bf16.mxu0 0
  %108 = vmatpush1.bf16.msra.mxu0 0
  %109 = vmatprep.subr.bf16.mxu0 0
  %110 = vmatpush1.bf16.msra.mxu0 0
  %111 = vmatprep.subr.bf16.mxu0 0
  %112 = vmatpush1.bf16.msra.mxu0 0
  %113 = vmatprep.subr.bf16.mxu0 0
  %114 = vmatpush1.bf16.msra.mxu0 0
  %115 = vmatprep.subr.bf16.mxu0 0
  %116 = vmatpush1.bf16.msra.mxu0 0
  %117 = vmatprep.subr.bf16.mxu0 0
  %118 = vmatpush1.bf16.msra.mxu0 0
  %119 = vmatprep.subr.bf16.mxu0 0
  %120 = vmatpush1.bf16.msra.mxu0 0
  %121 = vmatprep.subr.bf16.mxu0 0
  %122 = vmatpush1.bf16.msra.mxu0 %v105
  %123 = vmatprep.subr.bf16.mxu0 0
  %124 = vmatpush2.bf16.msra.mxu0 0
  %125 = vmatprep.subr.bf16.mxu0 0
  %126 = vmatpush2.bf16.msra.mxu0 0
  %127 = vmatprep.subr.bf16.mxu0 0
  %128 = vmatpush2.bf16.msra.mxu0 0
  %129 = vmatprep.subr.bf16.mxu0 0
  %130 = vmatpush2.bf16.msra.mxu0 0
  %131 = vmatprep.subr.bf16.mxu0 0
  %132 = vmatpush2.bf16.msra.mxu0 0
  %133 = vmatprep.subr.bf16.mxu0 0
  %134 = vmatpush2.bf16.msra.mxu0 0
  %135 = vmatprep.subr.bf16.mxu0 0
  %136 = vmatpush2.bf16.msra.mxu0 0
  %137 = vmatprep.subr.bf16.mxu0 0
  %138 = vmatpush2.bf16.msra.mxu0 0
  %139 = vmatprep.mubr.bf16.mxu0 0
  %140 = vmatmul.mubr.bf16.gmra.mxu0 %v80
  %v141 = vpop.f32.mrf.mxu0
  %v142 = vadd.f32 0.0, %v141
  %v143 = vpop.f32.mrf.mxu0
  %v144 = vpop.f32.mrf.mxu0
  %v145 = vadd.f32 0.0, %v144
  %v146 = vpop.f32.mrf.mxu0
  %147 = vmatprep.mubr.bf16.mxu0 0
  %148 = vmatmul.mubr.bf16.gmra.mxu0 %v83
  %v149 = vpop.f32.mrf.mxu0
  %v150 = vadd.f32 0.0, %v149
  %v151 = vpop.f32.mrf.mxu0
  %v152 = vpop.f32.mrf.mxu0
  %v153 = vadd.f32 0.0, %v152
  %v154 = vpop.f32.mrf.mxu0
  %155 = vmatprep.mubr.bf16.mxu0 0
  %156 = vmatmul.mubr.bf16.gmra.mxu0 %v86
  %v157 = vpop.f32.mrf.mxu0
  %v158 = vadd.f32 0.0, %v157
  %v159 = vpop.f32.mrf.mxu0
  %v160 = vpop.f32.mrf.mxu0
  %v161 = vadd.f32 0.0, %v160
  %v162 = vpop.f32.mrf.mxu0
  %163 = vmatprep.mubr.bf16.mxu0 0
  %164 = vmatmul.mubr.bf16.gmra.mxu0 %v89
  %v165 = vpop.f32.mrf.mxu0
  %v166 = vadd.f32 0.0, %v165
  %v167 = vpop.f32.mrf.mxu0
  %v168 = vpop.f32.mrf.mxu0
  %v169 = vadd.f32 0.0, %v168
  %v170 = vpop.f32.mrf.mxu0
  %171 = vmatprep.mubr.bf16.mxu0 0
  %172 = vmatmul.mubr.bf16.gmra.mxu0 %v92
  %v173 = vpop.f32.mrf.mxu0
  %v174 = vadd.f32 0.0, %v173
  %v175 = vpop.f32.mrf.mxu0
  %v176 = vpop.f32.mrf.mxu0
  %v177 = vadd.f32 0.0, %v176
  %v178 = vpop.f32.mrf.mxu0
  %179 = vmatprep.mubr.bf16.mxu0 0
  %180 = vmatmul.mubr.bf16.gmra.mxu0 %v95
  %v181 = vpop.f32.mrf.mxu0
  %v182 = vadd.f32 0.0, %v181
  %v183 = vpop.f32.mrf.mxu0
  %v184 = vpop.f32.mrf.mxu0
  %v185 = vadd.f32 0.0, %v184
  %v186 = vpop.f32.mrf.mxu0
  %187 = vmatprep.mubr.bf16.mxu0 0
  %188 = vmatmul.mubr.bf16.gmra.mxu0 %v98
  %v189 = vpop.f32.mrf.mxu0
  %v190 = vadd.f32 0.0, %v189
  %v191 = vpop.f32.mrf.mxu0
  %v192 = vpop.f32.mrf.mxu0
  %v193 = vadd.f32 0.0, %v192
  %v194 = vpop.f32.mrf.mxu0
  %195 = vmatprep.mubr.bf16.mxu0 0
  %196 = vmatmul.mubr.bf16.gmra.mxu0 %v101
  %v197 = vpop.f32.mrf.mxu0
  %v198 = vadd.f32 0.0, %v197
  %v199 = vpop.f32.mrf.mxu0
  %v200 = vpop.f32.mrf.mxu0
  %v201 = vadd.f32 0.0, %v200
  %v202 = vpop.f32.mrf.mxu0
  %203 = vdwg.mxu0
  %v204 = vld [vmem:[%s2] sm:$0x1]
  %v205 = vld [vmem:[%s3] sm:$0x1]
  %v206 = vsel %vm78, %v142, 0.0
  %v207 = vsel %vm78, %v145, 0.0
  %v208 = vadd.f32 %v206, %v207
  %v209 = vsel %vm78, %v150, 0.0
  %v210 = vadd.f32 %v208, %v209
  %v211 = vsel %vm78, %v153, 0.0
  %v212 = vadd.f32 %v210, %v211
  %v213 = vsel %vm78, %v158, 0.0
  %v214 = vadd.f32 %v212, %v213
  %v215 = vsel %vm78, %v161, 0.0
  %v216 = vadd.f32 %v214, %v215
  %v217 = vsel %vm78, %v166, 0.0
  %v218 = vadd.f32 %v216, %v217
  %v219 = vsel %vm78, %v169, 0.0
  %v220 = vadd.f32 %v218, %v219
  %v221 = vsel %vm78, %v174, 0.0
  %v222 = vadd.f32 %v220, %v221
  %v223 = vsel %vm78, %v177, 0.0
  %v224 = vadd.f32 %v222, %v223
  %v225 = vsel %vm78, %v182, 0.0
  %v226 = vadd.f32 %v224, %v225
  %v227 = vsel %vm78, %v185, 0.0
  %v228 = vadd.f32 %v226, %v227
  %v229 = vsel %vm78, %v190, 0.0
  %v230 = vadd.f32 %v228, %v229
  %v231 = vsel %vm78, %v193, 0.0
  %v232 = vadd.f32 %v230, %v231
  %v233 = vsel %vm78, %v198, 0.0
  %v234 = vadd.f32 %v232, %v233
  %v235 = vsel %vm78, %v201, 0.0
  %v236 = vadd.f32 %v234, %v235
  %v237 = vrot.slane %v236, 4
  %v238 = vadd.f32 %v236, %v237
  %v239 = vrot.slane %v238, 2
  %v240 = vadd.f32 %v238, %v239
  %v241 = vrot.slane %v240, 1
  %v242 = vadd.f32 %v240, %v241
  %v243 = vrcp.pop 128.0
  %v244 = vmul.f32 %v242, %v243
  %v245 = vsub.f32 %v142, %v244
  %v246 = vsub.f32 %v145, %v244
  %v247 = vsub.f32 %v150, %v244
  %v248 = vsub.f32 %v153, %v244
  %v249 = vsub.f32 %v158, %v244
  %v250 = vsub.f32 %v161, %v244
  %v251 = vsub.f32 %v166, %v244
  %v252 = vsub.f32 %v169, %v244
  %v253 = vsub.f32 %v174, %v244
  %v254 = vsub.f32 %v177, %v244
  %v255 = vsub.f32 %v182, %v244
  %v256 = vsub.f32 %v185, %v244
  %v257 = vsub.f32 %v190, %v244
  %v258 = vsub.f32 %v193, %v244
  %v259 = vsub.f32 %v198, %v244
  %v260 = vsub.f32 %v201, %v244
  %v261 = vmul.f32 %v245, %v245
  %v262 = vmul.f32 %v246, %v246
  %v263 = vmul.f32 %v247, %v247
  %v264 = vmul.f32 %v248, %v248
  %v265 = vmul.f32 %v249, %v249
  %v266 = vmul.f32 %v250, %v250
  %v267 = vmul.f32 %v251, %v251
  %v268 = vmul.f32 %v252, %v252
  %v269 = vmul.f32 %v253, %v253
  %v270 = vmul.f32 %v254, %v254
  %v271 = vmul.f32 %v255, %v255
  %v272 = vmul.f32 %v256, %v256
  %v273 = vmul.f32 %v257, %v257
  %v274 = vmul.f32 %v258, %v258
  %v275 = vmul.f32 %v259, %v259
  %v276 = vmul.f32 %v260, %v260
  %v277 = vsel %vm78, %v261, 0.0
  %v278 = vsel %vm78, %v262, 0.0
  %v279 = vadd.f32 %v277, %v278
  %v280 = vsel %vm78, %v263, 0.0
  %v281 = vadd.f32 %v279, %v280
  %v282 = vsel %vm78, %v264, 0.0
  %v283 = vadd.f32 %v281, %v282
  %v284 = vsel %vm78, %v265, 0.0
  %v285 = vadd.f32 %v283, %v284
  %v286 = vsel %vm78, %v266, 0.0
  %v287 = vadd.f32 %v285, %v286
  %v288 = vsel %vm78, %v267, 0.0
  %v289 = vadd.f32 %v287, %v288
  %v290 = vsel %vm78, %v268, 0.0
  %v291 = vadd.f32 %v289, %v290
  %v292 = vsel %vm78, %v269, 0.0
  %v293 = vadd.f32 %v291, %v292
  %v294 = vsel %vm78, %v270, 0.0
  %v295 = vadd.f32 %v293, %v294
  %v296 = vsel %vm78, %v271, 0.0
  %v297 = vadd.f32 %v295, %v296
  %v298 = vsel %vm78, %v272, 0.0
  %v299 = vadd.f32 %v297, %v298
  %v300 = vsel %vm78, %v273, 0.0
  %v301 = vadd.f32 %v299, %v300
  %v302 = vsel %vm78, %v274, 0.0
  %v303 = vadd.f32 %v301, %v302
  %v304 = vsel %vm78, %v275, 0.0
  %v305 = vadd.f32 %v303, %v304
  %v306 = vsel %vm78, %v276, 0.0
  %v307 = vadd.f32 %v305, %v306
  %v308 = vrot.slane %v307, 4
  %v309 = vadd.f32 %v307, %v308
  %v310 = vrot.slane %v309, 2
  %v311 = vadd.f32 %v309, %v310
  %v312 = vrot.slane %v311, 1
  %v313 = vadd.f32 %v311, %v312
  %v314 = vmul.f32 %v313, %v243
  %v315 = vadd.f32 %v314, 1e-05
  %v316 = vrsqrt.pop %v315
  %v317 = vmul.f32 %v204, %v316
  %v318 = vmul.f32 %v244, %v317
  %v319 = vsub.f32 %v205, %v318
  %v321 = vlaneseq
  %v322 = vshrl.u32 %v321, 7
  %v323 = vsub.s32 0, %v322
  %v324 = vrot.slane %v317, %v323
  %v326 = vmul.f32 %v142, %v324
  %v327 = vmul.f32 %v145, %v324
  %v328 = vmul.f32 %v150, %v324
  %v329 = vmul.f32 %v153, %v324
  %v330 = vmul.f32 %v158, %v324
  %v331 = vmul.f32 %v161, %v324
  %v332 = vmul.f32 %v166, %v324
  %v333 = vmul.f32 %v169, %v324
  %v334 = vmul.f32 %v174, %v324
  %v335 = vmul.f32 %v177, %v324
  %v336 = vmul.f32 %v182, %v324
  %v337 = vmul.f32 %v185, %v324
  %v338 = vmul.f32 %v190, %v324
  %v339 = vmul.f32 %v193, %v324
  %v340 = vmul.f32 %v198, %v324
  %v341 = vmul.f32 %v201, %v324
  %v343 = vlaneseq
  %v344 = vshrl.u32 %v343, 7
  %v345 = vsub.s32 0, %v344
  %v346 = vrot.slane %v319, %v345
  %v348 = vadd.f32 %v326, %v346
  %v349 = vadd.f32 %v327, %v346
  %v350 = vadd.f32 %v328, %v346
  %v351 = vadd.f32 %v329, %v346
  %v352 = vadd.f32 %v330, %v346
  %v353 = vadd.f32 %v331, %v346
  %v354 = vadd.f32 %v332, %v346
  %v355 = vadd.f32 %v333, %v346
  %v356 = vadd.f32 %v334, %v346
  %v357 = vadd.f32 %v335, %v346
  %v358 = vadd.f32 %v336, %v346
  %v359 = vadd.f32 %v337, %v346
  %v360 = vadd.f32 %v338, %v346
  %v361 = vadd.f32 %v339, %v346
  %v362 = vadd.f32 %v340, %v346
  %v363 = vadd.f32 %v341, %v346
  %v364 = vld [vmem:[%s4] sm:$0xff]
  %v365 = vld [vmem:[%s4 + $0x8] sm:$0xff]
  %v366 = vld [vmem:[%s4 + $0x10] sm:$0xff]
  %v367 = vld [vmem:[%s4 + $0x18] sm:$0xff]
  %v368 = vld [vmem:[%s4 + $0x20] sm:$0xff]
  %v369 = vld [vmem:[%s4 + $0x28] sm:$0xff]
  %v370 = vld [vmem:[%s4 + $0x30] sm:$0xff]
  %v371 = vld [vmem:[%s4 + $0x38] sm:$0xff]
  %v372 = vld [vmem:[%s4 + $0x40] sm:$0xff]
  %v373 = vld [vmem:[%s4 + $0x48] sm:$0xff]
  %v374 = vld [vmem:[%s4 + $0x50] sm:$0xff]
  %v375 = vld [vmem:[%s4 + $0x58] sm:$0xff]
  %v376 = vld [vmem:[%s4 + $0x60] sm:$0xff]
  %v377 = vld [vmem:[%s4 + $0x68] sm:$0xff]
  %v378 = vld [vmem:[%s4 + $0x70] sm:$0xff]
  %v379 = vld [vmem:[%s4 + $0x78] sm:$0xff]
  %v380 = vadd.f32 %v348, %v364
  %v381 = vadd.f32 %v349, %v365
  %v382 = vadd.f32 %v350, %v366
  %v383 = vadd.f32 %v351, %v367
  %v384 = vadd.f32 %v352, %v368
  %v385 = vadd.f32 %v353, %v369
  %v386 = vadd.f32 %v354, %v370
  %v387 = vadd.f32 %v355, %v371
  %v388 = vadd.f32 %v356, %v372
  %v389 = vadd.f32 %v357, %v373
  %v390 = vadd.f32 %v358, %v374
  %v391 = vadd.f32 %v359, %v375
  %v392 = vadd.f32 %v360, %v376
  %v393 = vadd.f32 %v361, %v377
  %v394 = vadd.f32 %v362, %v378
  %v395 = vadd.f32 %v363, %v379
  %v396 = vmax.f32 %v380, 0.0
  %v397 = vmax.f32 %v381, 0.0
  %v398 = vmax.f32 %v382, 0.0
  %v399 = vmax.f32 %v383, 0.0
  %v400 = vmax.f32 %v384, 0.0
  %v401 = vmax.f32 %v385, 0.0
  %v402 = vmax.f32 %v386, 0.0
  %v403 = vmax.f32 %v387, 0.0
  %v404 = vmax.f32 %v388, 0.0
  %v405 = vmax.f32 %v389, 0.0
  %v406 = vmax.f32 %v390, 0.0
  %v407 = vmax.f32 %v391, 0.0
  %v408 = vmax.f32 %v392, 0.0
  %v409 = vmax.f32 %v393, 0.0
  %v410 = vmax.f32 %v394, 0.0
  %v411 = vmax.f32 %v395, 0.0
  %412 = vst.msk [vmem:[%s5] sm:$0xff] %vm78, %v396
  %413 = vst.msk [vmem:[%s5 + $0x8] sm:$0xff] %vm78, %v397
  %414 = vst.msk [vmem:[%s5 + $0x10] sm:$0xff] %vm78, %v398
  %415 = vst.msk [vmem:[%s5 + $0x18] sm:$0xff] %vm78, %v399
  %416 = vst.msk [vmem:[%s5 + $0x20] sm:$0xff] %vm78, %v400
  %417 = vst.msk [vmem:[%s5 + $0x28] sm:$0xff] %vm78, %v401
  %418 = vst.msk [vmem:[%s5 + $0x30] sm:$0xff] %vm78, %v402
  %419 = vst.msk [vmem:[%s5 + $0x38] sm:$0xff] %vm78, %v403
  %420 = vst.msk [vmem:[%s5 + $0x40] sm:$0xff] %vm78, %v404
  %421 = vst.msk [vmem:[%s5 + $0x48] sm:$0xff] %vm78, %v405
  %422 = vst.msk [vmem:[%s5 + $0x50] sm:$0xff] %vm78, %v406
  %423 = vst.msk [vmem:[%s5 + $0x58] sm:$0xff] %vm78, %v407
  %424 = vst.msk [vmem:[%s5 + $0x60] sm:$0xff] %vm78, %v408
  %425 = vst.msk [vmem:[%s5 + $0x68] sm:$0xff] %vm78, %v409
  %426 = vst.msk [vmem:[%s5 + $0x70] sm:$0xff] %vm78, %v410
  %427 = vst.msk [vmem:[%s5 + $0x78] sm:$0xff] %vm78, %v411
  // Predicated region
  $region22: #{inception_res_forward.13} parent=0 // pred_check
    _
  $region23: #{inception_res_forward.13} parent=0 // pred_check_branch
    %429 = sbr.rel (0) target = $region25
  $region24: #{inception_res_forward.13} parent=0 // pred_region
    _
  $region25: #{inception_res_forward.13} parent=0 // pred_fallthru
    _
  // Predicated region
  $region26: #{inception_res_forward.13} parent=0 // pred_check
    _
  $region27: #{inception_res_forward.13} parent=0 // pred_check_branch
    %431 = sbr.rel (0) target = $region29
  $region28: #{inception_res_forward.13} parent=0 // pred_region
    _
  $region29: #{inception_res_forward.13} parent=0 // pred_fallthru
    _

// kernel: inception_res_forward.14
$region0: #{inception_res_forward.14}
  #allocation0 [shape = 'u32[]', space=smem, size = 0x4, offset = 0x4, fixed_abs, tag = 'smem constant byte address 0x4 - core index']
  #allocation1 [shape = 'u32[144,128]{1,0:T(1,128)}', space=vmem, size = 0x12000, scoped, tag = 'internal scratch']
  %s0 = inlined_call_operand.vmem [shape: bf16[32,100], index: 0, kind: input, shape index: {}]
  %s1 = inlined_call_operand.vmem [shape: bf16[100,16], index: 1, kind: input, shape index: {}]
  %s2 = inlined_call_operand.vmem [shape: f32[1,16], index: 2, kind: input, shape index: {}]
  %s3 = inlined_call_operand.vmem [shape: f32[1,16], index: 3, kind: input, shape index: {}]
  %s4 = inlined_call_operand.vmem [shape: f32[32,16], index: 4, kind: output, shape index: {}]
  %s5 = sld [smem:[#allocation0]]
  $region26: #{inception_res_forward.14} parent=0
    _
  %s7 = ssub.s32 1, %s5
  %s8 = scalar_select 0, %s7, %s5
  // Predicated region
  $region2: #{inception_res_forward.14} parent=0 // pred_check
    _
  $region3: #{inception_res_forward.14} parent=0 // pred_check_branch
    %10 = sbr.rel (0) target = $region5
  $region4: #{inception_res_forward.14} parent=0 // pred_region
    _
  $region5: #{inception_res_forward.14} parent=0 // pred_fallthru
    _
  // Predicated region
  $region6: #{inception_res_forward.14} parent=0 // pred_check
    _
  $region7: #{inception_res_forward.14} parent=0 // pred_check_branch
    %12 = sbr.rel (0) target = $region9
  $region8: #{inception_res_forward.14} parent=0 // pred_region
    _
  $region9: #{inception_res_forward.14} parent=0 // pred_fallthru
    _
  // Predicated region
  $region10: #{inception_res_forward.14} parent=0 // pred_check
    _
  $region11: #{inception_res_forward.14} parent=0 // pred_check_branch
    %14 = sbr.rel (0) target = $region13
  $region12: #{inception_res_forward.14} parent=0 // pred_region
    _
  $region13: #{inception_res_forward.14} parent=0 // pred_fallthru
    _
  // Predicated region
  $region14: #{inception_res_forward.14} parent=0 // pred_check
    _
  $region15: #{inception_res_forward.14} parent=0 // pred_check_branch
    %16 = sbr.rel (0) target = $region17
  $region16: #{inception_res_forward.14} parent=0 // pred_region
    _
  $region17: #{inception_res_forward.14} parent=0 // pred_fallthru
    _
  %v18 = vld [vmem:[%s0] sm:$0xf]
  %v19 = vld [vmem:[%s0 + $0x4] sm:$0xf]
  %v20 = vld [vmem:[%s0 + $0x8] sm:$0xf]
  %v21 = vld [vmem:[%s0 + $0xc] sm:$0xf]
  %v22 = vld [vmem:[%s1] sm:$0xf]
  %v23 = vld [vmem:[%s1 + $0x4] sm:$0xf]
  %v24 = vld [vmem:[%s1 + $0x8] sm:$0xf]
  %v25 = vld [vmem:[%s1 + $0xc] sm:$0xf]
  %v26 = vld [vmem:[%s1 + $0x10] sm:$0xf]
  %v27 = vld [vmem:[%s1 + $0x14] sm:$0xf]
  %v28 = vld [vmem:[%s1 + $0x18] sm:$0xf]
  %v29 = vld [vmem:[%s1 + $0x1c] sm:$0xf]
  %v30 = vld [vmem:[%s1 + $0x20] sm:$0xf]
  %v31 = vld [vmem:[%s1 + $0x24] sm:$0xf]
  %v32 = vld [vmem:[%s1 + $0x28] sm:$0xf]
  %v33 = vld [vmem:[%s1 + $0x2c] sm:$0xf]
  %v34 = vld [vmem:[%s1 + $0x30] sm:$0x3]
  %v39 = vunpack.c.l.b16 %v18
  %v40 = vunpack.c.l.b16 %v19
  %v41 = vunpack.c.l.b16 %v20
  %v42 = vunpack.c.l.b16 %v21
  %v43 = vpack.c.b16 %v40, %v39
  %v44 = vpack.c.b16 %v42, %v41
  %v58 = vunpack.c.l.b16 %v22
  %v59 = vunpack.c.l.b16 %v23
  %v60 = vunpack.c.l.b16 %v24
  %v61 = vunpack.c.l.b16 %v25
  %v62 = vunpack.c.l.b16 %v26
  %v63 = vunpack.c.l.b16 %v27
  %v64 = vunpack.c.l.b16 %v28
  %v65 = vunpack.c.l.b16 %v29
  %v66 = vunpack.c.l.b16 %v30
  %v67 = vunpack.c.l.b16 %v31
  %v68 = vunpack.c.l.b16 %v32
  %v69 = vunpack.c.l.b16 %v33
  %v70 = vunpack.c.l.b16 %v34
  %v71 = vpack.c.b16 %v59, %v58
  %v72 = vpack.c.b16 %v61, %v60
  %v73 = vpack.c.b16 %v63, %v62
  %v74 = vpack.c.b16 %v65, %v64
  %v75 = vpack.c.b16 %v67, %v66
  %v76 = vpack.c.b16 %v69, %v68
  %v77 = vpack.c.b16 %v70, %v70
  %vm84 = vcmask 818176
  %v86 = vsel %vm84, %v43, 0
  %v89 = vsel %vm84, %v44, 0
  %vm91 = vcmask 1041408
  %v93 = vsel %vm91, %v77, 0
  %95 = vmatprep.subr.bf16.mxu0 0
  %96 = vmatpush1.bf16.msra.mxu0 0
  %97 = vmatprep.subr.bf16.mxu0 0
  %98 = vmatpush1.bf16.msra.mxu0 %v93
  %99 = vmatprep.subr.bf16.mxu0 0
  %100 = vmatpush1.bf16.msra.mxu0 %v76
  %101 = vmatprep.subr.bf16.mxu0 0
  %102 = vmatpush1.bf16.msra.mxu0 %v75
  %103 = vmatprep.subr.bf16.mxu0 0
  %104 = vmatpush1.bf16.msra.mxu0 %v74
  %105 = vmatprep.subr.bf16.mxu0 0
  %106 = vmatpush1.bf16.msra.mxu0 %v73
  %107 = vmatprep.subr.bf16.mxu0 0
  %108 = vmatpush1.bf16.msra.mxu0 %v72
  %109 = vmatprep.subr.bf16.mxu0 0
  %110 = vmatpush1.bf16.msra.mxu0 %v71
  %111 = vmatprep.subr.bf16.mxu0 0
  %112 = vmatpush2.bf16.msra.mxu0 0
  %113 = vmatprep.subr.bf16.mxu0 0
  %114 = vmatpush2.bf16.msra.mxu0 0
  %115 = vmatprep.subr.bf16.mxu0 0
  %116 = vmatpush2.bf16.msra.mxu0 0
  %117 = vmatprep.subr.bf16.mxu0 0
  %118 = vmatpush2.bf16.msra.mxu0 0
  %119 = vmatprep.subr.bf16.mxu0 0
  %120 = vmatpush2.bf16.msra.mxu0 0
  %121 = vmatprep.subr.bf16.mxu0 0
  %122 = vmatpush2.bf16.msra.mxu0 0
  %123 = vmatprep.subr.bf16.mxu0 0
  %124 = vmatpush2.bf16.msra.mxu0 0
  %125 = vmatprep.subr.bf16.mxu0 0
  %126 = vmatpush2.bf16.msra.mxu0 0
  %127 = vmatprep.mubr.bf16.mxu0 0
  %128 = vmatmul.mubr.bf16.gmra.mxu0 %v86
  %v129 = vpop.f32.mrf.mxu0
  %v130 = vadd.f32 0.0, %v129
  %v131 = vpop.f32.mrf.mxu0
  %v132 = vpop.f32.mrf.mxu0
  %v133 = vadd.f32 0.0, %v132
  %v134 = vpop.f32.mrf.mxu0
  %135 = vmatprep.mubr.bf16.mxu0 0
  %136 = vmatmul.mubr.bf16.gmra.mxu0 %v89
  %v137 = vpop.f32.mrf.mxu0
  %v138 = vadd.f32 0.0, %v137
  %v139 = vpop.f32.mrf.mxu0
  %v140 = vpop.f32.mrf.mxu0
  %v141 = vadd.f32 0.0, %v140
  %v142 = vpop.f32.mrf.mxu0
  %143 = vdwg.mxu0
  %v144 = vld [vmem:[%s2] sm:$0x1]
  %v145 = vld [vmem:[%s3] sm:$0x1]
  %vm146 = vcmask 130048
  %v147 = vsel %vm146, %v130, 0.0
  %v148 = vsel %vm146, %v133, 0.0
  %v149 = vadd.f32 %v147, %v148
  %v150 = vsel %vm146, %v138, 0.0
  %v151 = vadd.f32 %v149, %v150
  %v152 = vsel %vm146, %v141, 0.0
  %v153 = vadd.f32 %v151, %v152
  %v154 = vrot.slane %v153, 4
  %v155 = vadd.f32 %v153, %v154
  %v156 = vrot.slane %v155, 2
  %v157 = vadd.f32 %v155, %v156
  %v158 = vrot.slane %v157, 1
  %v159 = vadd.f32 %v157, %v158
  %v160 = vrcp.pop 32.0
  %v161 = vmul.f32 %v159, %v160
  %v162 = vsub.f32 %v130, %v161
  %v163 = vsub.f32 %v133, %v161
  %v164 = vsub.f32 %v138, %v161
  %v165 = vsub.f32 %v141, %v161
  %v166 = vmul.f32 %v162, %v162
  %v167 = vmul.f32 %v163, %v163
  %v168 = vmul.f32 %v164, %v164
  %v169 = vmul.f32 %v165, %v165
  %v170 = vsel %vm146, %v166, 0.0
  %v171 = vsel %vm146, %v167, 0.0
  %v172 = vadd.f32 %v170, %v171
  %v173 = vsel %vm146, %v168, 0.0
  %v174 = vadd.f32 %v172, %v173
  %v175 = vsel %vm146, %v169, 0.0
  %v176 = vadd.f32 %v174, %v175
  %v177 = vrot.slane %v176, 4
  %v178 = vadd.f32 %v176, %v177
  %v179 = vrot.slane %v178, 2
  %v180 = vadd.f32 %v178, %v179
  %v181 = vrot.slane %v180, 1
  %v182 = vadd.f32 %v180, %v181
  %v183 = vmul.f32 %v182, %v160
  %v184 = vadd.f32 %v183, 1e-05
  %v185 = vrsqrt.pop %v184
  %v186 = vmul.f32 %v144, %v185
  %v187 = vmul.f32 %v161, %v186
  %v188 = vsub.f32 %v145, %v187
  %v190 = vlaneseq
  %v191 = vshrl.u32 %v190, 7
  %v192 = vsub.s32 0, %v191
  %v193 = vrot.slane %v186, %v192
  %v195 = vmul.f32 %v130, %v193
  %v196 = vmul.f32 %v133, %v193
  %v197 = vmul.f32 %v138, %v193
  %v198 = vmul.f32 %v141, %v193
  %v200 = vlaneseq
  %v201 = vshrl.u32 %v200, 7
  %v202 = vsub.s32 0, %v201
  %v203 = vrot.slane %v188, %v202
  %v205 = vadd.f32 %v195, %v203
  %v206 = vadd.f32 %v196, %v203
  %v207 = vadd.f32 %v197, %v203
  %v208 = vadd.f32 %v198, %v203
  %v209 = vlaneseq
  %v210 = vand.u32 %v209, 127
  %vm211 = vcmp.lt.s32.totalorder %v210, 8
  %v212 = vmax.f32 %v205, 0.0
  %v213 = vmax.f32 %v206, 0.0
  %v214 = vmax.f32 %v207, 0.0
  %v215 = vmax.f32 %v208, 0.0
  %v216 = vsel %vm211, %v212, %v205
  %v217 = vsel %vm211, %v213, %v206
  %v218 = vsel %vm211, %v214, %v207
  %v219 = vsel %vm211, %v215, %v208
  %220 = vst.msk [vmem:[%s4] sm:$0xff] %vm146, %v216
  %221 = vst.msk [vmem:[%s4 + $0x8] sm:$0xff] %vm146, %v217
  %222 = vst.msk [vmem:[%s4 + $0x10] sm:$0xff] %vm146, %v218
  %223 = vst.msk [vmem:[%s4 + $0x18] sm:$0xff] %vm146, %v219
  // Predicated region
  $region18: #{inception_res_forward.14} parent=0 // pred_check
    _
  $region19: #{inception_res_forward.14} parent=0 // pred_check_branch
    %225 = sbr.rel (0) target = $region21
  $region20: #{inception_res_forward.14} parent=0 // pred_region
    _
  $region21: #{inception_res_forward.14} parent=0 // pred_fallthru
    _
  // Predicated region
  $region22: #{inception_res_forward.14} parent=0 // pred_check
    _
  $region23: #{inception_res_forward.14} parent=0 // pred_check_branch
    %227 = sbr.rel (0) target = $region25
  $region24: #{inception_res_forward.14} parent=0 // pred_region
    _
  $region25: #{inception_res_forward.14} parent=0 // pred_fallthru
    _

// kernel: inception_res_forward.11
$region0: #{inception_res_forward.11}
  #allocation0 [shape = 'u32[]', space=smem, size = 0x4, offset = 0x4, fixed_abs, tag = 'smem constant byte address 0x4 - core index']
  #allocation1 [shape = 'u32[144,128]{1,0:T(1,128)}', space=vmem, size = 0x12000, scoped, tag = 'internal scratch']
  %s0 = inlined_call_operand.vmem [shape: bf16[162,4], index: 0, kind: input, shape index: {}]
  %s1 = inlined_call_operand.vmem [shape: bf16[4,16], index: 1, kind: input, shape index: {}]
  %s2 = inlined_call_operand.vmem [shape: f32[1,16], index: 2, kind: input, shape index: {}]
  %s3 = inlined_call_operand.vmem [shape: f32[1,16], index: 3, kind: input, shape index: {}]
  %s4 = inlined_call_operand.vmem [shape: f32[162,16], index: 4, kind: output, shape index: {}]
  %s5 = sld [smem:[#allocation0]]
  $region26: #{inception_res_forward.11} parent=0
    _
  %s7 = ssub.s32 1, %s5
  %s8 = scalar_select 0, %s7, %s5
  // Predicated region
  $region2: #{inception_res_forward.11} parent=0 // pred_check
    _
  $region3: #{inception_res_forward.11} parent=0 // pred_check_branch
    %10 = sbr.rel (0) target = $region5
  $region4: #{inception_res_forward.11} parent=0 // pred_region
    _
  $region5: #{inception_res_forward.11} parent=0 // pred_fallthru
    _
  // Predicated region
  $region6: #{inception_res_forward.11} parent=0 // pred_check
    _
  $region7: #{inception_res_forward.11} parent=0 // pred_check_branch
    %12 = sbr.rel (0) target = $region9
  $region8: #{inception_res_forward.11} parent=0 // pred_region
    _
  $region9: #{inception_res_forward.11} parent=0 // pred_fallthru
    _
  // Predicated region
  $region10: #{inception_res_forward.11} parent=0 // pred_check
    _
  $region11: #{inception_res_forward.11} parent=0 // pred_check_branch
    %14 = sbr.rel (0) target = $region13
  $region12: #{inception_res_forward.11} parent=0 // pred_region
    _
  $region13: #{inception_res_forward.11} parent=0 // pred_fallthru
    _
  // Predicated region
  $region14: #{inception_res_forward.11} parent=0 // pred_check
    _
  $region15: #{inception_res_forward.11} parent=0 // pred_check_branch
    %16 = sbr.rel (0) target = $region17
  $region16: #{inception_res_forward.11} parent=0 // pred_region
    _
  $region17: #{inception_res_forward.11} parent=0 // pred_fallthru
    _
  %v18 = vld [vmem:[%s0] sm:$0xf]
  %v19 = vld [vmem:[%s0 + $0x4] sm:$0xf]
  %v20 = vld [vmem:[%s0 + $0x8] sm:$0xf]
  %v21 = vld [vmem:[%s0 + $0xc] sm:$0xf]
  %v22 = vld [vmem:[%s0 + $0x10] sm:$0xf]
  %v23 = vld [vmem:[%s0 + $0x14] sm:$0xf]
  %v24 = vld [vmem:[%s0 + $0x18] sm:$0xf]
  %v25 = vld [vmem:[%s0 + $0x1c] sm:$0xf]
  %v26 = vld [vmem:[%s0 + $0x20] sm:$0xf]
  %v27 = vld [vmem:[%s0 + $0x24] sm:$0xf]
  %v28 = vld [vmem:[%s0 + $0x28] sm:$0xf]
  %v29 = vld [vmem:[%s0 + $0x2c] sm:$0xf]
  %v30 = vld [vmem:[%s0 + $0x30] sm:$0xf]
  %v31 = vld [vmem:[%s0 + $0x34] sm:$0xf]
  %v32 = vld [vmem:[%s0 + $0x38] sm:$0xf]
  %v33 = vld [vmem:[%s0 + $0x3c] sm:$0xf]
  %v34 = vld [vmem:[%s0 + $0x40] sm:$0xf]
  %v35 = vld [vmem:[%s0 + $0x44] sm:$0xf]
  %v36 = vld [vmem:[%s0 + $0x48] sm:$0xf]
  %v37 = vld [vmem:[%s0 + $0x4c] sm:$0xf]
  %v38 = vld [vmem:[%s0 + $0x50] sm:$0x1]
  %v39 = vld [vmem:[%s1] sm:$0x3]
  %v61 = vunpack.c.l.b16 %v18
  %v62 = vunpack.c.l.b16 %v19
  %v63 = vunpack.c.l.b16 %v20
  %v64 = vunpack.c.l.b16 %v21
  %v65 = vunpack.c.l.b16 %v22
  %v66 = vunpack.c.l.b16 %v23
  %v67 = vunpack.c.l.b16 %v24
  %v68 = vunpack.c.l.b16 %v25
  %v69 = vunpack.c.l.b16 %v26
  %v70 = vunpack.c.l.b16 %v27
  %v71 = vunpack.c.l.b16 %v28
  %v72 = vunpack.c.l.b16 %v29
  %v73 = vunpack.c.l.b16 %v30
  %v74 = vunpack.c.l.b16 %v31
  %v75 = vunpack.c.l.b16 %v32
  %v76 = vunpack.c.l.b16 %v33
  %v77 = vunpack.c.l.b16 %v34
  %v78 = vunpack.c.l.b16 %v35
  %v79 = vunpack.c.l.b16 %v36
  %v80 = vunpack.c.l.b16 %v37
  %v81 = vunpack.c.l.b16 %v38
  %v82 = vpack.c.b16 %v62, %v61
  %v83 = vpack.c.b16 %v64, %v63
  %v84 = vpack.c.b16 %v66, %v65
  %v85 = vpack.c.b16 %v68, %v67
  %v86 = vpack.c.b16 %v70, %v69
  %v87 = vpack.c.b16 %v72, %v71
  %v88 = vpack.c.b16 %v74, %v73
  %v89 = vpack.c.b16 %v76, %v75
  %v90 = vpack.c.b16 %v78, %v77
  %v91 = vpack.c.b16 %v80, %v79
  %v92 = vpack.c.b16 %v81, %v81
  %vm93 = vcmask 31744
  %v95 = vsel %vm93, %v82, 0
  %v98 = vsel %vm93, %v83, 0
  %v101 = vsel %vm93, %v84, 0
  %v104 = vsel %vm93, %v85, 0
  %v107 = vsel %vm93, %v86, 0
  %v110 = vsel %vm93, %v87, 0
  %v113 = vsel %vm93, %v88, 0
  %v116 = vsel %vm93, %v89, 0
  %v119 = vsel %vm93, %v90, 0
  %v122 = vsel %vm93, %v91, 0
  %v125 = vsel %vm93, %v92, 0
  %vm127 = vcmask 1041408
  %v129 = vsel %vm127, %v39, 0
  %131 = vmatprep.subr.bf16.mxu0 0
  %132 = vmatpush1.bf16.msra.mxu0 0
  %133 = vmatprep.subr.bf16.mxu0 0
  %134 = vmatpush1.bf16.msra.mxu0 0
  %135 = vmatprep.subr.bf16.mxu0 0
  %136 = vmatpush1.bf16.msra.mxu0 0
  %137 = vmatprep.subr.bf16.mxu0 0
  %138 = vmatpush1.bf16.msra.mxu0 0
  %139 = vmatprep.subr.bf16.mxu0 0
  %140 = vmatpush1.bf16.msra.mxu0 0
  %141 = vmatprep.subr.bf16.mxu0 0
  %142 = vmatpush1.bf16.msra.mxu0 0
  %143 = vmatprep.subr.bf16.mxu0 0
  %144 = vmatpush1.bf16.msra.mxu0 0
  %145 = vmatprep.subr.bf16.mxu0 0
  %146 = vmatpush1.bf16.msra.mxu0 %v129
  %147 = vmatprep.subr.bf16.mxu0 0
  %148 = vmatpush2.bf16.msra.mxu0 0
  %149 = vmatprep.subr.bf16.mxu0 0
  %150 = vmatpush2.bf16.msra.mxu0 0
  %151 = vmatprep.subr.bf16.mxu0 0
  %152 = vmatpush2.bf16.msra.mxu0 0
  %153 = vmatprep.subr.bf16.mxu0 0
  %154 = vmatpush2.bf16.msra.mxu0 0
  %155 = vmatprep.subr.bf16.mxu0 0
  %156 = vmatpush2.bf16.msra.mxu0 0
  %157 = vmatprep.subr.bf16.mxu0 0
  %158 = vmatpush2.bf16.msra.mxu0 0
  %159 = vmatprep.subr.bf16.mxu0 0
  %160 = vmatpush2.bf16.msra.mxu0 0
  %161 = vmatprep.subr.bf16.mxu0 0
  %162 = vmatpush2.bf16.msra.mxu0 0
  %163 = vmatprep.mubr.bf16.mxu0 0
  %164 = vmatmul.mubr.bf16.gmra.mxu0 %v95
  %v165 = vpop.f32.mrf.mxu0
  %v166 = vadd.f32 0.0, %v165
  %v167 = vpop.f32.mrf.mxu0
  %v168 = vpop.f32.mrf.mxu0
  %v169 = vadd.f32 0.0, %v168
  %v170 = vpop.f32.mrf.mxu0
  %171 = vmatprep.mubr.bf16.mxu0 0
  %172 = vmatmul.mubr.bf16.gmra.mxu0 %v98
  %v173 = vpop.f32.mrf.mxu0
  %v174 = vadd.f32 0.0, %v173
  %v175 = vpop.f32.mrf.mxu0
  %v176 = vpop.f32.mrf.mxu0
  %v177 = vadd.f32 0.0, %v176
  %v178 = vpop.f32.mrf.mxu0
  %179 = vmatprep.mubr.bf16.mxu0 0
  %180 = vmatmul.mubr.bf16.gmra.mxu0 %v101
  %v181 = vpop.f32.mrf.mxu0
  %v182 = vadd.f32 0.0, %v181
  %v183 = vpop.f32.mrf.mxu0
  %v184 = vpop.f32.mrf.mxu0
  %v185 = vadd.f32 0.0, %v184
  %v186 = vpop.f32.mrf.mxu0
  %187 = vmatprep.mubr.bf16.mxu0 0
  %188 = vmatmul.mubr.bf16.gmra.mxu0 %v104
  %v189 = vpop.f32.mrf.mxu0
  %v190 = vadd.f32 0.0, %v189
  %v191 = vpop.f32.mrf.mxu0
  %v192 = vpop.f32.mrf.mxu0
  %v193 = vadd.f32 0.0, %v192
  %v194 = vpop.f32.mrf.mxu0
  %195 = vmatprep.mubr.bf16.mxu0 0
  %196 = vmatmul.mubr.bf16.gmra.mxu0 %v107
  %v197 = vpop.f32.mrf.mxu0
  %v198 = vadd.f32 0.0, %v197
  %v199 = vpop.f32.mrf.mxu0
  %v200 = vpop.f32.mrf.mxu0
  %v201 = vadd.f32 0.0, %v200
  %v202 = vpop.f32.mrf.mxu0
  %203 = vmatprep.mubr.bf16.mxu0 0
  %204 = vmatmul.mubr.bf16.gmra.mxu0 %v110
  %v205 = vpop.f32.mrf.mxu0
  %v206 = vadd.f32 0.0, %v205
  %v207 = vpop.f32.mrf.mxu0
  %v208 = vpop.f32.mrf.mxu0
  %v209 = vadd.f32 0.0, %v208
  %v210 = vpop.f32.mrf.mxu0
  %211 = vmatprep.mubr.bf16.mxu0 0
  %212 = vmatmul.mubr.bf16.gmra.mxu0 %v113
  %v213 = vpop.f32.mrf.mxu0
  %v214 = vadd.f32 0.0, %v213
  %v215 = vpop.f32.mrf.mxu0
  %v216 = vpop.f32.mrf.mxu0
  %v217 = vadd.f32 0.0, %v216
  %v218 = vpop.f32.mrf.mxu0
  %219 = vmatprep.mubr.bf16.mxu0 0
  %220 = vmatmul.mubr.bf16.gmra.mxu0 %v116
  %v221 = vpop.f32.mrf.mxu0
  %v222 = vadd.f32 0.0, %v221
  %v223 = vpop.f32.mrf.mxu0
  %v224 = vpop.f32.mrf.mxu0
  %v225 = vadd.f32 0.0, %v224
  %v226 = vpop.f32.mrf.mxu0
  %227 = vmatprep.mubr.bf16.mxu0 0
  %228 = vmatmul.mubr.bf16.gmra.mxu0 %v119
  %v229 = vpop.f32.mrf.mxu0
  %v230 = vadd.f32 0.0, %v229
  %v231 = vpop.f32.mrf.mxu0
  %v232 = vpop.f32.mrf.mxu0
  %v233 = vadd.f32 0.0, %v232
  %v234 = vpop.f32.mrf.mxu0
  %235 = vmatprep.mubr.bf16.mxu0 0
  %236 = vmatmul.mubr.bf16.gmra.mxu0 %v122
  %v237 = vpop.f32.mrf.mxu0
  %v238 = vadd.f32 0.0, %v237
  %v239 = vpop.f32.mrf.mxu0
  %v240 = vpop.f32.mrf.mxu0
  %v241 = vadd.f32 0.0, %v240
  %v242 = vpop.f32.mrf.mxu0
  %243 = vmatprep.mubr.bf16.mxu0 0
  %244 = vmatmul.mubr.bf16.gmra.mxu0 %v125
  %v245 = vpop.f32.mrf.mxu0
  %v246 = vadd.f32 0.0, %v245
  %v247 = vpop.f32.mrf.mxu0
  %v248 = vpop.f32.mrf.mxu0
  %v249 = vpop.f32.mrf.mxu0
  %250 = vdwg.mxu0
  %v251 = vld [vmem:[%s2] sm:$0x1]
  %v252 = vld [vmem:[%s3] sm:$0x1]
  %vm253 = vcmask 130048
  %v254 = vsel %vm253, %v166, 0.0
  %v255 = vsel %vm253, %v169, 0.0
  %v256 = vadd.f32 %v254, %v255
  %v257 = vsel %vm253, %v174, 0.0
  %v258 = vadd.f32 %v256, %v257
  %v259 = vsel %vm253, %v177, 0.0
  %v260 = vadd.f32 %v258, %v259
  %v261 = vsel %vm253, %v182, 0.0
  %v262 = vadd.f32 %v260, %v261
  %v263 = vsel %vm253, %v185, 0.0
  %v264 = vadd.f32 %v262, %v263
  %v265 = vsel %vm253, %v190, 0.0
  %v266 = vadd.f32 %v264, %v265
  %v267 = vsel %vm253, %v193, 0.0
  %v268 = vadd.f32 %v266, %v267
  %v269 = vsel %vm253, %v198, 0.0
  %v270 = vadd.f32 %v268, %v269
  %v271 = vsel %vm253, %v201, 0.0
  %v272 = vadd.f32 %v270, %v271
  %v273 = vsel %vm253, %v206, 0.0
  %v274 = vadd.f32 %v272, %v273
  %v275 = vsel %vm253, %v209, 0.0
  %v276 = vadd.f32 %v274, %v275
  %v277 = vsel %vm253, %v214, 0.0
  %v278 = vadd.f32 %v276, %v277
  %v279 = vsel %vm253, %v217, 0.0
  %v280 = vadd.f32 %v278, %v279
  %v281 = vsel %vm253, %v222, 0.0
  %v282 = vadd.f32 %v280, %v281
  %v283 = vsel %vm253, %v225, 0.0
  %v284 = vadd.f32 %v282, %v283
  %v285 = vsel %vm253, %v230, 0.0
  %v286 = vadd.f32 %v284, %v285
  %v287 = vsel %vm253, %v233, 0.0
  %v288 = vadd.f32 %v286, %v287
  %v289 = vsel %vm253, %v238, 0.0
  %v290 = vadd.f32 %v288, %v289
  %v291 = vsel %vm253, %v241, 0.0
  %v292 = vadd.f32 %v290, %v291
  %vm293 = vcmask 123904
  %v294 = vsel %vm293, %v246, 0.0
  %v295 = vadd.f32 %v292, %v294
  %v296 = vrot.slane %v295, 4
  %v297 = vadd.f32 %v295, %v296
  %v298 = vrot.slane %v297, 2
  %v299 = vadd.f32 %v297, %v298
  %v300 = vrot.slane %v299, 1
  %v301 = vadd.f32 %v299, %v300
  %v302 = vrcp.pop 162.0
  %v303 = vmul.f32 %v301, %v302
  %v304 = vsub.f32 %v166, %v303
  %v305 = vsub.f32 %v169, %v303
  %v306 = vsub.f32 %v174, %v303
  %v307 = vsub.f32 %v177, %v303
  %v308 = vsub.f32 %v182, %v303
  %v309 = vsub.f32 %v185, %v303
  %v310 = vsub.f32 %v190, %v303
  %v311 = vsub.f32 %v193, %v303
  %v312 = vsub.f32 %v198, %v303
  %v313 = vsub.f32 %v201, %v303
  %v314 = vsub.f32 %v206, %v303
  %v315 = vsub.f32 %v209, %v303
  %v316 = vsub.f32 %v214, %v303
  %v317 = vsub.f32 %v217, %v303
  %v318 = vsub.f32 %v222, %v303
  %v319 = vsub.f32 %v225, %v303
  %v320 = vsub.f32 %v230, %v303
  %v321 = vsub.f32 %v233, %v303
  %v322 = vsub.f32 %v238, %v303
  %v323 = vsub.f32 %v241, %v303
  %v324 = vsub.f32 %v246, %v303
  %v325 = vmul.f32 %v304, %v304
  %v326 = vmul.f32 %v305, %v305
  %v327 = vmul.f32 %v306, %v306
  %v328 = vmul.f32 %v307, %v307
  %v329 = vmul.f32 %v308, %v308
  %v330 = vmul.f32 %v309, %v309
  %v331 = vmul.f32 %v310, %v310
  %v332 = vmul.f32 %v311, %v311
  %v333 = vmul.f32 %v312, %v312
  %v334 = vmul.f32 %v313, %v313
  %v335 = vmul.f32 %v314, %v314
  %v336 = vmul.f32 %v315, %v315
  %v337 = vmul.f32 %v316, %v316
  %v338 = vmul.f32 %v317, %v317
  %v339 = vmul.f32 %v318, %v318
  %v340 = vmul.f32 %v319, %v319
  %v341 = vmul.f32 %v320, %v320
  %v342 = vmul.f32 %v321, %v321
  %v343 = vmul.f32 %v322, %v322
  %v344 = vmul.f32 %v323, %v323
  %v345 = vmul.f32 %v324, %v324
  %v346 = vsel %vm253, %v325, 0.0
  %v347 = vsel %vm253, %v326, 0.0
  %v348 = vadd.f32 %v346, %v347
  %v349 = vsel %vm253, %v327, 0.0
  %v350 = vadd.f32 %v348, %v349
  %v351 = vsel %vm253, %v328, 0.0
  %v352 = vadd.f32 %v350, %v351
  %v353 = vsel %vm253, %v329, 0.0
  %v354 = vadd.f32 %v352, %v353
  %v355 = vsel %vm253, %v330, 0.0
  %v356 = vadd.f32 %v354, %v355
  %v357 = vsel %vm253, %v331, 0.0
  %v358 = vadd.f32 %v356, %v357
  %v359 = vsel %vm253, %v332, 0.0
  %v360 = vadd.f32 %v358, %v359
  %v361 = vsel %vm253, %v333, 0.0
  %v362 = vadd.f32 %v360, %v361
  %v363 = vsel %vm253, %v334, 0.0
  %v364 = vadd.f32 %v362, %v363
  %v365 = vsel %vm253, %v335, 0.0
  %v366 = vadd.f32 %v364, %v365
  %v367 = vsel %vm253, %v336, 0.0
  %v368 = vadd.f32 %v366, %v367
  %v369 = vsel %vm253, %v337, 0.0
  %v370 = vadd.f32 %v368, %v369
  %v371 = vsel %vm253, %v338, 0.0
  %v372 = vadd.f32 %v370, %v371
  %v373 = vsel %vm253, %v339, 0.0
  %v374 = vadd.f32 %v372, %v373
  %v375 = vsel %vm253, %v340, 0.0
  %v376 = vadd.f32 %v374, %v375
  %v377 = vsel %vm253, %v341, 0.0
  %v378 = vadd.f32 %v376, %v377
  %v379 = vsel %vm253, %v342, 0.0
  %v380 = vadd.f32 %v378, %v379
  %v381 = vsel %vm253, %v343, 0.0
  %v382 = vadd.f32 %v380, %v381
  %v383 = vsel %vm253, %v344, 0.0
  %v384 = vadd.f32 %v382, %v383
  %v385 = vsel %vm293, %v345, 0.0
  %v386 = vadd.f32 %v384, %v385
  %v387 = vrot.slane %v386, 4
  %v388 = vadd.f32 %v386, %v387
  %v389 = vrot.slane %v388, 2
  %v390 = vadd.f32 %v388, %v389
  %v391 = vrot.slane %v390, 1
  %v392 = vadd.f32 %v390, %v391
  %v393 = vmul.f32 %v392, %v302
  %v394 = vadd.f32 %v393, 1e-05
  %v395 = vrsqrt.pop %v394
  %v396 = vmul.f32 %v251, %v395
  %v397 = vmul.f32 %v303, %v396
  %v398 = vsub.f32 %v252, %v397
  %v400 = vlaneseq
  %v401 = vshrl.u32 %v400, 7
  %v402 = vsub.s32 0, %v401
  %v403 = vrot.slane %v396, %v402
  %v405 = vmul.f32 %v166, %v403
  %v406 = vmul.f32 %v169, %v403
  %v407 = vmul.f32 %v174, %v403
  %v408 = vmul.f32 %v177, %v403
  %v409 = vmul.f32 %v182, %v403
  %v410 = vmul.f32 %v185, %v403
  %v411 = vmul.f32 %v190, %v403
  %v412 = vmul.f32 %v193, %v403
  %v413 = vmul.f32 %v198, %v403
  %v414 = vmul.f32 %v201, %v403
  %v415 = vmul.f32 %v206, %v403
  %v416 = vmul.f32 %v209, %v403
  %v417 = vmul.f32 %v214, %v403
  %v418 = vmul.f32 %v217, %v403
  %v419 = vmul.f32 %v222, %v403
  %v420 = vmul.f32 %v225, %v403
  %v421 = vmul.f32 %v230, %v403
  %v422 = vmul.f32 %v233, %v403
  %v423 = vmul.f32 %v238, %v403
  %v424 = vmul.f32 %v241, %v403
  %v425 = vmul.f32 %v246, %v403
  %v427 = vlaneseq
  %v428 = vshrl.u32 %v427, 7
  %v429 = vsub.s32 0, %v428
  %v430 = vrot.slane %v398, %v429
  %v432 = vadd.f32 %v405, %v430
  %v433 = vadd.f32 %v406, %v430
  %v434 = vadd.f32 %v407, %v430
  %v435 = vadd.f32 %v408, %v430
  %v436 = vadd.f32 %v409, %v430
  %v437 = vadd.f32 %v410, %v430
  %v438 = vadd.f32 %v411, %v430
  %v439 = vadd.f32 %v412, %v430
  %v440 = vadd.f32 %v413, %v430
  %v441 = vadd.f32 %v414, %v430
  %v442 = vadd.f32 %v415, %v430
  %v443 = vadd.f32 %v416, %v430
  %v444 = vadd.f32 %v417, %v430
  %v445 = vadd.f32 %v418, %v430
  %v446 = vadd.f32 %v419, %v430
  %v447 = vadd.f32 %v420, %v430
  %v448 = vadd.f32 %v421, %v430
  %v449 = vadd.f32 %v422, %v430
  %v450 = vadd.f32 %v423, %v430
  %v451 = vadd.f32 %v424, %v430
  %v452 = vadd.f32 %v425, %v430
  %v453 = vmax.f32 %v432, 0.0
  %v454 = vmax.f32 %v433, 0.0
  %v455 = vmax.f32 %v434, 0.0
  %v456 = vmax.f32 %v435, 0.0
  %v457 = vmax.f32 %v436, 0.0
  %v458 = vmax.f32 %v437, 0.0
  %v459 = vmax.f32 %v438, 0.0
  %v460 = vmax.f32 %v439, 0.0
  %v461 = vmax.f32 %v440, 0.0
  %v462 = vmax.f32 %v441, 0.0
  %v463 = vmax.f32 %v442, 0.0
  %v464 = vmax.f32 %v443, 0.0
  %v465 = vmax.f32 %v444, 0.0
  %v466 = vmax.f32 %v445, 0.0
  %v467 = vmax.f32 %v446, 0.0
  %v468 = vmax.f32 %v447, 0.0
  %v469 = vmax.f32 %v448, 0.0
  %v470 = vmax.f32 %v449, 0.0
  %v471 = vmax.f32 %v450, 0.0
  %v472 = vmax.f32 %v451, 0.0
  %v473 = vmax.f32 %v452, 0.0
  %474 = vst.msk [vmem:[%s4] sm:$0xff] %vm253, %v453
  %475 = vst.msk [vmem:[%s4 + $0x8] sm:$0xff] %vm253, %v454
  %476 = vst.msk [vmem:[%s4 + $0x10] sm:$0xff] %vm253, %v455
  %477 = vst.msk [vmem:[%s4 + $0x18] sm:$0xff] %vm253, %v456
  %478 = vst.msk [vmem:[%s4 + $0x20] sm:$0xff] %vm253, %v457
  %479 = vst.msk [vmem:[%s4 + $0x28] sm:$0xff] %vm253, %v458
  %480 = vst.msk [vmem:[%s4 + $0x30] sm:$0xff] %vm253, %v459
  %481 = vst.msk [vmem:[%s4 + $0x38] sm:$0xff] %vm253, %v460
  %482 = vst.msk [vmem:[%s4 + $0x40] sm:$0xff] %vm253, %v461
  %483 = vst.msk [vmem:[%s4 + $0x48] sm:$0xff] %vm253, %v462
  %484 = vst.msk [vmem:[%s4 + $0x50] sm:$0xff] %vm253, %v463
  %485 = vst.msk [vmem:[%s4 + $0x58] sm:$0xff] %vm253, %v464
  %486 = vst.msk [vmem:[%s4 + $0x60] sm:$0xff] %vm253, %v465
  %487 = vst.msk [vmem:[%s4 + $0x68] sm:$0xff] %vm253, %v466
  %488 = vst.msk [vmem:[%s4 + $0x70] sm:$0xff] %vm253, %v467
  %489 = vst.msk [vmem:[%s4 + $0x78] sm:$0xff] %vm253, %v468
  %490 = vst.msk [vmem:[%s4 + $0x80] sm:$0xff] %vm253, %v469
  %491 = vst.msk [vmem:[%s4 + $0x88] sm:$0xff] %vm253, %v470
  %492 = vst.msk [vmem:[%s4 + $0x90] sm:$0xff] %vm253, %v471
  %493 = vst.msk [vmem:[%s4 + $0x98] sm:$0xff] %vm253, %v472
  %494 = vst.msk [vmem:[%s4 + $0xa0] sm:$0x3] %vm293, %v473
  // Predicated region
  $region18: #{inception_res_forward.11} parent=0 // pred_check
    _
  $region19: #{inception_res_forward.11} parent=0 // pred_check_branch
    %496 = sbr.rel (0) target = $region21
  $region20: #{inception_res_forward.11} parent=0 // pred_region
    _
  $region21: #{inception_res_forward.11} parent=0 // pred_fallthru
    _
  // Predicated region
  $region22: #{inception_res_forward.11} parent=0 // pred_check
    _
  $region23: #{inception_res_forward.11} parent=0 // pred_check_branch
    %498 = sbr.rel (0) target = $region25
  $region24: #{inception_res_forward.11} parent=0 // pred_region
    _
  $region25: #{inception_res_forward.11} parent=0 // pred_fallthru
    _

// kernel: inception_res_forward.20
$region0: #{inception_res_forward.20}
  #allocation0 [shape = 'u32[]', space=smem, size = 0x4, offset = 0x4, fixed_abs, tag = 'smem constant byte address 0x4 - core index']
  #allocation1 [shape = 'u32[144,128]{1,0:T(1,128)}', space=vmem, size = 0x12000, scoped, tag = 'internal scratch']
  %s0 = inlined_call_operand.vmem [shape: bf16[9,32,4], index: 0, kind: input, shape index: {}]
  %s1 = inlined_call_operand.vmem [shape: bf16[4,16], index: 1, kind: input, shape index: {}]
  %s2 = inlined_call_operand.vmem [shape: f32[1,16], index: 2, kind: input, shape index: {}]
  %s3 = inlined_call_operand.vmem [shape: f32[1,16], index: 3, kind: input, shape index: {}]
  %s4 = inlined_call_operand.vmem [shape: f32[32,16], index: 4, kind: output, shape index: {}]
  %s5 = sld [smem:[#allocation0]]
  $region26: #{inception_res_forward.20} parent=0
    _
  %s7 = ssub.s32 1, %s5
  %s8 = scalar_select 0, %s7, %s5
  // Predicated region
  $region2: #{inception_res_forward.20} parent=0 // pred_check
    _
  $region3: #{inception_res_forward.20} parent=0 // pred_check_branch
    %10 = sbr.rel (0) target = $region5
  $region4: #{inception_res_forward.20} parent=0 // pred_region
    _
  $region5: #{inception_res_forward.20} parent=0 // pred_fallthru
    _
  // Predicated region
  $region6: #{inception_res_forward.20} parent=0 // pred_check
    _
  $region7: #{inception_res_forward.20} parent=0 // pred_check_branch
    %12 = sbr.rel (0) target = $region9
  $region8: #{inception_res_forward.20} parent=0 // pred_region
    _
  $region9: #{inception_res_forward.20} parent=0 // pred_fallthru
    _
  // Predicated region
  $region10: #{inception_res_forward.20} parent=0 // pred_check
    _
  $region11: #{inception_res_forward.20} parent=0 // pred_check_branch
    %14 = sbr.rel (0) target = $region13
  $region12: #{inception_res_forward.20} parent=0 // pred_region
    _
  $region13: #{inception_res_forward.20} parent=0 // pred_fallthru
    _
  // Predicated region
  $region14: #{inception_res_forward.20} parent=0 // pred_check
    _
  $region15: #{inception_res_forward.20} parent=0 // pred_check_branch
    %16 = sbr.rel (0) target = $region17
  $region16: #{inception_res_forward.20} parent=0 // pred_region
    _
  $region17: #{inception_res_forward.20} parent=0 // pred_fallthru
    _
  %v18 = vld [vmem:[%s0] sm:$0xf]
  %v19 = vld [vmem:[%s0 + $0x4] sm:$0xf]
  %v20 = vld [vmem:[%s0 + $0x8] sm:$0xf]
  %v21 = vld [vmem:[%s0 + $0xc] sm:$0xf]
  %v22 = vld [vmem:[%s0 + $0x10] sm:$0xf]
  %v23 = vld [vmem:[%s0 + $0x14] sm:$0xf]
  %v24 = vld [vmem:[%s0 + $0x18] sm:$0xf]
  %v25 = vld [vmem:[%s0 + $0x1c] sm:$0xf]
  %v26 = vld [vmem:[%s0 + $0x20] sm:$0xf]
  %v27 = vld [vmem:[%s0 + $0x24] sm:$0xf]
  %v28 = vld [vmem:[%s0 + $0x28] sm:$0xf]
  %v29 = vld [vmem:[%s0 + $0x2c] sm:$0xf]
  %v30 = vld [vmem:[%s0 + $0x30] sm:$0xf]
  %v31 = vld [vmem:[%s0 + $0x34] sm:$0xf]
  %v32 = vld [vmem:[%s0 + $0x38] sm:$0xf]
  %v33 = vld [vmem:[%s0 + $0x3c] sm:$0xf]
  %v34 = vld [vmem:[%s0 + $0x40] sm:$0xf]
  %v35 = vld [vmem:[%s0 + $0x44] sm:$0xf]
  %v36 = vld [vmem:[%s0 + $0x48] sm:$0xf]
  %v37 = vld [vmem:[%s0 + $0x4c] sm:$0xf]
  %v38 = vld [vmem:[%s0 + $0x50] sm:$0xf]
  %v39 = vld [vmem:[%s0 + $0x54] sm:$0xf]
  %v40 = vld [vmem:[%s0 + $0x58] sm:$0xf]
  %v41 = vld [vmem:[%s0 + $0x5c] sm:$0xf]
  %v42 = vld [vmem:[%s0 + $0x60] sm:$0xf]
  %v43 = vld [vmem:[%s0 + $0x64] sm:$0xf]
  %v44 = vld [vmem:[%s0 + $0x68] sm:$0xf]
  %v45 = vld [vmem:[%s0 + $0x6c] sm:$0xf]
  %v46 = vld [vmem:[%s0 + $0x70] sm:$0xf]
  %v47 = vld [vmem:[%s0 + $0x74] sm:$0xf]
  %v48 = vld [vmem:[%s0 + $0x78] sm:$0xf]
  %v49 = vld [vmem:[%s0 + $0x7c] sm:$0xf]
  %v50 = vld [vmem:[%s0 + $0x80] sm:$0xf]
  %v51 = vld [vmem:[%s0 + $0x84] sm:$0xf]
  %v52 = vld [vmem:[%s0 + $0x88] sm:$0xf]
  %v53 = vld [vmem:[%s0 + $0x8c] sm:$0xf]
  %v54 = vunpack.c.l.bf16 %v18
  %v55 = vunpack.c.l.bf16 %v19
  %v56 = vunpack.c.l.bf16 %v20
  %v57 = vunpack.c.l.bf16 %v21
  %v58 = vunpack.c.l.bf16 %v22
  %v59 = vunpack.c.l.bf16 %v23
  %v60 = vunpack.c.l.bf16 %v24
  %v61 = vunpack.c.l.bf16 %v25
  %v62 = vunpack.c.l.bf16 %v26
  %v63 = vunpack.c.l.bf16 %v27
  %v64 = vunpack.c.l.bf16 %v28
  %v65 = vunpack.c.l.bf16 %v29
  %v66 = vunpack.c.l.bf16 %v30
  %v67 = vunpack.c.l.bf16 %v31
  %v68 = vunpack.c.l.bf16 %v32
  %v69 = vunpack.c.l.bf16 %v33
  %v70 = vunpack.c.l.bf16 %v34
  %v71 = vunpack.c.l.bf16 %v35
  %v72 = vunpack.c.l.bf16 %v36
  %v73 = vunpack.c.l.bf16 %v37
  %v74 = vunpack.c.l.bf16 %v38
  %v75 = vunpack.c.l.bf16 %v39
  %v76 = vunpack.c.l.bf16 %v40
  %v77 = vunpack.c.l.bf16 %v41
  %v78 = vunpack.c.l.bf16 %v42
  %v79 = vunpack.c.l.bf16 %v43
  %v80 = vunpack.c.l.bf16 %v44
  %v81 = vunpack.c.l.bf16 %v45
  %v82 = vunpack.c.l.bf16 %v46
  %v83 = vunpack.c.l.bf16 %v47
  %v84 = vunpack.c.l.bf16 %v48
  %v85 = vunpack.c.l.bf16 %v49
  %v86 = vunpack.c.l.bf16 %v50
  %v87 = vunpack.c.l.bf16 %v51
  %v88 = vunpack.c.l.bf16 %v52
  %v89 = vunpack.c.l.bf16 %v53
  %vm90 = vcmask 31744
  %v91 = vsel %vm90, %v54, 0.0
  %v92 = vsel %vm90, %v58, 0.0
  %v93 = vadd.f32 %v91, %v92
  %v94 = vsel %vm90, %v62, 0.0
  %v95 = vadd.f32 %v93, %v94
  %v96 = vsel %vm90, %v66, 0.0
  %v97 = vadd.f32 %v95, %v96
  %v98 = vsel %vm90, %v70, 0.0
  %v99 = vadd.f32 %v97, %v98
  %v100 = vsel %vm90, %v74, 0.0
  %v101 = vadd.f32 %v99, %v100
  %v102 = vsel %vm90, %v78, 0.0
  %v103 = vadd.f32 %v101, %v102
  %v104 = vsel %vm90, %v82, 0.0
  %v105 = vadd.f32 %v103, %v104
  %v106 = vsel %vm90, %v86, 0.0
  %v107 = vadd.f32 %v105, %v106
  %v108 = vsel %vm90, %v55, 0.0
  %v109 = vsel %vm90, %v59, 0.0
  %v110 = vadd.f32 %v108, %v109
  %v111 = vsel %vm90, %v63, 0.0
  %v112 = vadd.f32 %v110, %v111
  %v113 = vsel %vm90, %v67, 0.0
  %v114 = vadd.f32 %v112, %v113
  %v115 = vsel %vm90, %v71, 0.0
  %v116 = vadd.f32 %v114, %v115
  %v117 = vsel %vm90, %v75, 0.0
  %v118 = vadd.f32 %v116, %v117
  %v119 = vsel %vm90, %v79, 0.0
  %v120 = vadd.f32 %v118, %v119
  %v121 = vsel %vm90, %v83, 0.0
  %v122 = vadd.f32 %v120, %v121
  %v123 = vsel %vm90, %v87, 0.0
  %v124 = vadd.f32 %v122, %v123
  %v125 = vsel %vm90, %v56, 0.0
  %v126 = vsel %vm90, %v60, 0.0
  %v127 = vadd.f32 %v125, %v126
  %v128 = vsel %vm90, %v64, 0.0
  %v129 = vadd.f32 %v127, %v128
  %v130 = vsel %vm90, %v68, 0.0
  %v131 = vadd.f32 %v129, %v130
  %v132 = vsel %vm90, %v72, 0.0
  %v133 = vadd.f32 %v131, %v132
  %v134 = vsel %vm90, %v76, 0.0
  %v135 = vadd.f32 %v133, %v134
  %v136 = vsel %vm90, %v80, 0.0
  %v137 = vadd.f32 %v135, %v136
  %v138 = vsel %vm90, %v84, 0.0
  %v139 = vadd.f32 %v137, %v138
  %v140 = vsel %vm90, %v88, 0.0
  %v141 = vadd.f32 %v139, %v140
  %v142 = vsel %vm90, %v57, 0.0
  %v143 = vsel %vm90, %v61, 0.0
  %v144 = vadd.f32 %v142, %v143
  %v145 = vsel %vm90, %v65, 0.0
  %v146 = vadd.f32 %v144, %v145
  %v147 = vsel %vm90, %v69, 0.0
  %v148 = vadd.f32 %v146, %v147
  %v149 = vsel %vm90, %v73, 0.0
  %v150 = vadd.f32 %v148, %v149
  %v151 = vsel %vm90, %v77, 0.0
  %v152 = vadd.f32 %v150, %v151
  %v153 = vsel %vm90, %v81, 0.0
  %v154 = vadd.f32 %v152, %v153
  %v155 = vsel %vm90, %v85, 0.0
  %v156 = vadd.f32 %v154, %v155
  %v157 = vsel %vm90, %v89, 0.0
  %v158 = vadd.f32 %v156, %v157
  %v159 = vrcp.pop 9.0
  %v160 = vmul.f32 %v107, %v159
  %v161 = vmul.f32 %v124, %v159
  %v162 = vmul.f32 %v141, %v159
  %v163 = vmul.f32 %v158, %v159
  %v164 = vpack.c.bf16 %v161, %v160
  %v165 = vpack.c.bf16 %v163, %v162
  %v166 = vld [vmem:[%s1] sm:$0x3]
  %v168 = vsel %vm90, %v164, 0
  %v171 = vsel %vm90, %v165, 0
  %vm173 = vcmask 1041408
  %v175 = vsel %vm173, %v166, 0
  %177 = vmatprep.subr.bf16.mxu0 0
  %178 = vmatpush1.bf16.msra.mxu0 0
  %179 = vmatprep.subr.bf16.mxu0 0
  %180 = vmatpush1.bf16.msra.mxu0 0
  %181 = vmatprep.subr.bf16.mxu0 0
  %182 = vmatpush1.bf16.msra.mxu0 0
  %183 = vmatprep.subr.bf16.mxu0 0
  %184 = vmatpush1.bf16.msra.mxu0 0
  %185 = vmatprep.subr.bf16.mxu0 0
  %186 = vmatpush1.bf16.msra.mxu0 0
  %187 = vmatprep.subr.bf16.mxu0 0
  %188 = vmatpush1.bf16.msra.mxu0 0
  %189 = vmatprep.subr.bf16.mxu0 0
  %190 = vmatpush1.bf16.msra.mxu0 0
  %191 = vmatprep.subr.bf16.mxu0 0
  %192 = vmatpush1.bf16.msra.mxu0 %v175
  %193 = vmatprep.subr.bf16.mxu0 0
  %194 = vmatpush2.bf16.msra.mxu0 0
  %195 = vmatprep.subr.bf16.mxu0 0
  %196 = vmatpush2.bf16.msra.mxu0 0
  %197 = vmatprep.subr.bf16.mxu0 0
  %198 = vmatpush2.bf16.msra.mxu0 0
  %199 = vmatprep.subr.bf16.mxu0 0
  %200 = vmatpush2.bf16.msra.mxu0 0
  %201 = vmatprep.subr.bf16.mxu0 0
  %202 = vmatpush2.bf16.msra.mxu0 0
  %203 = vmatprep.subr.bf16.mxu0 0
  %204 = vmatpush2.bf16.msra.mxu0 0
  %205 = vmatprep.subr.bf16.mxu0 0
  %206 = vmatpush2.bf16.msra.mxu0 0
  %207 = vmatprep.subr.bf16.mxu0 0
  %208 = vmatpush2.bf16.msra.mxu0 0
  %209 = vmatprep.mubr.bf16.mxu0 0
  %210 = vmatmul.mubr.bf16.gmra.mxu0 %v168
  %v211 = vpop.f32.mrf.mxu0
  %v212 = vadd.f32 0.0, %v211
  %v213 = vpop.f32.mrf.mxu0
  %v214 = vpop.f32.mrf.mxu0
  %v215 = vadd.f32 0.0, %v214
  %v216 = vpop.f32.mrf.mxu0
  %217 = vmatprep.mubr.bf16.mxu0 0
  %218 = vmatmul.mubr.bf16.gmra.mxu0 %v171
  %v219 = vpop.f32.mrf.mxu0
  %v220 = vadd.f32 0.0, %v219
  %v221 = vpop.f32.mrf.mxu0
  %v222 = vpop.f32.mrf.mxu0
  %v223 = vadd.f32 0.0, %v222
  %v224 = vpop.f32.mrf.mxu0
  %225 = vdwg.mxu0
  %v226 = vld [vmem:[%s2] sm:$0x1]
  %v227 = vld [vmem:[%s3] sm:$0x1]
  %vm228 = vcmask 130048
  %v229 = vsel %vm228, %v212, 0.0
  %v230 = vsel %vm228, %v215, 0.0
  %v231 = vadd.f32 %v229, %v230
  %v232 = vsel %vm228, %v220, 0.0
  %v233 = vadd.f32 %v231, %v232
  %v234 = vsel %vm228, %v223, 0.0
  %v235 = vadd.f32 %v233, %v234
  %v236 = vrot.slane %v235, 4
  %v237 = vadd.f32 %v235, %v236
  %v238 = vrot.slane %v237, 2
  %v239 = vadd.f32 %v237, %v238
  %v240 = vrot.slane %v239, 1
  %v241 = vadd.f32 %v239, %v240
  %v242 = vrcp.pop 32.0
  %v243 = vmul.f32 %v241, %v242
  %v244 = vsub.f32 %v212, %v243
  %v245 = vsub.f32 %v215, %v243
  %v246 = vsub.f32 %v220, %v243
  %v247 = vsub.f32 %v223, %v243
  %v248 = vmul.f32 %v244, %v244
  %v249 = vmul.f32 %v245, %v245
  %v250 = vmul.f32 %v246, %v246
  %v251 = vmul.f32 %v247, %v247
  %v252 = vsel %vm228, %v248, 0.0
  %v253 = vsel %vm228, %v249, 0.0
  %v254 = vadd.f32 %v252, %v253
  %v255 = vsel %vm228, %v250, 0.0
  %v256 = vadd.f32 %v254, %v255
  %v257 = vsel %vm228, %v251, 0.0
  %v258 = vadd.f32 %v256, %v257
  %v259 = vrot.slane %v258, 4
  %v260 = vadd.f32 %v258, %v259
  %v261 = vrot.slane %v260, 2
  %v262 = vadd.f32 %v260, %v261
  %v263 = vrot.slane %v262, 1
  %v264 = vadd.f32 %v262, %v263
  %v265 = vmul.f32 %v264, %v242
  %v266 = vadd.f32 %v265, 1e-05
  %v267 = vrsqrt.pop %v266
  %v268 = vmul.f32 %v226, %v267
  %v269 = vmul.f32 %v243, %v268
  %v270 = vsub.f32 %v227, %v269
  %v272 = vlaneseq
  %v273 = vshrl.u32 %v272, 7
  %v274 = vsub.s32 0, %v273
  %v275 = vrot.slane %v268, %v274
  %v277 = vmul.f32 %v212, %v275
  %v278 = vmul.f32 %v215, %v275
  %v279 = vmul.f32 %v220, %v275
  %v280 = vmul.f32 %v223, %v275
  %v282 = vlaneseq
  %v283 = vshrl.u32 %v282, 7
  %v284 = vsub.s32 0, %v283
  %v285 = vrot.slane %v270, %v284
  %v287 = vadd.f32 %v277, %v285
  %v288 = vadd.f32 %v278, %v285
  %v289 = vadd.f32 %v279, %v285
  %v290 = vadd.f32 %v280, %v285
  %v291 = vlaneseq
  %v292 = vand.u32 %v291, 127
  %vm293 = vcmp.lt.s32.totalorder %v292, 8
  %v294 = vmax.f32 %v287, 0.0
  %v295 = vmax.f32 %v288, 0.0
  %v296 = vmax.f32 %v289, 0.0
  %v297 = vmax.f32 %v290, 0.0
  %v298 = vsel %vm293, %v294, %v287
  %v299 = vsel %vm293, %v295, %v288
  %v300 = vsel %vm293, %v296, %v289
  %v301 = vsel %vm293, %v297, %v290
  %302 = vst.msk [vmem:[%s4] sm:$0xff] %vm228, %v298
  %303 = vst.msk [vmem:[%s4 + $0x8] sm:$0xff] %vm228, %v299
  %304 = vst.msk [vmem:[%s4 + $0x10] sm:$0xff] %vm228, %v300
  %305 = vst.msk [vmem:[%s4 + $0x18] sm:$0xff] %vm228, %v301
  // Predicated region
  $region18: #{inception_res_forward.20} parent=0 // pred_check
    _
  $region19: #{inception_res_forward.20} parent=0 // pred_check_branch
    %307 = sbr.rel (0) target = $region21
  $region20: #{inception_res_forward.20} parent=0 // pred_region
    _
  $region21: #{inception_res_forward.20} parent=0 // pred_fallthru
    _
  // Predicated region
  $region22: #{inception_res_forward.20} parent=0 // pred_check
    _
  $region23: #{inception_res_forward.20} parent=0 // pred_check_branch
    %309 = sbr.rel (0) target = $region25
  $region24: #{inception_res_forward.20} parent=0 // pred_region
    _
  $region25: #{inception_res_forward.20} parent=0 // pred_fallthru
    _

// kernel: inception_res_forward.21
$region0: #{inception_res_forward.21}
  #allocation0 [shape = 'u32[]', space=smem, size = 0x4, offset = 0x4, fixed_abs, tag = 'smem constant byte address 0x4 - core index']
  #allocation1 [shape = 'u32[144,128]{1,0:T(1,128)}', space=vmem, size = 0x12000, scoped, tag = 'internal scratch']
  %s0 = inlined_call_operand.vmem [shape: f32[9,32,16], index: 0, kind: input, shape index: {}]
  %s1 = inlined_call_operand.vmem [shape: bf16[32,200], index: 1, kind: input, shape index: {}]
  %s2 = inlined_call_operand.vmem [shape: bf16[200,8], index: 2, kind: input, shape index: {}]
  %s3 = inlined_call_operand.vmem [shape: f32[1,8], index: 3, kind: input, shape index: {}]
  %s4 = inlined_call_operand.vmem [shape: f32[1,8], index: 4, kind: input, shape index: {}]
  %s5 = inlined_call_operand.vmem [shape: f32[32,8], index: 5, kind: input, shape index: {}]
  %s6 = inlined_call_operand.vmem [shape: bf16[32,72], index: 6, kind: input, shape index: {}]
  %s7 = inlined_call_operand.vmem [shape: bf16[72,8], index: 7, kind: input, shape index: {}]
  %s8 = inlined_call_operand.vmem [shape: f32[1,8], index: 8, kind: input, shape index: {}]
  %s9 = inlined_call_operand.vmem [shape: f32[1,8], index: 9, kind: input, shape index: {}]
  %s10 = inlined_call_operand.vmem [shape: f32[32,8], index: 10, kind: input, shape index: {}]
  %s11 = inlined_call_operand.vmem [shape: bf16[32,8], index: 11, kind: input, shape index: {}]
  %s12 = inlined_call_operand.vmem [shape: bf16[8,8], index: 12, kind: input, shape index: {}]
  %s13 = inlined_call_operand.vmem [shape: f32[1,8], index: 13, kind: input, shape index: {}]
  %s14 = inlined_call_operand.vmem [shape: f32[1,8], index: 14, kind: input, shape index: {}]
  %s15 = inlined_call_operand.vmem [shape: f32[32,8], index: 15, kind: input, shape index: {}]
  %s16 = inlined_call_operand.hbm [shape: f32[32,32], index: 16, kind: output, shape index: {}]
  %s17 = sld [smem:[#allocation0]]
  $region74: #{inception_res_forward.21} parent=0
    _
  %s19 = ssub.s32 1, %s17
  %s20 = scalar_select 0, %s19, %s17
  $region1: #{inception_res_forward.21} parent=0
    #allocation2 [shape = 'u8[16384]{0}', space=vmem, size = 0x4000, scoped, tag = 'output window, operand 0, single buffered']
    #allocation3 [shape = 's32[1]{0}', space=sflag, size = 0x4, scoped, tag = 'scoped memory for inception_res_forward.21']
    %21 = vsyncpa [#allocation3], 0
    // Predicated region
    $region2: #{inception_res_forward.21} parent=1 // pred_check
      _
    $region3: #{inception_res_forward.21} parent=1 // pred_check_branch
      %23 = sbr.rel (0) target = $region5
    $region4: #{inception_res_forward.21} parent=1 // pred_region
      _
    $region5: #{inception_res_forward.21} parent=1 // pred_fallthru
      _
    // Predicated region
    $region6: #{inception_res_forward.21} parent=1 // pred_check
      _
    $region7: #{inception_res_forward.21} parent=1 // pred_check_branch
      %25 = sbr.rel (0) target = $region9
    $region8: #{inception_res_forward.21} parent=1 // pred_region
      _
    $region9: #{inception_res_forward.21} parent=1 // pred_fallthru
      _
    // Predicated region
    $region10: #{inception_res_forward.21} parent=1 // pred_check
      _
    $region11: #{inception_res_forward.21} parent=1 // pred_check_branch
      %27 = sbr.rel (0) target = $region13
    $region12: #{inception_res_forward.21} parent=1 // pred_region
      _
    $region13: #{inception_res_forward.21} parent=1 // pred_fallthru
      _
    // Predicated region
    $region14: #{inception_res_forward.21} parent=1 // pred_check
      _
    $region15: #{inception_res_forward.21} parent=1 // pred_check_branch
      %29 = sbr.rel (0) target = $region17
    $region16: #{inception_res_forward.21} parent=1 // pred_region
      _
    $region17: #{inception_res_forward.21} parent=1 // pred_fallthru
      _
    // Predicated region
    $region18: #{inception_res_forward.21} parent=1 // pred_check
      _
    $region19: #{inception_res_forward.21} parent=1 // pred_check_branch
      %31 = sbr.rel (0) target = $region21
    $region20: #{inception_res_forward.21} parent=1 // pred_region
      _
    $region21: #{inception_res_forward.21} parent=1 // pred_fallthru
      _
    // Predicated region
    $region22: #{inception_res_forward.21} parent=1 // pred_check
      _
    $region23: #{inception_res_forward.21} parent=1 // pred_check_branch
      %33 = sbr.rel (0) target = $region25
    $region24: #{inception_res_forward.21} parent=1 // pred_region
      _
    $region25: #{inception_res_forward.21} parent=1 // pred_fallthru
      _
    // Predicated region
    $region26: #{inception_res_forward.21} parent=1 // pred_check
      _
    $region27: #{inception_res_forward.21} parent=1 // pred_check_branch
      %35 = sbr.rel (0) target = $region29
    $region28: #{inception_res_forward.21} parent=1 // pred_region
      _
    $region29: #{inception_res_forward.21} parent=1 // pred_fallthru
      _
    // Predicated region
    $region30: #{inception_res_forward.21} parent=1 // pred_check
      _
    $region31: #{inception_res_forward.21} parent=1 // pred_check_branch
      %37 = sbr.rel (0) target = $region33
    $region32: #{inception_res_forward.21} parent=1 // pred_region
      _
    $region33: #{inception_res_forward.21} parent=1 // pred_fallthru
      _
    // Predicated region
    $region34: #{inception_res_forward.21} parent=1 // pred_check
      _
    $region35: #{inception_res_forward.21} parent=1 // pred_check_branch
      %39 = sbr.rel (0) target = $region37
    $region36: #{inception_res_forward.21} parent=1 // pred_region
      _
    $region37: #{inception_res_forward.21} parent=1 // pred_fallthru
      _
    // Predicated region
    $region38: #{inception_res_forward.21} parent=1 // pred_check
      _
    $region39: #{inception_res_forward.21} parent=1 // pred_check_branch
      %41 = sbr.rel (0) target = $region41
    $region40: #{inception_res_forward.21} parent=1 // pred_region
      _
    $region41: #{inception_res_forward.21} parent=1 // pred_fallthru
      _
    // Predicated region
    $region42: #{inception_res_forward.21} parent=1 // pred_check
      _
    $region43: #{inception_res_forward.21} parent=1 // pred_check_branch
      %43 = sbr.rel (0) target = $region45
    $region44: #{inception_res_forward.21} parent=1 // pred_region
      _
    $region45: #{inception_res_forward.21} parent=1 // pred_fallthru
      _
    // Predicated region
    $region46: #{inception_res_forward.21} parent=1 // pred_check
      _
    $region47: #{inception_res_forward.21} parent=1 // pred_check_branch
      %45 = sbr.rel (0) target = $region49
    $region48: #{inception_res_forward.21} parent=1 // pred_region
      _
    $region49: #{inception_res_forward.21} parent=1 // pred_fallthru
      _
    // Predicated region
    $region50: #{inception_res_forward.21} parent=1 // pred_check
      _
    $region51: #{inception_res_forward.21} parent=1 // pred_check_branch
      %47 = sbr.rel (0) target = $region53
    $region52: #{inception_res_forward.21} parent=1 // pred_region
      _
    $region53: #{inception_res_forward.21} parent=1 // pred_fallthru
      _
    // Predicated region
    $region54: #{inception_res_forward.21} parent=1 // pred_check
      _
    $region55: #{inception_res_forward.21} parent=1 // pred_check_branch
      %49 = sbr.rel (0) target = $region57
    $region56: #{inception_res_forward.21} parent=1 // pred_region
      _
    $region57: #{inception_res_forward.21} parent=1 // pred_fallthru
      _
    // Predicated region
    $region58: #{inception_res_forward.21} parent=1 // pred_check
      _
    $region59: #{inception_res_forward.21} parent=1 // pred_check_branch
      %51 = sbr.rel (0) target = $region61
    $region60: #{inception_res_forward.21} parent=1 // pred_region
      _
    $region61: #{inception_res_forward.21} parent=1 // pred_fallthru
      _
    // Predicated region
    $region62: #{inception_res_forward.21} parent=1 // pred_check
      _
    $region63: #{inception_res_forward.21} parent=1 // pred_check_branch
      %53 = sbr.rel (0) target = $region65
    $region64: #{inception_res_forward.21} parent=1 // pred_region
      _
    $region65: #{inception_res_forward.21} parent=1 // pred_fallthru
      _
    %v55 = vld [vmem:[%s0] sm:$0xff]
    %v56 = vld [vmem:[%s0 + $0x8] sm:$0xff]
    %v57 = vld [vmem:[%s0 + $0x10] sm:$0xff]
    %v58 = vld [vmem:[%s0 + $0x18] sm:$0xff]
    %v59 = vld [vmem:[%s0 + $0x20] sm:$0xff]
    %v60 = vld [vmem:[%s0 + $0x28] sm:$0xff]
    %v61 = vld [vmem:[%s0 + $0x30] sm:$0xff]
    %v62 = vld [vmem:[%s0 + $0x38] sm:$0xff]
    %v63 = vld [vmem:[%s0 + $0x40] sm:$0xff]
    %v64 = vld [vmem:[%s0 + $0x48] sm:$0xff]
    %v65 = vld [vmem:[%s0 + $0x50] sm:$0xff]
    %v66 = vld [vmem:[%s0 + $0x58] sm:$0xff]
    %v67 = vld [vmem:[%s0 + $0x60] sm:$0xff]
    %v68 = vld [vmem:[%s0 + $0x68] sm:$0xff]
    %v69 = vld [vmem:[%s0 + $0x70] sm:$0xff]
    %v70 = vld [vmem:[%s0 + $0x78] sm:$0xff]
    %v71 = vld [vmem:[%s0 + $0x80] sm:$0xff]
    %v72 = vld [vmem:[%s0 + $0x88] sm:$0xff]
    %v73 = vld [vmem:[%s0 + $0x90] sm:$0xff]
    %v74 = vld [vmem:[%s0 + $0x98] sm:$0xff]
    %v75 = vld [vmem:[%s0 + $0xa0] sm:$0xff]
    %v76 = vld [vmem:[%s0 + $0xa8] sm:$0xff]
    %v77 = vld [vmem:[%s0 + $0xb0] sm:$0xff]
    %v78 = vld [vmem:[%s0 + $0xb8] sm:$0xff]
    %v79 = vld [vmem:[%s0 + $0xc0] sm:$0xff]
    %v80 = vld [vmem:[%s0 + $0xc8] sm:$0xff]
    %v81 = vld [vmem:[%s0 + $0xd0] sm:$0xff]
    %v82 = vld [vmem:[%s0 + $0xd8] sm:$0xff]
    %v83 = vld [vmem:[%s0 + $0xe0] sm:$0xff]
    %v84 = vld [vmem:[%s0 + $0xe8] sm:$0xff]
    %v85 = vld [vmem:[%s0 + $0xf0] sm:$0xff]
    %v86 = vld [vmem:[%s0 + $0xf8] sm:$0xff]
    %v87 = vld [vmem:[%s0 + $0x100] sm:$0xff]
    %v88 = vld [vmem:[%s0 + $0x108] sm:$0xff]
    %v89 = vld [vmem:[%s0 + $0x110] sm:$0xff]
    %v90 = vld [vmem:[%s0 + $0x118] sm:$0xff]
    %vm91 = vcmask 64512
    %v92 = vsel %vm91, %v55, 0.0
    %v93 = vsel %vm91, %v59, 0.0
    %v94 = vadd.f32 %v92, %v93
    %v95 = vsel %vm91, %v63, 0.0
    %v96 = vadd.f32 %v94, %v95
    %v97 = vsel %vm91, %v67, 0.0
    %v98 = vadd.f32 %v96, %v97
    %v99 = vsel %vm91, %v71, 0.0
    %v100 = vadd.f32 %v98, %v99
    %v101 = vsel %vm91, %v75, 0.0
    %v102 = vadd.f32 %v100, %v101
    %v103 = vsel %vm91, %v79, 0.0
    %v104 = vadd.f32 %v102, %v103
    %v105 = vsel %vm91, %v83, 0.0
    %v106 = vadd.f32 %v104, %v105
    %v107 = vsel %vm91, %v87, 0.0
    %v108 = vadd.f32 %v106, %v107
    %v109 = vsel %vm91, %v56, 0.0
    %v110 = vsel %vm91, %v60, 0.0
    %v111 = vadd.f32 %v109, %v110
    %v112 = vsel %vm91, %v64, 0.0
    %v113 = vadd.f32 %v111, %v112
    %v114 = vsel %vm91, %v68, 0.0
    %v115 = vadd.f32 %v113, %v114
    %v116 = vsel %vm91, %v72, 0.0
    %v117 = vadd.f32 %v115, %v116
    %v118 = vsel %vm91, %v76, 0.0
    %v119 = vadd.f32 %v117, %v118
    %v120 = vsel %vm91, %v80, 0.0
    %v121 = vadd.f32 %v119, %v120
    %v122 = vsel %vm91, %v84, 0.0
    %v123 = vadd.f32 %v121, %v122
    %v124 = vsel %vm91, %v88, 0.0
    %v125 = vadd.f32 %v123, %v124
    %v126 = vsel %vm91, %v57, 0.0
    %v127 = vsel %vm91, %v61, 0.0
    %v128 = vadd.f32 %v126, %v127
    %v129 = vsel %vm91, %v65, 0.0
    %v130 = vadd.f32 %v128, %v129
    %v131 = vsel %vm91, %v69, 0.0
    %v132 = vadd.f32 %v130, %v131
    %v133 = vsel %vm91, %v73, 0.0
    %v134 = vadd.f32 %v132, %v133
    %v135 = vsel %vm91, %v77, 0.0
    %v136 = vadd.f32 %v134, %v135
    %v137 = vsel %vm91, %v81, 0.0
    %v138 = vadd.f32 %v136, %v137
    %v139 = vsel %vm91, %v85, 0.0
    %v140 = vadd.f32 %v138, %v139
    %v141 = vsel %vm91, %v89, 0.0
    %v142 = vadd.f32 %v140, %v141
    %v143 = vsel %vm91, %v58, 0.0
    %v144 = vsel %vm91, %v62, 0.0
    %v145 = vadd.f32 %v143, %v144
    %v146 = vsel %vm91, %v66, 0.0
    %v147 = vadd.f32 %v145, %v146
    %v148 = vsel %vm91, %v70, 0.0
    %v149 = vadd.f32 %v147, %v148
    %v150 = vsel %vm91, %v74, 0.0
    %v151 = vadd.f32 %v149, %v150
    %v152 = vsel %vm91, %v78, 0.0
    %v153 = vadd.f32 %v151, %v152
    %v154 = vsel %vm91, %v82, 0.0
    %v155 = vadd.f32 %v153, %v154
    %v156 = vsel %vm91, %v86, 0.0
    %v157 = vadd.f32 %v155, %v156
    %v158 = vsel %vm91, %v90, 0.0
    %v159 = vadd.f32 %v157, %v158
    %v160 = vrcp.pop 9.0
    %v161 = vmul.f32 %v108, %v160
    %v162 = vmul.f32 %v125, %v160
    %v163 = vmul.f32 %v142, %v160
    %v164 = vmul.f32 %v159, %v160
    %vm165 = vcmask 130112
    %v166 = vsel %vm165, %v55, -inf
    %v167 = vsel %vm165, %v59, -inf
    %v168 = vmax.f32 %v166, %v167
    %v169 = vsel %vm165, %v63, -inf
    %v170 = vmax.f32 %v168, %v169
    %v171 = vsel %vm165, %v67, -inf
    %v172 = vmax.f32 %v170, %v171
    %v173 = vsel %vm165, %v71, -inf
    %v174 = vmax.f32 %v172, %v173
    %v175 = vsel %vm165, %v75, -inf
    %v176 = vmax.f32 %v174, %v175
    %v177 = vsel %vm165, %v79, -inf
    %v178 = vmax.f32 %v176, %v177
    %v179 = vsel %vm165, %v83, -inf
    %v180 = vmax.f32 %v178, %v179
    %v181 = vsel %vm165, %v87, -inf
    %v182 = vmax.f32 %v180, %v181
    %v183 = vsel %vm165, %v56, -inf
    %v184 = vsel %vm165, %v60, -inf
    %v185 = vmax.f32 %v183, %v184
    %v186 = vsel %vm165, %v64, -inf
    %v187 = vmax.f32 %v185, %v186
    %v188 = vsel %vm165, %v68, -inf
    %v189 = vmax.f32 %v187, %v188
    %v190 = vsel %vm165, %v72, -inf
    %v191 = vmax.f32 %v189, %v190
    %v192 = vsel %vm165, %v76, -inf
    %v193 = vmax.f32 %v191, %v192
    %v194 = vsel %vm165, %v80, -inf
    %v195 = vmax.f32 %v193, %v194
    %v196 = vsel %vm165, %v84, -inf
    %v197 = vmax.f32 %v195, %v196
    %v198 = vsel %vm165, %v88, -inf
    %v199 = vmax.f32 %v197, %v198
    %v200 = vsel %vm165, %v57, -inf
    %v201 = vsel %vm165, %v61, -inf
    %v202 = vmax.f32 %v200, %v201
    %v203 = vsel %vm165, %v65, -inf
    %v204 = vmax.f32 %v202, %v203
    %v205 = vsel %vm165, %v69, -inf
    %v206 = vmax.f32 %v204, %v205
    %v207 = vsel %vm165, %v73, -inf
    %v208 = vmax.f32 %v206, %v207
    %v209 = vsel %vm165, %v77, -inf
    %v210 = vmax.f32 %v208, %v209
    %v211 = vsel %vm165, %v81, -inf
    %v212 = vmax.f32 %v210, %v211
    %v213 = vsel %vm165, %v85, -inf
    %v214 = vmax.f32 %v212, %v213
    %v215 = vsel %vm165, %v89, -inf
    %v216 = vmax.f32 %v214, %v215
    %v217 = vsel %vm165, %v58, -inf
    %v218 = vsel %vm165, %v62, -inf
    %v219 = vmax.f32 %v217, %v218
    %v220 = vsel %vm165, %v66, -inf
    %v221 = vmax.f32 %v219, %v220
    %v222 = vsel %vm165, %v70, -inf
    %v223 = vmax.f32 %v221, %v222
    %v224 = vsel %vm165, %v74, -inf
    %v225 = vmax.f32 %v223, %v224
    %v226 = vsel %vm165, %v78, -inf
    %v227 = vmax.f32 %v225, %v226
    %v228 = vsel %vm165, %v82, -inf
    %v229 = vmax.f32 %v227, %v228
    %v230 = vsel %vm165, %v86, -inf
    %v231 = vmax.f32 %v229, %v230
    %v232 = vsel %vm165, %v90, -inf
    %v233 = vmax.f32 %v231, %v232
    %238 = vrot.lane.b32.xlu0 %v182, 120
    %v239 = vpop.permute.xlu0 %238
    %240 = vrot.lane.b32.xlu0 %v199, 120
    %v241 = vpop.permute.xlu0 %240
    %242 = vrot.lane.b32.xlu0 %v216, 120
    %v243 = vpop.permute.xlu0 %242
    %244 = vrot.lane.b32.xlu0 %v233, 120
    %v245 = vpop.permute.xlu0 %244
    %v250 = vadd.f32 %v161, %v239
    %v251 = vadd.f32 %v162, %v241
    %v252 = vadd.f32 %v163, %v243
    %v253 = vadd.f32 %v164, %v245
    %v254 = vmax.f32 %v250, 0.0
    %v255 = vmax.f32 %v251, 0.0
    %v256 = vmax.f32 %v252, 0.0
    %v257 = vmax.f32 %v253, 0.0
    %v258 = vld [vmem:[%s1] sm:$0xff]
    %v259 = vld [vmem:[%s1 + $0x8] sm:$0xff]
    %v260 = vld [vmem:[%s1 + $0x10] sm:$0xff]
    %v261 = vld [vmem:[%s1 + $0x18] sm:$0xff]
    %v262 = vld [vmem:[%s2] sm:$0xf]
    %v263 = vld [vmem:[%s2 + $0x4] sm:$0xf]
    %v264 = vld [vmem:[%s2 + $0x8] sm:$0xf]
    %v265 = vld [vmem:[%s2 + $0xc] sm:$0xf]
    %v266 = vld [vmem:[%s2 + $0x10] sm:$0xf]
    %v267 = vld [vmem:[%s2 + $0x14] sm:$0xf]
    %v268 = vld [vmem:[%s2 + $0x18] sm:$0xf]
    %v269 = vld [vmem:[%s2 + $0x1c] sm:$0xf]
    %v270 = vld [vmem:[%s2 + $0x20] sm:$0xf]
    %v271 = vld [vmem:[%s2 + $0x24] sm:$0xf]
    %v272 = vld [vmem:[%s2 + $0x28] sm:$0xf]
    %v273 = vld [vmem:[%s2 + $0x2c] sm:$0xf]
    %v274 = vld [vmem:[%s2 + $0x30] sm:$0xf]
    %v275 = vld [vmem:[%s2 + $0x34] sm:$0xf]
    %v276 = vld [vmem:[%s2 + $0x38] sm:$0xf]
    %v277 = vld [vmem:[%s2 + $0x3c] sm:$0xf]
    %v278 = vld [vmem:[%s2 + $0x40] sm:$0xf]
    %v279 = vld [vmem:[%s2 + $0x44] sm:$0xf]
    %v280 = vld [vmem:[%s2 + $0x48] sm:$0xf]
    %v281 = vld [vmem:[%s2 + $0x4c] sm:$0xf]
    %v282 = vld [vmem:[%s2 + $0x50] sm:$0xf]
    %v283 = vld [vmem:[%s2 + $0x54] sm:$0xf]
    %v284 = vld [vmem:[%s2 + $0x58] sm:$0xf]
    %v285 = vld [vmem:[%s2 + $0x5c] sm:$0xf]
    %v286 = vld [vmem:[%s2 + $0x60] sm:$0xf]
    %v291 = vunpack.c.l.b16 %v258
    %v292 = vunpack.c.h.b16 %v258
    %v293 = vunpack.c.l.b16 %v259
    %v294 = vunpack.c.h.b16 %v259
    %v295 = vunpack.c.l.b16 %v260
    %v296 = vunpack.c.h.b16 %v260
    %v297 = vunpack.c.l.b16 %v261
    %v298 = vunpack.c.h.b16 %v261
    %v299 = vpack.c.b16 %v293, %v291
    %v300 = vpack.c.b16 %v294, %v292
    %v301 = vpack.c.b16 %v297, %v295
    %v302 = vpack.c.b16 %v298, %v296
    %v330 = vunpack.c.l.b16 %v262
    %v331 = vunpack.c.l.b16 %v263
    %v332 = vunpack.c.l.b16 %v264
    %v333 = vunpack.c.l.b16 %v265
    %v334 = vunpack.c.l.b16 %v266
    %v335 = vunpack.c.l.b16 %v267
    %v336 = vunpack.c.l.b16 %v268
    %v337 = vunpack.c.l.b16 %v269
    %v338 = vunpack.c.l.b16 %v270
    %v339 = vunpack.c.l.b16 %v271
    %v340 = vunpack.c.l.b16 %v272
    %v341 = vunpack.c.l.b16 %v273
    %v342 = vunpack.c.l.b16 %v274
    %v343 = vunpack.c.l.b16 %v275
    %v344 = vunpack.c.l.b16 %v276
    %v345 = vunpack.c.l.b16 %v277
    %v346 = vunpack.c.l.b16 %v278
    %v347 = vunpack.c.l.b16 %v279
    %v348 = vunpack.c.l.b16 %v280
    %v349 = vunpack.c.l.b16 %v281
    %v350 = vunpack.c.l.b16 %v282
    %v351 = vunpack.c.l.b16 %v283
    %v352 = vunpack.c.l.b16 %v284
    %v353 = vunpack.c.l.b16 %v285
    %v354 = vunpack.c.l.b16 %v286
    %v355 = vpack.c.b16 %v331, %v330
    %v356 = vpack.c.b16 %v333, %v332
    %v357 = vpack.c.b16 %v335, %v334
    %v358 = vpack.c.b16 %v337, %v336
    %v359 = vpack.c.b16 %v339, %v338
    %v360 = vpack.c.b16 %v341, %v340
    %v361 = vpack.c.b16 %v343, %v342
    %v362 = vpack.c.b16 %v345, %v344
    %v363 = vpack.c.b16 %v347, %v346
    %v364 = vpack.c.b16 %v349, %v348
    %v365 = vpack.c.b16 %v351, %v350
    %v366 = vpack.c.b16 %v353, %v352
    %v367 = vpack.c.b16 %v354, %v354
    %vm380 = vcmask 588800
    %v382 = vsel %vm380, %v300, 0
    %v385 = vsel %vm380, %v302, 0
    %vm387 = vcmask 1043456
    %v389 = vsel %vm387, %v367, 0
    %391 = vmatprep.subr.bf16.mxu0 0
    %392 = vmatpush1.bf16.msra.mxu0 %v362
    %393 = vmatprep.subr.bf16.mxu0 0
    %394 = vmatpush1.bf16.msra.mxu0 %v361
    %395 = vmatprep.subr.bf16.mxu0 0
    %396 = vmatpush1.bf16.msra.mxu0 %v360
    %397 = vmatprep.subr.bf16.mxu0 0
    %398 = vmatpush1.bf16.msra.mxu0 %v359
    %399 = vmatprep.subr.bf16.mxu0 0
    %400 = vmatpush1.bf16.msra.mxu0 %v358
    %401 = vmatprep.subr.bf16.mxu0 0
    %402 = vmatpush1.bf16.msra.mxu0 %v357
    %403 = vmatprep.subr.bf16.mxu0 0
    %404 = vmatpush1.bf16.msra.mxu0 %v356
    %405 = vmatprep.subr.bf16.mxu0 0
    %406 = vmatpush1.bf16.msra.mxu0 %v355
    %407 = vmatprep.subr.bf16.mxu0 0
    %408 = vmatpush2.bf16.msra.mxu0 0
    %409 = vmatprep.subr.bf16.mxu0 0
    %410 = vmatpush2.bf16.msra.mxu0 0
    %411 = vmatprep.subr.bf16.mxu0 0
    %412 = vmatpush2.bf16.msra.mxu0 0
    %413 = vmatprep.subr.bf16.mxu0 0
    %414 = vmatpush2.bf16.msra.mxu0 %v389
    %415 = vmatprep.subr.bf16.mxu0 0
    %416 = vmatpush2.bf16.msra.mxu0 %v366
    %417 = vmatprep.subr.bf16.mxu0 0
    %418 = vmatpush2.bf16.msra.mxu0 %v365
    %419 = vmatprep.subr.bf16.mxu0 0
    %420 = vmatpush2.bf16.msra.mxu0 %v364
    %421 = vmatprep.subr.bf16.mxu0 0
    %422 = vmatpush2.bf16.msra.mxu0 %v363
    %423 = vmatprep.mubr.bf16.mxu0 %v382
    %424 = vmatmul.mubr.bf16.gmra.mxu0 %v299
    %v425 = vpop.f32.mrf.mxu0
    %v426 = vadd.f32 0.0, %v425
    %v427 = vpop.f32.mrf.mxu0
    %v428 = vpop.f32.mrf.mxu0
    %v429 = vadd.f32 0.0, %v428
    %v430 = vpop.f32.mrf.mxu0
    %431 = vmatprep.mubr.bf16.mxu0 %v385
    %432 = vmatmul.mubr.bf16.gmra.mxu0 %v301
    %v433 = vpop.f32.mrf.mxu0
    %v434 = vadd.f32 0.0, %v433
    %v435 = vpop.f32.mrf.mxu0
    %v436 = vpop.f32.mrf.mxu0
    %v437 = vadd.f32 0.0, %v436
    %v438 = vpop.f32.mrf.mxu0
    %439 = vdwg.mxu0
    %v440 = vld [vmem:[%s3] sm:$0x1]
    %v441 = vld [vmem:[%s4] sm:$0x1]
    %v442 = vsel %vm91, %v426, 0.0
    %v443 = vsel %vm91, %v429, 0.0
    %v444 = vadd.f32 %v442, %v443
    %v445 = vsel %vm91, %v434, 0.0
    %v446 = vadd.f32 %v444, %v445
    %v447 = vsel %vm91, %v437, 0.0
    %v448 = vadd.f32 %v446, %v447
    %v449 = vrot.slane %v448, 4
    %v450 = vadd.f32 %v448, %v449
    %v451 = vrot.slane %v450, 2
    %v452 = vadd.f32 %v450, %v451
    %v453 = vrot.slane %v452, 1
    %v454 = vadd.f32 %v452, %v453
    %v455 = vrcp.pop 32.0
    %v456 = vmul.f32 %v454, %v455
    %v457 = vsub.f32 %v426, %v456
    %v458 = vsub.f32 %v429, %v456
    %v459 = vsub.f32 %v434, %v456
    %v460 = vsub.f32 %v437, %v456
    %v461 = vmul.f32 %v457, %v457
    %v462 = vmul.f32 %v458, %v458
    %v463 = vmul.f32 %v459, %v459
    %v464 = vmul.f32 %v460, %v460
    %v465 = vsel %vm91, %v461, 0.0
    %v466 = vsel %vm91, %v462, 0.0
    %v467 = vadd.f32 %v465, %v466
    %v468 = vsel %vm91, %v463, 0.0
    %v469 = vadd.f32 %v467, %v468
    %v470 = vsel %vm91, %v464, 0.0
    %v471 = vadd.f32 %v469, %v470
    %v472 = vrot.slane %v471, 4
    %v473 = vadd.f32 %v471, %v472
    %v474 = vrot.slane %v473, 2
    %v475 = vadd.f32 %v473, %v474
    %v476 = vrot.slane %v475, 1
    %v477 = vadd.f32 %v475, %v476
    %v478 = vmul.f32 %v477, %v455
    %v479 = vadd.f32 %v478, 1e-05
    %v480 = vrsqrt.pop %v479
    %v481 = vmul.f32 %v440, %v480
    %v482 = vmul.f32 %v456, %v481
    %v483 = vsub.f32 %v441, %v482
    %v485 = vlaneseq
    %v486 = vshrl.u32 %v485, 7
    %v487 = vsub.s32 0, %v486
    %v488 = vrot.slane %v481, %v487
    %v490 = vmul.f32 %v426, %v488
    %v491 = vmul.f32 %v429, %v488
    %v492 = vmul.f32 %v434, %v488
    %v493 = vmul.f32 %v437, %v488
    %v495 = vlaneseq
    %v496 = vshrl.u32 %v495, 7
    %v497 = vsub.s32 0, %v496
    %v498 = vrot.slane %v483, %v497
    %v500 = vadd.f32 %v490, %v498
    %v501 = vadd.f32 %v491, %v498
    %v502 = vadd.f32 %v492, %v498
    %v503 = vadd.f32 %v493, %v498
    %v504 = vld [vmem:[%s5] sm:$0xff]
    %v505 = vld [vmem:[%s5 + $0x8] sm:$0xff]
    %v506 = vld [vmem:[%s5 + $0x10] sm:$0xff]
    %v507 = vld [vmem:[%s5 + $0x18] sm:$0xff]
    %v508 = vadd.f32 %v500, %v504
    %v509 = vadd.f32 %v501, %v505
    %v510 = vadd.f32 %v502, %v506
    %v511 = vadd.f32 %v503, %v507
    %v512 = vmax.f32 %v508, 0.0
    %v513 = vmax.f32 %v509, 0.0
    %v514 = vmax.f32 %v510, 0.0
    %v515 = vmax.f32 %v511, 0.0
    %v516 = vld [vmem:[%s6] sm:$0xf]
    %v517 = vld [vmem:[%s6 + $0x4] sm:$0xf]
    %v518 = vld [vmem:[%s6 + $0x8] sm:$0xf]
    %v519 = vld [vmem:[%s6 + $0xc] sm:$0xf]
    %v520 = vld [vmem:[%s7] sm:$0xf]
    %v521 = vld [vmem:[%s7 + $0x4] sm:$0xf]
    %v522 = vld [vmem:[%s7 + $0x8] sm:$0xf]
    %v523 = vld [vmem:[%s7 + $0xc] sm:$0xf]
    %v524 = vld [vmem:[%s7 + $0x10] sm:$0xf]
    %v525 = vld [vmem:[%s7 + $0x14] sm:$0xf]
    %v526 = vld [vmem:[%s7 + $0x18] sm:$0xf]
    %v527 = vld [vmem:[%s7 + $0x1c] sm:$0xf]
    %v528 = vld [vmem:[%s7 + $0x20] sm:$0xf]
    %v533 = vunpack.c.l.b16 %v516
    %v534 = vunpack.c.l.b16 %v517
    %v535 = vunpack.c.l.b16 %v518
    %v536 = vunpack.c.l.b16 %v519
    %v537 = vpack.c.b16 %v534, %v533
    %v538 = vpack.c.b16 %v536, %v535
    %v548 = vunpack.c.l.b16 %v520
    %v549 = vunpack.c.l.b16 %v521
    %v550 = vunpack.c.l.b16 %v522
    %v551 = vunpack.c.l.b16 %v523
    %v552 = vunpack.c.l.b16 %v524
    %v553 = vunpack.c.l.b16 %v525
    %v554 = vunpack.c.l.b16 %v526
    %v555 = vunpack.c.l.b16 %v527
    %v556 = vunpack.c.l.b16 %v528
    %v557 = vpack.c.b16 %v549, %v548
    %v558 = vpack.c.b16 %v551, %v550
    %v559 = vpack.c.b16 %v553, %v552
    %v560 = vpack.c.b16 %v555, %v554
    %v561 = vpack.c.b16 %v556, %v556
    %v567 = vsel %vm380, %v537, 0
    %v570 = vsel %vm380, %v538, 0
    %v573 = vsel %vm387, %v561, 0
    %575 = vmatprep.subr.bf16.mxu0 0
    %576 = vmatpush1.bf16.msra.mxu0 0
    %577 = vmatprep.subr.bf16.mxu0 0
    %578 = vmatpush1.bf16.msra.mxu0 0
    %579 = vmatprep.subr.bf16.mxu0 0
    %580 = vmatpush1.bf16.msra.mxu0 0
    %581 = vmatprep.subr.bf16.mxu0 0
    %582 = vmatpush1.bf16.msra.mxu0 %v573
    %583 = vmatprep.subr.bf16.mxu0 0
    %584 = vmatpush1.bf16.msra.mxu0 %v560
    %585 = vmatprep.subr.bf16.mxu0 0
    %586 = vmatpush1.bf16.msra.mxu0 %v559
    %587 = vmatprep.subr.bf16.mxu0 0
    %588 = vmatpush1.bf16.msra.mxu0 %v558
    %589 = vmatprep.subr.bf16.mxu0 0
    %590 = vmatpush1.bf16.msra.mxu0 %v557
    %591 = vmatprep.subr.bf16.mxu0 0
    %592 = vmatpush2.bf16.msra.mxu0 0
    %593 = vmatprep.subr.bf16.mxu0 0
    %594 = vmatpush2.bf16.msra.mxu0 0
    %595 = vmatprep.subr.bf16.mxu0 0
    %596 = vmatpush2.bf16.msra.mxu0 0
    %597 = vmatprep.subr.bf16.mxu0 0
    %598 = vmatpush2.bf16.msra.mxu0 0
    %599 = vmatprep.subr.bf16.mxu0 0
    %600 = vmatpush2.bf16.msra.mxu0 0
    %601 = vmatprep.subr.bf16.mxu0 0
    %602 = vmatpush2.bf16.msra.mxu0 0
    %603 = vmatprep.subr.bf16.mxu0 0
    %604 = vmatpush2.bf16.msra.mxu0 0
    %605 = vmatprep.subr.bf16.mxu0 0
    %606 = vmatpush2.bf16.msra.mxu0 0
    %607 = vmatprep.mubr.bf16.mxu0 0
    %608 = vmatmul.mubr.bf16.gmra.mxu0 %v567
    %v609 = vpop.f32.mrf.mxu0
    %v610 = vadd.f32 0.0, %v609
    %v611 = vpop.f32.mrf.mxu0
    %v612 = vpop.f32.mrf.mxu0
    %v613 = vadd.f32 0.0, %v612
    %v614 = vpop.f32.mrf.mxu0
    %615 = vmatprep.mubr.bf16.mxu0 0
    %616 = vmatmul.mubr.bf16.gmra.mxu0 %v570
    %v617 = vpop.f32.mrf.mxu0
    %v618 = vadd.f32 0.0, %v617
    %v619 = vpop.f32.mrf.mxu0
    %v620 = vpop.f32.mrf.mxu0
    %v621 = vadd.f32 0.0, %v620
    %v622 = vpop.f32.mrf.mxu0
    %623 = vdwg.mxu0
    %v624 = vld [vmem:[%s8] sm:$0x1]
    %v625 = vld [vmem:[%s9] sm:$0x1]
    %v626 = vsel %vm91, %v610, 0.0
    %v627 = vsel %vm91, %v613, 0.0
    %v628 = vadd.f32 %v626, %v627
    %v629 = vsel %vm91, %v618, 0.0
    %v630 = vadd.f32 %v628, %v629
    %v631 = vsel %vm91, %v621, 0.0
    %v632 = vadd.f32 %v630, %v631
    %v633 = vrot.slane %v632, 4
    %v634 = vadd.f32 %v632, %v633
    %v635 = vrot.slane %v634, 2
    %v636 = vadd.f32 %v634, %v635
    %v637 = vrot.slane %v636, 1
    %v638 = vadd.f32 %v636, %v637
    %v639 = vmul.f32 %v638, %v455
    %v640 = vsub.f32 %v610, %v639
    %v641 = vsub.f32 %v613, %v639
    %v642 = vsub.f32 %v618, %v639
    %v643 = vsub.f32 %v621, %v639
    %v644 = vmul.f32 %v640, %v640
    %v645 = vmul.f32 %v641, %v641
    %v646 = vmul.f32 %v642, %v642
    %v647 = vmul.f32 %v643, %v643
    %v648 = vsel %vm91, %v644, 0.0
    %v649 = vsel %vm91, %v645, 0.0
    %v650 = vadd.f32 %v648, %v649
    %v651 = vsel %vm91, %v646, 0.0
    %v652 = vadd.f32 %v650, %v651
    %v653 = vsel %vm91, %v647, 0.0
    %v654 = vadd.f32 %v652, %v653
    %v655 = vrot.slane %v654, 4
    %v656 = vadd.f32 %v654, %v655
    %v657 = vrot.slane %v656, 2
    %v658 = vadd.f32 %v656, %v657
    %v659 = vrot.slane %v658, 1
    %v660 = vadd.f32 %v658, %v659
    %v661 = vmul.f32 %v660, %v455
    %v662 = vadd.f32 %v661, 1e-05
    %v663 = vrsqrt.pop %v662
    %v664 = vmul.f32 %v624, %v663
    %v665 = vmul.f32 %v639, %v664
    %v666 = vsub.f32 %v625, %v665
    %v668 = vlaneseq
    %v669 = vshrl.u32 %v668, 7
    %v670 = vsub.s32 0, %v669
    %v671 = vrot.slane %v664, %v670
    %v673 = vmul.f32 %v610, %v671
    %v674 = vmul.f32 %v613, %v671
    %v675 = vmul.f32 %v618, %v671
    %v676 = vmul.f32 %v621, %v671
    %v678 = vlaneseq
    %v679 = vshrl.u32 %v678, 7
    %v680 = vsub.s32 0, %v679
    %v681 = vrot.slane %v666, %v680
    %v683 = vadd.f32 %v673, %v681
    %v684 = vadd.f32 %v674, %v681
    %v685 = vadd.f32 %v675, %v681
    %v686 = vadd.f32 %v676, %v681
    %v687 = vld [vmem:[%s10] sm:$0xff]
    %v688 = vld [vmem:[%s10 + $0x8] sm:$0xff]
    %v689 = vld [vmem:[%s10 + $0x10] sm:$0xff]
    %v690 = vld [vmem:[%s10 + $0x18] sm:$0xff]
    %v691 = vadd.f32 %v683, %v687
    %v692 = vadd.f32 %v684, %v688
    %v693 = vadd.f32 %v685, %v689
    %v694 = vadd.f32 %v686, %v690
    %v695 = vmax.f32 %v691, 0.0
    %v696 = vmax.f32 %v692, 0.0
    %v697 = vmax.f32 %v693, 0.0
    %v698 = vmax.f32 %v694, 0.0
    %v699 = vld [vmem:[%s11] sm:$0xf]
    %v700 = vld [vmem:[%s11 + $0x4] sm:$0xf]
    %v701 = vld [vmem:[%s11 + $0x8] sm:$0xf]
    %v702 = vld [vmem:[%s11 + $0xc] sm:$0xf]
    %v703 = vld [vmem:[%s12] sm:$0xf]
    %v708 = vunpack.c.l.b16 %v699
    %v709 = vunpack.c.l.b16 %v700
    %v710 = vunpack.c.l.b16 %v701
    %v711 = vunpack.c.l.b16 %v702
    %v712 = vpack.c.b16 %v709, %v708
    %v713 = vpack.c.b16 %v711, %v710
    %v715 = vsel %vm91, %v712, 0
    %v718 = vsel %vm91, %v713, 0
    %v721 = vsel %vm387, %v703, 0
    %723 = vmatprep.subr.bf16.mxu0 0
    %724 = vmatpush1.bf16.msra.mxu0 0
    %725 = vmatprep.subr.bf16.mxu0 0
    %726 = vmatpush1.bf16.msra.mxu0 0
    %727 = vmatprep.subr.bf16.mxu0 0
    %728 = vmatpush1.bf16.msra.mxu0 0
    %729 = vmatprep.subr.bf16.mxu0 0
    %730 = vmatpush1.bf16.msra.mxu0 0
    %731 = vmatprep.subr.bf16.mxu0 0
    %732 = vmatpush1.bf16.msra.mxu0 0
    %733 = vmatprep.subr.bf16.mxu0 0
    %734 = vmatpush1.bf16.msra.mxu0 0
    %735 = vmatprep.subr.bf16.mxu0 0
    %736 = vmatpush1.bf16.msra.mxu0 0
    %737 = vmatprep.subr.bf16.mxu0 0
    %738 = vmatpush1.bf16.msra.mxu0 %v721
    %739 = vmatprep.subr.bf16.mxu0 0
    %740 = vmatpush2.bf16.msra.mxu0 0
    %741 = vmatprep.subr.bf16.mxu0 0
    %742 = vmatpush2.bf16.msra.mxu0 0
    %743 = vmatprep.subr.bf16.mxu0 0
    %744 = vmatpush2.bf16.msra.mxu0 0
    %745 = vmatprep.subr.bf16.mxu0 0
    %746 = vmatpush2.bf16.msra.mxu0 0
    %747 = vmatprep.subr.bf16.mxu0 0
    %748 = vmatpush2.bf16.msra.mxu0 0
    %749 = vmatprep.subr.bf16.mxu0 0
    %750 = vmatpush2.bf16.msra.mxu0 0
    %751 = vmatprep.subr.bf16.mxu0 0
    %752 = vmatpush2.bf16.msra.mxu0 0
    %753 = vmatprep.subr.bf16.mxu0 0
    %754 = vmatpush2.bf16.msra.mxu0 0
    %755 = vmatprep.mubr.bf16.mxu0 0
    %756 = vmatmul.mubr.bf16.gmra.mxu0 %v715
    %v757 = vpop.f32.mrf.mxu0
    %v758 = vadd.f32 0.0, %v757
    %v759 = vpop.f32.mrf.mxu0
    %v760 = vpop.f32.mrf.mxu0
    %v761 = vadd.f32 0.0, %v760
    %v762 = vpop.f32.mrf.mxu0
    %763 = vmatprep.mubr.bf16.mxu0 0
    %764 = vmatmul.mubr.bf16.gmra.mxu0 %v718
    %v765 = vpop.f32.mrf.mxu0
    %v766 = vadd.f32 0.0, %v765
    %v767 = vpop.f32.mrf.mxu0
    %v768 = vpop.f32.mrf.mxu0
    %v769 = vadd.f32 0.0, %v768
    %v770 = vpop.f32.mrf.mxu0
    %771 = vdwg.mxu0
    %v772 = vld [vmem:[%s13] sm:$0x1]
    %v773 = vld [vmem:[%s14] sm:$0x1]
    %v774 = vsel %vm91, %v758, 0.0
    %v775 = vsel %vm91, %v761, 0.0
    %v776 = vadd.f32 %v774, %v775
    %v777 = vsel %vm91, %v766, 0.0
    %v778 = vadd.f32 %v776, %v777
    %v779 = vsel %vm91, %v769, 0.0
    %v780 = vadd.f32 %v778, %v779
    %v781 = vrot.slane %v780, 4
    %v782 = vadd.f32 %v780, %v781
    %v783 = vrot.slane %v782, 2
    %v784 = vadd.f32 %v782, %v783
    %v785 = vrot.slane %v784, 1
    %v786 = vadd.f32 %v784, %v785
    %v787 = vmul.f32 %v786, %v455
    %v788 = vsub.f32 %v758, %v787
    %v789 = vsub.f32 %v761, %v787
    %v790 = vsub.f32 %v766, %v787
    %v791 = vsub.f32 %v769, %v787
    %v792 = vmul.f32 %v788, %v788
    %v793 = vmul.f32 %v789, %v789
    %v794 = vmul.f32 %v790, %v790
    %v795 = vmul.f32 %v791, %v791
    %v796 = vsel %vm91, %v792, 0.0
    %v797 = vsel %vm91, %v793, 0.0
    %v798 = vadd.f32 %v796, %v797
    %v799 = vsel %vm91, %v794, 0.0
    %v800 = vadd.f32 %v798, %v799
    %v801 = vsel %vm91, %v795, 0.0
    %v802 = vadd.f32 %v800, %v801
    %v803 = vrot.slane %v802, 4
    %v804 = vadd.f32 %v802, %v803
    %v805 = vrot.slane %v804, 2
    %v806 = vadd.f32 %v804, %v805
    %v807 = vrot.slane %v806, 1
    %v808 = vadd.f32 %v806, %v807
    %v809 = vmul.f32 %v808, %v455
    %v810 = vadd.f32 %v809, 1e-05
    %v811 = vrsqrt.pop %v810
    %v812 = vmul.f32 %v772, %v811
    %v813 = vmul.f32 %v787, %v812
    %v814 = vsub.f32 %v773, %v813
    %v816 = vlaneseq
    %v817 = vshrl.u32 %v816, 7
    %v818 = vsub.s32 0, %v817
    %v819 = vrot.slane %v812, %v818
    %v821 = vmul.f32 %v758, %v819
    %v822 = vmul.f32 %v761, %v819
    %v823 = vmul.f32 %v766, %v819
    %v824 = vmul.f32 %v769, %v819
    %v826 = vlaneseq
    %v827 = vshrl.u32 %v826, 7
    %v828 = vsub.s32 0, %v827
    %v829 = vrot.slane %v814, %v828
    %v831 = vadd.f32 %v821, %v829
    %v832 = vadd.f32 %v822, %v829
    %v833 = vadd.f32 %v823, %v829
    %v834 = vadd.f32 %v824, %v829
    %v835 = vld [vmem:[%s15] sm:$0xff]
    %v836 = vld [vmem:[%s15 + $0x8] sm:$0xff]
    %v837 = vld [vmem:[%s15 + $0x10] sm:$0xff]
    %v838 = vld [vmem:[%s15 + $0x18] sm:$0xff]
    %v839 = vadd.f32 %v831, %v835
    %v840 = vadd.f32 %v832, %v836
    %v841 = vadd.f32 %v833, %v837
    %v842 = vadd.f32 %v834, %v838
    %v843 = vmax.f32 %v839, 0.0
    %v844 = vmax.f32 %v840, 0.0
    %v845 = vmax.f32 %v841, 0.0
    %v846 = vmax.f32 %v842, 0.0
    %851 = vrot.lane.b32.xlu0 %v512, 8
    %v852 = vpop.permute.xlu0 %851
    %853 = vrot.lane.b32.xlu0 %v513, 8
    %v854 = vpop.permute.xlu0 %853
    %855 = vrot.lane.b32.xlu0 %v514, 8
    %v856 = vpop.permute.xlu0 %855
    %857 = vrot.lane.b32.xlu0 %v515, 8
    %v858 = vpop.permute.xlu0 %857
    %867 = vrot.lane.b32.xlu0 %v695, 16
    %v868 = vpop.permute.xlu0 %867
    %869 = vrot.lane.b32.xlu0 %v696, 16
    %v870 = vpop.permute.xlu0 %869
    %871 = vrot.lane.b32.xlu0 %v697, 16
    %v872 = vpop.permute.xlu0 %871
    %873 = vrot.lane.b32.xlu0 %v698, 16
    %v874 = vpop.permute.xlu0 %873
    %883 = vrot.lane.b32.xlu0 %v843, 24
    %v884 = vpop.permute.xlu0 %883
    %885 = vrot.lane.b32.xlu0 %v844, 24
    %v886 = vpop.permute.xlu0 %885
    %887 = vrot.lane.b32.xlu0 %v845, 24
    %v888 = vpop.permute.xlu0 %887
    %889 = vrot.lane.b32.xlu0 %v846, 24
    %v890 = vpop.permute.xlu0 %889
    %v895 = vsel %vm91, %v254, %v852
    %v896 = vsel %vm91, %v255, %v854
    %v897 = vsel %vm91, %v256, %v856
    %v898 = vsel %vm91, %v257, %v858
    %vm899 = vcmask 130048
    %v900 = vsel %vm899, %v895, %v868
    %v901 = vsel %vm899, %v896, %v870
    %v902 = vsel %vm899, %v897, %v872
    %v903 = vsel %vm899, %v898, %v874
    %vm904 = vcmask 195584
    %v905 = vsel %vm904, %v900, %v884
    %v906 = vsel %vm904, %v901, %v886
    %v907 = vsel %vm904, %v902, %v888
    %v908 = vsel %vm904, %v903, %v890
    %vm909 = vcmask 261120
    %910 = vst.msk [vmem:[#allocation2] sm:$0xff] %vm909, %v905
    %911 = vst.msk [vmem:[#allocation2 + $0x8] sm:$0xff] %vm909, %v906
    %912 = vst.msk [vmem:[#allocation2 + $0x10] sm:$0xff] %vm909, %v907
    %913 = vst.msk [vmem:[#allocation2 + $0x18] sm:$0xff] %vm909, %v908
    // Predicated region
    $region66: #{inception_res_forward.21} parent=1 // pred_check
      _
    $region67: #{inception_res_forward.21} parent=1 // pred_check_branch
      %915 = sbr.rel (0) target = $region69
    $region68: #{inception_res_forward.21} parent=1 // pred_region
      %s917 = ssub.s32 512, 512
      %918 = vsyncadd [#allocation3], %s917
      %s919 = sshll.u32 [#allocation2], 4
      %s920 = int_to_ptr.vmem [resolvable:$true] %s919
      %925 = dma.vmem_to_hbm [thread:$0]  %s920, 512, %s16, [#allocation3], 128, 128, 8
    $region69: #{inception_res_forward.21} parent=1 // pred_fallthru
      _
    // Predicated region
    $region70: #{inception_res_forward.21} parent=1 // pred_check
      _
    $region71: #{inception_res_forward.21} parent=1 // pred_check_branch
      %927 = sbr.rel (0) target = $region73
    $region72: #{inception_res_forward.21} parent=1 // pred_region
      %928 = dma.done [#allocation3], 512
    $region73: #{inception_res_forward.21} parent=1 // pred_fallthru
      _
    %929 = vsyncpa [#allocation3], 1

</llo_original>
